<compile_context>
chip_gen: v7x
topology: tpu7x:2x2x1
jax: 0.10.0
libtpu: 0.0.40
codegen_flags: <defaults>
</compile_context>

<pallas_src>
import functools
import math

import jax
import jax.numpy as jnp
from jax.experimental import pallas as pl
from jax.experimental.pallas import tpu as pltpu


# ----------------------------- generation-aware budgets -----------------------------

def _tpu_defaults():
    """Derive VMEM budget / tile targets from the hardware (conservative fallback)."""
    vmem_bytes = None
    try:
        info = pltpu.get_tpu_info()
        vmem_bytes = getattr(info, "vmem_capacity_bytes", None)
    except Exception:
        vmem_bytes = None
    if not vmem_bytes:
        vmem_bytes = 64 * 1024 * 1024            # v7x per-TensorCore VMEM (most restrictive)
    vmem_limit = int(min(96 * 1024 * 1024, (vmem_bytes * 3) // 4))
    big_vmem = vmem_bytes >= 100 * 1024 * 1024   # v5e / v6e (128 MiB VMEM)
    tm_target = 512 if big_vmem else 256
    tn_target = 1024 if big_vmem else 512
    return vmem_limit, tm_target, tn_target


VMEM_LIMIT_BYTES, TM_TARGET, TN_TARGET = _tpu_defaults()
TK_TARGET = TN_TARGET      # contraction tiles (wo matmul)
TH_TARGET = TN_TARGET      # FFN hidden tiles
TQKV_TARGET = 256          # flash-attention q/kv rows per tile (fills 2x256 MXU on v6e/v7x)


def _pick_tile(n, target, align):
    """Largest multiple of `align` <= target that divides n (or n itself if n <= target)."""
    if n <= target:
        return n
    t = (target // align) * align
    while t >= align:
        if n % t == 0:
            return t
        t -= align
    return n


def _cparams(dims):
    return pltpu.CompilerParams(dimension_semantics=dims,
                                vmem_limit_bytes=VMEM_LIMIT_BYTES)


# ----------------------------- Pallas kernels -----------------------------

def _norm_linear_kernel(x_ref, g_ref, wt_ref, o_ref, *, eps):
    """out = RMSNorm(x) @ W^T on a (M-tiles, N-tiles) grid.  The RMSNorm is cheap relative to
    the matmul and is recomputed per (i, j) step so BOTH axes are megacore-parallel."""
    x = x_ref[...]
    ms = jnp.mean(x * x, axis=-1, keepdims=True)
    h = (x * jax.lax.rsqrt(ms + eps) * g_ref[...]).astype(jnp.bfloat16)
    o_ref[...] = jnp.dot(h, wt_ref[...], preferred_element_type=jnp.float32)


def _linear_residual_kernel(a_ref, wt_ref, r_ref, o_ref):
    """out = residual + a @ W^T on a (M, N, K) grid, accumulating into the resident f32 output."""
    k = pl.program_id(2)

    @pl.when(k == 0)
    def _():
        o_ref[...] = r_ref[...]

    o_ref[...] += jnp.dot(a_ref[...].astype(jnp.bfloat16), wt_ref[...],
                          preferred_element_type=jnp.float32)


def _norm_ffn_kernel(x_ref, g_ref, w1t_ref, w3t_ref, w2t_ref, o_ref, h_ref, *, eps):
    """out = x + W2(silu(W1(h)) * W3(h)), h = RMSNorm(x), on a (M-tiles, Hf-tiles) grid.
    The hidden dim is the reduction axis; each step adds one Hf tile into the resident f32
    output block, so (M, Hf) intermediates are never materialized.  h cached once as bf16."""
    j = pl.program_id(1)

    @pl.when(j == 0)
    def _():
        x = x_ref[...]
        ms = jnp.mean(x * x, axis=-1, keepdims=True)
        h_ref[...] = (x * jax.lax.rsqrt(ms + eps) * g_ref[...]).astype(jnp.bfloat16)
        o_ref[...] = x                        # residual

    h = h_ref[...]
    h1 = jnp.dot(h, w1t_ref[...], preferred_element_type=jnp.float32)
    h3 = jnp.dot(h, w3t_ref[...], preferred_element_type=jnp.float32)
    gated = ((h1 * jax.nn.sigmoid(h1)) * h3).astype(jnp.bfloat16)
    o_ref[...] += jnp.dot(gated, w2t_ref[...], preferred_element_type=jnp.float32)


def _qk_prep_kernel(q_ref, k_ref, qg_ref, qb_ref, kg_ref, kb_ref, cos_ref, sin_ref,
                    o_ref, *, ln_eps, n_heads, head_dim):
    """One pass over the rows: per-head qk-LayerNorm + RoPE (+ 1/sqrt(hd) folded into q).
    q/k head dims are pre-permuted to [even|odd] so RoPE is a half-rotation.  The whole
    (tm, 2D) result is assembled in registers and written with a single lane-dense store."""
    hd = head_dim
    hd2 = hd // 2
    sm_scale = 1.0 / math.sqrt(hd)
    c = cos_ref[...]
    s = sin_ref[...]
    q = q_ref[...]
    k = k_ref[...]

    def layernorm(x, g, b):
        mu = jnp.mean(x, axis=-1, keepdims=True)
        var = jnp.mean((x - mu) * (x - mu), axis=-1, keepdims=True)
        return (x - mu) * jax.lax.rsqrt(var + ln_eps) * g + b

    def rope(x):                              # x is [even | odd] permuted
        xe, xo = x[:, :hd2], x[:, hd2:]
        return jnp.concatenate([xe * c - xo * s, xe * s + xo * c], axis=-1)

    parts = []
    for h in range(n_heads):
        sl = slice(h * hd, (h + 1) * hd)
        parts.append(rope(layernorm(q[:, sl], qg_ref[...], qb_ref[...])) * sm_scale)
    for h in range(n_heads):
        sl = slice(h * hd, (h + 1) * hd)
        parts.append(rope(layernorm(k[:, sl], kg_ref[...], kb_ref[...])))
    o_ref[...] = jnp.concatenate(parts, axis=-1).astype(o_ref.dtype)


def _flash_attn_kernel(iq_ref, ik_ref, q_ref, k_ref, v_ref, o_ref,
                       m_ref, l_ref, acc_ref, *, n_heads, head_dim, tq, tkv):
    """Flash attention on a (batch, lower-triangular (iq, ik)) grid.  q/k arrive already
    qk-LayerNormed + rotated + scaled (bf16); the inner loop is one score matmul + online
    softmax + one PV matmul per head.  m/l scratch is (n_heads, tq, 128) full-width tiles; the
    output is a single lane-dense (tq, D) store at the last kv tile of each q tile."""
    t = pl.program_id(1)
    iq = iq_ref[t]
    ik = ik_ref[t]
    hd = head_dim

    @pl.when(ik == 0)
    def _():
        m_ref[...] = jnp.full(m_ref.shape, -jnp.inf, jnp.float32)
        l_ref[...] = jnp.zeros(l_ref.shape, jnp.float32)
        acc_ref[...] = jnp.zeros(acc_ref.shape, jnp.float32)

    q = q_ref[...]                              # (tq,  D) bf16, LN + RoPE + 1/sqrt(hd)
    k = k_ref[...]                              # (tkv, D) bf16, LN + RoPE
    v = v_ref[...].astype(jnp.bfloat16)         # (tkv, D)

    # in-kernel causal mask (no (S,S) HBM mask); fully-masked tiles were skipped at grid level.
    rows = iq * tq + jax.lax.broadcasted_iota(jnp.int32, (tq, tkv), 0)
    cols = ik * tkv + jax.lax.broadcasted_iota(jnp.int32, (tq, tkv), 1)
    masked = cols > rows

    # TODO(synk): at large n_heads switch to lax.fori_loop + packed head tiles; static unroll is
    #             fine at n_heads <= ~16 and avoids dynamic sub-128 lane slicing.
    for h in range(n_heads):
        sl = slice(h * hd, (h + 1) * hd)
        scores = jax.lax.dot_general(q[:, sl], k[:, sl], (((1,), (1,)), ((), ())),
                                     preferred_element_type=jnp.float32)   # (tq, tkv)
        scores = jnp.where(masked, -1e30, scores)   # finite: flash-safe, softmax-exact

        m_prev = m_ref[h][:, :1]
        l_prev = l_ref[h][:, :1]
        m_new = jnp.maximum(m_prev, jnp.max(scores, axis=-1, keepdims=True))
        alpha = jnp.exp(m_prev - m_new)
        p = jnp.exp(scores - m_new)
        l_new = alpha * l_prev + jnp.sum(p, axis=-1, keepdims=True)

        acc_ref[:, sl] = alpha * acc_ref[:, sl] + jnp.dot(
            p.astype(jnp.bfloat16), v[:, sl], preferred_element_type=jnp.float32)
        m_ref[h] = jnp.broadcast_to(m_new, (tq, 128))   # full-width lane-dense scratch store
        l_ref[h] = jnp.broadcast_to(l_new, (tq, 128))

    @pl.when(ik == iq)   # last kv tile of this q tile in the lower-triangular ordering
    def _():
        inv_l = jnp.concatenate(
            [pl.reciprocal(l_ref[h][:, :hd], approx=True) for h in range(n_heads)], axis=-1)
        o_ref[...] = acc_ref[...] * inv_l               # single lane-dense (tq, D) store


# ----------------------------- pallas_call wrappers -----------------------------

def pallas_norm_linear(x2d, g, wt, *, eps):
    M, D = x2d.shape
    N = wt.shape[1]
    tm = _pick_tile(M, TM_TARGET, 8)
    tn = _pick_tile(N, TN_TARGET, 128)
    return pl.pallas_call(
        functools.partial(_norm_linear_kernel, eps=eps),
        out_shape=jax.ShapeDtypeStruct((M, N), jnp.float32),
        grid=(M // tm, N // tn),
        in_specs=[pl.BlockSpec((tm, D), lambda i, j: (i, 0)),
                  pl.BlockSpec((1, D), lambda i, j: (0, 0)),
                  pl.BlockSpec((D, tn), lambda i, j: (0, j))],
        out_specs=pl.BlockSpec((tm, tn), lambda i, j: (i, j)),
        compiler_params=_cparams(("parallel", "parallel")),
    )(x2d, g.reshape(1, D), wt)


def pallas_linear_residual(a2d, wt, res2d):
    M, K = a2d.shape
    N = wt.shape[1]
    tm = _pick_tile(M, TM_TARGET, 8)
    tn = _pick_tile(N, TN_TARGET, 128)
    tk = _pick_tile(K, TK_TARGET, 128)
    return pl.pallas_call(
        _linear_residual_kernel,
        out_shape=jax.ShapeDtypeStruct((M, N), jnp.float32),
        grid=(M // tm, N // tn, K // tk),
        in_specs=[pl.BlockSpec((tm, tk), lambda i, j, k: (i, k)),
                  pl.BlockSpec((tk, tn), lambda i, j, k: (k, j)),
                  pl.BlockSpec((tm, tn), lambda i, j, k: (i, j))],
        out_specs=pl.BlockSpec((tm, tn), lambda i, j, k: (i, j)),
        compiler_params=_cparams(("parallel", "parallel", "arbitrary")),
    )(a2d, wt, res2d)


def pallas_norm_ffn_residual(x2d, g, w1t, w3t, w2t, *, eps):
    M, D = x2d.shape
    Hf = w1t.shape[1]
    tm = _pick_tile(M, TM_TARGET, 8)
    th = _pick_tile(Hf, TH_TARGET, 128)
    return pl.pallas_call(
        functools.partial(_norm_ffn_kernel, eps=eps),
        out_shape=jax.ShapeDtypeStruct((M, D), jnp.float32),
        grid=(M // tm, Hf // th),
        in_specs=[pl.BlockSpec((tm, D), lambda i, j: (i, 0)),
                  pl.BlockSpec((1, D), lambda i, j: (0, 0)),
                  pl.BlockSpec((D, th), lambda i, j: (0, j)),
                  pl.BlockSpec((D, th), lambda i, j: (0, j)),
                  pl.BlockSpec((th, D), lambda i, j: (j, 0))],
        out_specs=pl.BlockSpec((tm, D), lambda i, j: (i, 0)),
        scratch_shapes=[pltpu.VMEM((tm, D), jnp.bfloat16)],
        compiler_params=_cparams(("parallel", "arbitrary")),
    )(x2d, g.reshape(1, D), w1t, w3t, w2t)


def pallas_qk_prep(qkv, qg, qb, kg, kb, cos_m, sin_m, *, dim, n_heads, head_dim, ln_eps):
    """Reads the q|k column blocks of the fused (M, 3D) QKV output (no XLA slicing) and writes
    a bf16 (M, 2D) [q_rot | k_rot] array (q already scaled by 1/sqrt(hd))."""
    M = qkv.shape[0]
    D = dim
    hd2 = head_dim // 2
    tm = _pick_tile(M, TM_TARGET, 8)
    return pl.pallas_call(
        functools.partial(_qk_prep_kernel, ln_eps=ln_eps, n_heads=n_heads, head_dim=head_dim),
        out_shape=jax.ShapeDtypeStruct((M, 2 * D), jnp.bfloat16),
        grid=(M // tm,),
        in_specs=[pl.BlockSpec((tm, D), lambda i: (i, 0)),      # q columns of qkv
                  pl.BlockSpec((tm, D), lambda i: (i, 1)),      # k columns of qkv
                  pl.BlockSpec((1, head_dim), lambda i: (0, 0)),
                  pl.BlockSpec((1, head_dim), lambda i: (0, 0)),
                  pl.BlockSpec((1, head_dim), lambda i: (0, 0)),
                  pl.BlockSpec((1, head_dim), lambda i: (0, 0)),
                  pl.BlockSpec((tm, hd2), lambda i: (i, 0)),
                  pl.BlockSpec((tm, hd2), lambda i: (i, 0))],
        out_specs=pl.BlockSpec((tm, 2 * D), lambda i: (i, 0)),
        compiler_params=_cparams(("parallel",)),
    )(qkv, qkv, qg.reshape(1, -1), qb.reshape(1, -1),
      kg.reshape(1, -1), kb.reshape(1, -1), cos_m, sin_m)


def pallas_flash_attention(qk_rot, qkv, *, B, S, dim, n_heads, head_dim):
    """Causal flash attention.  The (iq, ik) pair axis is flattened to the lower triangle and
    scalar-prefetched, so upper-triangular KV tiles are never DMA'd or stepped."""
    assert head_dim % 2 == 0 and head_dim <= 128
    D = dim
    M = B * S
    tq = _pick_tile(S, TQKV_TARGET, 8)
    tkv = tq                                   # triangular grid requires tq == tkv
    nq = S // tq

    iq_list, ik_list = [], []
    for a in range(nq):
        for c in range(a + 1):
            iq_list.append(a)
            ik_list.append(c)
    T = len(iq_list)
    iq_of = jnp.asarray(iq_list, dtype=jnp.int32)
    ik_of = jnp.asarray(ik_list, dtype=jnp.int32)

    def q_map(b, t, iqm, ikm):
        return (b * nq + iqm[t], 0)

    def k_map(b, t, iqm, ikm):
        return (b * nq + ikm[t], 1)

    def v_map(b, t, iqm, ikm):
        return (b * nq + ikm[t], 2)

    def o_map(b, t, iqm, ikm):
        return (b * nq + iqm[t], 0)

    return pl.pallas_call(
        functools.partial(_flash_attn_kernel, n_heads=n_heads, head_dim=head_dim,
                          tq=tq, tkv=tkv),
        out_shape=jax.ShapeDtypeStruct((M, D), jnp.float32),
        grid_spec=pltpu.PrefetchScalarGridSpec(
            num_scalar_prefetch=2,
            grid=(B, T),
            in_specs=[pl.BlockSpec((tq, D), q_map),        # q block of (M, 2D) qk_rot
                      pl.BlockSpec((tkv, D), k_map),       # k block of (M, 2D) qk_rot
                      pl.BlockSpec((tkv, D), v_map)],      # v block of (M, 3D) qkv
            out_specs=pl.BlockSpec((tq, D), o_map),
            scratch_shapes=[pltpu.VMEM((n_heads, tq, 128), jnp.float32),   # running max
                            pltpu.VMEM((n_heads, tq, 128), jnp.float32),   # running denom
                            pltpu.VMEM((tq, D), jnp.float32)]),            # output accumulator
        compiler_params=_cparams(("parallel", "arbitrary")),
    )(iq_of, ik_of, qk_rot, qk_rot, qkv)


# ----------------------------- model glue -----------------------------

def precompute_freqs(head_dim, end, theta=10000.0):
    freqs = 1.0 / (theta ** (jnp.arange(0, head_dim, 2)[: head_dim // 2]
                             .astype(jnp.float32) / head_dim))
    t = jnp.arange(end, dtype=jnp.float32)
    ang = jnp.outer(t, freqs)
    return jnp.cos(ang), jnp.sin(ang)          # each (end, head_dim//2)


def prepare_rope(cfg, B, S):
    """RoPE tables expanded to (B*S, head_dim//2) once, outside the forward pass."""
    hd = cfg['dim'] // cfg['n_heads']
    cos_f, sin_f = precompute_freqs(hd, cfg['max_seq_len'] * 2)
    return jnp.tile(cos_f[:S], (B, 1)), jnp.tile(sin_f[:S], (B, 1))


def init_params(key, cfg):
    D, V, L, H = cfg['dim'], cfg['vocab_size'], cfg['n_layers'], cfg['n_heads']
    hd = D // H
    hidden = 256 * ((int(2 * D / 3) + 255) // 256)

    def nrm(k, shape, scale=0.02):
        return scale * jax.random.normal(k, shape, jnp.float32)

    keys = jax.random.split(key, 2 + L)
    params = {
        'wte': nrm(keys[0], (V, D)),
        'lm_head': nrm(keys[1], (V, D)),
        'ln_f': jnp.ones((D,), jnp.float32),
        'layers': [],
    }
    for li in range(L):
        lk = jax.random.split(keys[2 + li], 13)
        params['layers'].append({
            'wq': nrm(lk[0], (D, D)), 'wk': nrm(lk[1], (D, D)),
            'wv': nrm(lk[2], (D, D)), 'wo': nrm(lk[3], (D, D)),
            'q_ln_g': 1.0 + nrm(lk[4], (hd,), 0.05), 'q_ln_b': nrm(lk[5], (hd,), 0.05),
            'k_ln_g': 1.0 + nrm(lk[6], (hd,), 0.05), 'k_ln_b': nrm(lk[7], (hd,), 0.05),
            'ln_1': 1.0 + nrm(lk[8], (D,), 0.05), 'ln_2': 1.0 + nrm(lk[9], (D,), 0.05),
            'w1': nrm(lk[10], (hidden, D)), 'w3': nrm(lk[11], (hidden, D)),
            'w2': nrm(lk[12], (D, hidden)),
        })
    return params


def _permute_head_rows(w, n_heads, hd, perm):
    # w: (n_heads*hd, in_dim) PyTorch linear weight; permute rows inside each head block
    return w.reshape(n_heads, hd, -1)[:, perm, :].reshape(n_heads * hd, -1)


def prepare_weights(params, cfg):
    """One-time weight prep (outside the forward pass): permute q/k head-dim rows to
    [even|odd], transpose every matmul weight to (in, out), concatenate Q/K/V into a single
    (D, 3D) matrix, cast all matmul weights to bf16, and permute the qk-LayerNorm params."""
    D, H = cfg['dim'], cfg['n_heads']
    hd = D // H
    perm = jnp.concatenate([jnp.arange(0, hd, 2), jnp.arange(1, hd, 2)])
    bf = lambda w: w.astype(jnp.bfloat16)
    out = {'wte': params['wte'],
           'ln_f': params['ln_f'],
           'lm_head_t': bf(params['lm_head'].T),
           'layers': []}
    for lp in params['layers']:
        wq_p = _permute_head_rows(lp['wq'], H, hd, perm)
        wk_p = _permute_head_rows(lp['wk'], H, hd, perm)
        out['layers'].append({
            'ln_1': lp['ln_1'],
            'ln_2': lp['ln_2'],
            'wqkv_t': bf(jnp.concatenate([wq_p.T, wk_p.T, lp['wv'].T], axis=1)),   # (D, 3D)
            'wo_t': bf(lp['wo'].T),
            'q_ln_g': lp['q_ln_g'][perm], 'q_ln_b': lp['q_ln_b'][perm],
            'k_ln_g': lp['k_ln_g'][perm], 'k_ln_b': lp['k_ln_b'][perm],
            'w1_t': bf(lp['w1'].T), 'w3_t': bf(lp['w3'].T), 'w2_t': bf(lp['w2'].T),
        })
    return out


def chameleon_forward(input_ids, w, cos_m, sin_m, cfg):
    B, S = input_ids.shape
    D, H, V = cfg['dim'], cfg['n_heads'], cfg['vocab_size']
    hd = D // H
    eps, qk_eps = cfg['eps'], cfg['qk_norm_eps']
    M = B * S

    # token embedding gather kept in XLA glue
    x = jnp.take(w['wte'], input_ids.reshape(-1), axis=0)          # (M, D)

    for lp in w['layers']:
        # [RMSNorm(ln_1) + fused QKV projection]  -> (M, 3D)
        qkv = pallas_norm_linear(x, lp['ln_1'], lp['wqkv_t'], eps=eps)

        # [qk-LayerNorm + RoPE + 1/sqrt(hd)] one pass, bf16 (M, 2D) output
        qk_rot = pallas_qk_prep(qkv, lp['q_ln_g'], lp['q_ln_b'], lp['k_ln_g'], lp['k_ln_b'],
                                cos_m, sin_m, dim=D, n_heads=H, head_dim=hd, ln_eps=qk_eps)

        # [causal flash attention, triangular grid, lane-dense (M, D) output]
        attn = pallas_flash_attention(qk_rot, qkv, B=B, S=S, dim=D, n_heads=H, head_dim=hd)

        # [wo projection + residual add]
        x = pallas_linear_residual(attn, lp['wo_t'], x)

        # [RMSNorm(ln_2) + SwiGLU FFN (hidden-tiled) + residual add]
        x = pallas_norm_ffn_residual(x, lp['ln_2'], lp['w1_t'], lp['w3_t'], lp['w2_t'],
                                     eps=eps)

    # [RMSNorm(ln_f) + lm_head], vocab axis fully parallel (v7x 2-TC shardable)
    logits = pallas_norm_linear(x, w['ln_f'], w['lm_head_t'], eps=eps)
    return logits.reshape(B, S, V)


# ----------------------------- pure-JAX reference (for verification) -----------------------------

def quantize_matmul_weights(params):
    """Round the matmul weights through bf16 so the reference sees the same deployed weights."""
    q = lambda w: w.astype(jnp.bfloat16).astype(jnp.float32)
    out = {'wte': params['wte'], 'ln_f': params['ln_f'],
           'lm_head': q(params['lm_head']), 'layers': []}
    for lp in params['layers']:
        nlp = dict(lp)
        for name in ('wq', 'wk', 'wv', 'wo', 'w1', 'w2', 'w3'):
            nlp[name] = q(lp[name])
        out['layers'].append(nlp)
    return out


def ref_forward(input_ids, params, cfg):
    B, S = input_ids.shape
    D, H = cfg['dim'], cfg['n_heads']
    hd = D // H
    eps, qk_eps = cfg['eps'], cfg['qk_norm_eps']
    x = params['wte'][input_ids]
    cos_f, sin_f = precompute_freqs(hd, cfg['max_seq_len'] * 2)
    cos, sin = cos_f[:S], sin_f[:S]
    mask = jnp.triu(jnp.ones((S, S), jnp.float32), 1) * jnp.finfo(jnp.float32).min

    def rms(z, w):
        return z * jax.lax.rsqrt(jnp.mean(z * z, -1, keepdims=True) + eps) * w

    def ln(z, g, b):
        mu = jnp.mean(z, -1, keepdims=True)
        var = jnp.mean((z - mu) ** 2, -1, keepdims=True)
        return (z - mu) / jnp.sqrt(var + qk_eps) * g + b

    def rope(z):  # interleaved pairs, matches torch.view_as_complex formulation
        zr = z.reshape(B, S, H, hd // 2, 2)
        a, b = zr[..., 0], zr[..., 1]
        c = cos[None, :, None, :]
        s = sin[None, :, None, :]
        return jnp.stack([a * c - b * s, a * s + b * c], -1).reshape(B, S, H, hd)

    for lp in params['layers']:
        h = rms(x, lp['ln_1'])
        q = (h @ lp['wq'].T).reshape(B, S, H, hd)
        k = (h @ lp['wk'].T).reshape(B, S, H, hd)
        v = (h @ lp['wv'].T).reshape(B, S, H, hd)
        q = ln(q, lp['q_ln_g'], lp['q_ln_b'])
        k = ln(k, lp['k_ln_g'], lp['k_ln_b'])
        q, k = rope(q), rope(k)
        scores = jnp.einsum('bqhd,bkhd->bhqk', q, k) / math.sqrt(hd) + mask
        p = jax.nn.softmax(scores, -1)
        o = jnp.einsum('bhqk,bkhd->bqhd', p, v).reshape(B, S, D)
        x = x + o @ lp['wo'].T
        h2 = rms(x, lp['ln_2'])
        x = x + (jax.nn.silu(h2 @ lp['w1'].T) * (h2 @ lp['w3'].T)) @ lp['w2'].T
    return rms(x, params['ln_f']) @ params['lm_head'].T


# ----------------------------- main -----------------------------

if __name__ == "__main__":
    # dim=256 keeps D a multiple of 128 (column-block BlockSpecs on the fused (M,3D) array)
    # and head_dim=64 matches real Chameleon's head_dim.
    cfg = dict(vocab_size=512, n_layers=2, n_heads=4, dim=256,
               max_seq_len=16, eps=1e-5, qk_norm_eps=1e-5)
    B, S = 2, cfg['max_seq_len']

    key = jax.random.PRNGKey(0)
    pkey, ikey = jax.random.split(key)
    params = init_params(pkey, cfg)
    input_ids = jax.random.randint(ikey, (B, S), 0, cfg['vocab_size'], dtype=jnp.int32)

    prepped = prepare_weights(params, cfg)          # permuted/transposed/bf16 ONCE
    cos_m, sin_m = prepare_rope(cfg, B, S)          # RoPE tables prepared ONCE
    fwd = jax.jit(functools.partial(chameleon_forward, cfg=cfg))
    logits = jax.block_until_ready(fwd(input_ids, prepped, cos_m, sin_m))

    # reference with the same bf16-rounded weights (activations stay f32 in the reference;
    # the kernel additionally rounds matmul activation operands to bf16 -> tolerance 3e-2).
    ref = ref_forward(input_ids, quantize_matmul_weights(params), cfg)
    assert logits.shape == (B, S, cfg['vocab_size'])
    max_err = float(jnp.max(jnp.abs(logits - ref)))
    assert jnp.allclose(logits, ref, atol=3e-2, rtol=3e-2), max_err

    print("KERNEL_OK")
</pallas_src>

<mosaic_0001>
module attributes {stable_mosaic.version = 11 : i64} {
  func.func @_norm_linear_kernel(%arg0: i32, %arg1: i32, %arg2: memref<32x256xf32, #tpu.memory_space<vmem>>, %arg3: memref<1x256xf32, #tpu.memory_space<vmem>>, %arg4: memref<256x384xbf16, #tpu.memory_space<vmem>>, %arg5: memref<32x384xf32, #tpu.memory_space<vmem>>) attributes {dimension_semantics = [#tpu.dimension_semantics<parallel>, #tpu.dimension_semantics<parallel>], iteration_bounds = array<i64: 1, 2>, scalar_prefetch = 0 : i64, scratch_operands = 0 : i64, tpu.core_type = #tpu.core_type<tc>, window_params = [{transform_indices = @transform_0, window_bounds = array<i64: 32, 256>}, {pipeline_mode = #tpu.pipeline_mode<synchronous>, transform_indices = @transform_1, window_bounds = array<i64: 1, 256>}, {transform_indices = @transform_2, window_bounds = array<i64: 256, 384>}, {transform_indices = @transform_3, window_bounds = array<i64: 32, 384>}]} {
    %c0 = arith.constant 0 : index
    %c0_0 = arith.constant 0 : index
    %0 = vector.load %arg2[%c0, %c0_0] : memref<32x256xf32, #tpu.memory_space<vmem>>, vector<32x256xf32>
    %1 = arith.mulf %0, %0 : vector<32x256xf32>
    %cst = arith.constant dense<0.000000e+00> : vector<32xf32>
    %2 = vector.multi_reduction <add>, %1, %cst [1] : vector<32x256xf32> to vector<32xf32>
    %3 = vector.shape_cast %2 : vector<32xf32> to vector<32x1xf32>
    %cst_1 = arith.constant 2.560000e+02 : f32
    %4 = vector.broadcast %cst_1 : f32 to vector<32x1xf32>
    %5 = arith.divf %3, %4 : vector<32x1xf32>
    %cst_2 = arith.constant 9.99999974E-6 : f32
    %6 = vector.broadcast %cst_2 : f32 to vector<32x1xf32>
    %7 = arith.addf %5, %6 : vector<32x1xf32>
    %8 = math.rsqrt %7 : vector<32x1xf32>
    %9 = vector.broadcast %8 : vector<32x1xf32> to vector<32x256xf32>
    %10 = arith.mulf %0, %9 : vector<32x256xf32>
    %c0_3 = arith.constant 0 : index
    %c0_4 = arith.constant 0 : index
    %11 = vector.load %arg3[%c0_3, %c0_4] : memref<1x256xf32, #tpu.memory_space<vmem>>, vector<1x256xf32>
    %12 = vector.broadcast %11 : vector<1x256xf32> to vector<32x256xf32>
    %13 = arith.mulf %10, %12 : vector<32x256xf32>
    %14 = arith.truncf %13 : vector<32x256xf32> to vector<32x256xbf16>
    %c0_5 = arith.constant 0 : index
    %c0_6 = arith.constant 0 : index
    %15 = vector.load %arg4[%c0_5, %c0_6] : memref<256x384xbf16, #tpu.memory_space<vmem>>, vector<256x384xbf16>
    %cst_7 = arith.constant dense<0.000000e+00> : vector<32x384xf32>
    %16 = tpu.matmul %14, %15, %cst_7 {dimension_numbers = #tpu.dot_dimension_numbers<[1], [0], [0], [1], [0, 0, 1, 1], [], []>} : vector<32x256xbf16>, vector<256x384xbf16>, vector<32x384xf32> -> vector<32x384xf32>
    %c0_8 = arith.constant 0 : index
    %c0_9 = arith.constant 0 : index
    %17 = vector.load %arg5[%c0_8, %c0_9] : memref<32x384xf32, #tpu.memory_space<vmem>>, vector<32x384xf32>
    tpu.vector_store %arg5[%c0_8, %c0_9], %16 {strides = array<i32>} : memref<32x384xf32, #tpu.memory_space<vmem>>, vector<32x384xf32>,
    return
  }
  func.func @transform_0(%arg0: i32, %arg1: i32) -> (i32, i32) {
    %c0_i32 = arith.constant 0 : i32
    %c0_i32_0 = arith.constant 0 : i32
    return %arg0, %c0_i32 : i32, i32
  }
  func.func @transform_1(%arg0: i32, %arg1: i32) -> (i32, i32) {
    %c0_i32 = arith.constant 0 : i32
    %c0_i32_0 = arith.constant 0 : i32
    %c0_i32_1 = arith.constant 0 : i32
    return %c0_i32, %c0_i32_0 : i32, i32
  }
  func.func @transform_2(%arg0: i32, %arg1: i32) -> (i32, i32) {
    %c0_i32 = arith.constant 0 : i32
    %c0_i32_0 = arith.constant 0 : i32
    return %c0_i32, %arg1 : i32, i32
  }
  func.func @transform_3(%arg0: i32, %arg1: i32) -> (i32, i32) {
    %c0_i32 = arith.constant 0 : i32
    return %arg0, %arg1 : i32, i32
  }
}

module attributes {stable_mosaic.version = 11 : i64} {
  func.func @_flash_attn_kernel(%arg0: i32, %arg1: i32, %arg2: memref<1xi32, #tpu.memory_space<smem>>, %arg3: memref<1xi32, #tpu.memory_space<smem>>, %arg4: memref<16x256xbf16, #tpu.memory_space<vmem>>, %arg5: memref<16x256xbf16, #tpu.memory_space<vmem>>, %arg6: memref<16x256xf32, #tpu.memory_space<vmem>>, %arg7: memref<16x256xf32, #tpu.memory_space<vmem>>, %arg8: memref<4x16x128xf32, #tpu.memory_space<vmem>>, %arg9: memref<4x16x128xf32, #tpu.memory_space<vmem>>, %arg10: memref<16x256xf32, #tpu.memory_space<vmem>>) attributes {dimension_semantics = [#tpu.dimension_semantics<parallel>, #tpu.dimension_semantics<arbitrary>], iteration_bounds = array<i64: 2, 1>, scalar_prefetch = 2 : i64, scratch_operands = 3 : i64, tpu.core_type = #tpu.core_type<tc>, window_params = [{transform_indices = @transform_0, window_bounds = array<i64: 16, 256>}, {transform_indices = @transform_1, window_bounds = array<i64: 16, 256>}, {transform_indices = @transform_2, window_bounds = array<i64: 16, 256>}, {transform_indices = @transform_3, window_bounds = array<i64: 16, 256>}]} {
    %0 = arith.index_cast %arg1 : i32 to index
    %1 = memref.load %arg2[%0] : memref<1xi32, #tpu.memory_space<smem>>
    %2 = arith.index_cast %arg1 : i32 to index
    %3 = memref.load %arg3[%2] : memref<1xi32, #tpu.memory_space<smem>>
    %c0_i32 = arith.constant 0 : i32
    %4 = arith.cmpi eq, %3, %c0_i32 : i32
    %5 = arith.extui %4 : i1 to i32
    %c0_i32_0 = arith.constant 0 : i32
    %6 = arith.cmpi ne, %5, %c0_i32_0 : i32
    scf.if %6 {
      %cst_85 = arith.constant 0xFF800000 : f32
      %187 = vector.broadcast %cst_85 : f32 to vector<4x16x128xf32>
      %c0_86 = arith.constant 0 : index
      %c0_87 = arith.constant 0 : index
      %c0_88 = arith.constant 0 : index
      %188 = vector.load %arg8[%c0_86, %c0_87, %c0_88] : memref<4x16x128xf32, #tpu.memory_space<vmem>>, vector<4x16x128xf32>
      tpu.vector_store %arg8[%c0_86, %c0_87, %c0_88], %187 {strides = array<i32>} : memref<4x16x128xf32, #tpu.memory_space<vmem>>, vector<4x16x128xf32>,
      %cst_89 = arith.constant 0.000000e+00 : f32
      %189 = vector.broadcast %cst_89 : f32 to vector<4x16x128xf32>
      %c0_90 = arith.constant 0 : index
      %c0_91 = arith.constant 0 : index
      %c0_92 = arith.constant 0 : index
      %190 = vector.load %arg9[%c0_90, %c0_91, %c0_92] : memref<4x16x128xf32, #tpu.memory_space<vmem>>, vector<4x16x128xf32>
      tpu.vector_store %arg9[%c0_90, %c0_91, %c0_92], %189 {strides = array<i32>} : memref<4x16x128xf32, #tpu.memory_space<vmem>>, vector<4x16x128xf32>,
      %cst_93 = arith.constant 0.000000e+00 : f32
      %191 = vector.broadcast %cst_93 : f32 to vector<16x256xf32>
      %c0_94 = arith.constant 0 : index
      %c0_95 = arith.constant 0 : index
      %192 = vector.load %arg10[%c0_94, %c0_95] : memref<16x256xf32, #tpu.memory_space<vmem>>, vector<16x256xf32>
      tpu.vector_store %arg10[%c0_94, %c0_95], %191 {strides = array<i32>} : memref<16x256xf32, #tpu.memory_space<vmem>>, vector<16x256xf32>,
    } else {
    }
    %c0 = arith.constant 0 : index
    %c0_1 = arith.constant 0 : index
    %7 = vector.load %arg4[%c0, %c0_1] : memref<16x256xbf16, #tpu.memory_space<vmem>>, vector<16x256xbf16>
    %c0_2 = arith.constant 0 : index
    %c0_3 = arith.constant 0 : index
    %8 = vector.load %arg5[%c0_2, %c0_3] : memref<16x256xbf16, #tpu.memory_space<vmem>>, vector<16x256xbf16>
    %c0_4 = arith.constant 0 : index
    %c0_5 = arith.constant 0 : index
    %9 = vector.load %arg6[%c0_4, %c0_5] : memref<16x256xf32, #tpu.memory_space<vmem>>, vector<16x256xf32>
    %10 = arith.truncf %9 : vector<16x256xf32> to vector<16x256xbf16>
    %c16_i32 = arith.constant 16 : i32
    %11 = arith.muli %1, %c16_i32 : i32
    %12 = tpu.iota {dimensions = array<i32: 0>} : vector<16x16xi32>
    %13 = vector.broadcast %11 : i32 to vector<16x16xi32>
    %14 = arith.addi %13, %12 : vector<16x16xi32>
    %c16_i32_6 = arith.constant 16 : i32
    %15 = arith.muli %3, %c16_i32_6 : i32
    %16 = tpu.iota {dimensions = array<i32: 1>} : vector<16x16xi32>
    %17 = vector.broadcast %15 : i32 to vector<16x16xi32>
    %18 = arith.addi %17, %16 : vector<16x16xi32>
    %19 = arith.cmpi sgt, %18, %14 : vector<16x16xi32>
    %20 = vector.extract_strided_slice %7 {offsets = [0, 0], sizes = [16, 64], strides = [1, 1]} : vector<16x256xbf16> to vector<16x64xbf16>
    %21 = vector.extract_strided_slice %8 {offsets = [0, 0], sizes = [16, 64], strides = [1, 1]} : vector<16x256xbf16> to vector<16x64xbf16>
    %cst = arith.constant dense<0.000000e+00> : vector<16x16xf32>
    %22 = tpu.matmul %20, %21, %cst {dimension_numbers = #tpu.dot_dimension_numbers<[1], [1], [0], [0], [0, 0, 1, 0], [], []>} : vector<16x64xbf16>, vector<16x64xbf16>, vector<16x16xf32> -> vector<16x16xf32>
    %cst_7 = arith.constant -1.000000e+30 : f32
    %23 = vector.broadcast %cst_7 : f32 to vector<16x16xf32>
    %24 = arith.select %19, %23, %22 : vector<16x16xi1>, vector<16x16xf32>
    %c0_8 = arith.constant 0 : index
    %c0_9 = arith.constant 0 : index
    %c0_10 = arith.constant 0 : index
    %25 = vector.load %arg8[%c0_8, %c0_9, %c0_10] : memref<4x16x128xf32, #tpu.memory_space<vmem>>, vector<1x16x128xf32>
    %26 = vector.shape_cast %25 : vector<1x16x128xf32> to vector<16x128xf32>
    %27 = vector.extract_strided_slice %26 {offsets = [0, 0], sizes = [16, 1], strides = [1, 1]} : vector<16x128xf32> to vector<16x1xf32>
    %c0_11 = arith.constant 0 : index
    %c0_12 = arith.constant 0 : index
    %c0_13 = arith.constant 0 : index
    %28 = vector.load %arg9[%c0_11, %c0_12, %c0_13] : memref<4x16x128xf32, #tpu.memory_space<vmem>>, vector<1x16x128xf32>
    %29 = vector.shape_cast %28 : vector<1x16x128xf32> to vector<16x128xf32>
    %30 = vector.extract_strided_slice %29 {offsets = [0, 0], sizes = [16, 1], strides = [1, 1]} : vector<16x128xf32> to vector<16x1xf32>
    %cst_14 = arith.constant dense<0xFF800000> : vector<16xf32>
    %31 = vector.multi_reduction <maximumf>, %24, %cst_14 [1] : vector<16x16xf32> to vector<16xf32>
    %32 = vector.shape_cast %31 : vector<16xf32> to vector<16x1xf32>
    %33 = arith.maximumf %27, %32 : vector<16x1xf32>
    %34 = arith.subf %27, %33 : vector<16x1xf32>
    %35 = math.exp %34 : vector<16x1xf32>
    %36 = vector.broadcast %33 : vector<16x1xf32> to vector<16x16xf32>
    %37 = arith.subf %24, %36 : vector<16x16xf32>
    %38 = math.exp %37 : vector<16x16xf32>
    %39 = arith.mulf %35, %30 : vector<16x1xf32>
    %cst_15 = arith.constant dense<0.000000e+00> : vector<16xf32>
    %40 = vector.multi_reduction <add>, %38, %cst_15 [1] : vector<16x16xf32> to vector<16xf32>
    %41 = vector.shape_cast %40 : vector<16xf32> to vector<16x1xf32>
    %42 = arith.addf %39, %41 : vector<16x1xf32>
    %c0_16 = arith.constant 0 : index
    %c0_17 = arith.constant 0 : index
    %43 = vector.load %arg10[%c0_16, %c0_17] : memref<16x256xf32, #tpu.memory_space<vmem>>, vector<16x64xf32>
    %44 = vector.broadcast %35 : vector<16x1xf32> to vector<16x64xf32>
    %45 = arith.mulf %44, %43 : vector<16x64xf32>
    %46 = arith.truncf %38 : vector<16x16xf32> to vector<16x16xbf16>
    %47 = vector.extract_strided_slice %10 {offsets = [0, 0], sizes = [16, 64], strides = [1, 1]} : vector<16x256xbf16> to vector<16x64xbf16>
    %cst_18 = arith.constant dense<0.000000e+00> : vector<16x64xf32>
    %48 = tpu.matmul %46, %47, %cst_18 {dimension_numbers = #tpu.dot_dimension_numbers<[1], [0], [0], [1], [0, 0, 1, 1], [], []>} : vector<16x16xbf16>, vector<16x64xbf16>, vector<16x64xf32> -> vector<16x64xf32>
    %49 = arith.addf %45, %48 : vector<16x64xf32>
    %c0_19 = arith.constant 0 : index
    %c0_20 = arith.constant 0 : index
    %50 = vector.load %arg10[%c0_19, %c0_20] : memref<16x256xf32, #tpu.memory_space<vmem>>, vector<16x64xf32>
    tpu.vector_store %arg10[%c0_19, %c0_20], %49 {strides = array<i32>} : memref<16x256xf32, #tpu.memory_space<vmem>>, vector<16x64xf32>,
    %51 = vector.shape_cast %33 : vector<16x1xf32> to vector<16x1xf32>
    %52 = vector.broadcast %51 : vector<16x1xf32> to vector<16x128xf32>
    %c0_21 = arith.constant 0 : index
    %c0_22 = arith.constant 0 : index
    %c0_23 = arith.constant 0 : index
    %53 = vector.load %arg8[%c0_21, %c0_22, %c0_23] : memref<4x16x128xf32, #tpu.memory_space<vmem>>, vector<1x16x128xf32>
    %54 = vector.shape_cast %53 : vector<1x16x128xf32> to vector<16x128xf32>
    %55 = vector.shape_cast %52 : vector<16x128xf32> to vector<1x16x128xf32>
    tpu.vector_store %arg8[%c0_21, %c0_22, %c0_23], %55 {strides = array<i32>} : memref<4x16x128xf32, #tpu.memory_space<vmem>>, vector<1x16x128xf32>,
    %56 = vector.shape_cast %42 : vector<16x1xf32> to vector<16x1xf32>
    %57 = vector.broadcast %56 : vector<16x1xf32> to vector<16x128xf32>
    %c0_24 = arith.constant 0 : index
    %c0_25 = arith.constant 0 : index
    %c0_26 = arith.constant 0 : index
    %58 = vector.load %arg9[%c0_24, %c0_25, %c0_26] : memref<4x16x128xf32, #tpu.memory_space<vmem>>, vector<1x16x128xf32>
    %59 = vector.shape_cast %58 : vector<1x16x128xf32> to vector<16x128xf32>
    %60 = vector.shape_cast %57 : vector<16x128xf32> to vector<1x16x128xf32>
    tpu.vector_store %arg9[%c0_24, %c0_25, %c0_26], %60 {strides = array<i32>} : memref<4x16x128xf32, #tpu.memory_space<vmem>>, vector<1x16x128xf32>,
    %61 = vector.extract_strided_slice %7 {offsets = [0, 64], sizes = [16, 64], strides = [1, 1]} : vector<16x256xbf16> to vector<16x64xbf16>
    %62 = vector.extract_strided_slice %8 {offsets = [0, 64], sizes = [16, 64], strides = [1, 1]} : vector<16x256xbf16> to vector<16x64xbf16>
    %cst_27 = arith.constant dense<0.000000e+00> : vector<16x16xf32>
    %63 = tpu.matmul %61, %62, %cst_27 {dimension_numbers = #tpu.dot_dimension_numbers<[1], [1], [0], [0], [0, 0, 1, 0], [], []>} : vector<16x64xbf16>, vector<16x64xbf16>, vector<16x16xf32> -> vector<16x16xf32>
    %cst_28 = arith.constant -1.000000e+30 : f32
    %64 = vector.broadcast %cst_28 : f32 to vector<16x16xf32>
    %65 = arith.select %19, %64, %63 : vector<16x16xi1>, vector<16x16xf32>
    %c1 = arith.constant 1 : index
    %c0_29 = arith.constant 0 : index
    %c0_30 = arith.constant 0 : index
    %66 = vector.load %arg8[%c1, %c0_29, %c0_30] : memref<4x16x128xf32, #tpu.memory_space<vmem>>, vector<1x16x128xf32>
    %67 = vector.shape_cast %66 : vector<1x16x128xf32> to vector<16x128xf32>
    %68 = vector.extract_strided_slice %67 {offsets = [0, 0], sizes = [16, 1], strides = [1, 1]} : vector<16x128xf32> to vector<16x1xf32>
    %c1_31 = arith.constant 1 : index
    %c0_32 = arith.constant 0 : index
    %c0_33 = arith.constant 0 : index
    %69 = vector.load %arg9[%c1_31, %c0_32, %c0_33] : memref<4x16x128xf32, #tpu.memory_space<vmem>>, vector<1x16x128xf32>
    %70 = vector.shape_cast %69 : vector<1x16x128xf32> to vector<16x128xf32>
    %71 = vector.extract_strided_slice %70 {offsets = [0, 0], sizes = [16, 1], strides = [1, 1]} : vector<16x128xf32> to vector<16x1xf32>
    %cst_34 = arith.constant dense<0xFF800000> : vector<16xf32>
    %72 = vector.multi_reduction <maximumf>, %65, %cst_34 [1] : vector<16x16xf32> to vector<16xf32>
    %73 = vector.shape_cast %72 : vector<16xf32> to vector<16x1xf32>
    %74 = arith.maximumf %68, %73 : vector<16x1xf32>
    %75 = arith.subf %68, %74 : vector<16x1xf32>
    %76 = math.exp %75 : vector<16x1xf32>
    %77 = vector.broadcast %74 : vector<16x1xf32> to vector<16x16xf32>
    %78 = arith.subf %65, %77 : vector<16x16xf32>
    %79 = math.exp %78 : vector<16x16xf32>
    %80 = arith.mulf %76, %71 : vector<16x1xf32>
    %cst_35 = arith.constant dense<0.000000e+00> : vector<16xf32>
    %81 = vector.multi_reduction <add>, %79, %cst_35 [1] : vector<16x16xf32> to vector<16xf32>
    %82 = vector.shape_cast %81 : vector<16xf32> to vector<16x1xf32>
    %83 = arith.addf %80, %82 : vector<16x1xf32>
    %c0_36 = arith.constant 0 : index
    %c64 = arith.constant 64 : index
    %84 = vector.load %arg10[%c0_36, %c64] : memref<16x256xf32, #tpu.memory_space<vmem>>, vector<16x64xf32>
    %85 = vector.broadcast %76 : vector<16x1xf32> to vector<16x64xf32>
    %86 = arith.mulf %85, %84 : vector<16x64xf32>
    %87 = arith.truncf %79 : vector<16x16xf32> to vector<16x16xbf16>
    %88 = vector.extract_strided_slice %10 {offsets = [0, 64], sizes = [16, 64], strides = [1, 1]} : vector<16x256xbf16> to vector<16x64xbf16>
    %cst_37 = arith.constant dense<0.000000e+00> : vector<16x64xf32>
    %89 = tpu.matmul %87, %88, %cst_37 {dimension_numbers = #tpu.dot_dimension_numbers<[1], [0], [0], [1], [0, 0, 1, 1], [], []>} : vector<16x16xbf16>, vector<16x64xbf16>, vector<16x64xf32> -> vector<16x64xf32>
    %90 = arith.addf %86, %89 : vector<16x64xf32>
    %c0_38 = arith.constant 0 : index
    %c64_39 = arith.constant 64 : index
    %91 = vector.load %arg10[%c0_38, %c64_39] : memref<16x256xf32, #tpu.memory_space<vmem>>, vector<16x64xf32>
    tpu.vector_store %arg10[%c0_38, %c64_39], %90 {strides = array<i32>} : memref<16x256xf32, #tpu.memory_space<vmem>>, vector<16x64xf32>,
    %92 = vector.shape_cast %74 : vector<16x1xf32> to vector<16x1xf32>
    %93 = vector.broadcast %92 : vector<16x1xf32> to vector<16x128xf32>
    %c1_40 = arith.constant 1 : index
    %c0_41 = arith.constant 0 : index
    %c0_42 = arith.constant 0 : index
    %94 = vector.load %arg8[%c1_40, %c0_41, %c0_42] : memref<4x16x128xf32, #tpu.memory_space<vmem>>, vector<1x16x128xf32>
    %95 = vector.shape_cast %94 : vector<1x16x128xf32> to vector<16x128xf32>
    %96 = vector.shape_cast %93 : vector<16x128xf32> to vector<1x16x128xf32>
    tpu.vector_store %arg8[%c1_40, %c0_41, %c0_42], %96 {strides = array<i32>} : memref<4x16x128xf32, #tpu.memory_space<vmem>>, vector<1x16x128xf32>,
    %97 = vector.shape_cast %83 : vector<16x1xf32> to vector<16x1xf32>
    %98 = vector.broadcast %97 : vector<16x1xf32> to vector<16x128xf32>
    %c1_43 = arith.constant 1 : index
    %c0_44 = arith.constant 0 : index
    %c0_45 = arith.constant 0 : index
    %99 = vector.load %arg9[%c1_43, %c0_44, %c0_45] : memref<4x16x128xf32, #tpu.memory_space<vmem>>, vector<1x16x128xf32>
    %100 = vector.shape_cast %99 : vector<1x16x128xf32> to vector<16x128xf32>
    %101 = vector.shape_cast %98 : vector<16x128xf32> to vector<1x16x128xf32>
    tpu.vector_store %arg9[%c1_43, %c0_44, %c0_45], %101 {strides = array<i32>} : memref<4x16x128xf32, #tpu.memory_space<vmem>>, vector<1x16x128xf32>,
    %102 = vector.extract_strided_slice %7 {offsets = [0, 128], sizes = [16, 64], strides = [1, 1]} : vector<16x256xbf16> to vector<16x64xbf16>
    %103 = vector.extract_strided_slice %8 {offsets = [0, 128], sizes = [16, 64], strides = [1, 1]} : vector<16x256xbf16> to vector<16x64xbf16>
    %cst_46 = arith.constant dense<0.000000e+00> : vector<16x16xf32>
    %104 = tpu.matmul %102, %103, %cst_46 {dimension_numbers = #tpu.dot_dimension_numbers<[1], [1], [0], [0], [0, 0, 1, 0], [], []>} : vector<16x64xbf16>, vector<16x64xbf16>, vector<16x16xf32> -> vector<16x16xf32>
    %cst_47 = arith.constant -1.000000e+30 : f32
    %105 = vector.broadcast %cst_47 : f32 to vector<16x16xf32>
    %106 = arith.select %19, %105, %104 : vector<16x16xi1>, vector<16x16xf32>
    %c2 = arith.constant 2 : index
    %c0_48 = arith.constant 0 : index
    %c0_49 = arith.constant 0 : index
    %107 = vector.load %arg8[%c2, %c0_48, %c0_49] : memref<4x16x128xf32, #tpu.memory_space<vmem>>, vector<1x16x128xf32>
    %108 = vector.shape_cast %107 : vector<1x16x128xf32> to vector<16x128xf32>
    %109 = vector.extract_strided_slice %108 {offsets = [0, 0], sizes = [16, 1], strides = [1, 1]} : vector<16x128xf32> to vector<16x1xf32>
    %c2_50 = arith.constant 2 : index
    %c0_51 = arith.constant 0 : index
    %c0_52 = arith.constant 0 : index
    %110 = vector.load %arg9[%c2_50, %c0_51, %c0_52] : memref<4x16x128xf32, #tpu.memory_space<vmem>>, vector<1x16x128xf32>
    %111 = vector.shape_cast %110 : vector<1x16x128xf32> to vector<16x128xf32>
    %112 = vector.extract_strided_slice %111 {offsets = [0, 0], sizes = [16, 1], strides = [1, 1]} : vector<16x128xf32> to vector<16x1xf32>
    %cst_53 = arith.constant dense<0xFF800000> : vector<16xf32>
    %113 = vector.multi_reduction <maximumf>, %106, %cst_53 [1] : vector<16x16xf32> to vector<16xf32>
    %114 = vector.shape_cast %113 : vector<16xf32> to vector<16x1xf32>
    %115 = arith.maximumf %109, %114 : vector<16x1xf32>
    %116 = arith.subf %109, %115 : vector<16x1xf32>
    %117 = math.exp %116 : vector<16x1xf32>
    %118 = vector.broadcast %115 : vector<16x1xf32> to vector<16x16xf32>
    %119 = arith.subf %106, %118 : vector<16x16xf32>
    %120 = math.exp %119 : vector<16x16xf32>
    %121 = arith.mulf %117, %112 : vector<16x1xf32>
    %cst_54 = arith.constant dense<0.000000e+00> : vector<16xf32>
    %122 = vector.multi_reduction <add>, %120, %cst_54 [1] : vector<16x16xf32> to vector<16xf32>
    %123 = vector.shape_cast %122 : vector<16xf32> to vector<16x1xf32>
    %124 = arith.addf %121, %123 : vector<16x1xf32>
    %c0_55 = arith.constant 0 : index
    %c128 = arith.constant 128 : index
    %125 = vector.load %arg10[%c0_55, %c128] : memref<16x256xf32, #tpu.memory_space<vmem>>, vector<16x64xf32>
    %126 = vector.broadcast %117 : vector<16x1xf32> to vector<16x64xf32>
    %127 = arith.mulf %126, %125 : vector<16x64xf32>
    %128 = arith.truncf %120 : vector<16x16xf32> to vector<16x16xbf16>
    %129 = vector.extract_strided_slice %10 {offsets = [0, 128], sizes = [16, 64], strides = [1, 1]} : vector<16x256xbf16> to vector<16x64xbf16>
    %cst_56 = arith.constant dense<0.000000e+00> : vector<16x64xf32>
    %130 = tpu.matmul %128, %129, %cst_56 {dimension_numbers = #tpu.dot_dimension_numbers<[1], [0], [0], [1], [0, 0, 1, 1], [], []>} : vector<16x16xbf16>, vector<16x64xbf16>, vector<16x64xf32> -> vector<16x64xf32>
    %131 = arith.addf %127, %130 : vector<16x64xf32>
    %c0_57 = arith.constant 0 : index
    %c128_58 = arith.constant 128 : index
    %132 = vector.load %arg10[%c0_57, %c128_58] : memref<16x256xf32, #tpu.memory_space<vmem>>, vector<16x64xf32>
    tpu.vector_store %arg10[%c0_57, %c128_58], %131 {strides = array<i32>} : memref<16x256xf32, #tpu.memory_space<vmem>>, vector<16x64xf32>,
    %133 = vector.shape_cast %115 : vector<16x1xf32> to vector<16x1xf32>
    %134 = vector.broadcast %133 : vector<16x1xf32> to vector<16x128xf32>
    %c2_59 = arith.constant 2 : index
    %c0_60 = arith.constant 0 : index
    %c0_61 = arith.constant 0 : index
    %135 = vector.load %arg8[%c2_59, %c0_60, %c0_61] : memref<4x16x128xf32, #tpu.memory_space<vmem>>, vector<1x16x128xf32>
    %136 = vector.shape_cast %135 : vector<1x16x128xf32> to vector<16x128xf32>
    %137 = vector.shape_cast %134 : vector<16x128xf32> to vector<1x16x128xf32>
    tpu.vector_store %arg8[%c2_59, %c0_60, %c0_61], %137 {strides = array<i32>} : memref<4x16x128xf32, #tpu.memory_space<vmem>>, vector<1x16x128xf32>,
    %138 = vector.shape_cast %124 : vector<16x1xf32> to vector<16x1xf32>
    %139 = vector.broadcast %138 : vector<16x1xf32> to vector<16x128xf32>
    %c2_62 = arith.constant 2 : index
    %c0_63 = arith.constant 0 : index
    %c0_64 = arith.constant 0 : index
    %140 = vector.load %arg9[%c2_62, %c0_63, %c0_64] : memref<4x16x128xf32, #tpu.memory_space<vmem>>, vector<1x16x128xf32>
    %141 = vector.shape_cast %140 : vector<1x16x128xf32> to vector<16x128xf32>
    %142 = vector.shape_cast %139 : vector<16x128xf32> to vector<1x16x128xf32>
    tpu.vector_store %arg9[%c2_62, %c0_63, %c0_64], %142 {strides = array<i32>} : memref<4x16x128xf32, #tpu.memory_space<vmem>>, vector<1x16x128xf32>,
    %143 = vector.extract_strided_slice %7 {offsets = [0, 192], sizes = [16, 64], strides = [1, 1]} : vector<16x256xbf16> to vector<16x64xbf16>
    %144 = vector.extract_strided_slice %8 {offsets = [0, 192], sizes = [16, 64], strides = [1, 1]} : vector<16x256xbf16> to vector<16x64xbf16>
    %cst_65 = arith.constant dense<0.000000e+00> : vector<16x16xf32>
    %145 = tpu.matmul %143, %144, %cst_65 {dimension_numbers = #tpu.dot_dimension_numbers<[1], [1], [0], [0], [0, 0, 1, 0], [], []>} : vector<16x64xbf16>, vector<16x64xbf16>, vector<16x16xf32> -> vector<16x16xf32>
    %cst_66 = arith.constant -1.000000e+30 : f32
    %146 = vector.broadcast %cst_66 : f32 to vector<16x16xf32>
    %147 = arith.select %19, %146, %145 : vector<16x16xi1>, vector<16x16xf32>
    %c3 = arith.constant 3 : index
    %c0_67 = arith.constant 0 : index
    %c0_68 = arith.constant 0 : index
    %148 = vector.load %arg8[%c3, %c0_67, %c0_68] : memref<4x16x128xf32, #tpu.memory_space<vmem>>, vector<1x16x128xf32>
    %149 = vector.shape_cast %148 : vector<1x16x128xf32> to vector<16x128xf32>
    %150 = vector.extract_strided_slice %149 {offsets = [0, 0], sizes = [16, 1], strides = [1, 1]} : vector<16x128xf32> to vector<16x1xf32>
    %c3_69 = arith.constant 3 : index
    %c0_70 = arith.constant 0 : index
    %c0_71 = arith.constant 0 : index
    %151 = vector.load %arg9[%c3_69, %c0_70, %c0_71] : memref<4x16x128xf32, #tpu.memory_space<vmem>>, vector<1x16x128xf32>
    %152 = vector.shape_cast %151 : vector<1x16x128xf32> to vector<16x128xf32>
    %153 = vector.extract_strided_slice %152 {offsets = [0, 0], sizes = [16, 1], strides = [1, 1]} : vector<16x128xf32> to vector<16x1xf32>
    %cst_72 = arith.constant dense<0xFF800000> : vector<16xf32>
    %154 = vector.multi_reduction <maximumf>, %147, %cst_72 [1] : vector<16x16xf32> to vector<16xf32>
    %155 = vector.shape_cast %154 : vector<16xf32> to vector<16x1xf32>
    %156 = arith.maximumf %150, %155 : vector<16x1xf32>
    %157 = arith.subf %150, %156 : vector<16x1xf32>
    %158 = math.exp %157 : vector<16x1xf32>
    %159 = vector.broadcast %156 : vector<16x1xf32> to vector<16x16xf32>
    %160 = arith.subf %147, %159 : vector<16x16xf32>
    %161 = math.exp %160 : vector<16x16xf32>
    %162 = arith.mulf %158, %153 : vector<16x1xf32>
    %cst_73 = arith.constant dense<0.000000e+00> : vector<16xf32>
    %163 = vector.multi_reduction <add>, %161, %cst_73 [1] : vector<16x16xf32> to vector<16xf32>
    %164 = vector.shape_cast %163 : vector<16xf32> to vector<16x1xf32>
    %165 = arith.addf %162, %164 : vector<16x1xf32>
    %c0_74 = arith.constant 0 : index
    %c192 = arith.constant 192 : index
    %166 = vector.load %arg10[%c0_74, %c192] : memref<16x256xf32, #tpu.memory_space<vmem>>, vector<16x64xf32>
    %167 = vector.broadcast %158 : vector<16x1xf32> to vector<16x64xf32>
    %168 = arith.mulf %167, %166 : vector<16x64xf32>
    %169 = arith.truncf %161 : vector<16x16xf32> to vector<16x16xbf16>
    %170 = vector.extract_strided_slice %10 {offsets = [0, 192], sizes = [16, 64], strides = [1, 1]} : vector<16x256xbf16> to vector<16x64xbf16>
    %cst_75 = arith.constant dense<0.000000e+00> : vector<16x64xf32>
    %171 = tpu.matmul %169, %170, %cst_75 {dimension_numbers = #tpu.dot_dimension_numbers<[1], [0], [0], [1], [0, 0, 1, 1], [], []>} : vector<16x16xbf16>, vector<16x64xbf16>, vector<16x64xf32> -> vector<16x64xf32>
    %172 = arith.addf %168, %171 : vector<16x64xf32>
    %c0_76 = arith.constant 0 : index
    %c192_77 = arith.constant 192 : index
    %173 = vector.load %arg10[%c0_76, %c192_77] : memref<16x256xf32, #tpu.memory_space<vmem>>, vector<16x64xf32>
    tpu.vector_store %arg10[%c0_76, %c192_77], %172 {strides = array<i32>} : memref<16x256xf32, #tpu.memory_space<vmem>>, vector<16x64xf32>,
    %174 = vector.shape_cast %156 : vector<16x1xf32> to vector<16x1xf32>
    %175 = vector.broadcast %174 : vector<16x1xf32> to vector<16x128xf32>
    %c3_78 = arith.constant 3 : index
    %c0_79 = arith.constant 0 : index
    %c0_80 = arith.constant 0 : index
    %176 = vector.load %arg8[%c3_78, %c0_79, %c0_80] : memref<4x16x128xf32, #tpu.memory_space<vmem>>, vector<1x16x128xf32>
    %177 = vector.shape_cast %176 : vector<1x16x128xf32> to vector<16x128xf32>
    %178 = vector.shape_cast %175 : vector<16x128xf32> to vector<1x16x128xf32>
    tpu.vector_store %arg8[%c3_78, %c0_79, %c0_80], %178 {strides = array<i32>} : memref<4x16x128xf32, #tpu.memory_space<vmem>>, vector<1x16x128xf32>,
    %179 = vector.shape_cast %165 : vector<16x1xf32> to vector<16x1xf32>
    %180 = vector.broadcast %179 : vector<16x1xf32> to vector<16x128xf32>
    %c3_81 = arith.constant 3 : index
    %c0_82 = arith.constant 0 : index
    %c0_83 = arith.constant 0 : index
    %181 = vector.load %arg9[%c3_81, %c0_82, %c0_83] : memref<4x16x128xf32, #tpu.memory_space<vmem>>, vector<1x16x128xf32>
    %182 = vector.shape_cast %181 : vector<1x16x128xf32> to vector<16x128xf32>
    %183 = vector.shape_cast %180 : vector<16x128xf32> to vector<1x16x128xf32>
    tpu.vector_store %arg9[%c3_81, %c0_82, %c0_83], %183 {strides = array<i32>} : memref<4x16x128xf32, #tpu.memory_space<vmem>>, vector<1x16x128xf32>,
    %184 = arith.cmpi eq, %3, %1 : i32
    %185 = arith.extui %184 : i1 to i32
    %c0_i32_84 = arith.constant 0 : i32
    %186 = arith.cmpi ne, %185, %c0_i32_84 : i32
    scf.if %186 {
      %c0_85 = arith.constant 0 : index
      %c0_86 = arith.constant 0 : index
      %c0_87 = arith.constant 0 : index
      %187 = vector.load %arg9[%c0_85, %c0_86, %c0_87] : memref<4x16x128xf32, #tpu.memory_space<vmem>>, vector<1x16x128xf32>
      %188 = vector.shape_cast %187 : vector<1x16x128xf32> to vector<16x128xf32>
      %189 = vector.extract_strided_slice %188 {offsets = [0, 0], sizes = [16, 64], strides = [1, 1]} : vector<16x128xf32> to vector<16x64xf32>
      %190 = tpu.reciprocal %189 {approx = true} : vector<16x64xf32> -> vector<16x64xf32>
      %c1_88 = arith.constant 1 : index
      %c0_89 = arith.constant 0 : index
      %c0_90 = arith.constant 0 : index
      %191 = vector.load %arg9[%c1_88, %c0_89, %c0_90] : memref<4x16x128xf32, #tpu.memory_space<vmem>>, vector<1x16x128xf32>
      %192 = vector.shape_cast %191 : vector<1x16x128xf32> to vector<16x128xf32>
      %193 = vector.extract_strided_slice %192 {offsets = [0, 0], sizes = [16, 64], strides = [1, 1]} : vector<16x128xf32> to vector<16x64xf32>
      %194 = tpu.reciprocal %193 {approx = true} : vector<16x64xf32> -> vector<16x64xf32>
      %c2_91 = arith.constant 2 : index
      %c0_92 = arith.constant 0 : index
      %c0_93 = arith.constant 0 : index
      %195 = vector.load %arg9[%c2_91, %c0_92, %c0_93] : memref<4x16x128xf32, #tpu.memory_space<vmem>>, vector<1x16x128xf32>
      %196 = vector.shape_cast %195 : vector<1x16x128xf32> to vector<16x128xf32>
      %197 = vector.extract_strided_slice %196 {offsets = [0, 0], sizes = [16, 64], strides = [1, 1]} : vector<16x128xf32> to vector<16x64xf32>
      %198 = tpu.reciprocal %197 {approx = true} : vector<16x64xf32> -> vector<16x64xf32>
      %c3_94 = arith.constant 3 : index
      %c0_95 = arith.constant 0 : index
      %c0_96 = arith.constant 0 : index
      %199 = vector.load %arg9[%c3_94, %c0_95, %c0_96] : memref<4x16x128xf32, #tpu.memory_space<vmem>>, vector<1x16x128xf32>
      %200 = vector.shape_cast %199 : vector<1x16x128xf32> to vector<16x128xf32>
      %201 = vector.extract_strided_slice %200 {offsets = [0, 0], sizes = [16, 64], strides = [1, 1]} : vector<16x128xf32> to vector<16x64xf32>
      %202 = tpu.reciprocal %201 {approx = true} : vector<16x64xf32> -> vector<16x64xf32>
      %203 = tpu.concatenate %190, %194, %198, %202 in 1 : vector<16x64xf32>, vector<16x64xf32>, vector<16x64xf32>, vector<16x64xf32> -> vector<16x256xf32>
      %c0_97 = arith.constant 0 : index
      %c0_98 = arith.constant 0 : index
      %204 = vector.load %arg10[%c0_97, %c0_98] : memref<16x256xf32, #tpu.memory_space<vmem>>, vector<16x256xf32>
      %205 = arith.mulf %204, %203 : vector<16x256xf32>
      %c0_99 = arith.constant 0 : index
      %c0_100 = arith.constant 0 : index
      %206 = vector.load %arg7[%c0_99, %c0_100] : memref<16x256xf32, #tpu.memory_space<vmem>>, vector<16x256xf32>
      tpu.vector_store %arg7[%c0_99, %c0_100], %205 {strides = array<i32>} : memref<16x256xf32, #tpu.memory_space<vmem>>, vector<16x256xf32>,
    } else {
    }
    return
  }
  func.func @transform_0(%arg0: i32, %arg1: i32, %arg2: memref<1xi32, #tpu.memory_space<smem>>, %arg3: memref<1xi32, #tpu.memory_space<smem>>) -> (i32, i32) {
    %c1_i32 = arith.constant 1 : i32
    %0 = arith.muli %arg0, %c1_i32 : i32
    %1 = arith.index_cast %arg1 : i32 to index
    %2 = memref.load %arg2[%1] : memref<1xi32, #tpu.memory_space<smem>>
    %3 = arith.addi %0, %2 : i32
    %c0_i32 = arith.constant 0 : i32
    %c0_i32_0 = arith.constant 0 : i32
    return %3, %c0_i32 : i32, i32
  }
  func.func @transform_1(%arg0: i32, %arg1: i32, %arg2: memref<1xi32, #tpu.memory_space<smem>>, %arg3: memref<1xi32, #tpu.memory_space<smem>>) -> (i32, i32) {
    %c1_i32 = arith.constant 1 : i32
    %0 = arith.muli %arg0, %c1_i32 : i32
    %1 = arith.index_cast %arg1 : i32 to index
    %2 = memref.load %arg3[%1] : memref<1xi32, #tpu.memory_space<smem>>
    %3 = arith.addi %0, %2 : i32
    %c1_i32_0 = arith.constant 1 : i32
    %c0_i32 = arith.constant 0 : i32
    return %3, %c1_i32_0 : i32, i32
  }
  func.func @transform_2(%arg0: i32, %arg1: i32, %arg2: memref<1xi32, #tpu.memory_space<smem>>, %arg3: memref<1xi32, #tpu.memory_space<smem>>) -> (i32, i32) {
    %c1_i32 = arith.constant 1 : i32
    %0 = arith.muli %arg0, %c1_i32 : i32
    %1 = arith.index_cast %arg1 : i32 to index
    %2 = memref.load %arg3[%1] : memref<1xi32, #tpu.memory_space<smem>>
    %3 = arith.addi %0, %2 : i32
    %c2_i32 = arith.constant 2 : i32
    %c0_i32 = arith.constant 0 : i32
    return %3, %c2_i32 : i32, i32
  }
  func.func @transform_3(%arg0: i32, %arg1: i32, %arg2: memref<1xi32, #tpu.memory_space<smem>>, %arg3: memref<1xi32, #tpu.memory_space<smem>>) -> (i32, i32) {
    %c1_i32 = arith.constant 1 : i32
    %0 = arith.muli %arg0, %c1_i32 : i32
    %1 = arith.index_cast %arg1 : i32 to index
    %2 = memref.load %arg2[%1] : memref<1xi32, #tpu.memory_space<smem>>
    %3 = arith.addi %0, %2 : i32
    %c0_i32 = arith.constant 0 : i32
    %c0_i32_0 = arith.constant 0 : i32
    return %3, %c0_i32 : i32, i32
  }
}

module attributes {stable_mosaic.version = 11 : i64} {
  func.func @_qk_prep_kernel(%arg0: i32, %arg1: memref<32x256xf32, #tpu.memory_space<vmem>>, %arg2: memref<32x256xf32, #tpu.memory_space<vmem>>, %arg3: memref<1x64xf32, #tpu.memory_space<vmem>>, %arg4: memref<1x64xf32, #tpu.memory_space<vmem>>, %arg5: memref<1x64xf32, #tpu.memory_space<vmem>>, %arg6: memref<1x64xf32, #tpu.memory_space<vmem>>, %arg7: memref<32x32xf32, #tpu.memory_space<vmem>>, %arg8: memref<32x32xf32, #tpu.memory_space<vmem>>, %arg9: memref<32x512xbf16, #tpu.memory_space<vmem>>) attributes {dimension_semantics = [#tpu.dimension_semantics<parallel>], iteration_bounds = array<i64: 1>, scalar_prefetch = 0 : i64, scratch_operands = 0 : i64, tpu.core_type = #tpu.core_type<tc>, window_params = [{transform_indices = @transform_0, window_bounds = array<i64: 32, 256>}, {transform_indices = @transform_1, window_bounds = array<i64: 32, 256>}, {pipeline_mode = #tpu.pipeline_mode<synchronous>, transform_indices = @transform_2, window_bounds = array<i64: 1, 64>}, {pipeline_mode = #tpu.pipeline_mode<synchronous>, transform_indices = @transform_3, window_bounds = array<i64: 1, 64>}, {pipeline_mode = #tpu.pipeline_mode<synchronous>, transform_indices = @transform_4, window_bounds = array<i64: 1, 64>}, {pipeline_mode = #tpu.pipeline_mode<synchronous>, transform_indices = @transform_5, window_bounds = array<i64: 1, 64>}, {transform_indices = @transform_6, window_bounds = array<i64: 32, 32>}, {transform_indices = @transform_7, window_bounds = array<i64: 32, 32>}, {transform_indices = @transform_8, window_bounds = array<i64: 32, 512>}]} {
    %c0 = arith.constant 0 : index
    %c0_0 = arith.constant 0 : index
    %0 = vector.load %arg7[%c0, %c0_0] : memref<32x32xf32, #tpu.memory_space<vmem>>, vector<32x32xf32>
    %c0_1 = arith.constant 0 : index
    %c0_2 = arith.constant 0 : index
    %1 = vector.load %arg8[%c0_1, %c0_2] : memref<32x32xf32, #tpu.memory_space<vmem>>, vector<32x32xf32>
    %c0_3 = arith.constant 0 : index
    %c0_4 = arith.constant 0 : index
    %2 = vector.load %arg1[%c0_3, %c0_4] : memref<32x256xf32, #tpu.memory_space<vmem>>, vector<32x256xf32>
    %c0_5 = arith.constant 0 : index
    %c0_6 = arith.constant 0 : index
    %3 = vector.load %arg2[%c0_5, %c0_6] : memref<32x256xf32, #tpu.memory_space<vmem>>, vector<32x256xf32>
    %4 = vector.extract_strided_slice %2 {offsets = [0, 0], sizes = [32, 64], strides = [1, 1]} : vector<32x256xf32> to vector<32x64xf32>
    %c0_7 = arith.constant 0 : index
    %c0_8 = arith.constant 0 : index
    %5 = vector.load %arg3[%c0_7, %c0_8] : memref<1x64xf32, #tpu.memory_space<vmem>>, vector<1x64xf32>
    %c0_9 = arith.constant 0 : index
    %c0_10 = arith.constant 0 : index
    %6 = vector.load %arg4[%c0_9, %c0_10] : memref<1x64xf32, #tpu.memory_space<vmem>>, vector<1x64xf32>
    %cst = arith.constant dense<0.000000e+00> : vector<32xf32>
    %7 = vector.multi_reduction <add>, %4, %cst [1] : vector<32x64xf32> to vector<32xf32>
    %8 = vector.shape_cast %7 : vector<32xf32> to vector<32x1xf32>
    %cst_11 = arith.constant 6.400000e+01 : f32
    %9 = vector.broadcast %cst_11 : f32 to vector<32x1xf32>
    %10 = arith.divf %8, %9 : vector<32x1xf32>
    %11 = vector.broadcast %10 : vector<32x1xf32> to vector<32x64xf32>
    %12 = arith.subf %4, %11 : vector<32x64xf32>
    %13 = vector.broadcast %10 : vector<32x1xf32> to vector<32x64xf32>
    %14 = arith.subf %4, %13 : vector<32x64xf32>
    %15 = arith.mulf %12, %14 : vector<32x64xf32>
    %cst_12 = arith.constant dense<0.000000e+00> : vector<32xf32>
    %16 = vector.multi_reduction <add>, %15, %cst_12 [1] : vector<32x64xf32> to vector<32xf32>
    %17 = vector.shape_cast %16 : vector<32xf32> to vector<32x1xf32>
    %cst_13 = arith.constant 6.400000e+01 : f32
    %18 = vector.broadcast %cst_13 : f32 to vector<32x1xf32>
    %19 = arith.divf %17, %18 : vector<32x1xf32>
    %20 = vector.broadcast %10 : vector<32x1xf32> to vector<32x64xf32>
    %21 = arith.subf %4, %20 : vector<32x64xf32>
    %cst_14 = arith.constant 9.99999974E-6 : f32
    %22 = vector.broadcast %cst_14 : f32 to vector<32x1xf32>
    %23 = arith.addf %19, %22 : vector<32x1xf32>
    %24 = math.rsqrt %23 : vector<32x1xf32>
    %25 = vector.broadcast %24 : vector<32x1xf32> to vector<32x64xf32>
    %26 = arith.mulf %21, %25 : vector<32x64xf32>
    %27 = vector.broadcast %5 : vector<1x64xf32> to vector<32x64xf32>
    %28 = arith.mulf %26, %27 : vector<32x64xf32>
    %29 = vector.broadcast %6 : vector<1x64xf32> to vector<32x64xf32>
    %30 = arith.addf %28, %29 : vector<32x64xf32>
    %31 = vector.extract_strided_slice %30 {offsets = [0, 0], sizes = [32, 32], strides = [1, 1]} : vector<32x64xf32> to vector<32x32xf32>
    %32 = vector.extract_strided_slice %30 {offsets = [0, 32], sizes = [32, 32], strides = [1, 1]} : vector<32x64xf32> to vector<32x32xf32>
    %33 = arith.mulf %31, %0 : vector<32x32xf32>
    %34 = arith.mulf %32, %1 : vector<32x32xf32>
    %35 = arith.subf %33, %34 : vector<32x32xf32>
    %36 = arith.mulf %31, %1 : vector<32x32xf32>
    %37 = arith.mulf %32, %0 : vector<32x32xf32>
    %38 = arith.addf %36, %37 : vector<32x32xf32>
    %39 = tpu.concatenate %35, %38 in 1 : vector<32x32xf32>, vector<32x32xf32> -> vector<32x64xf32>
    %cst_15 = arith.constant 1.250000e-01 : f32
    %40 = vector.broadcast %cst_15 : f32 to vector<32x64xf32>
    %41 = arith.mulf %39, %40 : vector<32x64xf32>
    %42 = vector.extract_strided_slice %2 {offsets = [0, 64], sizes = [32, 64], strides = [1, 1]} : vector<32x256xf32> to vector<32x64xf32>
    %c0_16 = arith.constant 0 : index
    %c0_17 = arith.constant 0 : index
    %43 = vector.load %arg3[%c0_16, %c0_17] : memref<1x64xf32, #tpu.memory_space<vmem>>, vector<1x64xf32>
    %c0_18 = arith.constant 0 : index
    %c0_19 = arith.constant 0 : index
    %44 = vector.load %arg4[%c0_18, %c0_19] : memref<1x64xf32, #tpu.memory_space<vmem>>, vector<1x64xf32>
    %cst_20 = arith.constant dense<0.000000e+00> : vector<32xf32>
    %45 = vector.multi_reduction <add>, %42, %cst_20 [1] : vector<32x64xf32> to vector<32xf32>
    %46 = vector.shape_cast %45 : vector<32xf32> to vector<32x1xf32>
    %cst_21 = arith.constant 6.400000e+01 : f32
    %47 = vector.broadcast %cst_21 : f32 to vector<32x1xf32>
    %48 = arith.divf %46, %47 : vector<32x1xf32>
    %49 = vector.broadcast %48 : vector<32x1xf32> to vector<32x64xf32>
    %50 = arith.subf %42, %49 : vector<32x64xf32>
    %51 = vector.broadcast %48 : vector<32x1xf32> to vector<32x64xf32>
    %52 = arith.subf %42, %51 : vector<32x64xf32>
    %53 = arith.mulf %50, %52 : vector<32x64xf32>
    %cst_22 = arith.constant dense<0.000000e+00> : vector<32xf32>
    %54 = vector.multi_reduction <add>, %53, %cst_22 [1] : vector<32x64xf32> to vector<32xf32>
    %55 = vector.shape_cast %54 : vector<32xf32> to vector<32x1xf32>
    %cst_23 = arith.constant 6.400000e+01 : f32
    %56 = vector.broadcast %cst_23 : f32 to vector<32x1xf32>
    %57 = arith.divf %55, %56 : vector<32x1xf32>
    %58 = vector.broadcast %48 : vector<32x1xf32> to vector<32x64xf32>
    %59 = arith.subf %42, %58 : vector<32x64xf32>
    %cst_24 = arith.constant 9.99999974E-6 : f32
    %60 = vector.broadcast %cst_24 : f32 to vector<32x1xf32>
    %61 = arith.addf %57, %60 : vector<32x1xf32>
    %62 = math.rsqrt %61 : vector<32x1xf32>
    %63 = vector.broadcast %62 : vector<32x1xf32> to vector<32x64xf32>
    %64 = arith.mulf %59, %63 : vector<32x64xf32>
    %65 = vector.broadcast %43 : vector<1x64xf32> to vector<32x64xf32>
    %66 = arith.mulf %64, %65 : vector<32x64xf32>
    %67 = vector.broadcast %44 : vector<1x64xf32> to vector<32x64xf32>
    %68 = arith.addf %66, %67 : vector<32x64xf32>
    %69 = vector.extract_strided_slice %68 {offsets = [0, 0], sizes = [32, 32], strides = [1, 1]} : vector<32x64xf32> to vector<32x32xf32>
    %70 = vector.extract_strided_slice %68 {offsets = [0, 32], sizes = [32, 32], strides = [1, 1]} : vector<32x64xf32> to vector<32x32xf32>
    %71 = arith.mulf %69, %0 : vector<32x32xf32>
    %72 = arith.mulf %70, %1 : vector<32x32xf32>
    %73 = arith.subf %71, %72 : vector<32x32xf32>
    %74 = arith.mulf %69, %1 : vector<32x32xf32>
    %75 = arith.mulf %70, %0 : vector<32x32xf32>
    %76 = arith.addf %74, %75 : vector<32x32xf32>
    %77 = tpu.concatenate %73, %76 in 1 : vector<32x32xf32>, vector<32x32xf32> -> vector<32x64xf32>
    %cst_25 = arith.constant 1.250000e-01 : f32
    %78 = vector.broadcast %cst_25 : f32 to vector<32x64xf32>
    %79 = arith.mulf %77, %78 : vector<32x64xf32>
    %80 = vector.extract_strided_slice %2 {offsets = [0, 128], sizes = [32, 64], strides = [1, 1]} : vector<32x256xf32> to vector<32x64xf32>
    %c0_26 = arith.constant 0 : index
    %c0_27 = arith.constant 0 : index
    %81 = vector.load %arg3[%c0_26, %c0_27] : memref<1x64xf32, #tpu.memory_space<vmem>>, vector<1x64xf32>
    %c0_28 = arith.constant 0 : index
    %c0_29 = arith.constant 0 : index
    %82 = vector.load %arg4[%c0_28, %c0_29] : memref<1x64xf32, #tpu.memory_space<vmem>>, vector<1x64xf32>
    %cst_30 = arith.constant dense<0.000000e+00> : vector<32xf32>
    %83 = vector.multi_reduction <add>, %80, %cst_30 [1] : vector<32x64xf32> to vector<32xf32>
    %84 = vector.shape_cast %83 : vector<32xf32> to vector<32x1xf32>
    %cst_31 = arith.constant 6.400000e+01 : f32
    %85 = vector.broadcast %cst_31 : f32 to vector<32x1xf32>
    %86 = arith.divf %84, %85 : vector<32x1xf32>
    %87 = vector.broadcast %86 : vector<32x1xf32> to vector<32x64xf32>
    %88 = arith.subf %80, %87 : vector<32x64xf32>
    %89 = vector.broadcast %86 : vector<32x1xf32> to vector<32x64xf32>
    %90 = arith.subf %80, %89 : vector<32x64xf32>
    %91 = arith.mulf %88, %90 : vector<32x64xf32>
    %cst_32 = arith.constant dense<0.000000e+00> : vector<32xf32>
    %92 = vector.multi_reduction <add>, %91, %cst_32 [1] : vector<32x64xf32> to vector<32xf32>
    %93 = vector.shape_cast %92 : vector<32xf32> to vector<32x1xf32>
    %cst_33 = arith.constant 6.400000e+01 : f32
    %94 = vector.broadcast %cst_33 : f32 to vector<32x1xf32>
    %95 = arith.divf %93, %94 : vector<32x1xf32>
    %96 = vector.broadcast %86 : vector<32x1xf32> to vector<32x64xf32>
    %97 = arith.subf %80, %96 : vector<32x64xf32>
    %cst_34 = arith.constant 9.99999974E-6 : f32
    %98 = vector.broadcast %cst_34 : f32 to vector<32x1xf32>
    %99 = arith.addf %95, %98 : vector<32x1xf32>
    %100 = math.rsqrt %99 : vector<32x1xf32>
    %101 = vector.broadcast %100 : vector<32x1xf32> to vector<32x64xf32>
    %102 = arith.mulf %97, %101 : vector<32x64xf32>
    %103 = vector.broadcast %81 : vector<1x64xf32> to vector<32x64xf32>
    %104 = arith.mulf %102, %103 : vector<32x64xf32>
    %105 = vector.broadcast %82 : vector<1x64xf32> to vector<32x64xf32>
    %106 = arith.addf %104, %105 : vector<32x64xf32>
    %107 = vector.extract_strided_slice %106 {offsets = [0, 0], sizes = [32, 32], strides = [1, 1]} : vector<32x64xf32> to vector<32x32xf32>
    %108 = vector.extract_strided_slice %106 {offsets = [0, 32], sizes = [32, 32], strides = [1, 1]} : vector<32x64xf32> to vector<32x32xf32>
    %109 = arith.mulf %107, %0 : vector<32x32xf32>
    %110 = arith.mulf %108, %1 : vector<32x32xf32>
    %111 = arith.subf %109, %110 : vector<32x32xf32>
    %112 = arith.mulf %107, %1 : vector<32x32xf32>
    %113 = arith.mulf %108, %0 : vector<32x32xf32>
    %114 = arith.addf %112, %113 : vector<32x32xf32>
    %115 = tpu.concatenate %111, %114 in 1 : vector<32x32xf32>, vector<32x32xf32> -> vector<32x64xf32>
    %cst_35 = arith.constant 1.250000e-01 : f32
    %116 = vector.broadcast %cst_35 : f32 to vector<32x64xf32>
    %117 = arith.mulf %115, %116 : vector<32x64xf32>
    %118 = vector.extract_strided_slice %2 {offsets = [0, 192], sizes = [32, 64], strides = [1, 1]} : vector<32x256xf32> to vector<32x64xf32>
    %c0_36 = arith.constant 0 : index
    %c0_37 = arith.constant 0 : index
    %119 = vector.load %arg3[%c0_36, %c0_37] : memref<1x64xf32, #tpu.memory_space<vmem>>, vector<1x64xf32>
    %c0_38 = arith.constant 0 : index
    %c0_39 = arith.constant 0 : index
    %120 = vector.load %arg4[%c0_38, %c0_39] : memref<1x64xf32, #tpu.memory_space<vmem>>, vector<1x64xf32>
    %cst_40 = arith.constant dense<0.000000e+00> : vector<32xf32>
    %121 = vector.multi_reduction <add>, %118, %cst_40 [1] : vector<32x64xf32> to vector<32xf32>
    %122 = vector.shape_cast %121 : vector<32xf32> to vector<32x1xf32>
    %cst_41 = arith.constant 6.400000e+01 : f32
    %123 = vector.broadcast %cst_41 : f32 to vector<32x1xf32>
    %124 = arith.divf %122, %123 : vector<32x1xf32>
    %125 = vector.broadcast %124 : vector<32x1xf32> to vector<32x64xf32>
    %126 = arith.subf %118, %125 : vector<32x64xf32>
    %127 = vector.broadcast %124 : vector<32x1xf32> to vector<32x64xf32>
    %128 = arith.subf %118, %127 : vector<32x64xf32>
    %129 = arith.mulf %126, %128 : vector<32x64xf32>
    %cst_42 = arith.constant dense<0.000000e+00> : vector<32xf32>
    %130 = vector.multi_reduction <add>, %129, %cst_42 [1] : vector<32x64xf32> to vector<32xf32>
    %131 = vector.shape_cast %130 : vector<32xf32> to vector<32x1xf32>
    %cst_43 = arith.constant 6.400000e+01 : f32
    %132 = vector.broadcast %cst_43 : f32 to vector<32x1xf32>
    %133 = arith.divf %131, %132 : vector<32x1xf32>
    %134 = vector.broadcast %124 : vector<32x1xf32> to vector<32x64xf32>
    %135 = arith.subf %118, %134 : vector<32x64xf32>
    %cst_44 = arith.constant 9.99999974E-6 : f32
    %136 = vector.broadcast %cst_44 : f32 to vector<32x1xf32>
    %137 = arith.addf %133, %136 : vector<32x1xf32>
    %138 = math.rsqrt %137 : vector<32x1xf32>
    %139 = vector.broadcast %138 : vector<32x1xf32> to vector<32x64xf32>
    %140 = arith.mulf %135, %139 : vector<32x64xf32>
    %141 = vector.broadcast %119 : vector<1x64xf32> to vector<32x64xf32>
    %142 = arith.mulf %140, %141 : vector<32x64xf32>
    %143 = vector.broadcast %120 : vector<1x64xf32> to vector<32x64xf32>
    %144 = arith.addf %142, %143 : vector<32x64xf32>
    %145 = vector.extract_strided_slice %144 {offsets = [0, 0], sizes = [32, 32], strides = [1, 1]} : vector<32x64xf32> to vector<32x32xf32>
    %146 = vector.extract_strided_slice %144 {offsets = [0, 32], sizes = [32, 32], strides = [1, 1]} : vector<32x64xf32> to vector<32x32xf32>
    %147 = arith.mulf %145, %0 : vector<32x32xf32>
    %148 = arith.mulf %146, %1 : vector<32x32xf32>
    %149 = arith.subf %147, %148 : vector<32x32xf32>
    %150 = arith.mulf %145, %1 : vector<32x32xf32>
    %151 = arith.mulf %146, %0 : vector<32x32xf32>
    %152 = arith.addf %150, %151 : vector<32x32xf32>
    %153 = tpu.concatenate %149, %152 in 1 : vector<32x32xf32>, vector<32x32xf32> -> vector<32x64xf32>
    %cst_45 = arith.constant 1.250000e-01 : f32
    %154 = vector.broadcast %cst_45 : f32 to vector<32x64xf32>
    %155 = arith.mulf %153, %154 : vector<32x64xf32>
    %156 = vector.extract_strided_slice %3 {offsets = [0, 0], sizes = [32, 64], strides = [1, 1]} : vector<32x256xf32> to vector<32x64xf32>
    %c0_46 = arith.constant 0 : index
    %c0_47 = arith.constant 0 : index
    %157 = vector.load %arg5[%c0_46, %c0_47] : memref<1x64xf32, #tpu.memory_space<vmem>>, vector<1x64xf32>
    %c0_48 = arith.constant 0 : index
    %c0_49 = arith.constant 0 : index
    %158 = vector.load %arg6[%c0_48, %c0_49] : memref<1x64xf32, #tpu.memory_space<vmem>>, vector<1x64xf32>
    %cst_50 = arith.constant dense<0.000000e+00> : vector<32xf32>
    %159 = vector.multi_reduction <add>, %156, %cst_50 [1] : vector<32x64xf32> to vector<32xf32>
    %160 = vector.shape_cast %159 : vector<32xf32> to vector<32x1xf32>
    %cst_51 = arith.constant 6.400000e+01 : f32
    %161 = vector.broadcast %cst_51 : f32 to vector<32x1xf32>
    %162 = arith.divf %160, %161 : vector<32x1xf32>
    %163 = vector.broadcast %162 : vector<32x1xf32> to vector<32x64xf32>
    %164 = arith.subf %156, %163 : vector<32x64xf32>
    %165 = vector.broadcast %162 : vector<32x1xf32> to vector<32x64xf32>
    %166 = arith.subf %156, %165 : vector<32x64xf32>
    %167 = arith.mulf %164, %166 : vector<32x64xf32>
    %cst_52 = arith.constant dense<0.000000e+00> : vector<32xf32>
    %168 = vector.multi_reduction <add>, %167, %cst_52 [1] : vector<32x64xf32> to vector<32xf32>
    %169 = vector.shape_cast %168 : vector<32xf32> to vector<32x1xf32>
    %cst_53 = arith.constant 6.400000e+01 : f32
    %170 = vector.broadcast %cst_53 : f32 to vector<32x1xf32>
    %171 = arith.divf %169, %170 : vector<32x1xf32>
    %172 = vector.broadcast %162 : vector<32x1xf32> to vector<32x64xf32>
    %173 = arith.subf %156, %172 : vector<32x64xf32>
    %cst_54 = arith.constant 9.99999974E-6 : f32
    %174 = vector.broadcast %cst_54 : f32 to vector<32x1xf32>
    %175 = arith.addf %171, %174 : vector<32x1xf32>
    %176 = math.rsqrt %175 : vector<32x1xf32>
    %177 = vector.broadcast %176 : vector<32x1xf32> to vector<32x64xf32>
    %178 = arith.mulf %173, %177 : vector<32x64xf32>
    %179 = vector.broadcast %157 : vector<1x64xf32> to vector<32x64xf32>
    %180 = arith.mulf %178, %179 : vector<32x64xf32>
    %181 = vector.broadcast %158 : vector<1x64xf32> to vector<32x64xf32>
    %182 = arith.addf %180, %181 : vector<32x64xf32>
    %183 = vector.extract_strided_slice %182 {offsets = [0, 0], sizes = [32, 32], strides = [1, 1]} : vector<32x64xf32> to vector<32x32xf32>
    %184 = vector.extract_strided_slice %182 {offsets = [0, 32], sizes = [32, 32], strides = [1, 1]} : vector<32x64xf32> to vector<32x32xf32>
    %185 = arith.mulf %183, %0 : vector<32x32xf32>
    %186 = arith.mulf %184, %1 : vector<32x32xf32>
    %187 = arith.subf %185, %186 : vector<32x32xf32>
    %188 = arith.mulf %183, %1 : vector<32x32xf32>
    %189 = arith.mulf %184, %0 : vector<32x32xf32>
    %190 = arith.addf %188, %189 : vector<32x32xf32>
    %191 = tpu.concatenate %187, %190 in 1 : vector<32x32xf32>, vector<32x32xf32> -> vector<32x64xf32>
    %192 = vector.extract_strided_slice %3 {offsets = [0, 64], sizes = [32, 64], strides = [1, 1]} : vector<32x256xf32> to vector<32x64xf32>
    %c0_55 = arith.constant 0 : index
    %c0_56 = arith.constant 0 : index
    %193 = vector.load %arg5[%c0_55, %c0_56] : memref<1x64xf32, #tpu.memory_space<vmem>>, vector<1x64xf32>
    %c0_57 = arith.constant 0 : index
    %c0_58 = arith.constant 0 : index
    %194 = vector.load %arg6[%c0_57, %c0_58] : memref<1x64xf32, #tpu.memory_space<vmem>>, vector<1x64xf32>
    %cst_59 = arith.constant dense<0.000000e+00> : vector<32xf32>
    %195 = vector.multi_reduction <add>, %192, %cst_59 [1] : vector<32x64xf32> to vector<32xf32>
    %196 = vector.shape_cast %195 : vector<32xf32> to vector<32x1xf32>
    %cst_60 = arith.constant 6.400000e+01 : f32
    %197 = vector.broadcast %cst_60 : f32 to vector<32x1xf32>
    %198 = arith.divf %196, %197 : vector<32x1xf32>
    %199 = vector.broadcast %198 : vector<32x1xf32> to vector<32x64xf32>
    %200 = arith.subf %192, %199 : vector<32x64xf32>
    %201 = vector.broadcast %198 : vector<32x1xf32> to vector<32x64xf32>
    %202 = arith.subf %192, %201 : vector<32x64xf32>
    %203 = arith.mulf %200, %202 : vector<32x64xf32>
    %cst_61 = arith.constant dense<0.000000e+00> : vector<32xf32>
    %204 = vector.multi_reduction <add>, %203, %cst_61 [1] : vector<32x64xf32> to vector<32xf32>
    %205 = vector.shape_cast %204 : vector<32xf32> to vector<32x1xf32>
    %cst_62 = arith.constant 6.400000e+01 : f32
    %206 = vector.broadcast %cst_62 : f32 to vector<32x1xf32>
    %207 = arith.divf %205, %206 : vector<32x1xf32>
    %208 = vector.broadcast %198 : vector<32x1xf32> to vector<32x64xf32>
    %209 = arith.subf %192, %208 : vector<32x64xf32>
    %cst_63 = arith.constant 9.99999974E-6 : f32
    %210 = vector.broadcast %cst_63 : f32 to vector<32x1xf32>
    %211 = arith.addf %207, %210 : vector<32x1xf32>
    %212 = math.rsqrt %211 : vector<32x1xf32>
    %213 = vector.broadcast %212 : vector<32x1xf32> to vector<32x64xf32>
    %214 = arith.mulf %209, %213 : vector<32x64xf32>
    %215 = vector.broadcast %193 : vector<1x64xf32> to vector<32x64xf32>
    %216 = arith.mulf %214, %215 : vector<32x64xf32>
    %217 = vector.broadcast %194 : vector<1x64xf32> to vector<32x64xf32>
    %218 = arith.addf %216, %217 : vector<32x64xf32>
    %219 = vector.extract_strided_slice %218 {offsets = [0, 0], sizes = [32, 32], strides = [1, 1]} : vector<32x64xf32> to vector<32x32xf32>
    %220 = vector.extract_strided_slice %218 {offsets = [0, 32], sizes = [32, 32], strides = [1, 1]} : vector<32x64xf32> to vector<32x32xf32>
    %221 = arith.mulf %219, %0 : vector<32x32xf32>
    %222 = arith.mulf %220, %1 : vector<32x32xf32>
    %223 = arith.subf %221, %222 : vector<32x32xf32>
    %224 = arith.mulf %219, %1 : vector<32x32xf32>
    %225 = arith.mulf %220, %0 : vector<32x32xf32>
    %226 = arith.addf %224, %225 : vector<32x32xf32>
    %227 = tpu.concatenate %223, %226 in 1 : vector<32x32xf32>, vector<32x32xf32> -> vector<32x64xf32>
    %228 = vector.extract_strided_slice %3 {offsets = [0, 128], sizes = [32, 64], strides = [1, 1]} : vector<32x256xf32> to vector<32x64xf32>
    %c0_64 = arith.constant 0 : index
    %c0_65 = arith.constant 0 : index
    %229 = vector.load %arg5[%c0_64, %c0_65] : memref<1x64xf32, #tpu.memory_space<vmem>>, vector<1x64xf32>
    %c0_66 = arith.constant 0 : index
    %c0_67 = arith.constant 0 : index
    %230 = vector.load %arg6[%c0_66, %c0_67] : memref<1x64xf32, #tpu.memory_space<vmem>>, vector<1x64xf32>
    %cst_68 = arith.constant dense<0.000000e+00> : vector<32xf32>
    %231 = vector.multi_reduction <add>, %228, %cst_68 [1] : vector<32x64xf32> to vector<32xf32>
    %232 = vector.shape_cast %231 : vector<32xf32> to vector<32x1xf32>
    %cst_69 = arith.constant 6.400000e+01 : f32
    %233 = vector.broadcast %cst_69 : f32 to vector<32x1xf32>
    %234 = arith.divf %232, %233 : vector<32x1xf32>
    %235 = vector.broadcast %234 : vector<32x1xf32> to vector<32x64xf32>
    %236 = arith.subf %228, %235 : vector<32x64xf32>
    %237 = vector.broadcast %234 : vector<32x1xf32> to vector<32x64xf32>
    %238 = arith.subf %228, %237 : vector<32x64xf32>
    %239 = arith.mulf %236, %238 : vector<32x64xf32>
    %cst_70 = arith.constant dense<0.000000e+00> : vector<32xf32>
    %240 = vector.multi_reduction <add>, %239, %cst_70 [1] : vector<32x64xf32> to vector<32xf32>
    %241 = vector.shape_cast %240 : vector<32xf32> to vector<32x1xf32>
    %cst_71 = arith.constant 6.400000e+01 : f32
    %242 = vector.broadcast %cst_71 : f32 to vector<32x1xf32>
    %243 = arith.divf %241, %242 : vector<32x1xf32>
    %244 = vector.broadcast %234 : vector<32x1xf32> to vector<32x64xf32>
    %245 = arith.subf %228, %244 : vector<32x64xf32>
    %cst_72 = arith.constant 9.99999974E-6 : f32
    %246 = vector.broadcast %cst_72 : f32 to vector<32x1xf32>
    %247 = arith.addf %243, %246 : vector<32x1xf32>
    %248 = math.rsqrt %247 : vector<32x1xf32>
    %249 = vector.broadcast %248 : vector<32x1xf32> to vector<32x64xf32>
    %250 = arith.mulf %245, %249 : vector<32x64xf32>
    %251 = vector.broadcast %229 : vector<1x64xf32> to vector<32x64xf32>
    %252 = arith.mulf %250, %251 : vector<32x64xf32>
    %253 = vector.broadcast %230 : vector<1x64xf32> to vector<32x64xf32>
    %254 = arith.addf %252, %253 : vector<32x64xf32>
    %255 = vector.extract_strided_slice %254 {offsets = [0, 0], sizes = [32, 32], strides = [1, 1]} : vector<32x64xf32> to vector<32x32xf32>
    %256 = vector.extract_strided_slice %254 {offsets = [0, 32], sizes = [32, 32], strides = [1, 1]} : vector<32x64xf32> to vector<32x32xf32>
    %257 = arith.mulf %255, %0 : vector<32x32xf32>
    %258 = arith.mulf %256, %1 : vector<32x32xf32>
    %259 = arith.subf %257, %258 : vector<32x32xf32>
    %260 = arith.mulf %255, %1 : vector<32x32xf32>
    %261 = arith.mulf %256, %0 : vector<32x32xf32>
    %262 = arith.addf %260, %261 : vector<32x32xf32>
    %263 = tpu.concatenate %259, %262 in 1 : vector<32x32xf32>, vector<32x32xf32> -> vector<32x64xf32>
    %264 = vector.extract_strided_slice %3 {offsets = [0, 192], sizes = [32, 64], strides = [1, 1]} : vector<32x256xf32> to vector<32x64xf32>
    %c0_73 = arith.constant 0 : index
    %c0_74 = arith.constant 0 : index
    %265 = vector.load %arg5[%c0_73, %c0_74] : memref<1x64xf32, #tpu.memory_space<vmem>>, vector<1x64xf32>
    %c0_75 = arith.constant 0 : index
    %c0_76 = arith.constant 0 : index
    %266 = vector.load %arg6[%c0_75, %c0_76] : memref<1x64xf32, #tpu.memory_space<vmem>>, vector<1x64xf32>
    %cst_77 = arith.constant dense<0.000000e+00> : vector<32xf32>
    %267 = vector.multi_reduction <add>, %264, %cst_77 [1] : vector<32x64xf32> to vector<32xf32>
    %268 = vector.shape_cast %267 : vector<32xf32> to vector<32x1xf32>
    %cst_78 = arith.constant 6.400000e+01 : f32
    %269 = vector.broadcast %cst_78 : f32 to vector<32x1xf32>
    %270 = arith.divf %268, %269 : vector<32x1xf32>
    %271 = vector.broadcast %270 : vector<32x1xf32> to vector<32x64xf32>
    %272 = arith.subf %264, %271 : vector<32x64xf32>
    %273 = vector.broadcast %270 : vector<32x1xf32> to vector<32x64xf32>
    %274 = arith.subf %264, %273 : vector<32x64xf32>
    %275 = arith.mulf %272, %274 : vector<32x64xf32>
    %cst_79 = arith.constant dense<0.000000e+00> : vector<32xf32>
    %276 = vector.multi_reduction <add>, %275, %cst_79 [1] : vector<32x64xf32> to vector<32xf32>
    %277 = vector.shape_cast %276 : vector<32xf32> to vector<32x1xf32>
    %cst_80 = arith.constant 6.400000e+01 : f32
    %278 = vector.broadcast %cst_80 : f32 to vector<32x1xf32>
    %279 = arith.divf %277, %278 : vector<32x1xf32>
    %280 = vector.broadcast %270 : vector<32x1xf32> to vector<32x64xf32>
    %281 = arith.subf %264, %280 : vector<32x64xf32>
    %cst_81 = arith.constant 9.99999974E-6 : f32
    %282 = vector.broadcast %cst_81 : f32 to vector<32x1xf32>
    %283 = arith.addf %279, %282 : vector<32x1xf32>
    %284 = math.rsqrt %283 : vector<32x1xf32>
    %285 = vector.broadcast %284 : vector<32x1xf32> to vector<32x64xf32>
    %286 = arith.mulf %281, %285 : vector<32x64xf32>
    %287 = vector.broadcast %265 : vector<1x64xf32> to vector<32x64xf32>
    %288 = arith.mulf %286, %287 : vector<32x64xf32>
    %289 = vector.broadcast %266 : vector<1x64xf32> to vector<32x64xf32>
    %290 = arith.addf %288, %289 : vector<32x64xf32>
    %291 = vector.extract_strided_slice %290 {offsets = [0, 0], sizes = [32, 32], strides = [1, 1]} : vector<32x64xf32> to vector<32x32xf32>
    %292 = vector.extract_strided_slice %290 {offsets = [0, 32], sizes = [32, 32], strides = [1, 1]} : vector<32x64xf32> to vector<32x32xf32>
    %293 = arith.mulf %291, %0 : vector<32x32xf32>
    %294 = arith.mulf %292, %1 : vector<32x32xf32>
    %295 = arith.subf %293, %294 : vector<32x32xf32>
    %296 = arith.mulf %291, %1 : vector<32x32xf32>
    %297 = arith.mulf %292, %0 : vector<32x32xf32>
    %298 = arith.addf %296, %297 : vector<32x32xf32>
    %299 = tpu.concatenate %295, %298 in 1 : vector<32x32xf32>, vector<32x32xf32> -> vector<32x64xf32>
    %300 = tpu.concatenate %41, %79, %117, %155, %191, %227, %263, %299 in 1 : vector<32x64xf32>, vector<32x64xf32>, vector<32x64xf32>, vector<32x64xf32>, vector<32x64xf32>, vector<32x64xf32>, vector<32x64xf32>, vector<32x64xf32> -> vector<32x512xf32>
    %301 = arith.truncf %300 : vector<32x512xf32> to vector<32x512xbf16>
    %c0_82 = arith.constant 0 : index
    %c0_83 = arith.constant 0 : index
    %302 = vector.load %arg9[%c0_82, %c0_83] : memref<32x512xbf16, #tpu.memory_space<vmem>>, vector<32x512xbf16>
    tpu.vector_store %arg9[%c0_82, %c0_83], %301 {strides = array<i32>} : memref<32x512xbf16, #tpu.memory_space<vmem>>, vector<32x512xbf16>,
    return
  }
  func.func @transform_0(%arg0: i32) -> (i32, i32) {
    %c0_i32 = arith.constant 0 : i32
    %c0_i32_0 = arith.constant 0 : i32
    return %arg0, %c0_i32 : i32, i32
  }
  func.func @transform_1(%arg0: i32) -> (i32, i32) {
    %c1_i32 = arith.constant 1 : i32
    %c0_i32 = arith.constant 0 : i32
    return %arg0, %c1_i32 : i32, i32
  }
  func.func @transform_2(%arg0: i32) -> (i32, i32) {
    %c0_i32 = arith.constant 0 : i32
    %c0_i32_0 = arith.constant 0 : i32
    %c0_i32_1 = arith.constant 0 : i32
    return %c0_i32, %c0_i32_0 : i32, i32
  }
  func.func @transform_3(%arg0: i32) -> (i32, i32) {
    %c0_i32 = arith.constant 0 : i32
    %c0_i32_0 = arith.constant 0 : i32
    %c0_i32_1 = arith.constant 0 : i32
    return %c0_i32, %c0_i32_0 : i32, i32
  }
  func.func @transform_4(%arg0: i32) -> (i32, i32) {
    %c0_i32 = arith.constant 0 : i32
    %c0_i32_0 = arith.constant 0 : i32
    %c0_i32_1 = arith.constant 0 : i32
    return %c0_i32, %c0_i32_0 : i32, i32
  }
  func.func @transform_5(%arg0: i32) -> (i32, i32) {
    %c0_i32 = arith.constant 0 : i32
    %c0_i32_0 = arith.constant 0 : i32
    %c0_i32_1 = arith.constant 0 : i32
    return %c0_i32, %c0_i32_0 : i32, i32
  }
  func.func @transform_6(%arg0: i32) -> (i32, i32) {
    %c0_i32 = arith.constant 0 : i32
    %c0_i32_0 = arith.constant 0 : i32
    return %arg0, %c0_i32 : i32, i32
  }
  func.func @transform_7(%arg0: i32) -> (i32, i32) {
    %c0_i32 = arith.constant 0 : i32
    %c0_i32_0 = arith.constant 0 : i32
    return %arg0, %c0_i32 : i32, i32
  }
  func.func @transform_8(%arg0: i32) -> (i32, i32) {
    %c0_i32 = arith.constant 0 : i32
    %c0_i32_0 = arith.constant 0 : i32
    return %arg0, %c0_i32 : i32, i32
  }
}

module attributes {stable_mosaic.version = 11 : i64} {
  func.func @_linear_residual_kernel(%arg0: i32, %arg1: i32, %arg2: i32, %arg3: memref<32x256xf32, #tpu.memory_space<vmem>>, %arg4: memref<256x256xbf16, #tpu.memory_space<vmem>>, %arg5: memref<32x256xf32, #tpu.memory_space<vmem>>, %arg6: memref<32x256xf32, #tpu.memory_space<vmem>>) attributes {dimension_semantics = [#tpu.dimension_semantics<parallel>, #tpu.dimension_semantics<parallel>, #tpu.dimension_semantics<arbitrary>], iteration_bounds = array<i64: 1, 1, 1>, scalar_prefetch = 0 : i64, scratch_operands = 0 : i64, tpu.core_type = #tpu.core_type<tc>, window_params = [{transform_indices = @transform_0, window_bounds = array<i64: 32, 256>}, {transform_indices = @transform_1, window_bounds = array<i64: 256, 256>}, {transform_indices = @transform_2, window_bounds = array<i64: 32, 256>}, {transform_indices = @transform_3, window_bounds = array<i64: 32, 256>}]} {
    %c0_i32 = arith.constant 0 : i32
    %0 = arith.cmpi eq, %arg2, %c0_i32 : i32
    %1 = arith.extui %0 : i1 to i32
    %c0_i32_0 = arith.constant 0 : i32
    %2 = arith.cmpi ne, %1, %c0_i32_0 : i32
    scf.if %2 {
      %c0_8 = arith.constant 0 : index
      %c0_9 = arith.constant 0 : index
      %10 = vector.load %arg5[%c0_8, %c0_9] : memref<32x256xf32, #tpu.memory_space<vmem>>, vector<32x256xf32>
      %c0_10 = arith.constant 0 : index
      %c0_11 = arith.constant 0 : index
      %11 = vector.load %arg6[%c0_10, %c0_11] : memref<32x256xf32, #tpu.memory_space<vmem>>, vector<32x256xf32>
      tpu.vector_store %arg6[%c0_10, %c0_11], %10 {strides = array<i32>} : memref<32x256xf32, #tpu.memory_space<vmem>>, vector<32x256xf32>,
    } else {
    }
    %c0 = arith.constant 0 : index
    %c0_1 = arith.constant 0 : index
    %3 = vector.load %arg6[%c0, %c0_1] : memref<32x256xf32, #tpu.memory_space<vmem>>, vector<32x256xf32>
    %c0_2 = arith.constant 0 : index
    %c0_3 = arith.constant 0 : index
    %4 = vector.load %arg3[%c0_2, %c0_3] : memref<32x256xf32, #tpu.memory_space<vmem>>, vector<32x256xf32>
    %5 = arith.truncf %4 : vector<32x256xf32> to vector<32x256xbf16>
    %c0_4 = arith.constant 0 : index
    %c0_5 = arith.constant 0 : index
    %6 = vector.load %arg4[%c0_4, %c0_5] : memref<256x256xbf16, #tpu.memory_space<vmem>>, vector<256x256xbf16>
    %cst = arith.constant dense<0.000000e+00> : vector<32x256xf32>
    %7 = tpu.matmul %5, %6, %cst {dimension_numbers = #tpu.dot_dimension_numbers<[1], [0], [0], [1], [0, 0, 1, 1], [], []>} : vector<32x256xbf16>, vector<256x256xbf16>, vector<32x256xf32> -> vector<32x256xf32>
    %8 = arith.addf %3, %7 : vector<32x256xf32>
    %c0_6 = arith.constant 0 : index
    %c0_7 = arith.constant 0 : index
    %9 = vector.load %arg6[%c0_6, %c0_7] : memref<32x256xf32, #tpu.memory_space<vmem>>, vector<32x256xf32>
    tpu.vector_store %arg6[%c0_6, %c0_7], %8 {strides = array<i32>} : memref<32x256xf32, #tpu.memory_space<vmem>>, vector<32x256xf32>,
    return
  }
  func.func @transform_0(%arg0: i32, %arg1: i32, %arg2: i32) -> (i32, i32) {
    %c0_i32 = arith.constant 0 : i32
    return %arg0, %arg2 : i32, i32
  }
  func.func @transform_1(%arg0: i32, %arg1: i32, %arg2: i32) -> (i32, i32) {
    %c0_i32 = arith.constant 0 : i32
    return %arg2, %arg1 : i32, i32
  }
  func.func @transform_2(%arg0: i32, %arg1: i32, %arg2: i32) -> (i32, i32) {
    %c0_i32 = arith.constant 0 : i32
    return %arg0, %arg1 : i32, i32
  }
  func.func @transform_3(%arg0: i32, %arg1: i32, %arg2: i32) -> (i32, i32) {
    %c0_i32 = arith.constant 0 : i32
    return %arg0, %arg1 : i32, i32
  }
}

module attributes {stable_mosaic.version = 11 : i64} {
  func.func @_norm_ffn_kernel(%arg0: i32, %arg1: i32, %arg2: memref<32x256xf32, #tpu.memory_space<vmem>>, %arg3: memref<1x256xf32, #tpu.memory_space<vmem>>, %arg4: memref<256x256xbf16, #tpu.memory_space<vmem>>, %arg5: memref<256x256xbf16, #tpu.memory_space<vmem>>, %arg6: memref<256x256xbf16, #tpu.memory_space<vmem>>, %arg7: memref<32x256xf32, #tpu.memory_space<vmem>>, %arg8: memref<32x256xbf16, #tpu.memory_space<vmem>>) attributes {dimension_semantics = [#tpu.dimension_semantics<parallel>, #tpu.dimension_semantics<arbitrary>], iteration_bounds = array<i64: 1, 1>, scalar_prefetch = 0 : i64, scratch_operands = 1 : i64, tpu.core_type = #tpu.core_type<tc>, window_params = [{transform_indices = @transform_0, window_bounds = array<i64: 32, 256>}, {pipeline_mode = #tpu.pipeline_mode<synchronous>, transform_indices = @transform_1, window_bounds = array<i64: 1, 256>}, {transform_indices = @transform_2, window_bounds = array<i64: 256, 256>}, {transform_indices = @transform_3, window_bounds = array<i64: 256, 256>}, {transform_indices = @transform_4, window_bounds = array<i64: 256, 256>}, {transform_indices = @transform_5, window_bounds = array<i64: 32, 256>}]} {
    %c0_i32 = arith.constant 0 : i32
    %0 = arith.cmpi eq, %arg1, %c0_i32 : i32
    %1 = arith.extui %0 : i1 to i32
    %c0_i32_0 = arith.constant 0 : i32
    %2 = arith.cmpi ne, %1, %c0_i32_0 : i32
    scf.if %2 {
      %c0_15 = arith.constant 0 : index
      %c0_16 = arith.constant 0 : index
      %21 = vector.load %arg2[%c0_15, %c0_16] : memref<32x256xf32, #tpu.memory_space<vmem>>, vector<32x256xf32>
      %22 = arith.mulf %21, %21 : vector<32x256xf32>
      %cst_17 = arith.constant dense<0.000000e+00> : vector<32xf32>
      %23 = vector.multi_reduction <add>, %22, %cst_17 [1] : vector<32x256xf32> to vector<32xf32>
      %24 = vector.shape_cast %23 : vector<32xf32> to vector<32x1xf32>
      %cst_18 = arith.constant 2.560000e+02 : f32
      %25 = vector.broadcast %cst_18 : f32 to vector<32x1xf32>
      %26 = arith.divf %24, %25 : vector<32x1xf32>
      %cst_19 = arith.constant 9.99999974E-6 : f32
      %27 = vector.broadcast %cst_19 : f32 to vector<32x1xf32>
      %28 = arith.addf %26, %27 : vector<32x1xf32>
      %29 = math.rsqrt %28 : vector<32x1xf32>
      %30 = vector.broadcast %29 : vector<32x1xf32> to vector<32x256xf32>
      %31 = arith.mulf %21, %30 : vector<32x256xf32>
      %c0_20 = arith.constant 0 : index
      %c0_21 = arith.constant 0 : index
      %32 = vector.load %arg3[%c0_20, %c0_21] : memref<1x256xf32, #tpu.memory_space<vmem>>, vector<1x256xf32>
      %33 = vector.broadcast %32 : vector<1x256xf32> to vector<32x256xf32>
      %34 = arith.mulf %31, %33 : vector<32x256xf32>
      %35 = arith.truncf %34 : vector<32x256xf32> to vector<32x256xbf16>
      %c0_22 = arith.constant 0 : index
      %c0_23 = arith.constant 0 : index
      %36 = vector.load %arg8[%c0_22, %c0_23] : memref<32x256xbf16, #tpu.memory_space<vmem>>, vector<32x256xbf16>
      tpu.vector_store %arg8[%c0_22, %c0_23], %35 {strides = array<i32>} : memref<32x256xbf16, #tpu.memory_space<vmem>>, vector<32x256xbf16>,
      %c0_24 = arith.constant 0 : index
      %c0_25 = arith.constant 0 : index
      %37 = vector.load %arg7[%c0_24, %c0_25] : memref<32x256xf32, #tpu.memory_space<vmem>>, vector<32x256xf32>
      tpu.vector_store %arg7[%c0_24, %c0_25], %21 {strides = array<i32>} : memref<32x256xf32, #tpu.memory_space<vmem>>, vector<32x256xf32>,
    } else {
    }
    %c0 = arith.constant 0 : index
    %c0_1 = arith.constant 0 : index
    %3 = vector.load %arg8[%c0, %c0_1] : memref<32x256xbf16, #tpu.memory_space<vmem>>, vector<32x256xbf16>
    %c0_2 = arith.constant 0 : index
    %c0_3 = arith.constant 0 : index
    %4 = vector.load %arg4[%c0_2, %c0_3] : memref<256x256xbf16, #tpu.memory_space<vmem>>, vector<256x256xbf16>
    %cst = arith.constant dense<0.000000e+00> : vector<32x256xf32>
    %5 = tpu.matmul %3, %4, %cst {dimension_numbers = #tpu.dot_dimension_numbers<[1], [0], [0], [1], [0, 0, 1, 1], [], []>} : vector<32x256xbf16>, vector<256x256xbf16>, vector<32x256xf32> -> vector<32x256xf32>
    %c0_4 = arith.constant 0 : index
    %c0_5 = arith.constant 0 : index
    %6 = vector.load %arg5[%c0_4, %c0_5] : memref<256x256xbf16, #tpu.memory_space<vmem>>, vector<256x256xbf16>
    %cst_6 = arith.constant dense<0.000000e+00> : vector<32x256xf32>
    %7 = tpu.matmul %3, %6, %cst_6 {dimension_numbers = #tpu.dot_dimension_numbers<[1], [0], [0], [1], [0, 0, 1, 1], [], []>} : vector<32x256xbf16>, vector<256x256xbf16>, vector<32x256xf32> -> vector<32x256xf32>
    %8 = arith.negf %5 : vector<32x256xf32>
    %9 = math.exp %8 : vector<32x256xf32>
    %cst_7 = arith.constant 1.000000e+00 : f32
    %10 = vector.broadcast %cst_7 : f32 to vector<32x256xf32>
    %11 = arith.addf %10, %9 : vector<32x256xf32>
    %12 = arith.divf %10, %11 : vector<32x256xf32>
    %13 = arith.mulf %5, %12 : vector<32x256xf32>
    %14 = arith.mulf %13, %7 : vector<32x256xf32>
    %15 = arith.truncf %14 : vector<32x256xf32> to vector<32x256xbf16>
    %c0_8 = arith.constant 0 : index
    %c0_9 = arith.constant 0 : index
    %16 = vector.load %arg7[%c0_8, %c0_9] : memref<32x256xf32, #tpu.memory_space<vmem>>, vector<32x256xf32>
    %c0_10 = arith.constant 0 : index
    %c0_11 = arith.constant 0 : index
    %17 = vector.load %arg6[%c0_10, %c0_11] : memref<256x256xbf16, #tpu.memory_space<vmem>>, vector<256x256xbf16>
    %cst_12 = arith.constant dense<0.000000e+00> : vector<32x256xf32>
    %18 = tpu.matmul %15, %17, %cst_12 {dimension_numbers = #tpu.dot_dimension_numbers<[1], [0], [0], [1], [0, 0, 1, 1], [], []>} : vector<32x256xbf16>, vector<256x256xbf16>, vector<32x256xf32> -> vector<32x256xf32>
    %19 = arith.addf %16, %18 : vector<32x256xf32>
    %c0_13 = arith.constant 0 : index
    %c0_14 = arith.constant 0 : index
    %20 = vector.load %arg7[%c0_13, %c0_14] : memref<32x256xf32, #tpu.memory_space<vmem>>, vector<32x256xf32>
    tpu.vector_store %arg7[%c0_13, %c0_14], %19 {strides = array<i32>} : memref<32x256xf32, #tpu.memory_space<vmem>>, vector<32x256xf32>,
    return
  }
  func.func @transform_0(%arg0: i32, %arg1: i32) -> (i32, i32) {
    %c0_i32 = arith.constant 0 : i32
    %c0_i32_0 = arith.constant 0 : i32
    return %arg0, %c0_i32 : i32, i32
  }
  func.func @transform_1(%arg0: i32, %arg1: i32) -> (i32, i32) {
    %c0_i32 = arith.constant 0 : i32
    %c0_i32_0 = arith.constant 0 : i32
    %c0_i32_1 = arith.constant 0 : i32
    return %c0_i32, %c0_i32_0 : i32, i32
  }
  func.func @transform_2(%arg0: i32, %arg1: i32) -> (i32, i32) {
    %c0_i32 = arith.constant 0 : i32
    %c0_i32_0 = arith.constant 0 : i32
    return %c0_i32, %arg1 : i32, i32
  }
  func.func @transform_3(%arg0: i32, %arg1: i32) -> (i32, i32) {
    %c0_i32 = arith.constant 0 : i32
    %c0_i32_0 = arith.constant 0 : i32
    return %c0_i32, %arg1 : i32, i32
  }
  func.func @transform_4(%arg0: i32, %arg1: i32) -> (i32, i32) {
    %c0_i32 = arith.constant 0 : i32
    %c0_i32_0 = arith.constant 0 : i32
    return %arg1, %c0_i32 : i32, i32
  }
  func.func @transform_5(%arg0: i32, %arg1: i32) -> (i32, i32) {
    %c0_i32 = arith.constant 0 : i32
    %c0_i32_0 = arith.constant 0 : i32
    return %arg0, %c0_i32 : i32, i32
  }
}

module attributes {stable_mosaic.version = 11 : i64} {
  func.func @_norm_linear_kernel(%arg0: i32, %arg1: i32, %arg2: memref<32x256xf32, #tpu.memory_space<vmem>>, %arg3: memref<1x256xf32, #tpu.memory_space<vmem>>, %arg4: memref<256x512xbf16, #tpu.memory_space<vmem>>, %arg5: memref<32x512xf32, #tpu.memory_space<vmem>>) attributes {dimension_semantics = [#tpu.dimension_semantics<parallel>, #tpu.dimension_semantics<parallel>], iteration_bounds = array<i64: 1, 1>, scalar_prefetch = 0 : i64, scratch_operands = 0 : i64, tpu.core_type = #tpu.core_type<tc>, window_params = [{transform_indices = @transform_0, window_bounds = array<i64: 32, 256>}, {pipeline_mode = #tpu.pipeline_mode<synchronous>, transform_indices = @transform_1, window_bounds = array<i64: 1, 256>}, {transform_indices = @transform_2, window_bounds = array<i64: 256, 512>}, {transform_indices = @transform_3, window_bounds = array<i64: 32, 512>}]} {
    %c0 = arith.constant 0 : index
    %c0_0 = arith.constant 0 : index
    %0 = vector.load %arg2[%c0, %c0_0] : memref<32x256xf32, #tpu.memory_space<vmem>>, vector<32x256xf32>
    %1 = arith.mulf %0, %0 : vector<32x256xf32>
    %cst = arith.constant dense<0.000000e+00> : vector<32xf32>
    %2 = vector.multi_reduction <add>, %1, %cst [1] : vector<32x256xf32> to vector<32xf32>
    %3 = vector.shape_cast %2 : vector<32xf32> to vector<32x1xf32>
    %cst_1 = arith.constant 2.560000e+02 : f32
    %4 = vector.broadcast %cst_1 : f32 to vector<32x1xf32>
    %5 = arith.divf %3, %4 : vector<32x1xf32>
    %cst_2 = arith.constant 9.99999974E-6 : f32
    %6 = vector.broadcast %cst_2 : f32 to vector<32x1xf32>
    %7 = arith.addf %5, %6 : vector<32x1xf32>
    %8 = math.rsqrt %7 : vector<32x1xf32>
    %9 = vector.broadcast %8 : vector<32x1xf32> to vector<32x256xf32>
    %10 = arith.mulf %0, %9 : vector<32x256xf32>
    %c0_3 = arith.constant 0 : index
    %c0_4 = arith.constant 0 : index
    %11 = vector.load %arg3[%c0_3, %c0_4] : memref<1x256xf32, #tpu.memory_space<vmem>>, vector<1x256xf32>
    %12 = vector.broadcast %11 : vector<1x256xf32> to vector<32x256xf32>
    %13 = arith.mulf %10, %12 : vector<32x256xf32>
    %14 = arith.truncf %13 : vector<32x256xf32> to vector<32x256xbf16>
    %c0_5 = arith.constant 0 : index
    %c0_6 = arith.constant 0 : index
    %15 = vector.load %arg4[%c0_5, %c0_6] : memref<256x512xbf16, #tpu.memory_space<vmem>>, vector<256x512xbf16>
    %cst_7 = arith.constant dense<0.000000e+00> : vector<32x512xf32>
    %16 = tpu.matmul %14, %15, %cst_7 {dimension_numbers = #tpu.dot_dimension_numbers<[1], [0], [0], [1], [0, 0, 1, 1], [], []>} : vector<32x256xbf16>, vector<256x512xbf16>, vector<32x512xf32> -> vector<32x512xf32>
    %c0_8 = arith.constant 0 : index
    %c0_9 = arith.constant 0 : index
    %17 = vector.load %arg5[%c0_8, %c0_9] : memref<32x512xf32, #tpu.memory_space<vmem>>, vector<32x512xf32>
    tpu.vector_store %arg5[%c0_8, %c0_9], %16 {strides = array<i32>} : memref<32x512xf32, #tpu.memory_space<vmem>>, vector<32x512xf32>,
    return
  }
  func.func @transform_0(%arg0: i32, %arg1: i32) -> (i32, i32) {
    %c0_i32 = arith.constant 0 : i32
    %c0_i32_0 = arith.constant 0 : i32
    return %arg0, %c0_i32 : i32, i32
  }
  func.func @transform_1(%arg0: i32, %arg1: i32) -> (i32, i32) {
    %c0_i32 = arith.constant 0 : i32
    %c0_i32_0 = arith.constant 0 : i32
    %c0_i32_1 = arith.constant 0 : i32
    return %c0_i32, %c0_i32_0 : i32, i32
  }
  func.func @transform_2(%arg0: i32, %arg1: i32) -> (i32, i32) {
    %c0_i32 = arith.constant 0 : i32
    %c0_i32_0 = arith.constant 0 : i32
    return %c0_i32, %arg1 : i32, i32
  }
  func.func @transform_3(%arg0: i32, %arg1: i32) -> (i32, i32) {
    %c0_i32 = arith.constant 0 : i32
    return %arg0, %arg1 : i32, i32
  }
}

</mosaic_0001>

<llo_original>
// kernel: chameleon_forward.14
$region0: #{chameleon_forward.14}
  #allocation0 [shape = 'u32[]', space=smem, size = 0x4, offset = 0x4, fixed_abs, tag = 'smem constant byte address 0x4 - core index']
  #allocation1 [shape = 'u32[144,128]{1,0:T(1,128)}', space=vmem, size = 0x12000, scoped, tag = 'internal scratch']
  %s0 = inlined_call_operand.vmem [shape: f32[32,256], index: 0, kind: input, shape index: {}]
  %s1 = inlined_call_operand.vmem [shape: bf16[256,256], index: 1, kind: input, shape index: {}]
  %s2 = inlined_call_operand.vmem [shape: f32[32,256], index: 2, kind: input, shape index: {}]
  %s3 = inlined_call_operand.vmem [shape: f32[32,256], index: 3, kind: output, shape index: {}]
  %s4 = sld [smem:[#allocation0]]
  $region26: #{chameleon_forward.14} parent=0
    _
  %s6 = ssub.s32 1, %s4
  %s7 = scalar_select 0, %s6, %s4
  // Predicated region
  $region2: #{chameleon_forward.14} parent=0 // pred_check
    _
  $region3: #{chameleon_forward.14} parent=0 // pred_check_branch
    %9 = sbr.rel (0) target = $region5
  $region4: #{chameleon_forward.14} parent=0 // pred_region
    _
  $region5: #{chameleon_forward.14} parent=0 // pred_fallthru
    _
  // Predicated region
  $region6: #{chameleon_forward.14} parent=0 // pred_check
    _
  $region7: #{chameleon_forward.14} parent=0 // pred_check_branch
    %11 = sbr.rel (0) target = $region9
  $region8: #{chameleon_forward.14} parent=0 // pred_region
    _
  $region9: #{chameleon_forward.14} parent=0 // pred_fallthru
    _
  // Predicated region
  $region10: #{chameleon_forward.14} parent=0 // pred_check
    _
  $region11: #{chameleon_forward.14} parent=0 // pred_check_branch
    %13 = sbr.rel (0) target = $region13
  $region12: #{chameleon_forward.14} parent=0 // pred_region
    _
  $region13: #{chameleon_forward.14} parent=0 // pred_fallthru
    _
  %p14 = scmp.eq.s32.totalorder 0, 0
  // Predicated region
  $region14: #{chameleon_forward.14} parent=0 // pred_check
    %p15 = pneg %p14
  $region15: #{chameleon_forward.14} parent=0 // pred_check_branch
    %17 = sbr.rel (%p15) target = $region17
  $region16: #{chameleon_forward.14} parent=0 // pred_region
    %v18 = vld [vmem:[%s2] sm:$0xff]
    %v19 = vld [vmem:[%s2 + $0x8] sm:$0xff]
    %v20 = vld [vmem:[%s2 + $0x10] sm:$0xff]
    %v21 = vld [vmem:[%s2 + $0x18] sm:$0xff]
    %v22 = vld [vmem:[%s2 + $0x20] sm:$0xff]
    %v23 = vld [vmem:[%s2 + $0x28] sm:$0xff]
    %v24 = vld [vmem:[%s2 + $0x30] sm:$0xff]
    %v25 = vld [vmem:[%s2 + $0x38] sm:$0xff]
    %26 = vst [vmem:[%s3] sm:$0xff] %v18
    %27 = vst [vmem:[%s3 + $0x8] sm:$0xff] %v19
    %28 = vst [vmem:[%s3 + $0x10] sm:$0xff] %v20
    %29 = vst [vmem:[%s3 + $0x18] sm:$0xff] %v21
    %30 = vst [vmem:[%s3 + $0x20] sm:$0xff] %v22
    %31 = vst [vmem:[%s3 + $0x28] sm:$0xff] %v23
    %32 = vst [vmem:[%s3 + $0x30] sm:$0xff] %v24
    %33 = vst [vmem:[%s3 + $0x38] sm:$0xff] %v25
  $region17: #{chameleon_forward.14} parent=0 // pred_fallthru
    _
  %v34 = vld [vmem:[%s3] sm:$0xff]
  %v35 = vld [vmem:[%s3 + $0x8] sm:$0xff]
  %v36 = vld [vmem:[%s3 + $0x10] sm:$0xff]
  %v37 = vld [vmem:[%s3 + $0x18] sm:$0xff]
  %v38 = vld [vmem:[%s3 + $0x20] sm:$0xff]
  %v39 = vld [vmem:[%s3 + $0x28] sm:$0xff]
  %v40 = vld [vmem:[%s3 + $0x30] sm:$0xff]
  %v41 = vld [vmem:[%s3 + $0x38] sm:$0xff]
  %v42 = vld [vmem:[%s0] sm:$0xff]
  %v43 = vld [vmem:[%s0 + $0x8] sm:$0xff]
  %v44 = vld [vmem:[%s0 + $0x10] sm:$0xff]
  %v45 = vld [vmem:[%s0 + $0x18] sm:$0xff]
  %v46 = vld [vmem:[%s0 + $0x20] sm:$0xff]
  %v47 = vld [vmem:[%s0 + $0x28] sm:$0xff]
  %v48 = vld [vmem:[%s0 + $0x30] sm:$0xff]
  %v49 = vld [vmem:[%s0 + $0x38] sm:$0xff]
  %v50 = vpack.c.bf16 %v44, %v42
  %v51 = vpack.c.bf16 %v45, %v43
  %v52 = vpack.c.bf16 %v48, %v46
  %v53 = vpack.c.bf16 %v49, %v47
  %v54 = vld [vmem:[%s1] sm:$0xff]
  %v55 = vld [vmem:[%s1 + $0x8] sm:$0xff]
  %v56 = vld [vmem:[%s1 + $0x10] sm:$0xff]
  %v57 = vld [vmem:[%s1 + $0x18] sm:$0xff]
  %v58 = vld [vmem:[%s1 + $0x20] sm:$0xff]
  %v59 = vld [vmem:[%s1 + $0x28] sm:$0xff]
  %v60 = vld [vmem:[%s1 + $0x30] sm:$0xff]
  %v61 = vld [vmem:[%s1 + $0x38] sm:$0xff]
  %v62 = vld [vmem:[%s1 + $0x40] sm:$0xff]
  %v63 = vld [vmem:[%s1 + $0x48] sm:$0xff]
  %v64 = vld [vmem:[%s1 + $0x50] sm:$0xff]
  %v65 = vld [vmem:[%s1 + $0x58] sm:$0xff]
  %v66 = vld [vmem:[%s1 + $0x60] sm:$0xff]
  %v67 = vld [vmem:[%s1 + $0x68] sm:$0xff]
  %v68 = vld [vmem:[%s1 + $0x70] sm:$0xff]
  %v69 = vld [vmem:[%s1 + $0x78] sm:$0xff]
  %v70 = vld [vmem:[%s1 + $0x80] sm:$0xff]
  %v71 = vld [vmem:[%s1 + $0x88] sm:$0xff]
  %v72 = vld [vmem:[%s1 + $0x90] sm:$0xff]
  %v73 = vld [vmem:[%s1 + $0x98] sm:$0xff]
  %v74 = vld [vmem:[%s1 + $0xa0] sm:$0xff]
  %v75 = vld [vmem:[%s1 + $0xa8] sm:$0xff]
  %v76 = vld [vmem:[%s1 + $0xb0] sm:$0xff]
  %v77 = vld [vmem:[%s1 + $0xb8] sm:$0xff]
  %v78 = vld [vmem:[%s1 + $0xc0] sm:$0xff]
  %v79 = vld [vmem:[%s1 + $0xc8] sm:$0xff]
  %v80 = vld [vmem:[%s1 + $0xd0] sm:$0xff]
  %v81 = vld [vmem:[%s1 + $0xd8] sm:$0xff]
  %v82 = vld [vmem:[%s1 + $0xe0] sm:$0xff]
  %v83 = vld [vmem:[%s1 + $0xe8] sm:$0xff]
  %v84 = vld [vmem:[%s1 + $0xf0] sm:$0xff]
  %v85 = vld [vmem:[%s1 + $0xf8] sm:$0xff]
  %v118 = vunpack.c.l.b16 %v54
  %v119 = vunpack.c.h.b16 %v54
  %v120 = vunpack.c.l.b16 %v55
  %v121 = vunpack.c.h.b16 %v55
  %v122 = vunpack.c.l.b16 %v56
  %v123 = vunpack.c.h.b16 %v56
  %v124 = vunpack.c.l.b16 %v57
  %v125 = vunpack.c.h.b16 %v57
  %v126 = vunpack.c.l.b16 %v58
  %v127 = vunpack.c.h.b16 %v58
  %v128 = vunpack.c.l.b16 %v59
  %v129 = vunpack.c.h.b16 %v59
  %v130 = vunpack.c.l.b16 %v60
  %v131 = vunpack.c.h.b16 %v60
  %v132 = vunpack.c.l.b16 %v61
  %v133 = vunpack.c.h.b16 %v61
  %v134 = vunpack.c.l.b16 %v62
  %v135 = vunpack.c.h.b16 %v62
  %v136 = vunpack.c.l.b16 %v63
  %v137 = vunpack.c.h.b16 %v63
  %v138 = vunpack.c.l.b16 %v64
  %v139 = vunpack.c.h.b16 %v64
  %v140 = vunpack.c.l.b16 %v65
  %v141 = vunpack.c.h.b16 %v65
  %v142 = vunpack.c.l.b16 %v66
  %v143 = vunpack.c.h.b16 %v66
  %v144 = vunpack.c.l.b16 %v67
  %v145 = vunpack.c.h.b16 %v67
  %v146 = vunpack.c.l.b16 %v68
  %v147 = vunpack.c.h.b16 %v68
  %v148 = vunpack.c.l.b16 %v69
  %v149 = vunpack.c.h.b16 %v69
  %v150 = vunpack.c.l.b16 %v70
  %v151 = vunpack.c.h.b16 %v70
  %v152 = vunpack.c.l.b16 %v71
  %v153 = vunpack.c.h.b16 %v71
  %v154 = vunpack.c.l.b16 %v72
  %v155 = vunpack.c.h.b16 %v72
  %v156 = vunpack.c.l.b16 %v73
  %v157 = vunpack.c.h.b16 %v73
  %v158 = vunpack.c.l.b16 %v74
  %v159 = vunpack.c.h.b16 %v74
  %v160 = vunpack.c.l.b16 %v75
  %v161 = vunpack.c.h.b16 %v75
  %v162 = vunpack.c.l.b16 %v76
  %v163 = vunpack.c.h.b16 %v76
  %v164 = vunpack.c.l.b16 %v77
  %v165 = vunpack.c.h.b16 %v77
  %v166 = vunpack.c.l.b16 %v78
  %v167 = vunpack.c.h.b16 %v78
  %v168 = vunpack.c.l.b16 %v79
  %v169 = vunpack.c.h.b16 %v79
  %v170 = vunpack.c.l.b16 %v80
  %v171 = vunpack.c.h.b16 %v80
  %v172 = vunpack.c.l.b16 %v81
  %v173 = vunpack.c.h.b16 %v81
  %v174 = vunpack.c.l.b16 %v82
  %v175 = vunpack.c.h.b16 %v82
  %v176 = vunpack.c.l.b16 %v83
  %v177 = vunpack.c.h.b16 %v83
  %v178 = vunpack.c.l.b16 %v84
  %v179 = vunpack.c.h.b16 %v84
  %v180 = vunpack.c.l.b16 %v85
  %v181 = vunpack.c.h.b16 %v85
  %v182 = vpack.c.b16 %v120, %v118
  %v183 = vpack.c.b16 %v121, %v119
  %v184 = vpack.c.b16 %v124, %v122
  %v185 = vpack.c.b16 %v125, %v123
  %v186 = vpack.c.b16 %v128, %v126
  %v187 = vpack.c.b16 %v129, %v127
  %v188 = vpack.c.b16 %v132, %v130
  %v189 = vpack.c.b16 %v133, %v131
  %v190 = vpack.c.b16 %v136, %v134
  %v191 = vpack.c.b16 %v137, %v135
  %v192 = vpack.c.b16 %v140, %v138
  %v193 = vpack.c.b16 %v141, %v139
  %v194 = vpack.c.b16 %v144, %v142
  %v195 = vpack.c.b16 %v145, %v143
  %v196 = vpack.c.b16 %v148, %v146
  %v197 = vpack.c.b16 %v149, %v147
  %v198 = vpack.c.b16 %v152, %v150
  %v199 = vpack.c.b16 %v153, %v151
  %v200 = vpack.c.b16 %v156, %v154
  %v201 = vpack.c.b16 %v157, %v155
  %v202 = vpack.c.b16 %v160, %v158
  %v203 = vpack.c.b16 %v161, %v159
  %v204 = vpack.c.b16 %v164, %v162
  %v205 = vpack.c.b16 %v165, %v163
  %v206 = vpack.c.b16 %v168, %v166
  %v207 = vpack.c.b16 %v169, %v167
  %v208 = vpack.c.b16 %v172, %v170
  %v209 = vpack.c.b16 %v173, %v171
  %v210 = vpack.c.b16 %v176, %v174
  %v211 = vpack.c.b16 %v177, %v175
  %v212 = vpack.c.b16 %v180, %v178
  %v213 = vpack.c.b16 %v181, %v179
  %246 = vmatprep.subr.bf16.mxu0 %v183
  %247 = vmatpush1.bf16.msra.mxu0 %v182
  %248 = vmatprep.subr.bf16.mxu0 %v185
  %249 = vmatpush1.bf16.msra.mxu0 %v184
  %250 = vmatprep.subr.bf16.mxu0 %v187
  %251 = vmatpush1.bf16.msra.mxu0 %v186
  %252 = vmatprep.subr.bf16.mxu0 %v189
  %253 = vmatpush1.bf16.msra.mxu0 %v188
  %254 = vmatprep.subr.bf16.mxu0 %v191
  %255 = vmatpush1.bf16.msra.mxu0 %v190
  %256 = vmatprep.subr.bf16.mxu0 %v193
  %257 = vmatpush1.bf16.msra.mxu0 %v192
  %258 = vmatprep.subr.bf16.mxu0 %v195
  %259 = vmatpush1.bf16.msra.mxu0 %v194
  %260 = vmatprep.subr.bf16.mxu0 %v197
  %261 = vmatpush1.bf16.msra.mxu0 %v196
  %262 = vmatprep.subr.bf16.mxu0 %v199
  %263 = vmatpush1.bf16.msra.mxu0 %v198
  %264 = vmatprep.subr.bf16.mxu0 %v201
  %265 = vmatpush1.bf16.msra.mxu0 %v200
  %266 = vmatprep.subr.bf16.mxu0 %v203
  %267 = vmatpush1.bf16.msra.mxu0 %v202
  %268 = vmatprep.subr.bf16.mxu0 %v205
  %269 = vmatpush1.bf16.msra.mxu0 %v204
  %270 = vmatprep.subr.bf16.mxu0 %v207
  %271 = vmatpush1.bf16.msra.mxu0 %v206
  %272 = vmatprep.subr.bf16.mxu0 %v209
  %273 = vmatpush1.bf16.msra.mxu0 %v208
  %274 = vmatprep.subr.bf16.mxu0 %v211
  %275 = vmatpush1.bf16.msra.mxu0 %v210
  %276 = vmatprep.subr.bf16.mxu0 %v213
  %277 = vmatpush1.bf16.msra.mxu0 %v212
  %278 = vmatprep.mubr.bf16.mxu0 %v51
  %279 = vmatmul.mubr.bf16.gmra.mrb[0].mxu0 %v50
  %v280 = vpop.f32.mrb[0].mxu0
  %v281 = vadd.f32 0.0, %v280
  %v282 = vpop.f32.mrb[0].mxu0
  %v283 = vadd.f32 0.0, %v282
  %v284 = vpop.f32.mrb[0].mxu0
  %v285 = vadd.f32 0.0, %v284
  %v286 = vpop.f32.mrb[0].mxu0
  %v287 = vadd.f32 0.0, %v286
  %288 = vmatprep.mubr.bf16.mxu0 %v53
  %289 = vmatmul.mubr.bf16.gmra.mrb[0].mxu0 %v52
  %v290 = vpop.f32.mrb[0].mxu0
  %v291 = vadd.f32 0.0, %v290
  %v292 = vpop.f32.mrb[0].mxu0
  %v293 = vadd.f32 0.0, %v292
  %v294 = vpop.f32.mrb[0].mxu0
  %v295 = vadd.f32 0.0, %v294
  %v296 = vpop.f32.mrb[0].mxu0
  %v297 = vadd.f32 0.0, %v296
  %298 = vdwg.mxu0
  %v299 = vadd.f32 %v34, %v281
  %v300 = vadd.f32 %v35, %v283
  %v301 = vadd.f32 %v36, %v285
  %v302 = vadd.f32 %v37, %v287
  %v303 = vadd.f32 %v38, %v291
  %v304 = vadd.f32 %v39, %v293
  %v305 = vadd.f32 %v40, %v295
  %v306 = vadd.f32 %v41, %v297
  %307 = vst [vmem:[%s3] sm:$0xff] %v299
  %308 = vst [vmem:[%s3 + $0x8] sm:$0xff] %v300
  %309 = vst [vmem:[%s3 + $0x10] sm:$0xff] %v301
  %310 = vst [vmem:[%s3 + $0x18] sm:$0xff] %v302
  %311 = vst [vmem:[%s3 + $0x20] sm:$0xff] %v303
  %312 = vst [vmem:[%s3 + $0x28] sm:$0xff] %v304
  %313 = vst [vmem:[%s3 + $0x30] sm:$0xff] %v305
  %314 = vst [vmem:[%s3 + $0x38] sm:$0xff] %v306
  // Predicated region
  $region18: #{chameleon_forward.14} parent=0 // pred_check
    _
  $region19: #{chameleon_forward.14} parent=0 // pred_check_branch
    %316 = sbr.rel (0) target = $region21
  $region20: #{chameleon_forward.14} parent=0 // pred_region
    _
  $region21: #{chameleon_forward.14} parent=0 // pred_fallthru
    _
  // Predicated region
  $region22: #{chameleon_forward.14} parent=0 // pred_check
    _
  $region23: #{chameleon_forward.14} parent=0 // pred_check_branch
    %318 = sbr.rel (0) target = $region25
  $region24: #{chameleon_forward.14} parent=0 // pred_region
    _
  $region25: #{chameleon_forward.14} parent=0 // pred_fallthru
    _

// kernel: chameleon_forward.11
$region0: #{chameleon_forward.11}
  #allocation0 [shape = 'u32[]', space=smem, size = 0x4, offset = 0x4, fixed_abs, tag = 'smem constant byte address 0x4 - core index']
  #allocation1 [shape = 'u32[144,128]{1,0:T(1,128)}', space=vmem, size = 0x12000, scoped, tag = 'internal scratch']
  %s0 = inlined_call_operand.vmem [shape: f32[32,256], index: 0, kind: input, shape index: {}]
  %s1 = inlined_call_operand.vmem [shape: f32[1,256], index: 1, kind: input, shape index: {}]
  %s2 = inlined_call_operand.vmem [shape: bf16[256,768], index: 2, kind: input, shape index: {}]
  %s3 = inlined_call_operand.vmem [shape: f32[32,768], index: 3, kind: output, shape index: {}]
  %s4 = sld [smem:[#allocation0]]
  $region90: #{chameleon_forward.11} parent=0
    _
  %s6 = ssub.s32 1, %s4
  %s7 = scalar_select 0, %s6, %s4
  $region1: #{chameleon_forward.11} parent=0
    #allocation2 [shape = 'u8[393216]{0}', space=vmem, size = 0x60000, scoped, tag = 'input window, operand 2']
    #allocation3 [shape = 'u8[98304]{0}', space=vmem, size = 0x18000, scoped, tag = 'output window, operand 0']
    loop: start=0, step=1, limit=4
    $region2: #{chameleon_forward.11} parent=1 // loop_pre_header
      _
    $region3: #{chameleon_forward.11} parent=1 // loop_header
      %s9 = sphi 0, %s13
      %p10 = scmp.ge.s32.totalorder %s9, 4
      %s16 = sphi 0, %s28
      %s17 = sphi 0, %s24
      %s18 = sphi 0, %s16
      %s19 = sphi 0, %s17
      %s20 = sphi 0, %s18
      %s21 = sphi 0, %s19
      %s31 = sphi 0, %s33
      %s34 = sphi 0, %s31
      %s35 = sphi 0, %s34
      %s51 = sphi 0, %s35
      %s55 = sphi 0, %s55
      %s57 = sphi 0, %s55
      %s58 = sphi 0, %s57
      %s72 = sphi 0, %s58
      %s78 = sphi 0, %s80
      %s81 = sphi 0, %s78
      %s82 = sphi 0, %s81
      %s98 = sphi 0, %s82
      %s106 = sphi 0, %s108
      %s109 = sphi 0, %s106
      %s110 = sphi 0, %s109
      %s126 = sphi 0, %s110
    $region4: #{chameleon_forward.11} parent=1 // loop_header_branch
      %12 = sbr.rel (%p10) target = $region8
    $region5: #{chameleon_forward.11} parent=1 // loop_body
      %s14 = ssub.s32 %s9, 1
      %s15 = ssub.s32 %s9, 2
      %s22 = sadd.s32 1, %s17
      %p23 = scmp.ge.s32.totalorder %s22, 2
      %s24 = scalar_select %p23, 0, %s22
      %s25 = sadd.s32 1, %s16
      %s26 = scalar_select %p23, %s25, %s16
      %p27 = scmp.ge.s32.totalorder %s26, 1
      %s28 = scalar_select %p27, 0, %s26
      %s29 = ssub.s32 %s16, %s28
      %p30 = scmp.eq.s32.totalorder %s29, 0
      %s32 = sadd.s32 %s31, 1
      %s33 = scalar_select %p30, %s31, %s32
      %p36 = pneg %p30
      %p37 = scmp.eq.s32.totalorder %s9, 1
      %p38 = por %p36, %p37
      %p39 = scmp.ne.s32.totalorder %s31, %s34
      %p40 = scmp.eq.s32.totalorder %s9, 0
      %p41 = por %p39, %p40
      %p42 = scmp.ne.s32.totalorder %s31, %s34
      %p43 = scmp.eq.s32.totalorder %s14, 1
      %p44 = por %p42, %p43
      %p45 = scmp.ne.s32.totalorder %s34, %s35
      %p46 = scmp.eq.s32.totalorder %s14, 0
      %p47 = por %p45, %p46
      %p48 = scmp.ne.s32.totalorder %s34, %s35
      %p49 = scmp.eq.s32.totalorder %s15, 1
      %p50 = por %p48, %p49
      %p52 = scmp.ne.s32.totalorder %s35, %s51
      %p53 = scmp.eq.s32.totalorder %s15, 0
      %p54 = por %p52, %p53
      %s56 = sadd.s32 %s55, 1
      %p59 = scmp.eq.s32.totalorder %s9, 1
      %p60 = scmp.ne.s32.totalorder %s55, %s57
      %p61 = scmp.eq.s32.totalorder %s9, 0
      %p62 = por %p60, %p61
      %p63 = scmp.ne.s32.totalorder %s55, %s57
      %p64 = scmp.eq.s32.totalorder %s14, 1
      %p65 = por %p63, %p64
      %p66 = scmp.ne.s32.totalorder %s57, %s58
      %p67 = scmp.eq.s32.totalorder %s14, 0
      %p68 = por %p66, %p67
      %p69 = scmp.ne.s32.totalorder %s57, %s58
      %p70 = scmp.eq.s32.totalorder %s15, 1
      %p71 = por %p69, %p70
      %p73 = scmp.ne.s32.totalorder %s58, %s72
      %p74 = scmp.eq.s32.totalorder %s15, 0
      %p75 = por %p73, %p74
      %s76 = ssub.s32 %s17, %s24
      %p77 = scmp.eq.s32.totalorder %s76, 0
      %s79 = sadd.s32 %s78, 1
      %s80 = scalar_select %p77, %s78, %s79
      %p83 = pneg %p77
      %p84 = scmp.eq.s32.totalorder %s9, 1
      %p85 = por %p83, %p84
      %p86 = scmp.ne.s32.totalorder %s78, %s81
      %p87 = scmp.eq.s32.totalorder %s9, 0
      %p88 = por %p86, %p87
      %p89 = scmp.ne.s32.totalorder %s78, %s81
      %p90 = scmp.eq.s32.totalorder %s14, 1
      %p91 = por %p89, %p90
      %p92 = scmp.ne.s32.totalorder %s81, %s82
      %p93 = scmp.eq.s32.totalorder %s14, 0
      %p94 = por %p92, %p93
      %p95 = scmp.ne.s32.totalorder %s81, %s82
      %p96 = scmp.eq.s32.totalorder %s15, 1
      %p97 = por %p95, %p96
      %p99 = scmp.ne.s32.totalorder %s82, %s98
      %p100 = scmp.eq.s32.totalorder %s15, 0
      %p101 = por %p99, %p100
      %s102 = ssub.s32 %s16, %s28
      %s103 = ssub.s32 %s17, %s24
      %s104 = sor.u32 %s102, %s103
      %p105 = scmp.eq.s32.totalorder %s104, 0
      %s107 = sadd.s32 %s106, 1
      %s108 = scalar_select %p105, %s106, %s107
      %p111 = pneg %p105
      %p112 = scmp.eq.s32.totalorder %s9, 1
      %p113 = por %p111, %p112
      %p114 = scmp.ne.s32.totalorder %s106, %s109
      %p115 = scmp.eq.s32.totalorder %s9, 0
      %p116 = por %p114, %p115
      %p117 = scmp.ne.s32.totalorder %s106, %s109
      %p118 = scmp.eq.s32.totalorder %s14, 1
      %p119 = por %p117, %p118
      %p120 = scmp.ne.s32.totalorder %s109, %s110
      %p121 = scmp.eq.s32.totalorder %s14, 0
      %p122 = por %p120, %p121
      %p123 = scmp.ne.s32.totalorder %s109, %s110
      %p124 = scmp.eq.s32.totalorder %s15, 1
      %p125 = por %p123, %p124
      %p127 = scmp.ne.s32.totalorder %s110, %s126
      %p128 = scmp.eq.s32.totalorder %s15, 0
      %p129 = por %p127, %p128
      %p130 = scmp.le.s32.totalorder 1, %s9
      %p131 = scmp.lt.s32.totalorder %s9, 3
      %p132 = pnand %p130, %p131
      %p133 = pneg %p132
      // Predicated region
      $region9: #{chameleon_forward.11} parent=5 // pred_check
        _
      $region10: #{chameleon_forward.11} parent=5 // pred_check_branch
        %135 = sbr.rel (%p132) target = $region12
      $region11: #{chameleon_forward.11} parent=5 // pred_region
        %s136 = ssub.s32 %s9, 1
        // Predicated region
        $region13: #{chameleon_forward.11} parent=11 // pred_check
          %p137 = pneg %p47
        $region14: #{chameleon_forward.11} parent=11 // pred_check_branch
          %139 = sbr.rel (%p137) target = $region16
        $region15: #{chameleon_forward.11} parent=11 // pred_region
          %s140 = smul.u32 4, %s18
          %p141 = scmp.lt.s32.totalorder %s140, 3
          %s142 = scalar_select %p141, %s140, 3
          %s143 = smul.addr %s142, 2
          %s144 = smul.addr %s143, 8
          %s145 = scalar_lea.vmem %s0, %s144
          %s146 = smul.u32 4, %s18
        $region16: #{chameleon_forward.11} parent=11 // pred_fallthru
          _
        // Predicated region
        $region17: #{chameleon_forward.11} parent=11 // pred_check
          %p147 = pneg %p68
        $region18: #{chameleon_forward.11} parent=11 // pred_check_branch
          %149 = sbr.rel (%p147) target = $region20
        $region19: #{chameleon_forward.11} parent=11 // pred_region
          _
        $region20: #{chameleon_forward.11} parent=11 // pred_fallthru
          _
      $region12: #{chameleon_forward.11} parent=5 // pred_fallthru
        _
      %p150 = scmp.lt.s32.totalorder %s9, 2
      // Predicated region
      $region21: #{chameleon_forward.11} parent=5 // pred_check
        %p151 = pneg %p150
      $region22: #{chameleon_forward.11} parent=5 // pred_check_branch
        %153 = sbr.rel (%p151) target = $region24
      $region23: #{chameleon_forward.11} parent=5 // pred_region
        // Predicated region
        $region25: #{chameleon_forward.11} parent=23 // pred_check
          %p154 = pneg %p88
        $region26: #{chameleon_forward.11} parent=23 // pred_check_branch
          %156 = sbr.rel (%p154) target = $region28
        $region27: #{chameleon_forward.11} parent=23 // pred_region
          %s157 = sand.u32 %s78, 1
          %s158 = sand.u32 %s78, 1
          %s159 = smul.addr %s158, 384
          %s160 = scalar_lea.vmem [#allocation2], %s159
          %s161 = smul.u32 3, %s17
          %s162 = smul.addr %s161, 4
          %s163 = scalar_lea.vmem %s2, %s162
          // Predicated region
          $region29: #{chameleon_forward.11} parent=27 // pred_check
            _
          $region30: #{chameleon_forward.11} parent=27 // pred_check_branch
            %165 = sbr.rel (0) target = $region32
          $region31: #{chameleon_forward.11} parent=27 // pred_region
            // Predicated region
            $region33: #{chameleon_forward.11} parent=31 // pred_check
              _
            $region34: #{chameleon_forward.11} parent=31 // pred_check_branch
              %167 = sbr.rel (0) target = $region36
            $region35: #{chameleon_forward.11} parent=31 // pred_region
              %s168 = scalar_lea.vmem %s163, 8
              %s169 = scalar_lea.vmem %s160, 8 [#allocation2]
              loop: start=0, step=1, limit=1
              $region37: #{chameleon_forward.11} parent=35 // loop_pre_header
                _
              $region38: #{chameleon_forward.11} parent=35 // loop_header
                %s171 = sphi 0, %s175
                %p172 = scmp.ge.s32.totalorder %s171, 1
                %s176 = sphi %s163, %s163
                %s177 = sphi %s160, %s160
              $region39: #{chameleon_forward.11} parent=35 // loop_header_branch
                %174 = sbr.rel (%p172) target = $region43
              $region40: #{chameleon_forward.11} parent=35 // loop_body
                %v178 = vld [vmem:[%s176] sm:$0xff]
                %179 = vst [vmem:[%s177] sm:$0xff] %v178
                %v180 = vld [vmem:[%s176 + $0x18] sm:$0xff]
                %181 = vst [vmem:[%s177 + $0xc] sm:$0xff] %v180
                %v182 = vld [vmem:[%s176 + $0x30] sm:$0xff]
                %183 = vst [vmem:[%s177 + $0x18] sm:$0xff] %v182
                %v184 = vld [vmem:[%s176 + $0x48] sm:$0xff]
                %185 = vst [vmem:[%s177 + $0x24] sm:$0xff] %v184
                %v186 = vld [vmem:[%s176 + $0x60] sm:$0xff]
                %187 = vst [vmem:[%s177 + $0x30] sm:$0xff] %v186
                %v188 = vld [vmem:[%s176 + $0x78] sm:$0xff]
                %189 = vst [vmem:[%s177 + $0x3c] sm:$0xff] %v188
                %v190 = vld [vmem:[%s176 + $0x90] sm:$0xff]
                %191 = vst [vmem:[%s177 + $0x48] sm:$0xff] %v190
                %v192 = vld [vmem:[%s176 + $0xa8] sm:$0xff]
                %193 = vst [vmem:[%s177 + $0x54] sm:$0xff] %v192
                %v194 = vld [vmem:[%s176 + $0xc0] sm:$0xff]
                %195 = vst [vmem:[%s177 + $0x60] sm:$0xff] %v194
                %v196 = vld [vmem:[%s176 + $0xd8] sm:$0xff]
                %197 = vst [vmem:[%s177 + $0x6c] sm:$0xff] %v196
                %v198 = vld [vmem:[%s176 + $0xf0] sm:$0xff]
                %199 = vst [vmem:[%s177 + $0x78] sm:$0xff] %v198
                %v200 = vld [vmem:[%s176 + $0x108] sm:$0xff]
                %201 = vst [vmem:[%s177 + $0x84] sm:$0xff] %v200
                %v202 = vld [vmem:[%s176 + $0x120] sm:$0xff]
                %203 = vst [vmem:[%s177 + $0x90] sm:$0xff] %v202
                %v204 = vld [vmem:[%s176 + $0x138] sm:$0xff]
                %205 = vst [vmem:[%s177 + $0x9c] sm:$0xff] %v204
                %v206 = vld [vmem:[%s176 + $0x150] sm:$0xff]
                %207 = vst [vmem:[%s177 + $0xa8] sm:$0xff] %v206
                %v208 = vld [vmem:[%s176 + $0x168] sm:$0xff]
                %209 = vst [vmem:[%s177 + $0xb4] sm:$0xff] %v208
                %v210 = vld [vmem:[%s176 + $0x180] sm:$0xff]
                %211 = vst [vmem:[%s177 + $0xc0] sm:$0xff] %v210
                %v212 = vld [vmem:[%s176 + $0x198] sm:$0xff]
                %213 = vst [vmem:[%s177 + $0xcc] sm:$0xff] %v212
                %v214 = vld [vmem:[%s176 + $0x1b0] sm:$0xff]
                %215 = vst [vmem:[%s177 + $0xd8] sm:$0xff] %v214
                %v216 = vld [vmem:[%s176 + $0x1c8] sm:$0xff]
                %217 = vst [vmem:[%s177 + $0xe4] sm:$0xff] %v216
                %v218 = vld [vmem:[%s176 + $0x1e0] sm:$0xff]
                %219 = vst [vmem:[%s177 + $0xf0] sm:$0xff] %v218
                %v220 = vld [vmem:[%s176 + $0x1f8] sm:$0xff]
                %221 = vst [vmem:[%s177 + $0xfc] sm:$0xff] %v220
                %v222 = vld [vmem:[%s176 + $0x210] sm:$0xff]
                %223 = vst [vmem:[%s177 + $0x108] sm:$0xff] %v222
                %v224 = vld [vmem:[%s176 + $0x228] sm:$0xff]
                %225 = vst [vmem:[%s177 + $0x114] sm:$0xff] %v224
                %v226 = vld [vmem:[%s176 + $0x240] sm:$0xff]
                %227 = vst [vmem:[%s177 + $0x120] sm:$0xff] %v226
                %v228 = vld [vmem:[%s176 + $0x258] sm:$0xff]
                %229 = vst [vmem:[%s177 + $0x12c] sm:$0xff] %v228
                %v230 = vld [vmem:[%s176 + $0x270] sm:$0xff]
                %231 = vst [vmem:[%s177 + $0x138] sm:$0xff] %v230
                %v232 = vld [vmem:[%s176 + $0x288] sm:$0xff]
                %233 = vst [vmem:[%s177 + $0x144] sm:$0xff] %v232
                %v234 = vld [vmem:[%s176 + $0x2a0] sm:$0xff]
                %235 = vst [vmem:[%s177 + $0x150] sm:$0xff] %v234
                %v236 = vld [vmem:[%s176 + $0x2b8] sm:$0xff]
                %237 = vst [vmem:[%s177 + $0x15c] sm:$0xff] %v236
                %v238 = vld [vmem:[%s176 + $0x2d0] sm:$0xff]
                %239 = vst [vmem:[%s177 + $0x168] sm:$0xff] %v238
                %v240 = vld [vmem:[%s176 + $0x2e8] sm:$0xff]
                %241 = vst [vmem:[%s177 + $0x174] sm:$0xff] %v240
              $region41: #{chameleon_forward.11} parent=35 // loop_footer
                %s175 = sadd.s32 1, %s171
              $region42: #{chameleon_forward.11} parent=35 // loop_footer_branch
                %170 = sbr.rel target = $region38
              $region43: #{chameleon_forward.11} parent=35 // loop_exit
                _
              loop: start=0, step=1, limit=1
              $region44: #{chameleon_forward.11} parent=35 // loop_pre_header
                _
              $region45: #{chameleon_forward.11} parent=35 // loop_header
                %s244 = sphi 0, %s248
                %p245 = scmp.ge.s32.totalorder %s244, 1
                %s249 = sphi %s168, %s168
                %s250 = sphi %s169, %s169
              $region46: #{chameleon_forward.11} parent=35 // loop_header_branch
                %247 = sbr.rel (%p245) target = $region50
              $region47: #{chameleon_forward.11} parent=35 // loop_body
                %v251 = vld [vmem:[%s249] sm:$0xf]
                %252 = vst [vmem:[%s250] sm:$0xf] %v251
                %v253 = vld [vmem:[%s249 + $0x18] sm:$0xf]
                %254 = vst [vmem:[%s250 + $0xc] sm:$0xf] %v253
                %v255 = vld [vmem:[%s249 + $0x30] sm:$0xf]
                %256 = vst [vmem:[%s250 + $0x18] sm:$0xf] %v255
                %v257 = vld [vmem:[%s249 + $0x48] sm:$0xf]
                %258 = vst [vmem:[%s250 + $0x24] sm:$0xf] %v257
                %v259 = vld [vmem:[%s249 + $0x60] sm:$0xf]
                %260 = vst [vmem:[%s250 + $0x30] sm:$0xf] %v259
                %v261 = vld [vmem:[%s249 + $0x78] sm:$0xf]
                %262 = vst [vmem:[%s250 + $0x3c] sm:$0xf] %v261
                %v263 = vld [vmem:[%s249 + $0x90] sm:$0xf]
                %264 = vst [vmem:[%s250 + $0x48] sm:$0xf] %v263
                %v265 = vld [vmem:[%s249 + $0xa8] sm:$0xf]
                %266 = vst [vmem:[%s250 + $0x54] sm:$0xf] %v265
                %v267 = vld [vmem:[%s249 + $0xc0] sm:$0xf]
                %268 = vst [vmem:[%s250 + $0x60] sm:$0xf] %v267
                %v269 = vld [vmem:[%s249 + $0xd8] sm:$0xf]
                %270 = vst [vmem:[%s250 + $0x6c] sm:$0xf] %v269
                %v271 = vld [vmem:[%s249 + $0xf0] sm:$0xf]
                %272 = vst [vmem:[%s250 + $0x78] sm:$0xf] %v271
                %v273 = vld [vmem:[%s249 + $0x108] sm:$0xf]
                %274 = vst [vmem:[%s250 + $0x84] sm:$0xf] %v273
                %v275 = vld [vmem:[%s249 + $0x120] sm:$0xf]
                %276 = vst [vmem:[%s250 + $0x90] sm:$0xf] %v275
                %v277 = vld [vmem:[%s249 + $0x138] sm:$0xf]
                %278 = vst [vmem:[%s250 + $0x9c] sm:$0xf] %v277
                %v279 = vld [vmem:[%s249 + $0x150] sm:$0xf]
                %280 = vst [vmem:[%s250 + $0xa8] sm:$0xf] %v279
                %v281 = vld [vmem:[%s249 + $0x168] sm:$0xf]
                %282 = vst [vmem:[%s250 + $0xb4] sm:$0xf] %v281
                %v283 = vld [vmem:[%s249 + $0x180] sm:$0xf]
                %284 = vst [vmem:[%s250 + $0xc0] sm:$0xf] %v283
                %v285 = vld [vmem:[%s249 + $0x198] sm:$0xf]
                %286 = vst [vmem:[%s250 + $0xcc] sm:$0xf] %v285
                %v287 = vld [vmem:[%s249 + $0x1b0] sm:$0xf]
                %288 = vst [vmem:[%s250 + $0xd8] sm:$0xf] %v287
                %v289 = vld [vmem:[%s249 + $0x1c8] sm:$0xf]
                %290 = vst [vmem:[%s250 + $0xe4] sm:$0xf] %v289
                %v291 = vld [vmem:[%s249 + $0x1e0] sm:$0xf]
                %292 = vst [vmem:[%s250 + $0xf0] sm:$0xf] %v291
                %v293 = vld [vmem:[%s249 + $0x1f8] sm:$0xf]
                %294 = vst [vmem:[%s250 + $0xfc] sm:$0xf] %v293
                %v295 = vld [vmem:[%s249 + $0x210] sm:$0xf]
                %296 = vst [vmem:[%s250 + $0x108] sm:$0xf] %v295
                %v297 = vld [vmem:[%s249 + $0x228] sm:$0xf]
                %298 = vst [vmem:[%s250 + $0x114] sm:$0xf] %v297
                %v299 = vld [vmem:[%s249 + $0x240] sm:$0xf]
                %300 = vst [vmem:[%s250 + $0x120] sm:$0xf] %v299
                %v301 = vld [vmem:[%s249 + $0x258] sm:$0xf]
                %302 = vst [vmem:[%s250 + $0x12c] sm:$0xf] %v301
                %v303 = vld [vmem:[%s249 + $0x270] sm:$0xf]
                %304 = vst [vmem:[%s250 + $0x138] sm:$0xf] %v303
                %v305 = vld [vmem:[%s249 + $0x288] sm:$0xf]
                %306 = vst [vmem:[%s250 + $0x144] sm:$0xf] %v305
                %v307 = vld [vmem:[%s249 + $0x2a0] sm:$0xf]
                %308 = vst [vmem:[%s250 + $0x150] sm:$0xf] %v307
                %v309 = vld [vmem:[%s249 + $0x2b8] sm:$0xf]
                %310 = vst [vmem:[%s250 + $0x15c] sm:$0xf] %v309
                %v311 = vld [vmem:[%s249 + $0x2d0] sm:$0xf]
                %312 = vst [vmem:[%s250 + $0x168] sm:$0xf] %v311
                %v313 = vld [vmem:[%s249 + $0x2e8] sm:$0xf]
                %314 = vst [vmem:[%s250 + $0x174] sm:$0xf] %v313
              $region48: #{chameleon_forward.11} parent=35 // loop_footer
                %s248 = sadd.s32 1, %s244
              $region49: #{chameleon_forward.11} parent=35 // loop_footer_branch
                %243 = sbr.rel target = $region45
              $region50: #{chameleon_forward.11} parent=35 // loop_exit
                _
            $region36: #{chameleon_forward.11} parent=31 // pred_fallthru
              _
          $region32: #{chameleon_forward.11} parent=27 // pred_fallthru
            _
          %315 = vnop
        $region28: #{chameleon_forward.11} parent=23 // pred_fallthru
          _
      $region24: #{chameleon_forward.11} parent=5 // pred_fallthru
        _
      %p316 = scmp.le.s32.totalorder 1, %s9
      %p317 = scmp.lt.s32.totalorder %s9, 3
      %p318 = pnand %p316, %p317
      %p319 = pneg %p318
      // Predicated region
      $region51: #{chameleon_forward.11} parent=5 // pred_check
        _
      $region52: #{chameleon_forward.11} parent=5 // pred_check_branch
        %321 = sbr.rel (%p318) target = $region54
      $region53: #{chameleon_forward.11} parent=5 // pred_region
        %s322 = ssub.s32 %s9, 1
        %s323 = sand.u32 %s81, 1
        %s324 = sand.u32 %s81, 1
        %s325 = smul.addr %s324, 384
        %s326 = scalar_lea.vmem [#allocation2], %s325
        // Predicated region
        $region55: #{chameleon_forward.11} parent=53 // pred_check
          %p327 = pneg %p94
        $region56: #{chameleon_forward.11} parent=53 // pred_check_branch
          %329 = sbr.rel (%p327) target = $region58
        $region57: #{chameleon_forward.11} parent=53 // pred_region
          _
        $region58: #{chameleon_forward.11} parent=53 // pred_fallthru
          _
        %s330 = smul.u32 4, %s18
        %p331 = scmp.lt.s32.totalorder %s330, 3
        %s332 = scalar_select %p331, %s330, 3
        %s333 = smul.addr %s332, 2
        %s334 = smul.addr %s333, 8
        %s335 = scalar_lea.vmem %s0, %s334
        %p336 = pneg %p47
        %p337 = pneg %p44
        %p338 = pneg %p68
        %p339 = pneg %p65
        %s340 = sand.u32 %s81, 1
        %s341 = sand.u32 %s81, 1
        %s342 = smul.addr %s341, 384
        %s343 = scalar_lea.vmem [#allocation2], %s342
        %p344 = pneg %p94
        %p345 = pneg %p91
        %p346 = pneg %p122
        %p347 = pneg %p119
        %s348 = sand.u32 %s109, 1
        %s349 = sand.u32 %s109, 1
        %s350 = smul.addr %s349, 96
        %s351 = scalar_lea.vmem [#allocation3], %s350
        %s352 = smul.u32 4, %s18
        %p353 = scmp.lt.s32.totalorder %s352, 3
        %s354 = scalar_select %p353, %s352, 3
        %s355 = smul.addr %s354, 2
        %s356 = smul.addr %s355, 8
        %s357 = scalar_lea.vmem %s0, %s356
        %s358 = smul.u32 4, %s18
        %s359 = smul.u32 3, %s19
        %s360 = smul.u32 4, %s18
        %s361 = smul.u32 3, %s19
        %v363 = vld [vmem:[%s357] sm:$0xff]
        %v364 = vld [vmem:[%s357 + $0x8] sm:$0xff]
        %v365 = vld [vmem:[%s357 + $0x10] sm:$0xff]
        %v366 = vld [vmem:[%s357 + $0x18] sm:$0xff]
        %v367 = vld [vmem:[%s357 + $0x20] sm:$0xff]
        %v368 = vld [vmem:[%s357 + $0x28] sm:$0xff]
        %v369 = vld [vmem:[%s357 + $0x30] sm:$0xff]
        %v370 = vld [vmem:[%s357 + $0x38] sm:$0xff]
        %v371 = vmul.f32 %v363, %v363
        %v372 = vmul.f32 %v364, %v364
        %v373 = vmul.f32 %v365, %v365
        %v374 = vmul.f32 %v366, %v366
        %v375 = vmul.f32 %v367, %v367
        %v376 = vmul.f32 %v368, %v368
        %v377 = vmul.f32 %v369, %v369
        %v378 = vmul.f32 %v370, %v370
        %v379 = vadd.f32 %v371, %v372
        %380 = vadd.xlane.f32.xlu0 %v379
        %v381 = vpop.xlane.xlu0 %380
        %v382 = vadd.f32 %v373, %v374
        %383 = vadd.xlane.f32.xlu0 %v382
        %v384 = vpop.xlane.xlu0 %383
        %v385 = vadd.f32 %v375, %v376
        %386 = vadd.xlane.f32.xlu0 %v385
        %v387 = vpop.xlane.xlu0 %386
        %v388 = vadd.f32 %v377, %v378
        %389 = vadd.xlane.f32.xlu0 %v388
        %v390 = vpop.xlane.xlu0 %389
        %v391 = vrcp.pop 256.0
        %v392 = vmul.f32 %v381, %v391
        %v393 = vmul.f32 %v384, %v391
        %v394 = vmul.f32 %v387, %v391
        %v395 = vmul.f32 %v390, %v391
        %v396 = vadd.f32 %v392, 1e-05
        %v397 = vadd.f32 %v393, 1e-05
        %v398 = vadd.f32 %v394, 1e-05
        %v399 = vadd.f32 %v395, 1e-05
        %v400 = vrsqrt.pop %v396
        %v401 = vrsqrt.pop %v397
        %v402 = vrsqrt.pop %v398
        %v403 = vrsqrt.pop %v399
        %v404 = vmul.f32 %v363, %v400
        %v405 = vmul.f32 %v364, %v400
        %v406 = vmul.f32 %v365, %v401
        %v407 = vmul.f32 %v366, %v401
        %v408 = vmul.f32 %v367, %v402
        %v409 = vmul.f32 %v368, %v402
        %v410 = vmul.f32 %v369, %v403
        %v411 = vmul.f32 %v370, %v403
        %v412 = vld [vmem:[%s1] sm:$0x3]
        %v414 = vlaneseq
        %v415 = vshrl.u32 %v414, 7
        %v416 = vsub.s32 0, %v415
        %v417 = vrot.slane %v412, %v416
        %v418 = vlaneseq
        %v419 = vshrl.u32 %v418, 7
        %v420 = vsub.s32 1, %v419
        %v421 = vrot.slane %v412, %v420
        %v424 = vmul.f32 %v404, %v417
        %v425 = vmul.f32 %v405, %v421
        %v426 = vmul.f32 %v406, %v417
        %v427 = vmul.f32 %v407, %v421
        %v428 = vmul.f32 %v408, %v417
        %v429 = vmul.f32 %v409, %v421
        %v430 = vmul.f32 %v410, %v417
        %v431 = vmul.f32 %v411, %v421
        %v432 = vpack.c.bf16 %v426, %v424
        %v433 = vpack.c.bf16 %v427, %v425
        %v434 = vpack.c.bf16 %v430, %v428
        %v435 = vpack.c.bf16 %v431, %v429
        %v436 = vld [vmem:[%s326] sm:$0xff]
        %v437 = vld [vmem:[%s326 + $0x8] sm:$0xf]
        %v438 = vld [vmem:[%s326 + $0xc] sm:$0xff]
        %v439 = vld [vmem:[%s326 + $0x14] sm:$0xf]
        %v440 = vld [vmem:[%s326 + $0x18] sm:$0xff]
        %v441 = vld [vmem:[%s326 + $0x20] sm:$0xf]
        %v442 = vld [vmem:[%s326 + $0x24] sm:$0xff]
        %v443 = vld [vmem:[%s326 + $0x2c] sm:$0xf]
        %v444 = vld [vmem:[%s326 + $0x30] sm:$0xff]
        %v445 = vld [vmem:[%s326 + $0x38] sm:$0xf]
        %v446 = vld [vmem:[%s326 + $0x3c] sm:$0xff]
        %v447 = vld [vmem:[%s326 + $0x44] sm:$0xf]
        %v448 = vld [vmem:[%s326 + $0x48] sm:$0xff]
        %v449 = vld [vmem:[%s326 + $0x50] sm:$0xf]
        %v450 = vld [vmem:[%s326 + $0x54] sm:$0xff]
        %v451 = vld [vmem:[%s326 + $0x5c] sm:$0xf]
        %v452 = vld [vmem:[%s326 + $0x60] sm:$0xff]
        %v453 = vld [vmem:[%s326 + $0x68] sm:$0xf]
        %v454 = vld [vmem:[%s326 + $0x6c] sm:$0xff]
        %v455 = vld [vmem:[%s326 + $0x74] sm:$0xf]
        %v456 = vld [vmem:[%s326 + $0x78] sm:$0xff]
        %v457 = vld [vmem:[%s326 + $0x80] sm:$0xf]
        %v458 = vld [vmem:[%s326 + $0x84] sm:$0xff]
        %v459 = vld [vmem:[%s326 + $0x8c] sm:$0xf]
        %v460 = vld [vmem:[%s326 + $0x90] sm:$0xff]
        %v461 = vld [vmem:[%s326 + $0x98] sm:$0xf]
        %v462 = vld [vmem:[%s326 + $0x9c] sm:$0xff]
        %v463 = vld [vmem:[%s326 + $0xa4] sm:$0xf]
        %v464 = vld [vmem:[%s326 + $0xa8] sm:$0xff]
        %v465 = vld [vmem:[%s326 + $0xb0] sm:$0xf]
        %v466 = vld [vmem:[%s326 + $0xb4] sm:$0xff]
        %v467 = vld [vmem:[%s326 + $0xbc] sm:$0xf]
        %v468 = vld [vmem:[%s326 + $0xc0] sm:$0xff]
        %v469 = vld [vmem:[%s326 + $0xc8] sm:$0xf]
        %v470 = vld [vmem:[%s326 + $0xcc] sm:$0xff]
        %v471 = vld [vmem:[%s326 + $0xd4] sm:$0xf]
        %v472 = vld [vmem:[%s326 + $0xd8] sm:$0xff]
        %v473 = vld [vmem:[%s326 + $0xe0] sm:$0xf]
        %v474 = vld [vmem:[%s326 + $0xe4] sm:$0xff]
        %v475 = vld [vmem:[%s326 + $0xec] sm:$0xf]
        %v476 = vld [vmem:[%s326 + $0xf0] sm:$0xff]
        %v477 = vld [vmem:[%s326 + $0xf8] sm:$0xf]
        %v478 = vld [vmem:[%s326 + $0xfc] sm:$0xff]
        %v479 = vld [vmem:[%s326 + $0x104] sm:$0xf]
        %v480 = vld [vmem:[%s326 + $0x108] sm:$0xff]
        %v481 = vld [vmem:[%s326 + $0x110] sm:$0xf]
        %v482 = vld [vmem:[%s326 + $0x114] sm:$0xff]
        %v483 = vld [vmem:[%s326 + $0x11c] sm:$0xf]
        %v484 = vld [vmem:[%s326 + $0x120] sm:$0xff]
        %v485 = vld [vmem:[%s326 + $0x128] sm:$0xf]
        %v486 = vld [vmem:[%s326 + $0x12c] sm:$0xff]
        %v487 = vld [vmem:[%s326 + $0x134] sm:$0xf]
        %v488 = vld [vmem:[%s326 + $0x138] sm:$0xff]
        %v489 = vld [vmem:[%s326 + $0x140] sm:$0xf]
        %v490 = vld [vmem:[%s326 + $0x144] sm:$0xff]
        %v491 = vld [vmem:[%s326 + $0x14c] sm:$0xf]
        %v492 = vld [vmem:[%s326 + $0x150] sm:$0xff]
        %v493 = vld [vmem:[%s326 + $0x158] sm:$0xf]
        %v494 = vld [vmem:[%s326 + $0x15c] sm:$0xff]
        %v495 = vld [vmem:[%s326 + $0x164] sm:$0xf]
        %v496 = vld [vmem:[%s326 + $0x168] sm:$0xff]
        %v497 = vld [vmem:[%s326 + $0x170] sm:$0xf]
        %v498 = vld [vmem:[%s326 + $0x174] sm:$0xff]
        %v499 = vld [vmem:[%s326 + $0x17c] sm:$0xf]
        %v564 = vunpack.c.l.b16 %v436
        %v565 = vunpack.c.h.b16 %v436
        %v566 = vunpack.c.l.b16 %v437
        %v567 = vunpack.c.l.b16 %v438
        %v568 = vunpack.c.h.b16 %v438
        %v569 = vunpack.c.l.b16 %v439
        %v570 = vunpack.c.l.b16 %v440
        %v571 = vunpack.c.h.b16 %v440
        %v572 = vunpack.c.l.b16 %v441
        %v573 = vunpack.c.l.b16 %v442
        %v574 = vunpack.c.h.b16 %v442
        %v575 = vunpack.c.l.b16 %v443
        %v576 = vunpack.c.l.b16 %v444
        %v577 = vunpack.c.h.b16 %v444
        %v578 = vunpack.c.l.b16 %v445
        %v579 = vunpack.c.l.b16 %v446
        %v580 = vunpack.c.h.b16 %v446
        %v581 = vunpack.c.l.b16 %v447
        %v582 = vunpack.c.l.b16 %v448
        %v583 = vunpack.c.h.b16 %v448
        %v584 = vunpack.c.l.b16 %v449
        %v585 = vunpack.c.l.b16 %v450
        %v586 = vunpack.c.h.b16 %v450
        %v587 = vunpack.c.l.b16 %v451
        %v588 = vunpack.c.l.b16 %v452
        %v589 = vunpack.c.h.b16 %v452
        %v590 = vunpack.c.l.b16 %v453
        %v591 = vunpack.c.l.b16 %v454
        %v592 = vunpack.c.h.b16 %v454
        %v593 = vunpack.c.l.b16 %v455
        %v594 = vunpack.c.l.b16 %v456
        %v595 = vunpack.c.h.b16 %v456
        %v596 = vunpack.c.l.b16 %v457
        %v597 = vunpack.c.l.b16 %v458
        %v598 = vunpack.c.h.b16 %v458
        %v599 = vunpack.c.l.b16 %v459
        %v600 = vunpack.c.l.b16 %v460
        %v601 = vunpack.c.h.b16 %v460
        %v602 = vunpack.c.l.b16 %v461
        %v603 = vunpack.c.l.b16 %v462
        %v604 = vunpack.c.h.b16 %v462
        %v605 = vunpack.c.l.b16 %v463
        %v606 = vunpack.c.l.b16 %v464
        %v607 = vunpack.c.h.b16 %v464
        %v608 = vunpack.c.l.b16 %v465
        %v609 = vunpack.c.l.b16 %v466
        %v610 = vunpack.c.h.b16 %v466
        %v611 = vunpack.c.l.b16 %v467
        %v612 = vunpack.c.l.b16 %v468
        %v613 = vunpack.c.h.b16 %v468
        %v614 = vunpack.c.l.b16 %v469
        %v615 = vunpack.c.l.b16 %v470
        %v616 = vunpack.c.h.b16 %v470
        %v617 = vunpack.c.l.b16 %v471
        %v618 = vunpack.c.l.b16 %v472
        %v619 = vunpack.c.h.b16 %v472
        %v620 = vunpack.c.l.b16 %v473
        %v621 = vunpack.c.l.b16 %v474
        %v622 = vunpack.c.h.b16 %v474
        %v623 = vunpack.c.l.b16 %v475
        %v624 = vunpack.c.l.b16 %v476
        %v625 = vunpack.c.h.b16 %v476
        %v626 = vunpack.c.l.b16 %v477
        %v627 = vunpack.c.l.b16 %v478
        %v628 = vunpack.c.h.b16 %v478
        %v629 = vunpack.c.l.b16 %v479
        %v630 = vunpack.c.l.b16 %v480
        %v631 = vunpack.c.h.b16 %v480
        %v632 = vunpack.c.l.b16 %v481
        %v633 = vunpack.c.l.b16 %v482
        %v634 = vunpack.c.h.b16 %v482
        %v635 = vunpack.c.l.b16 %v483
        %v636 = vunpack.c.l.b16 %v484
        %v637 = vunpack.c.h.b16 %v484
        %v638 = vunpack.c.l.b16 %v485
        %v639 = vunpack.c.l.b16 %v486
        %v640 = vunpack.c.h.b16 %v486
        %v641 = vunpack.c.l.b16 %v487
        %v642 = vunpack.c.l.b16 %v488
        %v643 = vunpack.c.h.b16 %v488
        %v644 = vunpack.c.l.b16 %v489
        %v645 = vunpack.c.l.b16 %v490
        %v646 = vunpack.c.h.b16 %v490
        %v647 = vunpack.c.l.b16 %v491
        %v648 = vunpack.c.l.b16 %v492
        %v649 = vunpack.c.h.b16 %v492
        %v650 = vunpack.c.l.b16 %v493
        %v651 = vunpack.c.l.b16 %v494
        %v652 = vunpack.c.h.b16 %v494
        %v653 = vunpack.c.l.b16 %v495
        %v654 = vunpack.c.l.b16 %v496
        %v655 = vunpack.c.h.b16 %v496
        %v656 = vunpack.c.l.b16 %v497
        %v657 = vunpack.c.l.b16 %v498
        %v658 = vunpack.c.h.b16 %v498
        %v659 = vunpack.c.l.b16 %v499
        %v660 = vpack.c.b16 %v567, %v564
        %v661 = vpack.c.b16 %v568, %v565
        %v662 = vpack.c.b16 %v569, %v566
        %v663 = vpack.c.b16 %v573, %v570
        %v664 = vpack.c.b16 %v574, %v571
        %v665 = vpack.c.b16 %v575, %v572
        %v666 = vpack.c.b16 %v579, %v576
        %v667 = vpack.c.b16 %v580, %v577
        %v668 = vpack.c.b16 %v581, %v578
        %v669 = vpack.c.b16 %v585, %v582
        %v670 = vpack.c.b16 %v586, %v583
        %v671 = vpack.c.b16 %v587, %v584
        %v672 = vpack.c.b16 %v591, %v588
        %v673 = vpack.c.b16 %v592, %v589
        %v674 = vpack.c.b16 %v593, %v590
        %v675 = vpack.c.b16 %v597, %v594
        %v676 = vpack.c.b16 %v598, %v595
        %v677 = vpack.c.b16 %v599, %v596
        %v678 = vpack.c.b16 %v603, %v600
        %v679 = vpack.c.b16 %v604, %v601
        %v680 = vpack.c.b16 %v605, %v602
        %v681 = vpack.c.b16 %v609, %v606
        %v682 = vpack.c.b16 %v610, %v607
        %v683 = vpack.c.b16 %v611, %v608
        %v684 = vpack.c.b16 %v615, %v612
        %v685 = vpack.c.b16 %v616, %v613
        %v686 = vpack.c.b16 %v617, %v614
        %v687 = vpack.c.b16 %v621, %v618
        %v688 = vpack.c.b16 %v622, %v619
        %v689 = vpack.c.b16 %v623, %v620
        %v690 = vpack.c.b16 %v627, %v624
        %v691 = vpack.c.b16 %v628, %v625
        %v692 = vpack.c.b16 %v629, %v626
        %v693 = vpack.c.b16 %v633, %v630
        %v694 = vpack.c.b16 %v634, %v631
        %v695 = vpack.c.b16 %v635, %v632
        %v696 = vpack.c.b16 %v639, %v636
        %v697 = vpack.c.b16 %v640, %v637
        %v698 = vpack.c.b16 %v641, %v638
        %v699 = vpack.c.b16 %v645, %v642
        %v700 = vpack.c.b16 %v646, %v643
        %v701 = vpack.c.b16 %v647, %v644
        %v702 = vpack.c.b16 %v651, %v648
        %v703 = vpack.c.b16 %v652, %v649
        %v704 = vpack.c.b16 %v653, %v650
        %v705 = vpack.c.b16 %v657, %v654
        %v706 = vpack.c.b16 %v658, %v655
        %v707 = vpack.c.b16 %v659, %v656
        %756 = vmatprep.subr.bf16.mxu0 %v661
        %757 = vmatpush1.bf16.msra.mxu0 %v660
        %758 = vmatprep.subr.bf16.mxu0 %v664
        %759 = vmatpush1.bf16.msra.mxu0 %v663
        %760 = vmatprep.subr.bf16.mxu0 %v667
        %761 = vmatpush1.bf16.msra.mxu0 %v666
        %762 = vmatprep.subr.bf16.mxu0 %v670
        %763 = vmatpush1.bf16.msra.mxu0 %v669
        %764 = vmatprep.subr.bf16.mxu0 %v673
        %765 = vmatpush1.bf16.msra.mxu0 %v672
        %766 = vmatprep.subr.bf16.mxu0 %v676
        %767 = vmatpush1.bf16.msra.mxu0 %v675
        %768 = vmatprep.subr.bf16.mxu0 %v679
        %769 = vmatpush1.bf16.msra.mxu0 %v678
        %770 = vmatprep.subr.bf16.mxu0 %v682
        %771 = vmatpush1.bf16.msra.mxu0 %v681
        %772 = vmatprep.subr.bf16.mxu0 %v685
        %773 = vmatpush1.bf16.msra.mxu0 %v684
        %774 = vmatprep.subr.bf16.mxu0 %v688
        %775 = vmatpush1.bf16.msra.mxu0 %v687
        %776 = vmatprep.subr.bf16.mxu0 %v691
        %777 = vmatpush1.bf16.msra.mxu0 %v690
        %778 = vmatprep.subr.bf16.mxu0 %v694
        %779 = vmatpush1.bf16.msra.mxu0 %v693
        %780 = vmatprep.subr.bf16.mxu0 %v697
        %781 = vmatpush1.bf16.msra.mxu0 %v696
        %782 = vmatprep.subr.bf16.mxu0 %v700
        %783 = vmatpush1.bf16.msra.mxu0 %v699
        %784 = vmatprep.subr.bf16.mxu0 %v703
        %785 = vmatpush1.bf16.msra.mxu0 %v702
        %786 = vmatprep.subr.bf16.mxu0 %v706
        %787 = vmatpush1.bf16.msra.mxu0 %v705
        %788 = vmatprep.mubr.bf16.mxu0 %v433
        %789 = vmatmul.mubr.bf16.gmra.mrb[0].mxu0 %v432
        %v790 = vpop.f32.mrb[0].mxu0
        %v791 = vadd.f32 0.0, %v790
        %v792 = vpop.f32.mrb[0].mxu0
        %v793 = vadd.f32 0.0, %v792
        %v794 = vpop.f32.mrb[0].mxu0
        %v795 = vadd.f32 0.0, %v794
        %v796 = vpop.f32.mrb[0].mxu0
        %v797 = vadd.f32 0.0, %v796
        %798 = vmatprep.mubr.bf16.mxu0 %v435
        %799 = vmatmul.mubr.bf16.gmra.mrb[0].mxu0 %v434
        %v800 = vpop.f32.mrb[0].mxu0
        %v801 = vadd.f32 0.0, %v800
        %v802 = vpop.f32.mrb[0].mxu0
        %v803 = vadd.f32 0.0, %v802
        %v804 = vpop.f32.mrb[0].mxu0
        %v805 = vadd.f32 0.0, %v804
        %v806 = vpop.f32.mrb[0].mxu0
        %v807 = vadd.f32 0.0, %v806
        %808 = vdwg.mxu0
        %809 = vmatprep.subr.bf16.mxu0 0
        %810 = vmatpush1.bf16.msra.mxu0 %v662
        %811 = vmatprep.subr.bf16.mxu0 0
        %812 = vmatpush1.bf16.msra.mxu0 %v665
        %813 = vmatprep.subr.bf16.mxu0 0
        %814 = vmatpush1.bf16.msra.mxu0 %v668
        %815 = vmatprep.subr.bf16.mxu0 0
        %816 = vmatpush1.bf16.msra.mxu0 %v671
        %817 = vmatprep.subr.bf16.mxu0 0
        %818 = vmatpush1.bf16.msra.mxu0 %v674
        %819 = vmatprep.subr.bf16.mxu0 0
        %820 = vmatpush1.bf16.msra.mxu0 %v677
        %821 = vmatprep.subr.bf16.mxu0 0
        %822 = vmatpush1.bf16.msra.mxu0 %v680
        %823 = vmatprep.subr.bf16.mxu0 0
        %824 = vmatpush1.bf16.msra.mxu0 %v683
        %825 = vmatprep.subr.bf16.mxu0 0
        %826 = vmatpush1.bf16.msra.mxu0 %v686
        %827 = vmatprep.subr.bf16.mxu0 0
        %828 = vmatpush1.bf16.msra.mxu0 %v689
        %829 = vmatprep.subr.bf16.mxu0 0
        %830 = vmatpush1.bf16.msra.mxu0 %v692
        %831 = vmatprep.subr.bf16.mxu0 0
        %832 = vmatpush1.bf16.msra.mxu0 %v695
        %833 = vmatprep.subr.bf16.mxu0 0
        %834 = vmatpush1.bf16.msra.mxu0 %v698
        %835 = vmatprep.subr.bf16.mxu0 0
        %836 = vmatpush1.bf16.msra.mxu0 %v701
        %837 = vmatprep.subr.bf16.mxu0 0
        %838 = vmatpush1.bf16.msra.mxu0 %v704
        %839 = vmatprep.subr.bf16.mxu0 0
        %840 = vmatpush1.bf16.msra.mxu0 %v707
        %841 = vmatprep.mubr.bf16.mxu0 %v433
        %842 = vmatmul.mubr.bf16.gmra.mrb[0].mxu0 %v432
        %v843 = vpop.f32.mrb[0].mxu0
        %v844 = vadd.f32 0.0, %v843
        %v845 = vpop.f32.mrb[0].mxu0
        %v846 = vpop.f32.mrb[0].mxu0
        %v847 = vadd.f32 0.0, %v846
        %v848 = vpop.f32.mrb[0].mxu0
        %849 = vmatprep.mubr.bf16.mxu0 %v435
        %850 = vmatmul.mubr.bf16.gmra.mrb[0].mxu0 %v434
        %v851 = vpop.f32.mrb[0].mxu0
        %v852 = vadd.f32 0.0, %v851
        %v853 = vpop.f32.mrb[0].mxu0
        %v854 = vpop.f32.mrb[0].mxu0
        %v855 = vadd.f32 0.0, %v854
        %v856 = vpop.f32.mrb[0].mxu0
        %857 = vdwg.mxu0
        %858 = vst [vmem:[%s351] sm:$0xff] %v791
        %859 = vst [vmem:[%s351 + $0x8] sm:$0xff] %v793
        %860 = vst [vmem:[%s351 + $0x10] sm:$0xff] %v844
        %861 = vst [vmem:[%s351 + $0x18] sm:$0xff] %v795
        %862 = vst [vmem:[%s351 + $0x20] sm:$0xff] %v797
        %863 = vst [vmem:[%s351 + $0x28] sm:$0xff] %v847
        %864 = vst [vmem:[%s351 + $0x30] sm:$0xff] %v801
        %865 = vst [vmem:[%s351 + $0x38] sm:$0xff] %v803
        %866 = vst [vmem:[%s351 + $0x40] sm:$0xff] %v852
        %867 = vst [vmem:[%s351 + $0x48] sm:$0xff] %v805
        %868 = vst [vmem:[%s351 + $0x50] sm:$0xff] %v807
        %869 = vst [vmem:[%s351 + $0x58] sm:$0xff] %v855
        %s870 = sand.u32 %s109, 1
        %s871 = sand.u32 %s109, 1
        %s872 = smul.addr %s871, 96
        %s873 = scalar_lea.vmem [#allocation3], %s872
        // Predicated region
        $region59: #{chameleon_forward.11} parent=53 // pred_check
          %p874 = pneg %p119
        $region60: #{chameleon_forward.11} parent=53 // pred_check_branch
          %876 = sbr.rel (%p874) target = $region62
        $region61: #{chameleon_forward.11} parent=53 // pred_region
          %s877 = smul.u32 4, %s18
          %s878 = smul.u32 3, %s19
          %s879 = smul.addr %s877, 6
          %s880 = sadd.s32 %s878, %s879
          %s881 = smul.addr %s880, 8
          %s882 = scalar_lea.vmem %s3, %s881
          // Predicated region
          $region63: #{chameleon_forward.11} parent=61 // pred_check
            _
          $region64: #{chameleon_forward.11} parent=61 // pred_check_branch
            %884 = sbr.rel (0) target = $region66
          $region65: #{chameleon_forward.11} parent=61 // pred_region
            // Predicated region
            $region67: #{chameleon_forward.11} parent=65 // pred_check
              _
            $region68: #{chameleon_forward.11} parent=65 // pred_check_branch
              %886 = sbr.rel (0) target = $region70
            $region69: #{chameleon_forward.11} parent=65 // pred_region
              loop: start=0, step=1, limit=1
              $region71: #{chameleon_forward.11} parent=69 // loop_pre_header
                _
              $region72: #{chameleon_forward.11} parent=69 // loop_header
                %s888 = sphi 0, %s892
                %p889 = scmp.ge.s32.totalorder %s888, 1
                %s893 = sphi %s873, %s873
                %s894 = sphi %s882, %s882
              $region73: #{chameleon_forward.11} parent=69 // loop_header_branch
                %891 = sbr.rel (%p889) target = $region77
              $region74: #{chameleon_forward.11} parent=69 // loop_body
                %v895 = vld [vmem:[%s893] sm:$0xff]
                %896 = vst [vmem:[%s894] sm:$0xff] %v895
                %v897 = vld [vmem:[%s893 + $0x8] sm:$0xff]
                %898 = vst [vmem:[%s894 + $0x8] sm:$0xff] %v897
                %v899 = vld [vmem:[%s893 + $0x10] sm:$0xff]
                %900 = vst [vmem:[%s894 + $0x10] sm:$0xff] %v899
                %v901 = vld [vmem:[%s893 + $0x18] sm:$0xff]
                %902 = vst [vmem:[%s894 + $0x30] sm:$0xff] %v901
                %v903 = vld [vmem:[%s893 + $0x20] sm:$0xff]
                %904 = vst [vmem:[%s894 + $0x38] sm:$0xff] %v903
                %v905 = vld [vmem:[%s893 + $0x28] sm:$0xff]
                %906 = vst [vmem:[%s894 + $0x40] sm:$0xff] %v905
                %v907 = vld [vmem:[%s893 + $0x30] sm:$0xff]
                %908 = vst [vmem:[%s894 + $0x60] sm:$0xff] %v907
                %v909 = vld [vmem:[%s893 + $0x38] sm:$0xff]
                %910 = vst [vmem:[%s894 + $0x68] sm:$0xff] %v909
                %v911 = vld [vmem:[%s893 + $0x40] sm:$0xff]
                %912 = vst [vmem:[%s894 + $0x70] sm:$0xff] %v911
                %v913 = vld [vmem:[%s893 + $0x48] sm:$0xff]
                %914 = vst [vmem:[%s894 + $0x90] sm:$0xff] %v913
                %v915 = vld [vmem:[%s893 + $0x50] sm:$0xff]
                %916 = vst [vmem:[%s894 + $0x98] sm:$0xff] %v915
                %v917 = vld [vmem:[%s893 + $0x58] sm:$0xff]
                %918 = vst [vmem:[%s894 + $0xa0] sm:$0xff] %v917
              $region75: #{chameleon_forward.11} parent=69 // loop_footer
                %s892 = sadd.s32 1, %s888
              $region76: #{chameleon_forward.11} parent=69 // loop_footer_branch
                %887 = sbr.rel target = $region72
              $region77: #{chameleon_forward.11} parent=69 // loop_exit
                _
            $region70: #{chameleon_forward.11} parent=65 // pred_fallthru
              _
            // Predicated region
            $region78: #{chameleon_forward.11} parent=65 // pred_check
              _
            $region79: #{chameleon_forward.11} parent=65 // pred_check_branch
              %920 = sbr.rel target = $region81
            $region80: #{chameleon_forward.11} parent=65 // pred_region
              _
            $region81: #{chameleon_forward.11} parent=65 // pred_fallthru
              _
          $region66: #{chameleon_forward.11} parent=61 // pred_fallthru
            _
          %921 = vnop
        $region62: #{chameleon_forward.11} parent=53 // pred_fallthru
          _
      $region54: #{chameleon_forward.11} parent=5 // pred_fallthru
        _
      %p922 = scmp.le.s32.totalorder 2, %s9
      // Predicated region
      $region82: #{chameleon_forward.11} parent=5 // pred_check
        %p923 = pneg %p922
      $region83: #{chameleon_forward.11} parent=5 // pred_check_branch
        %925 = sbr.rel (%p923) target = $region85
      $region84: #{chameleon_forward.11} parent=5 // pred_region
        %s926 = ssub.s32 %s9, 2
        // Predicated region
        $region86: #{chameleon_forward.11} parent=84 // pred_check
          %p927 = pneg %p125
        $region87: #{chameleon_forward.11} parent=84 // pred_check_branch
          %929 = sbr.rel (%p927) target = $region89
        $region88: #{chameleon_forward.11} parent=84 // pred_region
          %s930 = sand.u32 %s110, 1
          %s931 = sand.u32 %s110, 1
          %s932 = smul.addr %s931, 96
          %s933 = scalar_lea.vmem [#allocation3], %s932
        $region89: #{chameleon_forward.11} parent=84 // pred_fallthru
          _
      $region85: #{chameleon_forward.11} parent=5 // pred_fallthru
        _
    $region6: #{chameleon_forward.11} parent=1 // loop_footer
      %s13 = sadd.s32 1, %s9
    $region7: #{chameleon_forward.11} parent=1 // loop_footer_branch
      %8 = sbr.rel target = $region3
    $region8: #{chameleon_forward.11} parent=1 // loop_exit
      _

// kernel: chameleon_forward.13
$region0: #{chameleon_forward.13}
  #allocation0 [shape = 'u32[]', space=smem, size = 0x4, offset = 0x4, fixed_abs, tag = 'smem constant byte address 0x4 - core index']
  #allocation1 [shape = 'u32[144,128]{1,0:T(1,128)}', space=vmem, size = 0x12000, scoped, tag = 'internal scratch']
  #allocation2 [shape = 'f32[4,16,128]{2,1,0:T(8,128)}', space=vmem, size = 0x8000, scoped, tag = 'scratch operand']
  #allocation3 [shape = 'f32[4,16,128]{2,1,0:T(8,128)}', space=vmem, size = 0x8000, scoped, tag = 'scratch operand']
  #allocation4 [shape = 'f32[16,256]{1,0:T(8,128)}', space=vmem, size = 0x4000, scoped, tag = 'scratch operand']
  #allocation5 [shape = 's32[1]{0}', space=sflag, size = 0x4, scoped, tag = 'scoped memory for chameleon_forward.13']
  #allocation6 [shape = 's32[1]{0:T(128)S(6)}', space=smem, size = 0x200, scoped, tag = 'prefetched SMEM operand 0']
  #allocation7 [shape = 's32[1]{0:T(128)S(6)}', space=smem, size = 0x200, scoped, tag = 'prefetched SMEM operand 1']
  %s0 = inlined_call_operand.<no memory space> [shape: s32[1], index: 0, kind: input, shape index: {}, may-alias: {0,1}]
  %s1 = inlined_call_operand.<no memory space> [shape: s32[1], index: 1, kind: input, shape index: {}, may-alias: {0,1}]
  %s2 = inlined_call_operand.vmem [shape: bf16[32,512], index: 2, kind: input, shape index: {}, may-alias: {2,3}]
  %s3 = inlined_call_operand.vmem [shape: bf16[32,512], index: 3, kind: input, shape index: {}, may-alias: {2,3}]
  %s4 = inlined_call_operand.vmem [shape: f32[32,768], index: 4, kind: input, shape index: {}]
  %s5 = inlined_call_operand.vmem [shape: f32[32,256], index: 5, kind: output, shape index: {}]
  %s6 = sld [smem:[#allocation0]]
  $region152: #{chameleon_forward.13} parent=0
    _
  %s8 = ssub.s32 1, %s6
  %s9 = scalar_select 0, %s8, %s6
  %10 = sst [smem:[#allocation6]] %s0
  %11 = sst [smem:[#allocation7]] %s1
  $region1: #{chameleon_forward.13} parent=0
    #allocation8 [shape = 'u8[16384]{0}', space=vmem, size = 0x4000, scoped, tag = 'input window, operand 2']
    #allocation9 [shape = 'u8[16384]{0}', space=vmem, size = 0x4000, scoped, tag = 'input window, operand 3']
    #allocation10 [shape = 'u8[32768]{0}', space=vmem, size = 0x8000, scoped, tag = 'input window, operand 4']
    loop: start=0, step=1, limit=4
    $region2: #{chameleon_forward.13} parent=1 // loop_pre_header
      _
    $region3: #{chameleon_forward.13} parent=1 // loop_header
      %s13 = sphi 0, %s17
      %p14 = scmp.ge.s32.totalorder %s13, 4
      %s20 = sphi 0, %s32
      %s21 = sphi 0, %s28
      %s22 = sphi 0, %s20
      %s23 = sphi 0, %s21
      %s24 = sphi 0, %s22
      %s25 = sphi 0, %s23
      %s39 = sphi 0, %s41
      %s42 = sphi 0, %s39
      %s43 = sphi 0, %s42
      %s59 = sphi 0, %s43
      %s69 = sphi 0, %s71
      %s72 = sphi 0, %s69
      %s73 = sphi 0, %s72
      %s89 = sphi 0, %s73
      %s99 = sphi 0, %s101
      %s102 = sphi 0, %s99
      %s103 = sphi 0, %s102
      %s119 = sphi 0, %s103
      %s129 = sphi 0, %s131
      %s132 = sphi 0, %s129
      %s133 = sphi 0, %s132
      %s149 = sphi 0, %s133
    $region4: #{chameleon_forward.13} parent=1 // loop_header_branch
      %16 = sbr.rel (%p14) target = $region8
    $region5: #{chameleon_forward.13} parent=1 // loop_body
      %s18 = ssub.s32 %s13, 1
      %s19 = ssub.s32 %s13, 2
      %s26 = sadd.s32 1, %s21
      %p27 = scmp.ge.s32.totalorder %s26, 1
      %s28 = scalar_select %p27, 0, %s26
      %s29 = sadd.s32 1, %s20
      %s30 = scalar_select %p27, %s29, %s20
      %p31 = scmp.ge.s32.totalorder %s30, 2
      %s32 = scalar_select %p31, 0, %s30
      %s33 = sld [smem:[#allocation6 + %s21]]
      %s34 = sadd.s32 %s20, %s33
      %s35 = sld [smem:[#allocation6 + %s28]]
      %s36 = sadd.s32 %s32, %s35
      %s37 = ssub.s32 %s34, %s36
      %p38 = scmp.eq.s32.totalorder %s37, 0
      %s40 = sadd.s32 %s39, 1
      %s41 = scalar_select %p38, %s39, %s40
      %p44 = pneg %p38
      %p45 = scmp.eq.s32.totalorder %s13, 1
      %p46 = por %p44, %p45
      %p47 = scmp.ne.s32.totalorder %s39, %s42
      %p48 = scmp.eq.s32.totalorder %s13, 0
      %p49 = por %p47, %p48
      %p50 = scmp.ne.s32.totalorder %s39, %s42
      %p51 = scmp.eq.s32.totalorder %s18, 1
      %p52 = por %p50, %p51
      %p53 = scmp.ne.s32.totalorder %s42, %s43
      %p54 = scmp.eq.s32.totalorder %s18, 0
      %p55 = por %p53, %p54
      %p56 = scmp.ne.s32.totalorder %s42, %s43
      %p57 = scmp.eq.s32.totalorder %s19, 1
      %p58 = por %p56, %p57
      %p60 = scmp.ne.s32.totalorder %s43, %s59
      %p61 = scmp.eq.s32.totalorder %s19, 0
      %p62 = por %p60, %p61
      %s63 = sld [smem:[#allocation7 + %s21]]
      %s64 = sadd.s32 %s20, %s63
      %s65 = sld [smem:[#allocation7 + %s28]]
      %s66 = sadd.s32 %s32, %s65
      %s67 = ssub.s32 %s64, %s66
      %p68 = scmp.eq.s32.totalorder %s67, 0
      %s70 = sadd.s32 %s69, 1
      %s71 = scalar_select %p68, %s69, %s70
      %p74 = pneg %p68
      %p75 = scmp.eq.s32.totalorder %s13, 1
      %p76 = por %p74, %p75
      %p77 = scmp.ne.s32.totalorder %s69, %s72
      %p78 = scmp.eq.s32.totalorder %s13, 0
      %p79 = por %p77, %p78
      %p80 = scmp.ne.s32.totalorder %s69, %s72
      %p81 = scmp.eq.s32.totalorder %s18, 1
      %p82 = por %p80, %p81
      %p83 = scmp.ne.s32.totalorder %s72, %s73
      %p84 = scmp.eq.s32.totalorder %s18, 0
      %p85 = por %p83, %p84
      %p86 = scmp.ne.s32.totalorder %s72, %s73
      %p87 = scmp.eq.s32.totalorder %s19, 1
      %p88 = por %p86, %p87
      %p90 = scmp.ne.s32.totalorder %s73, %s89
      %p91 = scmp.eq.s32.totalorder %s19, 0
      %p92 = por %p90, %p91
      %s93 = sld [smem:[#allocation7 + %s21]]
      %s94 = sadd.s32 %s20, %s93
      %s95 = sld [smem:[#allocation7 + %s28]]
      %s96 = sadd.s32 %s32, %s95
      %s97 = ssub.s32 %s94, %s96
      %p98 = scmp.eq.s32.totalorder %s97, 0
      %s100 = sadd.s32 %s99, 1
      %s101 = scalar_select %p98, %s99, %s100
      %p104 = pneg %p98
      %p105 = scmp.eq.s32.totalorder %s13, 1
      %p106 = por %p104, %p105
      %p107 = scmp.ne.s32.totalorder %s99, %s102
      %p108 = scmp.eq.s32.totalorder %s13, 0
      %p109 = por %p107, %p108
      %p110 = scmp.ne.s32.totalorder %s99, %s102
      %p111 = scmp.eq.s32.totalorder %s18, 1
      %p112 = por %p110, %p111
      %p113 = scmp.ne.s32.totalorder %s102, %s103
      %p114 = scmp.eq.s32.totalorder %s18, 0
      %p115 = por %p113, %p114
      %p116 = scmp.ne.s32.totalorder %s102, %s103
      %p117 = scmp.eq.s32.totalorder %s19, 1
      %p118 = por %p116, %p117
      %p120 = scmp.ne.s32.totalorder %s103, %s119
      %p121 = scmp.eq.s32.totalorder %s19, 0
      %p122 = por %p120, %p121
      %s123 = sld [smem:[#allocation6 + %s21]]
      %s124 = sadd.s32 %s20, %s123
      %s125 = sld [smem:[#allocation6 + %s28]]
      %s126 = sadd.s32 %s32, %s125
      %s127 = ssub.s32 %s124, %s126
      %p128 = scmp.eq.s32.totalorder %s127, 0
      %s130 = sadd.s32 %s129, 1
      %s131 = scalar_select %p128, %s129, %s130
      %p134 = pneg %p128
      %p135 = scmp.eq.s32.totalorder %s13, 1
      %p136 = por %p134, %p135
      %p137 = scmp.ne.s32.totalorder %s129, %s132
      %p138 = scmp.eq.s32.totalorder %s13, 0
      %p139 = por %p137, %p138
      %p140 = scmp.ne.s32.totalorder %s129, %s132
      %p141 = scmp.eq.s32.totalorder %s18, 1
      %p142 = por %p140, %p141
      %p143 = scmp.ne.s32.totalorder %s132, %s133
      %p144 = scmp.eq.s32.totalorder %s18, 0
      %p145 = por %p143, %p144
      %p146 = scmp.ne.s32.totalorder %s132, %s133
      %p147 = scmp.eq.s32.totalorder %s19, 1
      %p148 = por %p146, %p147
      %p150 = scmp.ne.s32.totalorder %s133, %s149
      %p151 = scmp.eq.s32.totalorder %s19, 0
      %p152 = por %p150, %p151
      %p153 = scmp.le.s32.totalorder 1, %s13
      %p154 = scmp.lt.s32.totalorder %s13, 3
      %p155 = pnand %p153, %p154
      %p156 = pneg %p155
      // Predicated region
      $region9: #{chameleon_forward.13} parent=5 // pred_check
        _
      $region10: #{chameleon_forward.13} parent=5 // pred_check_branch
        %158 = sbr.rel (%p155) target = $region12
      $region11: #{chameleon_forward.13} parent=5 // pred_region
        %s159 = ssub.s32 %s13, 1
      $region12: #{chameleon_forward.13} parent=5 // pred_fallthru
        _
      %p160 = scmp.lt.s32.totalorder %s13, 2
      // Predicated region
      $region13: #{chameleon_forward.13} parent=5 // pred_check
        %p161 = pneg %p160
      $region14: #{chameleon_forward.13} parent=5 // pred_check_branch
        %163 = sbr.rel (%p161) target = $region16
      $region15: #{chameleon_forward.13} parent=5 // pred_region
        // Predicated region
        $region17: #{chameleon_forward.13} parent=15 // pred_check
          %p164 = pneg %p49
        $region18: #{chameleon_forward.13} parent=15 // pred_check_branch
          %166 = sbr.rel (%p164) target = $region20
        $region19: #{chameleon_forward.13} parent=15 // pred_region
          %s167 = sand.u32 %s39, 1
          %s168 = sand.u32 %s39, 1
          %s169 = smul.addr %s168, 16
          %s170 = scalar_lea.vmem [#allocation8], %s169
          %s171 = sld [smem:[#allocation6 + %s21]]
          %s172 = sadd.s32 %s20, %s171
          %s173 = smul.u32 2, %s172
          %s174 = smul.addr %s173, 4
          %s175 = smul.addr %s174, 4
          %s176 = scalar_lea.vmem %s2, %s175
          // Predicated region
          $region21: #{chameleon_forward.13} parent=19 // pred_check
            _
          $region22: #{chameleon_forward.13} parent=19 // pred_check_branch
            %178 = sbr.rel (0) target = $region24
          $region23: #{chameleon_forward.13} parent=19 // pred_region
            // Predicated region
            $region25: #{chameleon_forward.13} parent=23 // pred_check
              _
            $region26: #{chameleon_forward.13} parent=23 // pred_check_branch
              %180 = sbr.rel (0) target = $region28
            $region27: #{chameleon_forward.13} parent=23 // pred_region
              // Predicated region
              $region40: #{chameleon_forward.13} parent=27 // pred_check
                _
              $region41: #{chameleon_forward.13} parent=27 // pred_check_branch
                %197 = sbr.rel (0) target = $region43
              $region42: #{chameleon_forward.13} parent=27 // pred_region
                loop: start=0, step=1, limit=1
                $region44: #{chameleon_forward.13} parent=42 // loop_pre_header
                  _
                $region45: #{chameleon_forward.13} parent=42 // loop_header
                  %s199 = sphi 0, %s203
                  %p200 = scmp.ge.s32.totalorder %s199, 1
                  %s204 = sphi %s176, %s176
                  %s205 = sphi %s170, %s170
                $region46: #{chameleon_forward.13} parent=42 // loop_header_branch
                  %202 = sbr.rel (%p200) target = $region50
                $region47: #{chameleon_forward.13} parent=42 // loop_body
                  %v206 = vld [vmem:[%s204] sm:$0xff]
                  %207 = vst [vmem:[%s205] sm:$0xff] %v206
                  %v208 = vld [vmem:[%s204 + $0x10] sm:$0xff]
                  %209 = vst [vmem:[%s205 + $0x8] sm:$0xff] %v208
                $region48: #{chameleon_forward.13} parent=42 // loop_footer
                  %s203 = sadd.s32 1, %s199
                $region49: #{chameleon_forward.13} parent=42 // loop_footer_branch
                  %198 = sbr.rel target = $region45
                $region50: #{chameleon_forward.13} parent=42 // loop_exit
                  _
              $region43: #{chameleon_forward.13} parent=27 // pred_fallthru
                _
              // Predicated region
              $region51: #{chameleon_forward.13} parent=27 // pred_check
                _
              $region52: #{chameleon_forward.13} parent=27 // pred_check_branch
                %211 = sbr.rel target = $region54
              $region53: #{chameleon_forward.13} parent=27 // pred_region
                _
              $region54: #{chameleon_forward.13} parent=27 // pred_fallthru
                _
            $region28: #{chameleon_forward.13} parent=23 // pred_fallthru
              _
            // Predicated region
            $region29: #{chameleon_forward.13} parent=23 // pred_check
              _
            $region30: #{chameleon_forward.13} parent=23 // pred_check_branch
              %182 = sbr.rel target = $region32
            $region31: #{chameleon_forward.13} parent=23 // pred_region
              loop: start=0, step=1, limit=1
              $region33: #{chameleon_forward.13} parent=31 // loop_pre_header
                _
              $region34: #{chameleon_forward.13} parent=31 // loop_header
                %s185 = sphi 0, %s189
                %p186 = scmp.ge.s32.totalorder %s185, 1
                %s190 = sphi %s176, %s176
                %s191 = sphi %s170, %s170
              $region35: #{chameleon_forward.13} parent=31 // loop_header_branch
                %188 = sbr.rel (%p186) target = $region39
              $region36: #{chameleon_forward.13} parent=31 // loop_body
                %v192 = vld [vmem:[%s190] sm:$0xff]
                %193 = vst [vmem:[%s191] sm:$0xff] %v192
                %v194 = vld [vmem:[%s190 + $0x10] sm:$0xff]
                %195 = vst [vmem:[%s191 + $0x8] sm:$0xff] %v194
              $region37: #{chameleon_forward.13} parent=31 // loop_footer
                %s189 = sadd.s32 1, %s185
              $region38: #{chameleon_forward.13} parent=31 // loop_footer_branch
                %184 = sbr.rel target = $region34
              $region39: #{chameleon_forward.13} parent=31 // loop_exit
                _
            $region32: #{chameleon_forward.13} parent=23 // pred_fallthru
              _
          $region24: #{chameleon_forward.13} parent=19 // pred_fallthru
            _
          %212 = vnop
        $region20: #{chameleon_forward.13} parent=15 // pred_fallthru
          _
        // Predicated region
        $region55: #{chameleon_forward.13} parent=15 // pred_check
          %p213 = pneg %p79
        $region56: #{chameleon_forward.13} parent=15 // pred_check_branch
          %215 = sbr.rel (%p213) target = $region58
        $region57: #{chameleon_forward.13} parent=15 // pred_region
          %s216 = sand.u32 %s69, 1
          %s217 = sand.u32 %s69, 1
          %s218 = smul.addr %s217, 16
          %s219 = scalar_lea.vmem [#allocation9], %s218
          %s220 = sld [smem:[#allocation7 + %s21]]
          %s221 = sadd.s32 %s20, %s220
          %s222 = smul.u32 2, %s221
          %s223 = smul.addr %s222, 4
          %s224 = sadd.s32 2, %s223
          %s225 = smul.addr %s224, 4
          %s226 = scalar_lea.vmem %s3, %s225
          // Predicated region
          $region59: #{chameleon_forward.13} parent=57 // pred_check
            _
          $region60: #{chameleon_forward.13} parent=57 // pred_check_branch
            %228 = sbr.rel (0) target = $region62
          $region61: #{chameleon_forward.13} parent=57 // pred_region
            // Predicated region
            $region63: #{chameleon_forward.13} parent=61 // pred_check
              _
            $region64: #{chameleon_forward.13} parent=61 // pred_check_branch
              %230 = sbr.rel (0) target = $region66
            $region65: #{chameleon_forward.13} parent=61 // pred_region
              // Predicated region
              $region78: #{chameleon_forward.13} parent=65 // pred_check
                _
              $region79: #{chameleon_forward.13} parent=65 // pred_check_branch
                %247 = sbr.rel (0) target = $region81
              $region80: #{chameleon_forward.13} parent=65 // pred_region
                loop: start=0, step=1, limit=1
                $region82: #{chameleon_forward.13} parent=80 // loop_pre_header
                  _
                $region83: #{chameleon_forward.13} parent=80 // loop_header
                  %s249 = sphi 0, %s253
                  %p250 = scmp.ge.s32.totalorder %s249, 1
                  %s254 = sphi %s226, %s226
                  %s255 = sphi %s219, %s219
                $region84: #{chameleon_forward.13} parent=80 // loop_header_branch
                  %252 = sbr.rel (%p250) target = $region88
                $region85: #{chameleon_forward.13} parent=80 // loop_body
                  %v256 = vld [vmem:[%s254] sm:$0xff]
                  %257 = vst [vmem:[%s255] sm:$0xff] %v256
                  %v258 = vld [vmem:[%s254 + $0x10] sm:$0xff]
                  %259 = vst [vmem:[%s255 + $0x8] sm:$0xff] %v258
                $region86: #{chameleon_forward.13} parent=80 // loop_footer
                  %s253 = sadd.s32 1, %s249
                $region87: #{chameleon_forward.13} parent=80 // loop_footer_branch
                  %248 = sbr.rel target = $region83
                $region88: #{chameleon_forward.13} parent=80 // loop_exit
                  _
              $region81: #{chameleon_forward.13} parent=65 // pred_fallthru
                _
              // Predicated region
              $region89: #{chameleon_forward.13} parent=65 // pred_check
                _
              $region90: #{chameleon_forward.13} parent=65 // pred_check_branch
                %261 = sbr.rel target = $region92
              $region91: #{chameleon_forward.13} parent=65 // pred_region
                _
              $region92: #{chameleon_forward.13} parent=65 // pred_fallthru
                _
            $region66: #{chameleon_forward.13} parent=61 // pred_fallthru
              _
            // Predicated region
            $region67: #{chameleon_forward.13} parent=61 // pred_check
              _
            $region68: #{chameleon_forward.13} parent=61 // pred_check_branch
              %232 = sbr.rel target = $region70
            $region69: #{chameleon_forward.13} parent=61 // pred_region
              loop: start=0, step=1, limit=1
              $region71: #{chameleon_forward.13} parent=69 // loop_pre_header
                _
              $region72: #{chameleon_forward.13} parent=69 // loop_header
                %s235 = sphi 0, %s239
                %p236 = scmp.ge.s32.totalorder %s235, 1
                %s240 = sphi %s226, %s226
                %s241 = sphi %s219, %s219
              $region73: #{chameleon_forward.13} parent=69 // loop_header_branch
                %238 = sbr.rel (%p236) target = $region77
              $region74: #{chameleon_forward.13} parent=69 // loop_body
                %v242 = vld [vmem:[%s240] sm:$0xff]
                %243 = vst [vmem:[%s241] sm:$0xff] %v242
                %v244 = vld [vmem:[%s240 + $0x10] sm:$0xff]
                %245 = vst [vmem:[%s241 + $0x8] sm:$0xff] %v244
              $region75: #{chameleon_forward.13} parent=69 // loop_footer
                %s239 = sadd.s32 1, %s235
              $region76: #{chameleon_forward.13} parent=69 // loop_footer_branch
                %234 = sbr.rel target = $region72
              $region77: #{chameleon_forward.13} parent=69 // loop_exit
                _
            $region70: #{chameleon_forward.13} parent=61 // pred_fallthru
              _
          $region62: #{chameleon_forward.13} parent=57 // pred_fallthru
            _
          %262 = vnop
        $region58: #{chameleon_forward.13} parent=15 // pred_fallthru
          _
        // Predicated region
        $region93: #{chameleon_forward.13} parent=15 // pred_check
          %p263 = pneg %p109
        $region94: #{chameleon_forward.13} parent=15 // pred_check_branch
          %265 = sbr.rel (%p263) target = $region96
        $region95: #{chameleon_forward.13} parent=15 // pred_region
          %s266 = sand.u32 %s99, 1
          %s267 = sand.u32 %s99, 1
          %s268 = smul.addr %s267, 32
          %s269 = scalar_lea.vmem [#allocation10], %s268
          %s270 = sld [smem:[#allocation7 + %s21]]
          %s271 = sadd.s32 %s20, %s270
          %s272 = smul.u32 2, %s271
          %s273 = smul.addr %s272, 6
          %s274 = sadd.s32 4, %s273
          %s275 = smul.addr %s274, 8
          %s276 = scalar_lea.vmem %s4, %s275
          // Predicated region
          $region97: #{chameleon_forward.13} parent=95 // pred_check
            _
          $region98: #{chameleon_forward.13} parent=95 // pred_check_branch
            %278 = sbr.rel (0) target = $region100
          $region99: #{chameleon_forward.13} parent=95 // pred_region
            // Predicated region
            $region101: #{chameleon_forward.13} parent=99 // pred_check
              _
            $region102: #{chameleon_forward.13} parent=99 // pred_check_branch
              %280 = sbr.rel (0) target = $region104
            $region103: #{chameleon_forward.13} parent=99 // pred_region
              loop: start=0, step=1, limit=1
              $region105: #{chameleon_forward.13} parent=103 // loop_pre_header
                _
              $region106: #{chameleon_forward.13} parent=103 // loop_header
                %s282 = sphi 0, %s286
                %p283 = scmp.ge.s32.totalorder %s282, 1
                %s287 = sphi %s276, %s276
                %s288 = sphi %s269, %s269
              $region107: #{chameleon_forward.13} parent=103 // loop_header_branch
                %285 = sbr.rel (%p283) target = $region111
              $region108: #{chameleon_forward.13} parent=103 // loop_body
                %v289 = vld [vmem:[%s287] sm:$0xff]
                %290 = vst [vmem:[%s288] sm:$0xff] %v289
                %v291 = vld [vmem:[%s287 + $0x8] sm:$0xff]
                %292 = vst [vmem:[%s288 + $0x8] sm:$0xff] %v291
                %v293 = vld [vmem:[%s287 + $0x30] sm:$0xff]
                %294 = vst [vmem:[%s288 + $0x10] sm:$0xff] %v293
                %v295 = vld [vmem:[%s287 + $0x38] sm:$0xff]
                %296 = vst [vmem:[%s288 + $0x18] sm:$0xff] %v295
              $region109: #{chameleon_forward.13} parent=103 // loop_footer
                %s286 = sadd.s32 1, %s282
              $region110: #{chameleon_forward.13} parent=103 // loop_footer_branch
                %281 = sbr.rel target = $region106
              $region111: #{chameleon_forward.13} parent=103 // loop_exit
                _
            $region104: #{chameleon_forward.13} parent=99 // pred_fallthru
              _
            // Predicated region
            $region112: #{chameleon_forward.13} parent=99 // pred_check
              _
            $region113: #{chameleon_forward.13} parent=99 // pred_check_branch
              %298 = sbr.rel target = $region115
            $region114: #{chameleon_forward.13} parent=99 // pred_region
              _
            $region115: #{chameleon_forward.13} parent=99 // pred_fallthru
              _
          $region100: #{chameleon_forward.13} parent=95 // pred_fallthru
            _
          %299 = vnop
        $region96: #{chameleon_forward.13} parent=15 // pred_fallthru
          _
      $region16: #{chameleon_forward.13} parent=5 // pred_fallthru
        _
      %p300 = scmp.le.s32.totalorder 1, %s13
      %p301 = scmp.lt.s32.totalorder %s13, 3
      %p302 = pnand %p300, %p301
      %p303 = pneg %p302
      // Predicated region
      $region116: #{chameleon_forward.13} parent=5 // pred_check
        _
      $region117: #{chameleon_forward.13} parent=5 // pred_check_branch
        %305 = sbr.rel (%p302) target = $region119
      $region118: #{chameleon_forward.13} parent=5 // pred_region
        %s306 = ssub.s32 %s13, 1
        %s307 = sand.u32 %s42, 1
        %s308 = sand.u32 %s42, 1
        %s309 = smul.addr %s308, 16
        %s310 = scalar_lea.vmem [#allocation8], %s309
        // Predicated region
        $region120: #{chameleon_forward.13} parent=118 // pred_check
          %p311 = pneg %p55
        $region121: #{chameleon_forward.13} parent=118 // pred_check_branch
          %313 = sbr.rel (%p311) target = $region123
        $region122: #{chameleon_forward.13} parent=118 // pred_region
          _
        $region123: #{chameleon_forward.13} parent=118 // pred_fallthru
          _
        %s314 = sand.u32 %s72, 1
        %s315 = sand.u32 %s72, 1
        %s316 = smul.addr %s315, 16
        %s317 = scalar_lea.vmem [#allocation9], %s316
        // Predicated region
        $region124: #{chameleon_forward.13} parent=118 // pred_check
          %p318 = pneg %p85
        $region125: #{chameleon_forward.13} parent=118 // pred_check_branch
          %320 = sbr.rel (%p318) target = $region127
        $region126: #{chameleon_forward.13} parent=118 // pred_region
          _
        $region127: #{chameleon_forward.13} parent=118 // pred_fallthru
          _
        %s321 = sand.u32 %s102, 1
        %s322 = sand.u32 %s102, 1
        %s323 = smul.addr %s322, 32
        %s324 = scalar_lea.vmem [#allocation10], %s323
        // Predicated region
        $region128: #{chameleon_forward.13} parent=118 // pred_check
          %p325 = pneg %p115
        $region129: #{chameleon_forward.13} parent=118 // pred_check_branch
          %327 = sbr.rel (%p325) target = $region131
        $region130: #{chameleon_forward.13} parent=118 // pred_region
          _
        $region131: #{chameleon_forward.13} parent=118 // pred_fallthru
          _
        %s328 = sand.u32 %s42, 1
        %s329 = sand.u32 %s42, 1
        %s330 = smul.addr %s329, 16
        %s331 = scalar_lea.vmem [#allocation8], %s330
        %p332 = pneg %p55
        %p333 = pneg %p52
        %s334 = sand.u32 %s72, 1
        %s335 = sand.u32 %s72, 1
        %s336 = smul.addr %s335, 16
        %s337 = scalar_lea.vmem [#allocation9], %s336
        %p338 = pneg %p85
        %p339 = pneg %p82
        %s340 = sand.u32 %s102, 1
        %s341 = sand.u32 %s102, 1
        %s342 = smul.addr %s341, 32
        %s343 = scalar_lea.vmem [#allocation10], %s342
        %p344 = pneg %p115
        %p345 = pneg %p112
        %p346 = pneg %p145
        %p347 = pneg %p142
        %s348 = sld [smem:[#allocation6 + %s23]]
        %s349 = sadd.s32 %s22, %s348
        %s350 = smul.u32 2, %s349
        %p351 = scmp.lt.s32.totalorder %s350, 3
        %s352 = scalar_select %p351, %s350, 3
        %s353 = smul.addr %s352, 2
        %s354 = smul.addr %s353, 8
        %s355 = scalar_lea.vmem %s5, %s354
        %s356 = sld [smem:[#allocation6 + %s23]]
        %s357 = sadd.s32 %s22, %s356
        %s358 = smul.u32 2, %s357
        %s359 = sld [smem:[#allocation7 + %s23]]
        %s360 = sadd.s32 %s22, %s359
        %s361 = smul.u32 2, %s360
        %s362 = sld [smem:[#allocation7 + %s23]]
        %s363 = sadd.s32 %s22, %s362
        %s364 = smul.u32 2, %s363
        %s365 = sld [smem:[#allocation6 + %s23]]
        %s366 = sadd.s32 %s22, %s365
        %s367 = smul.u32 2, %s366
        %p368 = scmp.lt.s32.totalorder %s367, 3
        %s369 = scalar_select %p368, %s367, 3
        %s370 = smul.addr %s369, 2
        %s371 = smul.addr %s370, 8
        %s372 = scalar_lea.vmem %s5, %s371
        %s373 = sld [smem:[#allocation6 + %s23]]
        %s374 = sadd.s32 %s22, %s373
        %s375 = smul.u32 2, %s374
        %s377 = sld [smem:[#allocation6 + %s23]]
        %s378 = sld [smem:[#allocation7 + %s23]]
        %p379 = scmp.eq.s32.totalorder %s378, 0
        // Predicated region
        $region132: #{chameleon_forward.13} parent=118 // pred_check
          %p380 = pneg %p379
        $region133: #{chameleon_forward.13} parent=118 // pred_check_branch
          %382 = sbr.rel (%p380) target = $region135
        $region134: #{chameleon_forward.13} parent=118 // pred_region
          %383 = vst [vmem:[#allocation2] sm:$0xff] -inf
          %384 = vst [vmem:[#allocation2 + $0x8] sm:$0xff] -inf
          %385 = vst [vmem:[#allocation2 + $0x10] sm:$0xff] -inf
          %386 = vst [vmem:[#allocation2 + $0x18] sm:$0xff] -inf
          %387 = vst [vmem:[#allocation2 + $0x20] sm:$0xff] -inf
          %388 = vst [vmem:[#allocation2 + $0x28] sm:$0xff] -inf
          %389 = vst [vmem:[#allocation2 + $0x30] sm:$0xff] -inf
          %390 = vst [vmem:[#allocation2 + $0x38] sm:$0xff] -inf
          %391 = vst [vmem:[#allocation3] sm:$0xff] 0.0
          %392 = vst [vmem:[#allocation3 + $0x8] sm:$0xff] 0.0
          %393 = vst [vmem:[#allocation3 + $0x10] sm:$0xff] 0.0
          %394 = vst [vmem:[#allocation3 + $0x18] sm:$0xff] 0.0
          %395 = vst [vmem:[#allocation3 + $0x20] sm:$0xff] 0.0
          %396 = vst [vmem:[#allocation3 + $0x28] sm:$0xff] 0.0
          %397 = vst [vmem:[#allocation3 + $0x30] sm:$0xff] 0.0
          %398 = vst [vmem:[#allocation3 + $0x38] sm:$0xff] 0.0
          %399 = vst [vmem:[#allocation4] sm:$0xff] 0.0
          %400 = vst [vmem:[#allocation4 + $0x8] sm:$0xff] 0.0
          %401 = vst [vmem:[#allocation4 + $0x10] sm:$0xff] 0.0
          %402 = vst [vmem:[#allocation4 + $0x18] sm:$0xff] 0.0
        $region135: #{chameleon_forward.13} parent=118 // pred_fallthru
          _
        %v403 = vld [vmem:[%s310] sm:$0xff]
        %v404 = vld [vmem:[%s310 + $0x8] sm:$0xff]
        %v405 = vld [vmem:[%s317] sm:$0xff]
        %v406 = vld [vmem:[%s317 + $0x8] sm:$0xff]
        %v407 = vld [vmem:[%s324] sm:$0xff]
        %v408 = vld [vmem:[%s324 + $0x8] sm:$0xff]
        %v409 = vld [vmem:[%s324 + $0x10] sm:$0xff]
        %v410 = vld [vmem:[%s324 + $0x18] sm:$0xff]
        %v411 = vpack.c.bf16 %v409, %v407
        %v412 = vpack.c.bf16 %v410, %v408
        %s413 = smul.u32 %s377, 16
        %v414 = vlaneseq
        %v415 = vshrl.u32 %v414, 7
        %v416 = vadd.s32 %v415, 8
        %v417 = vstv %s413
        %v418 = vadd.s32 %v417, %v415
        %v419 = vadd.s32 %v417, %v416
        %s420 = smul.u32 %s378, 16
        %v421 = vlaneseq
        %v422 = vand.u32 %v421, 127
        %v423 = vstv %s420
        %v424 = vadd.s32 %v423, %v422
        %vm425 = vcmp.gt.s32.totalorder %v424, %v418
        %vm426 = vcmp.gt.s32.totalorder %v424, %v419
        %v429 = vunpack.c.l.b16 %v403
        %v430 = vunpack.c.l.b16 %v404
        %v431 = vpack.c.b16 %v430, %v429
        %v434 = vunpack.c.l.b16 %v405
        %v435 = vunpack.c.l.b16 %v406
        %v436 = vpack.c.b16 %v435, %v434
        %vm437 = vcmask 523264
        %v439 = vsel %vm437, %v431, 0
        %v442 = vsel %vm437, %v436, 0
        %444 = vmatprep.subr.bf16.mxu0 0
        %445 = vmatpush1.bf16.xpose.msra.mxu0 %v442
        %446 = vmatprep.subr.bf16.mxu0 0
        %447 = vmatpush1.bf16.xpose.msra.mxu0 0
        %448 = vmatprep.subr.bf16.mxu0 0
        %449 = vmatpush1.bf16.xpose.msra.mxu0 0
        %450 = vmatprep.subr.bf16.mxu0 0
        %451 = vmatpush1.bf16.xpose.msra.mxu0 0
        %452 = vmatprep.subr.bf16.mxu0 0
        %453 = vmatpush1.bf16.xpose.msra.mxu0 0
        %454 = vmatprep.subr.bf16.mxu0 0
        %455 = vmatpush1.bf16.xpose.msra.mxu0 0
        %456 = vmatprep.subr.bf16.mxu0 0
        %457 = vmatpush1.bf16.xpose.msra.mxu0 0
        %458 = vmatprep.subr.bf16.mxu0 0
        %459 = vmatpush1.bf16.xpose.msra.mxu0 0
        %460 = vmatprep.subr.bf16.mxu0 0
        %461 = vmatpush1.bf16.xpose.msra.mxu0 0
        %462 = vmatprep.subr.bf16.mxu0 0
        %463 = vmatpush1.bf16.xpose.msra.mxu0 0
        %464 = vmatprep.subr.bf16.mxu0 0
        %465 = vmatpush1.bf16.xpose.msra.mxu0 0
        %466 = vmatprep.subr.bf16.mxu0 0
        %467 = vmatpush1.bf16.xpose.msra.mxu0 0
        %468 = vmatprep.subr.bf16.mxu0 0
        %469 = vmatpush1.bf16.xpose.msra.mxu0 0
        %470 = vmatprep.subr.bf16.mxu0 0
        %471 = vmatpush1.bf16.xpose.msra.mxu0 0
        %472 = vmatprep.subr.bf16.mxu0 0
        %473 = vmatpush1.bf16.xpose.msra.mxu0 0
        %474 = vmatprep.subr.bf16.mxu0 0
        %475 = vmatpush1.bf16.xpose.msra.mxu0 0
        %476 = vmatprep.mubr.bf16.mxu0 0
        %477 = vmatmul.mubr.bf16.gmra.mrb[0].mxu0 %v439
        %v478 = vpop.f32.mrb[0].mxu0
        %v479 = vadd.f32 0.0, %v478
        %v480 = vpop.f32.mrb[0].mxu0
        %v481 = vpop.f32.mrb[0].mxu0
        %v482 = vadd.f32 0.0, %v481
        %v483 = vpop.f32.mrb[0].mxu0
        %484 = vdwg.mxu0
        %v485 = vsel %vm425, -1e+30, %v479
        %v486 = vsel %vm426, -1e+30, %v482
        %v487 = vld [vmem:[#allocation2] sm:$0xff]
        %v488 = vld [vmem:[#allocation2 + $0x8] sm:$0xff]
        %v489 = vld [vmem:[#allocation3] sm:$0xff]
        %v490 = vld [vmem:[#allocation3 + $0x8] sm:$0xff]
        %vm491 = vcmask 130048
        %v492 = vsel %vm491, %v485, -inf
        %493 = vmax.xlane.f32.xlu0 %v492
        %v494 = vpop.xlane.xlu0 %493
        %v495 = vsel %vm491, %v486, -inf
        %496 = vmax.xlane.f32.xlu0 %v495
        %v497 = vpop.xlane.xlu0 %496
        %v498 = vmax.f32 %v487, %v494
        %v499 = vmax.f32 %v488, %v497
        %v500 = vsub.f32 %v487, %v498
        %v501 = vsub.f32 %v488, %v499
        %v502 = vmul.f32 %v500, 1.442695
        %v503 = vpow.pop %v502
        %v504 = vmul.f32 %v501, 1.442695
        %v505 = vpow.pop %v504
        %507 = vset.pattern.permute.xlu0 0
        %508 = vperm.xlu0 %507, %v498
        %v509 = vpop.permute.xlu0 %508
        %512 = vset.pattern.permute.xlu0 0
        %513 = vperm.xlu0 %512, %v499
        %v514 = vpop.permute.xlu0 %513
        %v516 = vsub.f32 %v485, %v509
        %v517 = vsub.f32 %v486, %v514
        %v518 = vmul.f32 %v516, 1.442695
        %v519 = vpow.pop %v518
        %v520 = vmul.f32 %v517, 1.442695
        %v521 = vpow.pop %v520
        %v522 = vmul.f32 %v503, %v489
        %v523 = vmul.f32 %v505, %v490
        %v524 = vsel %vm491, %v519, 0.0
        %525 = vadd.xlane.f32.xlu0 %v524
        %v526 = vpop.xlane.xlu0 %525
        %v527 = vsel %vm491, %v521, 0.0
        %528 = vadd.xlane.f32.xlu0 %v527
        %v529 = vpop.xlane.xlu0 %528
        %v530 = vadd.f32 %v522, %v526
        %v531 = vadd.f32 %v523, %v529
        %v532 = vld [vmem:[#allocation4] sm:$0xff]
        %v533 = vld [vmem:[#allocation4 + $0x10] sm:$0xff]
        %535 = vset.pattern.permute.xlu0 0
        %536 = vperm.xlu0 %535, %v503
        %v537 = vpop.permute.xlu0 %536
        %540 = vset.pattern.permute.xlu0 0
        %541 = vperm.xlu0 %540, %v505
        %v542 = vpop.permute.xlu0 %541
        %v544 = vmul.f32 %v537, %v532
        %v545 = vmul.f32 %v542, %v533
        %v546 = vpack.c.bf16 %v521, %v519
        %v548 = vsel %vm491, %v546, 0
        %550 = vmatprep.subr.bf16.mxu0 0
        %551 = vmatpush1.bf16.msra.mxu0 %v411
        %552 = vmatprep.subr.bf16.mxu0 0
        %553 = vmatpush1.bf16.msra.mxu0 0
        %554 = vmatprep.subr.bf16.mxu0 0
        %555 = vmatpush1.bf16.msra.mxu0 0
        %556 = vmatprep.subr.bf16.mxu0 0
        %557 = vmatpush1.bf16.msra.mxu0 0
        %558 = vmatprep.subr.bf16.mxu0 0
        %559 = vmatpush1.bf16.msra.mxu0 0
        %560 = vmatprep.subr.bf16.mxu0 0
        %561 = vmatpush1.bf16.msra.mxu0 0
        %562 = vmatprep.subr.bf16.mxu0 0
        %563 = vmatpush1.bf16.msra.mxu0 0
        %564 = vmatprep.subr.bf16.mxu0 0
        %565 = vmatpush1.bf16.msra.mxu0 0
        %566 = vmatprep.subr.bf16.mxu0 0
        %567 = vmatpush1.bf16.msra.mxu0 0
        %568 = vmatprep.subr.bf16.mxu0 0
        %569 = vmatpush1.bf16.msra.mxu0 0
        %570 = vmatprep.subr.bf16.mxu0 0
        %571 = vmatpush1.bf16.msra.mxu0 0
        %572 = vmatprep.subr.bf16.mxu0 0
        %573 = vmatpush1.bf16.msra.mxu0 0
        %574 = vmatprep.subr.bf16.mxu0 0
        %575 = vmatpush1.bf16.msra.mxu0 0
        %576 = vmatprep.subr.bf16.mxu0 0
        %577 = vmatpush1.bf16.msra.mxu0 0
        %578 = vmatprep.subr.bf16.mxu0 0
        %579 = vmatpush1.bf16.msra.mxu0 0
        %580 = vmatprep.subr.bf16.mxu0 0
        %581 = vmatpush1.bf16.msra.mxu0 0
        %582 = vmatprep.mubr.bf16.mxu0 0
        %583 = vmatmul.mubr.bf16.gmra.mrb[0].mxu0 %v548
        %v584 = vpop.f32.mrb[0].mxu0
        %v585 = vadd.f32 0.0, %v584
        %v586 = vpop.f32.mrb[0].mxu0
        %v587 = vpop.f32.mrb[0].mxu0
        %v588 = vadd.f32 0.0, %v587
        %v589 = vpop.f32.mrb[0].mxu0
        %590 = vdwg.mxu0
        %v591 = vadd.f32 %v544, %v585
        %v592 = vadd.f32 %v545, %v588
        %593 = vst.msk [vmem:[#allocation4] sm:$0xff] %vm437, %v591
        %594 = vst.msk [vmem:[#allocation4 + $0x10] sm:$0xff] %vm437, %v592
        %595 = vst [vmem:[#allocation2] sm:$0xff] %v509
        %596 = vst [vmem:[#allocation2 + $0x8] sm:$0xff] %v514
        %598 = vset.pattern.permute.xlu0 0
        %599 = vperm.xlu0 %598, %v530
        %v600 = vpop.permute.xlu0 %599
        %603 = vset.pattern.permute.xlu0 0
        %604 = vperm.xlu0 %603, %v531
        %v605 = vpop.permute.xlu0 %604
        %607 = vst [vmem:[#allocation3] sm:$0xff] %v600
        %608 = vst [vmem:[#allocation3 + $0x8] sm:$0xff] %v605
        %609 = vrot.lane.b32.xlu0 %v431, 64
        %v610 = vpop.permute.xlu0 %609
        %611 = vrot.lane.b32.xlu0 %v436, 64
        %v612 = vpop.permute.xlu0 %611
        %v614 = vsel %vm437, %v610, 0
        %v617 = vsel %vm437, %v612, 0
        %619 = vmatprep.subr.bf16.mxu0 0
        %620 = vmatpush1.bf16.xpose.msra.mxu0 %v617
        %621 = vmatprep.subr.bf16.mxu0 0
        %622 = vmatpush1.bf16.xpose.msra.mxu0 0
        %623 = vmatprep.subr.bf16.mxu0 0
        %624 = vmatpush1.bf16.xpose.msra.mxu0 0
        %625 = vmatprep.subr.bf16.mxu0 0
        %626 = vmatpush1.bf16.xpose.msra.mxu0 0
        %627 = vmatprep.subr.bf16.mxu0 0
        %628 = vmatpush1.bf16.xpose.msra.mxu0 0
        %629 = vmatprep.subr.bf16.mxu0 0
        %630 = vmatpush1.bf16.xpose.msra.mxu0 0
        %631 = vmatprep.subr.bf16.mxu0 0
        %632 = vmatpush1.bf16.xpose.msra.mxu0 0
        %633 = vmatprep.subr.bf16.mxu0 0
        %634 = vmatpush1.bf16.xpose.msra.mxu0 0
        %635 = vmatprep.subr.bf16.mxu0 0
        %636 = vmatpush1.bf16.xpose.msra.mxu0 0
        %637 = vmatprep.subr.bf16.mxu0 0
        %638 = vmatpush1.bf16.xpose.msra.mxu0 0
        %639 = vmatprep.subr.bf16.mxu0 0
        %640 = vmatpush1.bf16.xpose.msra.mxu0 0
        %641 = vmatprep.subr.bf16.mxu0 0
        %642 = vmatpush1.bf16.xpose.msra.mxu0 0
        %643 = vmatprep.subr.bf16.mxu0 0
        %644 = vmatpush1.bf16.xpose.msra.mxu0 0
        %645 = vmatprep.subr.bf16.mxu0 0
        %646 = vmatpush1.bf16.xpose.msra.mxu0 0
        %647 = vmatprep.subr.bf16.mxu0 0
        %648 = vmatpush1.bf16.xpose.msra.mxu0 0
        %649 = vmatprep.subr.bf16.mxu0 0
        %650 = vmatpush1.bf16.xpose.msra.mxu0 0
        %651 = vmatprep.mubr.bf16.mxu0 0
        %652 = vmatmul.mubr.bf16.gmra.mrb[0].mxu0 %v614
        %v653 = vpop.f32.mrb[0].mxu0
        %v654 = vadd.f32 0.0, %v653
        %v655 = vpop.f32.mrb[0].mxu0
        %v656 = vpop.f32.mrb[0].mxu0
        %v657 = vadd.f32 0.0, %v656
        %v658 = vpop.f32.mrb[0].mxu0
        %659 = vdwg.mxu0
        %v660 = vsel %vm425, -1e+30, %v654
        %v661 = vsel %vm426, -1e+30, %v657
        %s662 = scalar_lea.vmem [#allocation2], 16
        %v663 = vld [vmem:[%s662] sm:$0xff]
        %v664 = vld [vmem:[%s662 + $0x8] sm:$0xff]
        %s665 = scalar_lea.vmem [#allocation3], 16
        %v666 = vld [vmem:[%s665] sm:$0xff]
        %v667 = vld [vmem:[%s665 + $0x8] sm:$0xff]
        %v668 = vsel %vm491, %v660, -inf
        %669 = vmax.xlane.f32.xlu0 %v668
        %v670 = vpop.xlane.xlu0 %669
        %v671 = vsel %vm491, %v661, -inf
        %672 = vmax.xlane.f32.xlu0 %v671
        %v673 = vpop.xlane.xlu0 %672
        %v674 = vmax.f32 %v663, %v670
        %v675 = vmax.f32 %v664, %v673
        %v676 = vsub.f32 %v663, %v674
        %v677 = vsub.f32 %v664, %v675
        %v678 = vmul.f32 %v676, 1.442695
        %v679 = vpow.pop %v678
        %v680 = vmul.f32 %v677, 1.442695
        %v681 = vpow.pop %v680
        %683 = vset.pattern.permute.xlu0 0
        %684 = vperm.xlu0 %683, %v674
        %v685 = vpop.permute.xlu0 %684
        %688 = vset.pattern.permute.xlu0 0
        %689 = vperm.xlu0 %688, %v675
        %v690 = vpop.permute.xlu0 %689
        %v692 = vsub.f32 %v660, %v685
        %v693 = vsub.f32 %v661, %v690
        %v694 = vmul.f32 %v692, 1.442695
        %v695 = vpow.pop %v694
        %v696 = vmul.f32 %v693, 1.442695
        %v697 = vpow.pop %v696
        %v698 = vmul.f32 %v679, %v666
        %v699 = vmul.f32 %v681, %v667
        %v700 = vsel %vm491, %v695, 0.0
        %701 = vadd.xlane.f32.xlu0 %v700
        %v702 = vpop.xlane.xlu0 %701
        %v703 = vsel %vm491, %v697, 0.0
        %704 = vadd.xlane.f32.xlu0 %v703
        %v705 = vpop.xlane.xlu0 %704
        %v706 = vadd.f32 %v698, %v702
        %v707 = vadd.f32 %v699, %v705
        %v708 = vld [vmem:[#allocation4] sm:$0xff]
        %v709 = vld [vmem:[#allocation4 + $0x10] sm:$0xff]
        %711 = vset.pattern.permute.xlu0 0
        %712 = vperm.xlu0 %711, %v679
        %v713 = vpop.permute.xlu0 %712
        %716 = vset.pattern.permute.xlu0 0
        %717 = vperm.xlu0 %716, %v681
        %v718 = vpop.permute.xlu0 %717
        %v720 = vmul.f32 %v713, %v708
        %v721 = vmul.f32 %v718, %v709
        %v722 = vpack.c.bf16 %v697, %v695
        %724 = vrot.lane.b32.xlu0 %v411, 64
        %v725 = vpop.permute.xlu0 %724
        %v728 = vsel %vm491, %v722, 0
        %730 = vmatprep.subr.bf16.mxu0 0
        %731 = vmatpush1.bf16.msra.mxu0 %v725
        %732 = vmatprep.subr.bf16.mxu0 0
        %733 = vmatpush1.bf16.msra.mxu0 0
        %734 = vmatprep.subr.bf16.mxu0 0
        %735 = vmatpush1.bf16.msra.mxu0 0
        %736 = vmatprep.subr.bf16.mxu0 0
        %737 = vmatpush1.bf16.msra.mxu0 0
        %738 = vmatprep.subr.bf16.mxu0 0
        %739 = vmatpush1.bf16.msra.mxu0 0
        %740 = vmatprep.subr.bf16.mxu0 0
        %741 = vmatpush1.bf16.msra.mxu0 0
        %742 = vmatprep.subr.bf16.mxu0 0
        %743 = vmatpush1.bf16.msra.mxu0 0
        %744 = vmatprep.subr.bf16.mxu0 0
        %745 = vmatpush1.bf16.msra.mxu0 0
        %746 = vmatprep.subr.bf16.mxu0 0
        %747 = vmatpush1.bf16.msra.mxu0 0
        %748 = vmatprep.subr.bf16.mxu0 0
        %749 = vmatpush1.bf16.msra.mxu0 0
        %750 = vmatprep.subr.bf16.mxu0 0
        %751 = vmatpush1.bf16.msra.mxu0 0
        %752 = vmatprep.subr.bf16.mxu0 0
        %753 = vmatpush1.bf16.msra.mxu0 0
        %754 = vmatprep.subr.bf16.mxu0 0
        %755 = vmatpush1.bf16.msra.mxu0 0
        %756 = vmatprep.subr.bf16.mxu0 0
        %757 = vmatpush1.bf16.msra.mxu0 0
        %758 = vmatprep.subr.bf16.mxu0 0
        %759 = vmatpush1.bf16.msra.mxu0 0
        %760 = vmatprep.subr.bf16.mxu0 0
        %761 = vmatpush1.bf16.msra.mxu0 0
        %762 = vmatprep.mubr.bf16.mxu0 0
        %763 = vmatmul.mubr.bf16.gmra.mrb[0].mxu0 %v728
        %v764 = vpop.f32.mrb[0].mxu0
        %v765 = vadd.f32 0.0, %v764
        %v766 = vpop.f32.mrb[0].mxu0
        %v767 = vpop.f32.mrb[0].mxu0
        %v768 = vadd.f32 0.0, %v767
        %v769 = vpop.f32.mrb[0].mxu0
        %770 = vdwg.mxu0
        %773 = vrot.lane.b32.xlu0 %v765, 64
        %v774 = vpop.permute.xlu0 %773
        %775 = vrot.lane.b32.xlu0 %v768, 64
        %v776 = vpop.permute.xlu0 %775
        %v779 = vadd.f32 %v720, %v774
        %v780 = vadd.f32 %v721, %v776
        %vm781 = vcmask 1048064
        %782 = vst.msk [vmem:[#allocation4] sm:$0xff] %vm781, %v779
        %783 = vst.msk [vmem:[#allocation4 + $0x10] sm:$0xff] %vm781, %v780
        %784 = vst [vmem:[%s662] sm:$0xff] %v685
        %785 = vst [vmem:[%s662 + $0x8] sm:$0xff] %v690
        %787 = vset.pattern.permute.xlu0 0
        %788 = vperm.xlu0 %787, %v706
        %v789 = vpop.permute.xlu0 %788
        %792 = vset.pattern.permute.xlu0 0
        %793 = vperm.xlu0 %792, %v707
        %v794 = vpop.permute.xlu0 %793
        %796 = vst [vmem:[%s665] sm:$0xff] %v789
        %797 = vst [vmem:[%s665 + $0x8] sm:$0xff] %v794
        %v798 = vunpack.c.h.b16 %v403
        %v799 = vunpack.c.h.b16 %v404
        %v800 = vpack.c.b16 %v799, %v798
        %v801 = vunpack.c.h.b16 %v405
        %v802 = vunpack.c.h.b16 %v406
        %v803 = vpack.c.b16 %v802, %v801
        %v805 = vsel %vm437, %v800, 0
        %v808 = vsel %vm437, %v803, 0
        %810 = vmatprep.subr.bf16.mxu0 0
        %811 = vmatpush1.bf16.xpose.msra.mxu0 %v808
        %812 = vmatprep.subr.bf16.mxu0 0
        %813 = vmatpush1.bf16.xpose.msra.mxu0 0
        %814 = vmatprep.subr.bf16.mxu0 0
        %815 = vmatpush1.bf16.xpose.msra.mxu0 0
        %816 = vmatprep.subr.bf16.mxu0 0
        %817 = vmatpush1.bf16.xpose.msra.mxu0 0
        %818 = vmatprep.subr.bf16.mxu0 0
        %819 = vmatpush1.bf16.xpose.msra.mxu0 0
        %820 = vmatprep.subr.bf16.mxu0 0
        %821 = vmatpush1.bf16.xpose.msra.mxu0 0
        %822 = vmatprep.subr.bf16.mxu0 0
        %823 = vmatpush1.bf16.xpose.msra.mxu0 0
        %824 = vmatprep.subr.bf16.mxu0 0
        %825 = vmatpush1.bf16.xpose.msra.mxu0 0
        %826 = vmatprep.subr.bf16.mxu0 0
        %827 = vmatpush1.bf16.xpose.msra.mxu0 0
        %828 = vmatprep.subr.bf16.mxu0 0
        %829 = vmatpush1.bf16.xpose.msra.mxu0 0
        %830 = vmatprep.subr.bf16.mxu0 0
        %831 = vmatpush1.bf16.xpose.msra.mxu0 0
        %832 = vmatprep.subr.bf16.mxu0 0
        %833 = vmatpush1.bf16.xpose.msra.mxu0 0
        %834 = vmatprep.subr.bf16.mxu0 0
        %835 = vmatpush1.bf16.xpose.msra.mxu0 0
        %836 = vmatprep.subr.bf16.mxu0 0
        %837 = vmatpush1.bf16.xpose.msra.mxu0 0
        %838 = vmatprep.subr.bf16.mxu0 0
        %839 = vmatpush1.bf16.xpose.msra.mxu0 0
        %840 = vmatprep.subr.bf16.mxu0 0
        %841 = vmatpush1.bf16.xpose.msra.mxu0 0
        %842 = vmatprep.mubr.bf16.mxu0 0
        %843 = vmatmul.mubr.bf16.gmra.mrb[0].mxu0 %v805
        %v844 = vpop.f32.mrb[0].mxu0
        %v845 = vadd.f32 0.0, %v844
        %v846 = vpop.f32.mrb[0].mxu0
        %v847 = vpop.f32.mrb[0].mxu0
        %v848 = vadd.f32 0.0, %v847
        %v849 = vpop.f32.mrb[0].mxu0
        %850 = vdwg.mxu0
        %v851 = vsel %vm425, -1e+30, %v845
        %v852 = vsel %vm426, -1e+30, %v848
        %s853 = scalar_lea.vmem [#allocation2], 32
        %v854 = vld [vmem:[%s853] sm:$0xff]
        %v855 = vld [vmem:[%s853 + $0x8] sm:$0xff]
        %s856 = scalar_lea.vmem [#allocation3], 32
        %v857 = vld [vmem:[%s856] sm:$0xff]
        %v858 = vld [vmem:[%s856 + $0x8] sm:$0xff]
        %v859 = vsel %vm491, %v851, -inf
        %860 = vmax.xlane.f32.xlu0 %v859
        %v861 = vpop.xlane.xlu0 %860
        %v862 = vsel %vm491, %v852, -inf
        %863 = vmax.xlane.f32.xlu0 %v862
        %v864 = vpop.xlane.xlu0 %863
        %v865 = vmax.f32 %v854, %v861
        %v866 = vmax.f32 %v855, %v864
        %v867 = vsub.f32 %v854, %v865
        %v868 = vsub.f32 %v855, %v866
        %v869 = vmul.f32 %v867, 1.442695
        %v870 = vpow.pop %v869
        %v871 = vmul.f32 %v868, 1.442695
        %v872 = vpow.pop %v871
        %874 = vset.pattern.permute.xlu0 0
        %875 = vperm.xlu0 %874, %v865
        %v876 = vpop.permute.xlu0 %875
        %879 = vset.pattern.permute.xlu0 0
        %880 = vperm.xlu0 %879, %v866
        %v881 = vpop.permute.xlu0 %880
        %v883 = vsub.f32 %v851, %v876
        %v884 = vsub.f32 %v852, %v881
        %v885 = vmul.f32 %v883, 1.442695
        %v886 = vpow.pop %v885
        %v887 = vmul.f32 %v884, 1.442695
        %v888 = vpow.pop %v887
        %v889 = vmul.f32 %v870, %v857
        %v890 = vmul.f32 %v872, %v858
        %v891 = vsel %vm491, %v886, 0.0
        %892 = vadd.xlane.f32.xlu0 %v891
        %v893 = vpop.xlane.xlu0 %892
        %v894 = vsel %vm491, %v888, 0.0
        %895 = vadd.xlane.f32.xlu0 %v894
        %v896 = vpop.xlane.xlu0 %895
        %v897 = vadd.f32 %v889, %v893
        %v898 = vadd.f32 %v890, %v896
        %v899 = vld [vmem:[#allocation4 + $0x8] sm:$0xff]
        %v900 = vld [vmem:[#allocation4 + $0x18] sm:$0xff]
        %902 = vset.pattern.permute.xlu0 0
        %903 = vperm.xlu0 %902, %v870
        %v904 = vpop.permute.xlu0 %903
        %907 = vset.pattern.permute.xlu0 0
        %908 = vperm.xlu0 %907, %v872
        %v909 = vpop.permute.xlu0 %908
        %v911 = vmul.f32 %v904, %v899
        %v912 = vmul.f32 %v909, %v900
        %v913 = vpack.c.bf16 %v888, %v886
        %v915 = vsel %vm491, %v913, 0
        %917 = vmatprep.subr.bf16.mxu0 0
        %918 = vmatpush1.bf16.msra.mxu0 %v412
        %919 = vmatprep.subr.bf16.mxu0 0
        %920 = vmatpush1.bf16.msra.mxu0 0
        %921 = vmatprep.subr.bf16.mxu0 0
        %922 = vmatpush1.bf16.msra.mxu0 0
        %923 = vmatprep.subr.bf16.mxu0 0
        %924 = vmatpush1.bf16.msra.mxu0 0
        %925 = vmatprep.subr.bf16.mxu0 0
        %926 = vmatpush1.bf16.msra.mxu0 0
        %927 = vmatprep.subr.bf16.mxu0 0
        %928 = vmatpush1.bf16.msra.mxu0 0
        %929 = vmatprep.subr.bf16.mxu0 0
        %930 = vmatpush1.bf16.msra.mxu0 0
        %931 = vmatprep.subr.bf16.mxu0 0
        %932 = vmatpush1.bf16.msra.mxu0 0
        %933 = vmatprep.subr.bf16.mxu0 0
        %934 = vmatpush1.bf16.msra.mxu0 0
        %935 = vmatprep.subr.bf16.mxu0 0
        %936 = vmatpush1.bf16.msra.mxu0 0
        %937 = vmatprep.subr.bf16.mxu0 0
        %938 = vmatpush1.bf16.msra.mxu0 0
        %939 = vmatprep.subr.bf16.mxu0 0
        %940 = vmatpush1.bf16.msra.mxu0 0
        %941 = vmatprep.subr.bf16.mxu0 0
        %942 = vmatpush1.bf16.msra.mxu0 0
        %943 = vmatprep.subr.bf16.mxu0 0
        %944 = vmatpush1.bf16.msra.mxu0 0
        %945 = vmatprep.subr.bf16.mxu0 0
        %946 = vmatpush1.bf16.msra.mxu0 0
        %947 = vmatprep.subr.bf16.mxu0 0
        %948 = vmatpush1.bf16.msra.mxu0 0
        %949 = vmatprep.mubr.bf16.mxu0 0
        %950 = vmatmul.mubr.bf16.gmra.mrb[0].mxu0 %v915
        %v951 = vpop.f32.mrb[0].mxu0
        %v952 = vadd.f32 0.0, %v951
        %v953 = vpop.f32.mrb[0].mxu0
        %v954 = vpop.f32.mrb[0].mxu0
        %v955 = vadd.f32 0.0, %v954
        %v956 = vpop.f32.mrb[0].mxu0
        %957 = vdwg.mxu0
        %v958 = vadd.f32 %v911, %v952
        %v959 = vadd.f32 %v912, %v955
        %960 = vst.msk [vmem:[#allocation4 + $0x8] sm:$0xff] %vm437, %v958
        %961 = vst.msk [vmem:[#allocation4 + $0x18] sm:$0xff] %vm437, %v959
        %962 = vst [vmem:[%s853] sm:$0xff] %v876
        %963 = vst [vmem:[%s853 + $0x8] sm:$0xff] %v881
        %965 = vset.pattern.permute.xlu0 0
        %966 = vperm.xlu0 %965, %v897
        %v967 = vpop.permute.xlu0 %966
        %970 = vset.pattern.permute.xlu0 0
        %971 = vperm.xlu0 %970, %v898
        %v972 = vpop.permute.xlu0 %971
        %974 = vst [vmem:[%s856] sm:$0xff] %v967
        %975 = vst [vmem:[%s856 + $0x8] sm:$0xff] %v972
        %976 = vrot.lane.b32.xlu0 %v800, 64
        %v977 = vpop.permute.xlu0 %976
        %978 = vrot.lane.b32.xlu0 %v803, 64
        %v979 = vpop.permute.xlu0 %978
        %v981 = vsel %vm437, %v977, 0
        %v984 = vsel %vm437, %v979, 0
        %986 = vmatprep.subr.bf16.mxu0 0
        %987 = vmatpush1.bf16.xpose.msra.mxu0 %v984
        %988 = vmatprep.subr.bf16.mxu0 0
        %989 = vmatpush1.bf16.xpose.msra.mxu0 0
        %990 = vmatprep.subr.bf16.mxu0 0
        %991 = vmatpush1.bf16.xpose.msra.mxu0 0
        %992 = vmatprep.subr.bf16.mxu0 0
        %993 = vmatpush1.bf16.xpose.msra.mxu0 0
        %994 = vmatprep.subr.bf16.mxu0 0
        %995 = vmatpush1.bf16.xpose.msra.mxu0 0
        %996 = vmatprep.subr.bf16.mxu0 0
        %997 = vmatpush1.bf16.xpose.msra.mxu0 0
        %998 = vmatprep.subr.bf16.mxu0 0
        %999 = vmatpush1.bf16.xpose.msra.mxu0 0
        %1000 = vmatprep.subr.bf16.mxu0 0
        %1001 = vmatpush1.bf16.xpose.msra.mxu0 0
        %1002 = vmatprep.subr.bf16.mxu0 0
        %1003 = vmatpush1.bf16.xpose.msra.mxu0 0
        %1004 = vmatprep.subr.bf16.mxu0 0
        %1005 = vmatpush1.bf16.xpose.msra.mxu0 0
        %1006 = vmatprep.subr.bf16.mxu0 0
        %1007 = vmatpush1.bf16.xpose.msra.mxu0 0
        %1008 = vmatprep.subr.bf16.mxu0 0
        %1009 = vmatpush1.bf16.xpose.msra.mxu0 0
        %1010 = vmatprep.subr.bf16.mxu0 0
        %1011 = vmatpush1.bf16.xpose.msra.mxu0 0
        %1012 = vmatprep.subr.bf16.mxu0 0
        %1013 = vmatpush1.bf16.xpose.msra.mxu0 0
        %1014 = vmatprep.subr.bf16.mxu0 0
        %1015 = vmatpush1.bf16.xpose.msra.mxu0 0
        %1016 = vmatprep.subr.bf16.mxu0 0
        %1017 = vmatpush1.bf16.xpose.msra.mxu0 0
        %1018 = vmatprep.mubr.bf16.mxu0 0
        %1019 = vmatmul.mubr.bf16.gmra.mrb[0].mxu0 %v981
        %v1020 = vpop.f32.mrb[0].mxu0
        %v1021 = vadd.f32 0.0, %v1020
        %v1022 = vpop.f32.mrb[0].mxu0
        %v1023 = vpop.f32.mrb[0].mxu0
        %v1024 = vadd.f32 0.0, %v1023
        %v1025 = vpop.f32.mrb[0].mxu0
        %1026 = vdwg.mxu0
        %v1027 = vsel %vm425, -1e+30, %v1021
        %v1028 = vsel %vm426, -1e+30, %v1024
        %s1029 = scalar_lea.vmem [#allocation2], 48
        %v1030 = vld [vmem:[%s1029] sm:$0xff]
        %v1031 = vld [vmem:[%s1029 + $0x8] sm:$0xff]
        %s1032 = scalar_lea.vmem [#allocation3], 48
        %v1033 = vld [vmem:[%s1032] sm:$0xff]
        %v1034 = vld [vmem:[%s1032 + $0x8] sm:$0xff]
        %v1035 = vsel %vm491, %v1027, -inf
        %1036 = vmax.xlane.f32.xlu0 %v1035
        %v1037 = vpop.xlane.xlu0 %1036
        %v1038 = vsel %vm491, %v1028, -inf
        %1039 = vmax.xlane.f32.xlu0 %v1038
        %v1040 = vpop.xlane.xlu0 %1039
        %v1041 = vmax.f32 %v1030, %v1037
        %v1042 = vmax.f32 %v1031, %v1040
        %v1043 = vsub.f32 %v1030, %v1041
        %v1044 = vsub.f32 %v1031, %v1042
        %v1045 = vmul.f32 %v1043, 1.442695
        %v1046 = vpow.pop %v1045
        %v1047 = vmul.f32 %v1044, 1.442695
        %v1048 = vpow.pop %v1047
        %1050 = vset.pattern.permute.xlu0 0
        %1051 = vperm.xlu0 %1050, %v1041
        %v1052 = vpop.permute.xlu0 %1051
        %1055 = vset.pattern.permute.xlu0 0
        %1056 = vperm.xlu0 %1055, %v1042
        %v1057 = vpop.permute.xlu0 %1056
        %v1059 = vsub.f32 %v1027, %v1052
        %v1060 = vsub.f32 %v1028, %v1057
        %v1061 = vmul.f32 %v1059, 1.442695
        %v1062 = vpow.pop %v1061
        %v1063 = vmul.f32 %v1060, 1.442695
        %v1064 = vpow.pop %v1063
        %v1065 = vmul.f32 %v1046, %v1033
        %v1066 = vmul.f32 %v1048, %v1034
        %v1067 = vsel %vm491, %v1062, 0.0
        %1068 = vadd.xlane.f32.xlu0 %v1067
        %v1069 = vpop.xlane.xlu0 %1068
        %v1070 = vsel %vm491, %v1064, 0.0
        %1071 = vadd.xlane.f32.xlu0 %v1070
        %v1072 = vpop.xlane.xlu0 %1071
        %v1073 = vadd.f32 %v1065, %v1069
        %v1074 = vadd.f32 %v1066, %v1072
        %v1075 = vld [vmem:[#allocation4 + $0x8] sm:$0xff]
        %v1076 = vld [vmem:[#allocation4 + $0x18] sm:$0xff]
        %1078 = vset.pattern.permute.xlu0 0
        %1079 = vperm.xlu0 %1078, %v1046
        %v1080 = vpop.permute.xlu0 %1079
        %1083 = vset.pattern.permute.xlu0 0
        %1084 = vperm.xlu0 %1083, %v1048
        %v1085 = vpop.permute.xlu0 %1084
        %v1087 = vmul.f32 %v1080, %v1075
        %v1088 = vmul.f32 %v1085, %v1076
        %v1089 = vpack.c.bf16 %v1064, %v1062
        %1091 = vrot.lane.b32.xlu0 %v412, 64
        %v1092 = vpop.permute.xlu0 %1091
        %v1095 = vsel %vm491, %v1089, 0
        %1097 = vmatprep.subr.bf16.mxu0 0
        %1098 = vmatpush1.bf16.msra.mxu0 %v1092
        %1099 = vmatprep.subr.bf16.mxu0 0
        %1100 = vmatpush1.bf16.msra.mxu0 0
        %1101 = vmatprep.subr.bf16.mxu0 0
        %1102 = vmatpush1.bf16.msra.mxu0 0
        %1103 = vmatprep.subr.bf16.mxu0 0
        %1104 = vmatpush1.bf16.msra.mxu0 0
        %1105 = vmatprep.subr.bf16.mxu0 0
        %1106 = vmatpush1.bf16.msra.mxu0 0
        %1107 = vmatprep.subr.bf16.mxu0 0
        %1108 = vmatpush1.bf16.msra.mxu0 0
        %1109 = vmatprep.subr.bf16.mxu0 0
        %1110 = vmatpush1.bf16.msra.mxu0 0
        %1111 = vmatprep.subr.bf16.mxu0 0
        %1112 = vmatpush1.bf16.msra.mxu0 0
        %1113 = vmatprep.subr.bf16.mxu0 0
        %1114 = vmatpush1.bf16.msra.mxu0 0
        %1115 = vmatprep.subr.bf16.mxu0 0
        %1116 = vmatpush1.bf16.msra.mxu0 0
        %1117 = vmatprep.subr.bf16.mxu0 0
        %1118 = vmatpush1.bf16.msra.mxu0 0
        %1119 = vmatprep.subr.bf16.mxu0 0
        %1120 = vmatpush1.bf16.msra.mxu0 0
        %1121 = vmatprep.subr.bf16.mxu0 0
        %1122 = vmatpush1.bf16.msra.mxu0 0
        %1123 = vmatprep.subr.bf16.mxu0 0
        %1124 = vmatpush1.bf16.msra.mxu0 0
        %1125 = vmatprep.subr.bf16.mxu0 0
        %1126 = vmatpush1.bf16.msra.mxu0 0
        %1127 = vmatprep.subr.bf16.mxu0 0
        %1128 = vmatpush1.bf16.msra.mxu0 0
        %1129 = vmatprep.mubr.bf16.mxu0 0
        %1130 = vmatmul.mubr.bf16.gmra.mrb[0].mxu0 %v1095
        %v1131 = vpop.f32.mrb[0].mxu0
        %v1132 = vadd.f32 0.0, %v1131
        %v1133 = vpop.f32.mrb[0].mxu0
        %v1134 = vpop.f32.mrb[0].mxu0
        %v1135 = vadd.f32 0.0, %v1134
        %v1136 = vpop.f32.mrb[0].mxu0
        %1137 = vdwg.mxu0
        %1140 = vrot.lane.b32.xlu0 %v1132, 64
        %v1141 = vpop.permute.xlu0 %1140
        %1142 = vrot.lane.b32.xlu0 %v1135, 64
        %v1143 = vpop.permute.xlu0 %1142
        %v1146 = vadd.f32 %v1087, %v1141
        %v1147 = vadd.f32 %v1088, %v1143
        %1148 = vst.msk [vmem:[#allocation4 + $0x8] sm:$0xff] %vm781, %v1146
        %1149 = vst.msk [vmem:[#allocation4 + $0x18] sm:$0xff] %vm781, %v1147
        %1150 = vst [vmem:[%s1029] sm:$0xff] %v1052
        %1151 = vst [vmem:[%s1029 + $0x8] sm:$0xff] %v1057
        %1153 = vset.pattern.permute.xlu0 0
        %1154 = vperm.xlu0 %1153, %v1073
        %v1155 = vpop.permute.xlu0 %1154
        %1158 = vset.pattern.permute.xlu0 0
        %1159 = vperm.xlu0 %1158, %v1074
        %v1160 = vpop.permute.xlu0 %1159
        %1162 = vst [vmem:[%s1032] sm:$0xff] %v1155
        %1163 = vst [vmem:[%s1032 + $0x8] sm:$0xff] %v1160
        %p1164 = scmp.eq.s32.totalorder %s378, %s377
        // Predicated region
        $region136: #{chameleon_forward.13} parent=118 // pred_check
          %p1165 = pneg %p1164
        $region137: #{chameleon_forward.13} parent=118 // pred_check_branch
          %1167 = sbr.rel (%p1165) target = $region139
        $region138: #{chameleon_forward.13} parent=118 // pred_region
          %v1168 = vld [vmem:[#allocation3] sm:$0xff]
          %v1169 = vld [vmem:[#allocation3 + $0x8] sm:$0xff]
          %v1170 = vrcp.pop %v1168
          %v1171 = vrcp.pop %v1169
          %v1172 = vld [vmem:[%s665] sm:$0xff]
          %v1173 = vld [vmem:[%s665 + $0x8] sm:$0xff]
          %v1174 = vrcp.pop %v1172
          %v1175 = vrcp.pop %v1173
          %v1176 = vld [vmem:[%s856] sm:$0xff]
          %v1177 = vld [vmem:[%s856 + $0x8] sm:$0xff]
          %v1178 = vrcp.pop %v1176
          %v1179 = vrcp.pop %v1177
          %v1180 = vld [vmem:[%s1032] sm:$0xff]
          %v1181 = vld [vmem:[%s1032 + $0x8] sm:$0xff]
          %v1182 = vrcp.pop %v1180
          %v1183 = vrcp.pop %v1181
          %1186 = vrot.lane.b32.xlu0 %v1174, 64
          %v1187 = vpop.permute.xlu0 %1186
          %1188 = vrot.lane.b32.xlu0 %v1175, 64
          %v1189 = vpop.permute.xlu0 %1188
          %1194 = vrot.lane.b32.xlu0 %v1182, 64
          %v1195 = vpop.permute.xlu0 %1194
          %1196 = vrot.lane.b32.xlu0 %v1183, 64
          %v1197 = vpop.permute.xlu0 %1196
          %v1200 = vsel %vm437, %v1170, %v1187
          %v1201 = vsel %vm437, %v1171, %v1189
          %v1202 = vsel %vm437, %v1178, %v1195
          %v1203 = vsel %vm437, %v1179, %v1197
          %v1204 = vld [vmem:[#allocation4] sm:$0xff]
          %v1205 = vld [vmem:[#allocation4 + $0x8] sm:$0xff]
          %v1206 = vld [vmem:[#allocation4 + $0x10] sm:$0xff]
          %v1207 = vld [vmem:[#allocation4 + $0x18] sm:$0xff]
          %v1208 = vmul.f32 %v1204, %v1200
          %v1209 = vmul.f32 %v1205, %v1202
          %v1210 = vmul.f32 %v1206, %v1201
          %v1211 = vmul.f32 %v1207, %v1203
          %1212 = vst [vmem:[%s372] sm:$0xff] %v1208
          %1213 = vst [vmem:[%s372 + $0x8] sm:$0xff] %v1209
          %1214 = vst [vmem:[%s372 + $0x10] sm:$0xff] %v1210
          %1215 = vst [vmem:[%s372 + $0x18] sm:$0xff] %v1211
        $region139: #{chameleon_forward.13} parent=118 // pred_fallthru
          _
        %s1216 = sld [smem:[#allocation6 + %s23]]
        %s1217 = sadd.s32 %s22, %s1216
        %s1218 = smul.u32 2, %s1217
        %p1219 = scmp.lt.s32.totalorder %s1218, 3
        %s1220 = scalar_select %p1219, %s1218, 3
        %s1221 = smul.addr %s1220, 2
        %s1222 = smul.addr %s1221, 8
        %s1223 = scalar_lea.vmem %s5, %s1222
        // Predicated region
        $region140: #{chameleon_forward.13} parent=118 // pred_check
          %p1224 = pneg %p142
        $region141: #{chameleon_forward.13} parent=118 // pred_check_branch
          %1226 = sbr.rel (%p1224) target = $region143
        $region142: #{chameleon_forward.13} parent=118 // pred_region
          %s1227 = sld [smem:[#allocation6 + %s23]]
          %s1228 = sadd.s32 %s22, %s1227
          %s1229 = smul.u32 2, %s1228
        $region143: #{chameleon_forward.13} parent=118 // pred_fallthru
          _
      $region119: #{chameleon_forward.13} parent=5 // pred_fallthru
        _
      %p1230 = scmp.le.s32.totalorder 2, %s13
      // Predicated region
      $region144: #{chameleon_forward.13} parent=5 // pred_check
        %p1231 = pneg %p1230
      $region145: #{chameleon_forward.13} parent=5 // pred_check_branch
        %1233 = sbr.rel (%p1231) target = $region147
      $region146: #{chameleon_forward.13} parent=5 // pred_region
        %s1234 = ssub.s32 %s13, 2
        // Predicated region
        $region148: #{chameleon_forward.13} parent=146 // pred_check
          %p1235 = pneg %p148
        $region149: #{chameleon_forward.13} parent=146 // pred_check_branch
          %1237 = sbr.rel (%p1235) target = $region151
        $region150: #{chameleon_forward.13} parent=146 // pred_region
          %s1238 = sld [smem:[#allocation6 + %s25]]
          %s1239 = sadd.s32 %s24, %s1238
          %s1240 = smul.u32 2, %s1239
          %p1241 = scmp.lt.s32.totalorder %s1240, 3
          %s1242 = scalar_select %p1241, %s1240, 3
          %s1243 = smul.addr %s1242, 2
          %s1244 = smul.addr %s1243, 8
          %s1245 = scalar_lea.vmem %s5, %s1244
        $region151: #{chameleon_forward.13} parent=146 // pred_fallthru
          _
      $region147: #{chameleon_forward.13} parent=5 // pred_fallthru
        _
    $region6: #{chameleon_forward.13} parent=1 // loop_footer
      %s17 = sadd.s32 1, %s13
    $region7: #{chameleon_forward.13} parent=1 // loop_footer_branch
      %12 = sbr.rel target = $region3
    $region8: #{chameleon_forward.13} parent=1 // loop_exit
      _

// kernel: chameleon_forward.12
$region0: #{chameleon_forward.12}
  #allocation0 [shape = 'u32[]', space=smem, size = 0x4, offset = 0x4, fixed_abs, tag = 'smem constant byte address 0x4 - core index']
  #allocation1 [shape = 'u32[144,128]{1,0:T(1,128)}', space=vmem, size = 0x12000, scoped, tag = 'internal scratch']
  %s0 = inlined_call_operand.vmem [shape: f32[32,768], index: 0, kind: input, shape index: {}, may-alias: {0,1}]
  %s1 = inlined_call_operand.vmem [shape: f32[32,768], index: 1, kind: input, shape index: {}, may-alias: {0,1}]
  %s2 = inlined_call_operand.vmem [shape: f32[1,64], index: 2, kind: input, shape index: {}]
  %s3 = inlined_call_operand.vmem [shape: f32[1,64], index: 3, kind: input, shape index: {}]
  %s4 = inlined_call_operand.vmem [shape: f32[1,64], index: 4, kind: input, shape index: {}]
  %s5 = inlined_call_operand.vmem [shape: f32[1,64], index: 5, kind: input, shape index: {}]
  %s6 = inlined_call_operand.vmem [shape: f32[32,32], index: 6, kind: input, shape index: {}]
  %s7 = inlined_call_operand.vmem [shape: f32[32,32], index: 7, kind: input, shape index: {}]
  %s8 = inlined_call_operand.vmem [shape: bf16[32,512], index: 8, kind: output, shape index: {}]
  %s9 = sld [smem:[#allocation0]]
  $region88: #{chameleon_forward.12} parent=0
    _
  %s11 = ssub.s32 1, %s9
  %s12 = scalar_select 0, %s11, %s9
  $region1: #{chameleon_forward.12} parent=0
    #allocation2 [shape = 'u8[32768]{0}', space=vmem, size = 0x8000, scoped, tag = 'input window, operand 0, single buffered']
    #allocation3 [shape = 'u8[32768]{0}', space=vmem, size = 0x8000, scoped, tag = 'input window, operand 1, single buffered']
    // Predicated region
    $region2: #{chameleon_forward.12} parent=1 // pred_check
      _
    $region3: #{chameleon_forward.12} parent=1 // pred_check_branch
      %14 = sbr.rel (0) target = $region5
    $region4: #{chameleon_forward.12} parent=1 // pred_region
      // Predicated region
      $region6: #{chameleon_forward.12} parent=4 // pred_check
        _
      $region7: #{chameleon_forward.12} parent=4 // pred_check_branch
        %16 = sbr.rel (0) target = $region9
      $region8: #{chameleon_forward.12} parent=4 // pred_region
        // Predicated region
        $region10: #{chameleon_forward.12} parent=8 // pred_check
          _
        $region11: #{chameleon_forward.12} parent=8 // pred_check_branch
          %18 = sbr.rel (0) target = $region13
        $region12: #{chameleon_forward.12} parent=8 // pred_region
          loop: start=0, step=1, limit=1
          $region14: #{chameleon_forward.12} parent=12 // loop_pre_header
            _
          $region15: #{chameleon_forward.12} parent=12 // loop_header
            %s20 = sphi 0, %s24
            %p21 = scmp.ge.s32.totalorder %s20, 1
            %s25 = sphi %s0, %s0
            %s26 = sphi [#allocation2], [#allocation2]
          $region16: #{chameleon_forward.12} parent=12 // loop_header_branch
            %23 = sbr.rel (%p21) target = $region20
          $region17: #{chameleon_forward.12} parent=12 // loop_body
            %v27 = vld [vmem:[%s25] sm:$0xff]
            %28 = vst [vmem:[%s26] sm:$0xff] %v27
            %v29 = vld [vmem:[%s25 + $0x8] sm:$0xff]
            %30 = vst [vmem:[%s26 + $0x8] sm:$0xff] %v29
            %v31 = vld [vmem:[%s25 + $0x30] sm:$0xff]
            %32 = vst [vmem:[%s26 + $0x10] sm:$0xff] %v31
            %v33 = vld [vmem:[%s25 + $0x38] sm:$0xff]
            %34 = vst [vmem:[%s26 + $0x18] sm:$0xff] %v33
            %v35 = vld [vmem:[%s25 + $0x60] sm:$0xff]
            %36 = vst [vmem:[%s26 + $0x20] sm:$0xff] %v35
            %v37 = vld [vmem:[%s25 + $0x68] sm:$0xff]
            %38 = vst [vmem:[%s26 + $0x28] sm:$0xff] %v37
            %v39 = vld [vmem:[%s25 + $0x90] sm:$0xff]
            %40 = vst [vmem:[%s26 + $0x30] sm:$0xff] %v39
            %v41 = vld [vmem:[%s25 + $0x98] sm:$0xff]
            %42 = vst [vmem:[%s26 + $0x38] sm:$0xff] %v41
          $region18: #{chameleon_forward.12} parent=12 // loop_footer
            %s24 = sadd.s32 1, %s20
          $region19: #{chameleon_forward.12} parent=12 // loop_footer_branch
            %19 = sbr.rel target = $region15
          $region20: #{chameleon_forward.12} parent=12 // loop_exit
            _
        $region13: #{chameleon_forward.12} parent=8 // pred_fallthru
          _
        // Predicated region
        $region21: #{chameleon_forward.12} parent=8 // pred_check
          _
        $region22: #{chameleon_forward.12} parent=8 // pred_check_branch
          %44 = sbr.rel target = $region24
        $region23: #{chameleon_forward.12} parent=8 // pred_region
          _
        $region24: #{chameleon_forward.12} parent=8 // pred_fallthru
          _
      $region9: #{chameleon_forward.12} parent=4 // pred_fallthru
        _
      %45 = vnop
    $region5: #{chameleon_forward.12} parent=1 // pred_fallthru
      _
    // Predicated region
    $region25: #{chameleon_forward.12} parent=1 // pred_check
      _
    $region26: #{chameleon_forward.12} parent=1 // pred_check_branch
      %47 = sbr.rel (0) target = $region28
    $region27: #{chameleon_forward.12} parent=1 // pred_region
      %s48 = scalar_lea.vmem %s1, 16
      // Predicated region
      $region29: #{chameleon_forward.12} parent=27 // pred_check
        _
      $region30: #{chameleon_forward.12} parent=27 // pred_check_branch
        %50 = sbr.rel (0) target = $region32
      $region31: #{chameleon_forward.12} parent=27 // pred_region
        // Predicated region
        $region33: #{chameleon_forward.12} parent=31 // pred_check
          _
        $region34: #{chameleon_forward.12} parent=31 // pred_check_branch
          %52 = sbr.rel (0) target = $region36
        $region35: #{chameleon_forward.12} parent=31 // pred_region
          loop: start=0, step=1, limit=1
          $region37: #{chameleon_forward.12} parent=35 // loop_pre_header
            _
          $region38: #{chameleon_forward.12} parent=35 // loop_header
            %s54 = sphi 0, %s58
            %p55 = scmp.ge.s32.totalorder %s54, 1
            %s59 = sphi %s48, %s48
            %s60 = sphi [#allocation3], [#allocation3]
          $region39: #{chameleon_forward.12} parent=35 // loop_header_branch
            %57 = sbr.rel (%p55) target = $region43
          $region40: #{chameleon_forward.12} parent=35 // loop_body
            %v61 = vld [vmem:[%s59] sm:$0xff]
            %62 = vst [vmem:[%s60] sm:$0xff] %v61
            %v63 = vld [vmem:[%s59 + $0x8] sm:$0xff]
            %64 = vst [vmem:[%s60 + $0x8] sm:$0xff] %v63
            %v65 = vld [vmem:[%s59 + $0x30] sm:$0xff]
            %66 = vst [vmem:[%s60 + $0x10] sm:$0xff] %v65
            %v67 = vld [vmem:[%s59 + $0x38] sm:$0xff]
            %68 = vst [vmem:[%s60 + $0x18] sm:$0xff] %v67
            %v69 = vld [vmem:[%s59 + $0x60] sm:$0xff]
            %70 = vst [vmem:[%s60 + $0x20] sm:$0xff] %v69
            %v71 = vld [vmem:[%s59 + $0x68] sm:$0xff]
            %72 = vst [vmem:[%s60 + $0x28] sm:$0xff] %v71
            %v73 = vld [vmem:[%s59 + $0x90] sm:$0xff]
            %74 = vst [vmem:[%s60 + $0x30] sm:$0xff] %v73
            %v75 = vld [vmem:[%s59 + $0x98] sm:$0xff]
            %76 = vst [vmem:[%s60 + $0x38] sm:$0xff] %v75
          $region41: #{chameleon_forward.12} parent=35 // loop_footer
            %s58 = sadd.s32 1, %s54
          $region42: #{chameleon_forward.12} parent=35 // loop_footer_branch
            %53 = sbr.rel target = $region38
          $region43: #{chameleon_forward.12} parent=35 // loop_exit
            _
        $region36: #{chameleon_forward.12} parent=31 // pred_fallthru
          _
        // Predicated region
        $region44: #{chameleon_forward.12} parent=31 // pred_check
          _
        $region45: #{chameleon_forward.12} parent=31 // pred_check_branch
          %78 = sbr.rel target = $region47
        $region46: #{chameleon_forward.12} parent=31 // pred_region
          _
        $region47: #{chameleon_forward.12} parent=31 // pred_fallthru
          _
      $region32: #{chameleon_forward.12} parent=27 // pred_fallthru
        _
      %79 = vnop
    $region28: #{chameleon_forward.12} parent=1 // pred_fallthru
      _
    // Predicated region
    $region48: #{chameleon_forward.12} parent=1 // pred_check
      _
    $region49: #{chameleon_forward.12} parent=1 // pred_check_branch
      %81 = sbr.rel (0) target = $region51
    $region50: #{chameleon_forward.12} parent=1 // pred_region
      _
    $region51: #{chameleon_forward.12} parent=1 // pred_fallthru
      _
    // Predicated region
    $region52: #{chameleon_forward.12} parent=1 // pred_check
      _
    $region53: #{chameleon_forward.12} parent=1 // pred_check_branch
      %83 = sbr.rel (0) target = $region55
    $region54: #{chameleon_forward.12} parent=1 // pred_region
      _
    $region55: #{chameleon_forward.12} parent=1 // pred_fallthru
      _
    // Predicated region
    $region56: #{chameleon_forward.12} parent=1 // pred_check
      _
    $region57: #{chameleon_forward.12} parent=1 // pred_check_branch
      %85 = sbr.rel (0) target = $region59
    $region58: #{chameleon_forward.12} parent=1 // pred_region
      _
    $region59: #{chameleon_forward.12} parent=1 // pred_fallthru
      _
    // Predicated region
    $region60: #{chameleon_forward.12} parent=1 // pred_check
      _
    $region61: #{chameleon_forward.12} parent=1 // pred_check_branch
      %87 = sbr.rel (0) target = $region63
    $region62: #{chameleon_forward.12} parent=1 // pred_region
      _
    $region63: #{chameleon_forward.12} parent=1 // pred_fallthru
      _
    // Predicated region
    $region64: #{chameleon_forward.12} parent=1 // pred_check
      _
    $region65: #{chameleon_forward.12} parent=1 // pred_check_branch
      %89 = sbr.rel (0) target = $region67
    $region66: #{chameleon_forward.12} parent=1 // pred_region
      _
    $region67: #{chameleon_forward.12} parent=1 // pred_fallthru
      _
    // Predicated region
    $region68: #{chameleon_forward.12} parent=1 // pred_check
      _
    $region69: #{chameleon_forward.12} parent=1 // pred_check_branch
      %91 = sbr.rel (0) target = $region71
    $region70: #{chameleon_forward.12} parent=1 // pred_region
      _
    $region71: #{chameleon_forward.12} parent=1 // pred_fallthru
      _
    // Predicated region
    $region72: #{chameleon_forward.12} parent=1 // pred_check
      _
    $region73: #{chameleon_forward.12} parent=1 // pred_check_branch
      %93 = sbr.rel (0) target = $region75
    $region74: #{chameleon_forward.12} parent=1 // pred_region
      _
    $region75: #{chameleon_forward.12} parent=1 // pred_fallthru
      _
    // Predicated region
    $region76: #{chameleon_forward.12} parent=1 // pred_check
      _
    $region77: #{chameleon_forward.12} parent=1 // pred_check_branch
      %95 = sbr.rel (0) target = $region79
    $region78: #{chameleon_forward.12} parent=1 // pred_region
      _
    $region79: #{chameleon_forward.12} parent=1 // pred_fallthru
      _
    %v96 = vld [vmem:[%s6] sm:$0xff]
    %v97 = vld [vmem:[%s6 + $0x8] sm:$0xff]
    %v98 = vld [vmem:[%s6 + $0x10] sm:$0xff]
    %v99 = vld [vmem:[%s6 + $0x18] sm:$0xff]
    %v100 = vld [vmem:[%s7] sm:$0xff]
    %v101 = vld [vmem:[%s7 + $0x8] sm:$0xff]
    %v102 = vld [vmem:[%s7 + $0x10] sm:$0xff]
    %v103 = vld [vmem:[%s7 + $0x18] sm:$0xff]
    %v104 = vld [vmem:[#allocation2] sm:$0xff]
    %v105 = vld [vmem:[#allocation2 + $0x8] sm:$0xff]
    %v106 = vld [vmem:[#allocation2 + $0x10] sm:$0xff]
    %v107 = vld [vmem:[#allocation2 + $0x18] sm:$0xff]
    %v108 = vld [vmem:[#allocation2 + $0x20] sm:$0xff]
    %v109 = vld [vmem:[#allocation2 + $0x28] sm:$0xff]
    %v110 = vld [vmem:[#allocation2 + $0x30] sm:$0xff]
    %v111 = vld [vmem:[#allocation2 + $0x38] sm:$0xff]
    %v112 = vld [vmem:[#allocation3] sm:$0xff]
    %v113 = vld [vmem:[#allocation3 + $0x8] sm:$0xff]
    %v114 = vld [vmem:[#allocation3 + $0x10] sm:$0xff]
    %v115 = vld [vmem:[#allocation3 + $0x18] sm:$0xff]
    %v116 = vld [vmem:[#allocation3 + $0x20] sm:$0xff]
    %v117 = vld [vmem:[#allocation3 + $0x28] sm:$0xff]
    %v118 = vld [vmem:[#allocation3 + $0x30] sm:$0xff]
    %v119 = vld [vmem:[#allocation3 + $0x38] sm:$0xff]
    %v120 = vld [vmem:[%s2] sm:$0x1]
    %v121 = vld [vmem:[%s3] sm:$0x1]
    %vm122 = vcmask 523264
    %v123 = vsel %vm122, %v104, 0.0
    %124 = vadd.xlane.f32.xlu0 %v123
    %v125 = vpop.xlane.xlu0 %124
    %v126 = vsel %vm122, %v106, 0.0
    %127 = vadd.xlane.f32.xlu0 %v126
    %v128 = vpop.xlane.xlu0 %127
    %v129 = vsel %vm122, %v108, 0.0
    %130 = vadd.xlane.f32.xlu0 %v129
    %v131 = vpop.xlane.xlu0 %130
    %v132 = vsel %vm122, %v110, 0.0
    %133 = vadd.xlane.f32.xlu0 %v132
    %v134 = vpop.xlane.xlu0 %133
    %v135 = vrcp.pop 64.0
    %v136 = vmul.f32 %v125, %v135
    %v137 = vmul.f32 %v128, %v135
    %v138 = vmul.f32 %v131, %v135
    %v139 = vmul.f32 %v134, %v135
    %v140 = vsub.f32 %v104, %v136
    %v141 = vsub.f32 %v106, %v137
    %v142 = vsub.f32 %v108, %v138
    %v143 = vsub.f32 %v110, %v139
    %v144 = vmul.f32 %v140, %v140
    %v145 = vmul.f32 %v141, %v141
    %v146 = vmul.f32 %v142, %v142
    %v147 = vmul.f32 %v143, %v143
    %v148 = vsel %vm122, %v144, 0.0
    %149 = vadd.xlane.f32.xlu0 %v148
    %v150 = vpop.xlane.xlu0 %149
    %v151 = vsel %vm122, %v145, 0.0
    %152 = vadd.xlane.f32.xlu0 %v151
    %v153 = vpop.xlane.xlu0 %152
    %v154 = vsel %vm122, %v146, 0.0
    %155 = vadd.xlane.f32.xlu0 %v154
    %v156 = vpop.xlane.xlu0 %155
    %v157 = vsel %vm122, %v147, 0.0
    %158 = vadd.xlane.f32.xlu0 %v157
    %v159 = vpop.xlane.xlu0 %158
    %v160 = vmul.f32 %v150, %v135
    %v161 = vmul.f32 %v153, %v135
    %v162 = vmul.f32 %v156, %v135
    %v163 = vmul.f32 %v159, %v135
    %v164 = vadd.f32 %v160, 1e-05
    %v165 = vadd.f32 %v161, 1e-05
    %v166 = vadd.f32 %v162, 1e-05
    %v167 = vadd.f32 %v163, 1e-05
    %v168 = vrsqrt.pop %v164
    %v169 = vrsqrt.pop %v165
    %v170 = vrsqrt.pop %v166
    %v171 = vrsqrt.pop %v167
    %v172 = vmul.f32 %v140, %v168
    %v173 = vmul.f32 %v141, %v169
    %v174 = vmul.f32 %v142, %v170
    %v175 = vmul.f32 %v143, %v171
    %v177 = vlaneseq
    %v178 = vshrl.u32 %v177, 7
    %v179 = vsub.s32 0, %v178
    %v180 = vrot.slane %v120, %v179
    %v182 = vmul.f32 %v172, %v180
    %v183 = vmul.f32 %v173, %v180
    %v184 = vmul.f32 %v174, %v180
    %v185 = vmul.f32 %v175, %v180
    %v187 = vlaneseq
    %v188 = vshrl.u32 %v187, 7
    %v189 = vsub.s32 0, %v188
    %v190 = vrot.slane %v121, %v189
    %v192 = vadd.f32 %v182, %v190
    %v193 = vadd.f32 %v183, %v190
    %v194 = vadd.f32 %v184, %v190
    %v195 = vadd.f32 %v185, %v190
    %v196 = vmul.f32 %v192, %v96
    %v197 = vmul.f32 %v193, %v97
    %v198 = vmul.f32 %v194, %v98
    %v199 = vmul.f32 %v195, %v99
    %204 = vrot.lane.b32.xlu0 %v100, 32
    %v205 = vpop.permute.xlu0 %204
    %206 = vrot.lane.b32.xlu0 %v101, 32
    %v207 = vpop.permute.xlu0 %206
    %208 = vrot.lane.b32.xlu0 %v102, 32
    %v209 = vpop.permute.xlu0 %208
    %210 = vrot.lane.b32.xlu0 %v103, 32
    %v211 = vpop.permute.xlu0 %210
    %v216 = vmul.f32 %v192, %v205
    %v217 = vmul.f32 %v193, %v207
    %v218 = vmul.f32 %v194, %v209
    %v219 = vmul.f32 %v195, %v211
    %224 = vrot.lane.b32.xlu0 %v216, 96
    %v225 = vpop.permute.xlu0 %224
    %226 = vrot.lane.b32.xlu0 %v217, 96
    %v227 = vpop.permute.xlu0 %226
    %228 = vrot.lane.b32.xlu0 %v218, 96
    %v229 = vpop.permute.xlu0 %228
    %230 = vrot.lane.b32.xlu0 %v219, 96
    %v231 = vpop.permute.xlu0 %230
    %v236 = vsub.f32 %v196, %v225
    %v237 = vsub.f32 %v197, %v227
    %v238 = vsub.f32 %v198, %v229
    %v239 = vsub.f32 %v199, %v231
    %v240 = vmul.f32 %v192, %v100
    %v241 = vmul.f32 %v193, %v101
    %v242 = vmul.f32 %v194, %v102
    %v243 = vmul.f32 %v195, %v103
    %248 = vrot.lane.b32.xlu0 %v96, 32
    %v249 = vpop.permute.xlu0 %248
    %250 = vrot.lane.b32.xlu0 %v97, 32
    %v251 = vpop.permute.xlu0 %250
    %252 = vrot.lane.b32.xlu0 %v98, 32
    %v253 = vpop.permute.xlu0 %252
    %254 = vrot.lane.b32.xlu0 %v99, 32
    %v255 = vpop.permute.xlu0 %254
    %v260 = vmul.f32 %v192, %v249
    %v261 = vmul.f32 %v193, %v251
    %v262 = vmul.f32 %v194, %v253
    %v263 = vmul.f32 %v195, %v255
    %268 = vrot.lane.b32.xlu0 %v260, 96
    %v269 = vpop.permute.xlu0 %268
    %270 = vrot.lane.b32.xlu0 %v261, 96
    %v271 = vpop.permute.xlu0 %270
    %272 = vrot.lane.b32.xlu0 %v262, 96
    %v273 = vpop.permute.xlu0 %272
    %274 = vrot.lane.b32.xlu0 %v263, 96
    %v275 = vpop.permute.xlu0 %274
    %v280 = vadd.f32 %v240, %v269
    %v281 = vadd.f32 %v241, %v271
    %v282 = vadd.f32 %v242, %v273
    %v283 = vadd.f32 %v243, %v275
    %288 = vrot.lane.b32.xlu0 %v280, 32
    %v289 = vpop.permute.xlu0 %288
    %290 = vrot.lane.b32.xlu0 %v281, 32
    %v291 = vpop.permute.xlu0 %290
    %292 = vrot.lane.b32.xlu0 %v282, 32
    %v293 = vpop.permute.xlu0 %292
    %294 = vrot.lane.b32.xlu0 %v283, 32
    %v295 = vpop.permute.xlu0 %294
    %vm300 = vcmask 261120
    %v301 = vsel %vm300, %v236, %v289
    %v302 = vsel %vm300, %v237, %v291
    %v303 = vsel %vm300, %v238, %v293
    %v304 = vsel %vm300, %v239, %v295
    %v305 = vmul.f32 %v301, 0.125
    %v306 = vmul.f32 %v302, 0.125
    %v307 = vmul.f32 %v303, 0.125
    %v308 = vmul.f32 %v304, 0.125
    %313 = vrot.lane.b32.xlu0 %v104, 64
    %v314 = vpop.permute.xlu0 %313
    %315 = vrot.lane.b32.xlu0 %v106, 64
    %v316 = vpop.permute.xlu0 %315
    %317 = vrot.lane.b32.xlu0 %v108, 64
    %v318 = vpop.permute.xlu0 %317
    %319 = vrot.lane.b32.xlu0 %v110, 64
    %v320 = vpop.permute.xlu0 %319
    %v325 = vsel %vm122, %v314, 0.0
    %326 = vadd.xlane.f32.xlu0 %v325
    %v327 = vpop.xlane.xlu0 %326
    %v328 = vsel %vm122, %v316, 0.0
    %329 = vadd.xlane.f32.xlu0 %v328
    %v330 = vpop.xlane.xlu0 %329
    %v331 = vsel %vm122, %v318, 0.0
    %332 = vadd.xlane.f32.xlu0 %v331
    %v333 = vpop.xlane.xlu0 %332
    %v334 = vsel %vm122, %v320, 0.0
    %335 = vadd.xlane.f32.xlu0 %v334
    %v336 = vpop.xlane.xlu0 %335
    %v337 = vmul.f32 %v327, %v135
    %v338 = vmul.f32 %v330, %v135
    %v339 = vmul.f32 %v333, %v135
    %v340 = vmul.f32 %v336, %v135
    %v341 = vsub.f32 %v104, %v337
    %v342 = vsub.f32 %v106, %v338
    %v343 = vsub.f32 %v108, %v339
    %v344 = vsub.f32 %v110, %v340
    %v345 = vmul.f32 %v341, %v341
    %v346 = vmul.f32 %v342, %v342
    %v347 = vmul.f32 %v343, %v343
    %v348 = vmul.f32 %v344, %v344
    %353 = vrot.lane.b32.xlu0 %v345, 64
    %v354 = vpop.permute.xlu0 %353
    %355 = vrot.lane.b32.xlu0 %v346, 64
    %v356 = vpop.permute.xlu0 %355
    %357 = vrot.lane.b32.xlu0 %v347, 64
    %v358 = vpop.permute.xlu0 %357
    %359 = vrot.lane.b32.xlu0 %v348, 64
    %v360 = vpop.permute.xlu0 %359
    %v365 = vsel %vm122, %v354, 0.0
    %366 = vadd.xlane.f32.xlu0 %v365
    %v367 = vpop.xlane.xlu0 %366
    %v368 = vsel %vm122, %v356, 0.0
    %369 = vadd.xlane.f32.xlu0 %v368
    %v370 = vpop.xlane.xlu0 %369
    %v371 = vsel %vm122, %v358, 0.0
    %372 = vadd.xlane.f32.xlu0 %v371
    %v373 = vpop.xlane.xlu0 %372
    %v374 = vsel %vm122, %v360, 0.0
    %375 = vadd.xlane.f32.xlu0 %v374
    %v376 = vpop.xlane.xlu0 %375
    %v377 = vmul.f32 %v367, %v135
    %v378 = vmul.f32 %v370, %v135
    %v379 = vmul.f32 %v373, %v135
    %v380 = vmul.f32 %v376, %v135
    %v381 = vadd.f32 %v377, 1e-05
    %v382 = vadd.f32 %v378, 1e-05
    %v383 = vadd.f32 %v379, 1e-05
    %v384 = vadd.f32 %v380, 1e-05
    %v385 = vrsqrt.pop %v381
    %v386 = vrsqrt.pop %v382
    %v387 = vrsqrt.pop %v383
    %v388 = vrsqrt.pop %v384
    %v389 = vmul.f32 %v341, %v385
    %v390 = vmul.f32 %v342, %v386
    %v391 = vmul.f32 %v343, %v387
    %v392 = vmul.f32 %v344, %v388
    %393 = vrot.lane.b32.xlu0 %v180, 64
    %v394 = vpop.permute.xlu0 %393
    %v396 = vmul.f32 %v389, %v394
    %v397 = vmul.f32 %v390, %v394
    %v398 = vmul.f32 %v391, %v394
    %v399 = vmul.f32 %v392, %v394
    %400 = vrot.lane.b32.xlu0 %v190, 64
    %v401 = vpop.permute.xlu0 %400
    %v403 = vadd.f32 %v396, %v401
    %v404 = vadd.f32 %v397, %v401
    %v405 = vadd.f32 %v398, %v401
    %v406 = vadd.f32 %v399, %v401
    %407 = vrot.lane.b32.xlu0 %v96, 64
    %v408 = vpop.permute.xlu0 %407
    %409 = vrot.lane.b32.xlu0 %v97, 64
    %v410 = vpop.permute.xlu0 %409
    %411 = vrot.lane.b32.xlu0 %v98, 64
    %v412 = vpop.permute.xlu0 %411
    %413 = vrot.lane.b32.xlu0 %v99, 64
    %v414 = vpop.permute.xlu0 %413
    %v419 = vmul.f32 %v403, %v408
    %v420 = vmul.f32 %v404, %v410
    %v421 = vmul.f32 %v405, %v412
    %v422 = vmul.f32 %v406, %v414
    %423 = vrot.lane.b32.xlu0 %v100, 96
    %v424 = vpop.permute.xlu0 %423
    %425 = vrot.lane.b32.xlu0 %v101, 96
    %v426 = vpop.permute.xlu0 %425
    %427 = vrot.lane.b32.xlu0 %v102, 96
    %v428 = vpop.permute.xlu0 %427
    %429 = vrot.lane.b32.xlu0 %v103, 96
    %v430 = vpop.permute.xlu0 %429
    %v435 = vmul.f32 %v403, %v424
    %v436 = vmul.f32 %v404, %v426
    %v437 = vmul.f32 %v405, %v428
    %v438 = vmul.f32 %v406, %v430
    %443 = vrot.lane.b32.xlu0 %v435, 96
    %v444 = vpop.permute.xlu0 %443
    %445 = vrot.lane.b32.xlu0 %v436, 96
    %v446 = vpop.permute.xlu0 %445
    %447 = vrot.lane.b32.xlu0 %v437, 96
    %v448 = vpop.permute.xlu0 %447
    %449 = vrot.lane.b32.xlu0 %v438, 96
    %v450 = vpop.permute.xlu0 %449
    %v455 = vsub.f32 %v419, %v444
    %v456 = vsub.f32 %v420, %v446
    %v457 = vsub.f32 %v421, %v448
    %v458 = vsub.f32 %v422, %v450
    %459 = vrot.lane.b32.xlu0 %v100, 64
    %v460 = vpop.permute.xlu0 %459
    %461 = vrot.lane.b32.xlu0 %v101, 64
    %v462 = vpop.permute.xlu0 %461
    %463 = vrot.lane.b32.xlu0 %v102, 64
    %v464 = vpop.permute.xlu0 %463
    %465 = vrot.lane.b32.xlu0 %v103, 64
    %v466 = vpop.permute.xlu0 %465
    %v471 = vmul.f32 %v403, %v460
    %v472 = vmul.f32 %v404, %v462
    %v473 = vmul.f32 %v405, %v464
    %v474 = vmul.f32 %v406, %v466
    %475 = vrot.lane.b32.xlu0 %v96, 96
    %v476 = vpop.permute.xlu0 %475
    %477 = vrot.lane.b32.xlu0 %v97, 96
    %v478 = vpop.permute.xlu0 %477
    %479 = vrot.lane.b32.xlu0 %v98, 96
    %v480 = vpop.permute.xlu0 %479
    %481 = vrot.lane.b32.xlu0 %v99, 96
    %v482 = vpop.permute.xlu0 %481
    %v487 = vmul.f32 %v403, %v476
    %v488 = vmul.f32 %v404, %v478
    %v489 = vmul.f32 %v405, %v480
    %v490 = vmul.f32 %v406, %v482
    %495 = vrot.lane.b32.xlu0 %v487, 96
    %v496 = vpop.permute.xlu0 %495
    %497 = vrot.lane.b32.xlu0 %v488, 96
    %v498 = vpop.permute.xlu0 %497
    %499 = vrot.lane.b32.xlu0 %v489, 96
    %v500 = vpop.permute.xlu0 %499
    %501 = vrot.lane.b32.xlu0 %v490, 96
    %v502 = vpop.permute.xlu0 %501
    %v507 = vadd.f32 %v471, %v496
    %v508 = vadd.f32 %v472, %v498
    %v509 = vadd.f32 %v473, %v500
    %v510 = vadd.f32 %v474, %v502
    %515 = vrot.lane.b32.xlu0 %v455, 64
    %v516 = vpop.permute.xlu0 %515
    %517 = vrot.lane.b32.xlu0 %v456, 64
    %v518 = vpop.permute.xlu0 %517
    %519 = vrot.lane.b32.xlu0 %v457, 64
    %v520 = vpop.permute.xlu0 %519
    %521 = vrot.lane.b32.xlu0 %v458, 64
    %v522 = vpop.permute.xlu0 %521
    %531 = vrot.lane.b32.xlu0 %v507, 96
    %v532 = vpop.permute.xlu0 %531
    %533 = vrot.lane.b32.xlu0 %v508, 96
    %v534 = vpop.permute.xlu0 %533
    %535 = vrot.lane.b32.xlu0 %v509, 96
    %v536 = vpop.permute.xlu0 %535
    %537 = vrot.lane.b32.xlu0 %v510, 96
    %v538 = vpop.permute.xlu0 %537
    %v543 = vsel %vm300, %v516, %v532
    %v544 = vsel %vm300, %v518, %v534
    %v545 = vsel %vm300, %v520, %v536
    %v546 = vsel %vm300, %v522, %v538
    %v547 = vmul.f32 %v543, 0.125
    %v548 = vmul.f32 %v544, 0.125
    %v549 = vmul.f32 %v545, 0.125
    %v550 = vmul.f32 %v546, 0.125
    %v551 = vsel %vm122, %v105, 0.0
    %552 = vadd.xlane.f32.xlu0 %v551
    %v553 = vpop.xlane.xlu0 %552
    %v554 = vsel %vm122, %v107, 0.0
    %555 = vadd.xlane.f32.xlu0 %v554
    %v556 = vpop.xlane.xlu0 %555
    %v557 = vsel %vm122, %v109, 0.0
    %558 = vadd.xlane.f32.xlu0 %v557
    %v559 = vpop.xlane.xlu0 %558
    %v560 = vsel %vm122, %v111, 0.0
    %561 = vadd.xlane.f32.xlu0 %v560
    %v562 = vpop.xlane.xlu0 %561
    %v563 = vmul.f32 %v553, %v135
    %v564 = vmul.f32 %v556, %v135
    %v565 = vmul.f32 %v559, %v135
    %v566 = vmul.f32 %v562, %v135
    %v567 = vsub.f32 %v105, %v563
    %v568 = vsub.f32 %v107, %v564
    %v569 = vsub.f32 %v109, %v565
    %v570 = vsub.f32 %v111, %v566
    %v571 = vmul.f32 %v567, %v567
    %v572 = vmul.f32 %v568, %v568
    %v573 = vmul.f32 %v569, %v569
    %v574 = vmul.f32 %v570, %v570
    %v575 = vsel %vm122, %v571, 0.0
    %576 = vadd.xlane.f32.xlu0 %v575
    %v577 = vpop.xlane.xlu0 %576
    %v578 = vsel %vm122, %v572, 0.0
    %579 = vadd.xlane.f32.xlu0 %v578
    %v580 = vpop.xlane.xlu0 %579
    %v581 = vsel %vm122, %v573, 0.0
    %582 = vadd.xlane.f32.xlu0 %v581
    %v583 = vpop.xlane.xlu0 %582
    %v584 = vsel %vm122, %v574, 0.0
    %585 = vadd.xlane.f32.xlu0 %v584
    %v586 = vpop.xlane.xlu0 %585
    %v587 = vmul.f32 %v577, %v135
    %v588 = vmul.f32 %v580, %v135
    %v589 = vmul.f32 %v583, %v135
    %v590 = vmul.f32 %v586, %v135
    %v591 = vadd.f32 %v587, 1e-05
    %v592 = vadd.f32 %v588, 1e-05
    %v593 = vadd.f32 %v589, 1e-05
    %v594 = vadd.f32 %v590, 1e-05
    %v595 = vrsqrt.pop %v591
    %v596 = vrsqrt.pop %v592
    %v597 = vrsqrt.pop %v593
    %v598 = vrsqrt.pop %v594
    %v599 = vmul.f32 %v567, %v595
    %v600 = vmul.f32 %v568, %v596
    %v601 = vmul.f32 %v569, %v597
    %v602 = vmul.f32 %v570, %v598
    %v603 = vmul.f32 %v599, %v180
    %v604 = vmul.f32 %v600, %v180
    %v605 = vmul.f32 %v601, %v180
    %v606 = vmul.f32 %v602, %v180
    %v607 = vadd.f32 %v603, %v190
    %v608 = vadd.f32 %v604, %v190
    %v609 = vadd.f32 %v605, %v190
    %v610 = vadd.f32 %v606, %v190
    %v611 = vmul.f32 %v607, %v96
    %v612 = vmul.f32 %v608, %v97
    %v613 = vmul.f32 %v609, %v98
    %v614 = vmul.f32 %v610, %v99
    %v615 = vmul.f32 %v607, %v205
    %v616 = vmul.f32 %v608, %v207
    %v617 = vmul.f32 %v609, %v209
    %v618 = vmul.f32 %v610, %v211
    %623 = vrot.lane.b32.xlu0 %v615, 96
    %v624 = vpop.permute.xlu0 %623
    %625 = vrot.lane.b32.xlu0 %v616, 96
    %v626 = vpop.permute.xlu0 %625
    %627 = vrot.lane.b32.xlu0 %v617, 96
    %v628 = vpop.permute.xlu0 %627
    %629 = vrot.lane.b32.xlu0 %v618, 96
    %v630 = vpop.permute.xlu0 %629
    %v635 = vsub.f32 %v611, %v624
    %v636 = vsub.f32 %v612, %v626
    %v637 = vsub.f32 %v613, %v628
    %v638 = vsub.f32 %v614, %v630
    %v639 = vmul.f32 %v607, %v100
    %v640 = vmul.f32 %v608, %v101
    %v641 = vmul.f32 %v609, %v102
    %v642 = vmul.f32 %v610, %v103
    %v643 = vmul.f32 %v607, %v249
    %v644 = vmul.f32 %v608, %v251
    %v645 = vmul.f32 %v609, %v253
    %v646 = vmul.f32 %v610, %v255
    %651 = vrot.lane.b32.xlu0 %v643, 96
    %v652 = vpop.permute.xlu0 %651
    %653 = vrot.lane.b32.xlu0 %v644, 96
    %v654 = vpop.permute.xlu0 %653
    %655 = vrot.lane.b32.xlu0 %v645, 96
    %v656 = vpop.permute.xlu0 %655
    %657 = vrot.lane.b32.xlu0 %v646, 96
    %v658 = vpop.permute.xlu0 %657
    %v663 = vadd.f32 %v639, %v652
    %v664 = vadd.f32 %v640, %v654
    %v665 = vadd.f32 %v641, %v656
    %v666 = vadd.f32 %v642, %v658
    %671 = vrot.lane.b32.xlu0 %v663, 32
    %v672 = vpop.permute.xlu0 %671
    %673 = vrot.lane.b32.xlu0 %v664, 32
    %v674 = vpop.permute.xlu0 %673
    %675 = vrot.lane.b32.xlu0 %v665, 32
    %v676 = vpop.permute.xlu0 %675
    %677 = vrot.lane.b32.xlu0 %v666, 32
    %v678 = vpop.permute.xlu0 %677
    %v683 = vsel %vm300, %v635, %v672
    %v684 = vsel %vm300, %v636, %v674
    %v685 = vsel %vm300, %v637, %v676
    %v686 = vsel %vm300, %v638, %v678
    %v687 = vmul.f32 %v683, 0.125
    %v688 = vmul.f32 %v684, 0.125
    %v689 = vmul.f32 %v685, 0.125
    %v690 = vmul.f32 %v686, 0.125
    %695 = vrot.lane.b32.xlu0 %v105, 64
    %v696 = vpop.permute.xlu0 %695
    %697 = vrot.lane.b32.xlu0 %v107, 64
    %v698 = vpop.permute.xlu0 %697
    %699 = vrot.lane.b32.xlu0 %v109, 64
    %v700 = vpop.permute.xlu0 %699
    %701 = vrot.lane.b32.xlu0 %v111, 64
    %v702 = vpop.permute.xlu0 %701
    %v707 = vsel %vm122, %v696, 0.0
    %708 = vadd.xlane.f32.xlu0 %v707
    %v709 = vpop.xlane.xlu0 %708
    %v710 = vsel %vm122, %v698, 0.0
    %711 = vadd.xlane.f32.xlu0 %v710
    %v712 = vpop.xlane.xlu0 %711
    %v713 = vsel %vm122, %v700, 0.0
    %714 = vadd.xlane.f32.xlu0 %v713
    %v715 = vpop.xlane.xlu0 %714
    %v716 = vsel %vm122, %v702, 0.0
    %717 = vadd.xlane.f32.xlu0 %v716
    %v718 = vpop.xlane.xlu0 %717
    %v719 = vmul.f32 %v709, %v135
    %v720 = vmul.f32 %v712, %v135
    %v721 = vmul.f32 %v715, %v135
    %v722 = vmul.f32 %v718, %v135
    %v723 = vsub.f32 %v105, %v719
    %v724 = vsub.f32 %v107, %v720
    %v725 = vsub.f32 %v109, %v721
    %v726 = vsub.f32 %v111, %v722
    %v727 = vmul.f32 %v723, %v723
    %v728 = vmul.f32 %v724, %v724
    %v729 = vmul.f32 %v725, %v725
    %v730 = vmul.f32 %v726, %v726
    %735 = vrot.lane.b32.xlu0 %v727, 64
    %v736 = vpop.permute.xlu0 %735
    %737 = vrot.lane.b32.xlu0 %v728, 64
    %v738 = vpop.permute.xlu0 %737
    %739 = vrot.lane.b32.xlu0 %v729, 64
    %v740 = vpop.permute.xlu0 %739
    %741 = vrot.lane.b32.xlu0 %v730, 64
    %v742 = vpop.permute.xlu0 %741
    %v747 = vsel %vm122, %v736, 0.0
    %748 = vadd.xlane.f32.xlu0 %v747
    %v749 = vpop.xlane.xlu0 %748
    %v750 = vsel %vm122, %v738, 0.0
    %751 = vadd.xlane.f32.xlu0 %v750
    %v752 = vpop.xlane.xlu0 %751
    %v753 = vsel %vm122, %v740, 0.0
    %754 = vadd.xlane.f32.xlu0 %v753
    %v755 = vpop.xlane.xlu0 %754
    %v756 = vsel %vm122, %v742, 0.0
    %757 = vadd.xlane.f32.xlu0 %v756
    %v758 = vpop.xlane.xlu0 %757
    %v759 = vmul.f32 %v749, %v135
    %v760 = vmul.f32 %v752, %v135
    %v761 = vmul.f32 %v755, %v135
    %v762 = vmul.f32 %v758, %v135
    %v763 = vadd.f32 %v759, 1e-05
    %v764 = vadd.f32 %v760, 1e-05
    %v765 = vadd.f32 %v761, 1e-05
    %v766 = vadd.f32 %v762, 1e-05
    %v767 = vrsqrt.pop %v763
    %v768 = vrsqrt.pop %v764
    %v769 = vrsqrt.pop %v765
    %v770 = vrsqrt.pop %v766
    %v771 = vmul.f32 %v723, %v767
    %v772 = vmul.f32 %v724, %v768
    %v773 = vmul.f32 %v725, %v769
    %v774 = vmul.f32 %v726, %v770
    %v775 = vmul.f32 %v771, %v394
    %v776 = vmul.f32 %v772, %v394
    %v777 = vmul.f32 %v773, %v394
    %v778 = vmul.f32 %v774, %v394
    %v779 = vadd.f32 %v775, %v401
    %v780 = vadd.f32 %v776, %v401
    %v781 = vadd.f32 %v777, %v401
    %v782 = vadd.f32 %v778, %v401
    %v783 = vmul.f32 %v779, %v408
    %v784 = vmul.f32 %v780, %v410
    %v785 = vmul.f32 %v781, %v412
    %v786 = vmul.f32 %v782, %v414
    %v787 = vmul.f32 %v779, %v424
    %v788 = vmul.f32 %v780, %v426
    %v789 = vmul.f32 %v781, %v428
    %v790 = vmul.f32 %v782, %v430
    %795 = vrot.lane.b32.xlu0 %v787, 96
    %v796 = vpop.permute.xlu0 %795
    %797 = vrot.lane.b32.xlu0 %v788, 96
    %v798 = vpop.permute.xlu0 %797
    %799 = vrot.lane.b32.xlu0 %v789, 96
    %v800 = vpop.permute.xlu0 %799
    %801 = vrot.lane.b32.xlu0 %v790, 96
    %v802 = vpop.permute.xlu0 %801
    %v807 = vsub.f32 %v783, %v796
    %v808 = vsub.f32 %v784, %v798
    %v809 = vsub.f32 %v785, %v800
    %v810 = vsub.f32 %v786, %v802
    %v811 = vmul.f32 %v779, %v460
    %v812 = vmul.f32 %v780, %v462
    %v813 = vmul.f32 %v781, %v464
    %v814 = vmul.f32 %v782, %v466
    %v815 = vmul.f32 %v779, %v476
    %v816 = vmul.f32 %v780, %v478
    %v817 = vmul.f32 %v781, %v480
    %v818 = vmul.f32 %v782, %v482
    %823 = vrot.lane.b32.xlu0 %v815, 96
    %v824 = vpop.permute.xlu0 %823
    %825 = vrot.lane.b32.xlu0 %v816, 96
    %v826 = vpop.permute.xlu0 %825
    %827 = vrot.lane.b32.xlu0 %v817, 96
    %v828 = vpop.permute.xlu0 %827
    %829 = vrot.lane.b32.xlu0 %v818, 96
    %v830 = vpop.permute.xlu0 %829
    %v835 = vadd.f32 %v811, %v824
    %v836 = vadd.f32 %v812, %v826
    %v837 = vadd.f32 %v813, %v828
    %v838 = vadd.f32 %v814, %v830
    %843 = vrot.lane.b32.xlu0 %v807, 64
    %v844 = vpop.permute.xlu0 %843
    %845 = vrot.lane.b32.xlu0 %v808, 64
    %v846 = vpop.permute.xlu0 %845
    %847 = vrot.lane.b32.xlu0 %v809, 64
    %v848 = vpop.permute.xlu0 %847
    %849 = vrot.lane.b32.xlu0 %v810, 64
    %v850 = vpop.permute.xlu0 %849
    %859 = vrot.lane.b32.xlu0 %v835, 96
    %v860 = vpop.permute.xlu0 %859
    %861 = vrot.lane.b32.xlu0 %v836, 96
    %v862 = vpop.permute.xlu0 %861
    %863 = vrot.lane.b32.xlu0 %v837, 96
    %v864 = vpop.permute.xlu0 %863
    %865 = vrot.lane.b32.xlu0 %v838, 96
    %v866 = vpop.permute.xlu0 %865
    %v871 = vsel %vm300, %v844, %v860
    %v872 = vsel %vm300, %v846, %v862
    %v873 = vsel %vm300, %v848, %v864
    %v874 = vsel %vm300, %v850, %v866
    %v875 = vmul.f32 %v871, 0.125
    %v876 = vmul.f32 %v872, 0.125
    %v877 = vmul.f32 %v873, 0.125
    %v878 = vmul.f32 %v874, 0.125
    %v879 = vld [vmem:[%s4] sm:$0x1]
    %v880 = vld [vmem:[%s5] sm:$0x1]
    %v881 = vsel %vm122, %v112, 0.0
    %882 = vadd.xlane.f32.xlu0 %v881
    %v883 = vpop.xlane.xlu0 %882
    %v884 = vsel %vm122, %v114, 0.0
    %885 = vadd.xlane.f32.xlu0 %v884
    %v886 = vpop.xlane.xlu0 %885
    %v887 = vsel %vm122, %v116, 0.0
    %888 = vadd.xlane.f32.xlu0 %v887
    %v889 = vpop.xlane.xlu0 %888
    %v890 = vsel %vm122, %v118, 0.0
    %891 = vadd.xlane.f32.xlu0 %v890
    %v892 = vpop.xlane.xlu0 %891
    %v893 = vmul.f32 %v883, %v135
    %v894 = vmul.f32 %v886, %v135
    %v895 = vmul.f32 %v889, %v135
    %v896 = vmul.f32 %v892, %v135
    %v897 = vsub.f32 %v112, %v893
    %v898 = vsub.f32 %v114, %v894
    %v899 = vsub.f32 %v116, %v895
    %v900 = vsub.f32 %v118, %v896
    %v901 = vmul.f32 %v897, %v897
    %v902 = vmul.f32 %v898, %v898
    %v903 = vmul.f32 %v899, %v899
    %v904 = vmul.f32 %v900, %v900
    %v905 = vsel %vm122, %v901, 0.0
    %906 = vadd.xlane.f32.xlu0 %v905
    %v907 = vpop.xlane.xlu0 %906
    %v908 = vsel %vm122, %v902, 0.0
    %909 = vadd.xlane.f32.xlu0 %v908
    %v910 = vpop.xlane.xlu0 %909
    %v911 = vsel %vm122, %v903, 0.0
    %912 = vadd.xlane.f32.xlu0 %v911
    %v913 = vpop.xlane.xlu0 %912
    %v914 = vsel %vm122, %v904, 0.0
    %915 = vadd.xlane.f32.xlu0 %v914
    %v916 = vpop.xlane.xlu0 %915
    %v917 = vmul.f32 %v907, %v135
    %v918 = vmul.f32 %v910, %v135
    %v919 = vmul.f32 %v913, %v135
    %v920 = vmul.f32 %v916, %v135
    %v921 = vadd.f32 %v917, 1e-05
    %v922 = vadd.f32 %v918, 1e-05
    %v923 = vadd.f32 %v919, 1e-05
    %v924 = vadd.f32 %v920, 1e-05
    %v925 = vrsqrt.pop %v921
    %v926 = vrsqrt.pop %v922
    %v927 = vrsqrt.pop %v923
    %v928 = vrsqrt.pop %v924
    %v929 = vmul.f32 %v897, %v925
    %v930 = vmul.f32 %v898, %v926
    %v931 = vmul.f32 %v899, %v927
    %v932 = vmul.f32 %v900, %v928
    %v934 = vlaneseq
    %v935 = vshrl.u32 %v934, 7
    %v936 = vsub.s32 0, %v935
    %v937 = vrot.slane %v879, %v936
    %v939 = vmul.f32 %v929, %v937
    %v940 = vmul.f32 %v930, %v937
    %v941 = vmul.f32 %v931, %v937
    %v942 = vmul.f32 %v932, %v937
    %v944 = vlaneseq
    %v945 = vshrl.u32 %v944, 7
    %v946 = vsub.s32 0, %v945
    %v947 = vrot.slane %v880, %v946
    %v949 = vadd.f32 %v939, %v947
    %v950 = vadd.f32 %v940, %v947
    %v951 = vadd.f32 %v941, %v947
    %v952 = vadd.f32 %v942, %v947
    %v953 = vmul.f32 %v949, %v96
    %v954 = vmul.f32 %v950, %v97
    %v955 = vmul.f32 %v951, %v98
    %v956 = vmul.f32 %v952, %v99
    %v957 = vmul.f32 %v949, %v205
    %v958 = vmul.f32 %v950, %v207
    %v959 = vmul.f32 %v951, %v209
    %v960 = vmul.f32 %v952, %v211
    %965 = vrot.lane.b32.xlu0 %v957, 96
    %v966 = vpop.permute.xlu0 %965
    %967 = vrot.lane.b32.xlu0 %v958, 96
    %v968 = vpop.permute.xlu0 %967
    %969 = vrot.lane.b32.xlu0 %v959, 96
    %v970 = vpop.permute.xlu0 %969
    %971 = vrot.lane.b32.xlu0 %v960, 96
    %v972 = vpop.permute.xlu0 %971
    %v977 = vsub.f32 %v953, %v966
    %v978 = vsub.f32 %v954, %v968
    %v979 = vsub.f32 %v955, %v970
    %v980 = vsub.f32 %v956, %v972
    %v981 = vmul.f32 %v949, %v100
    %v982 = vmul.f32 %v950, %v101
    %v983 = vmul.f32 %v951, %v102
    %v984 = vmul.f32 %v952, %v103
    %v985 = vmul.f32 %v949, %v249
    %v986 = vmul.f32 %v950, %v251
    %v987 = vmul.f32 %v951, %v253
    %v988 = vmul.f32 %v952, %v255
    %993 = vrot.lane.b32.xlu0 %v985, 96
    %v994 = vpop.permute.xlu0 %993
    %995 = vrot.lane.b32.xlu0 %v986, 96
    %v996 = vpop.permute.xlu0 %995
    %997 = vrot.lane.b32.xlu0 %v987, 96
    %v998 = vpop.permute.xlu0 %997
    %999 = vrot.lane.b32.xlu0 %v988, 96
    %v1000 = vpop.permute.xlu0 %999
    %v1005 = vadd.f32 %v981, %v994
    %v1006 = vadd.f32 %v982, %v996
    %v1007 = vadd.f32 %v983, %v998
    %v1008 = vadd.f32 %v984, %v1000
    %1013 = vrot.lane.b32.xlu0 %v1005, 32
    %v1014 = vpop.permute.xlu0 %1013
    %1015 = vrot.lane.b32.xlu0 %v1006, 32
    %v1016 = vpop.permute.xlu0 %1015
    %1017 = vrot.lane.b32.xlu0 %v1007, 32
    %v1018 = vpop.permute.xlu0 %1017
    %1019 = vrot.lane.b32.xlu0 %v1008, 32
    %v1020 = vpop.permute.xlu0 %1019
    %v1025 = vsel %vm300, %v977, %v1014
    %v1026 = vsel %vm300, %v978, %v1016
    %v1027 = vsel %vm300, %v979, %v1018
    %v1028 = vsel %vm300, %v980, %v1020
    %1033 = vrot.lane.b32.xlu0 %v112, 64
    %v1034 = vpop.permute.xlu0 %1033
    %1035 = vrot.lane.b32.xlu0 %v114, 64
    %v1036 = vpop.permute.xlu0 %1035
    %1037 = vrot.lane.b32.xlu0 %v116, 64
    %v1038 = vpop.permute.xlu0 %1037
    %1039 = vrot.lane.b32.xlu0 %v118, 64
    %v1040 = vpop.permute.xlu0 %1039
    %v1045 = vsel %vm122, %v1034, 0.0
    %1046 = vadd.xlane.f32.xlu0 %v1045
    %v1047 = vpop.xlane.xlu0 %1046
    %v1048 = vsel %vm122, %v1036, 0.0
    %1049 = vadd.xlane.f32.xlu0 %v1048
    %v1050 = vpop.xlane.xlu0 %1049
    %v1051 = vsel %vm122, %v1038, 0.0
    %1052 = vadd.xlane.f32.xlu0 %v1051
    %v1053 = vpop.xlane.xlu0 %1052
    %v1054 = vsel %vm122, %v1040, 0.0
    %1055 = vadd.xlane.f32.xlu0 %v1054
    %v1056 = vpop.xlane.xlu0 %1055
    %v1057 = vmul.f32 %v1047, %v135
    %v1058 = vmul.f32 %v1050, %v135
    %v1059 = vmul.f32 %v1053, %v135
    %v1060 = vmul.f32 %v1056, %v135
    %v1061 = vsub.f32 %v112, %v1057
    %v1062 = vsub.f32 %v114, %v1058
    %v1063 = vsub.f32 %v116, %v1059
    %v1064 = vsub.f32 %v118, %v1060
    %v1065 = vmul.f32 %v1061, %v1061
    %v1066 = vmul.f32 %v1062, %v1062
    %v1067 = vmul.f32 %v1063, %v1063
    %v1068 = vmul.f32 %v1064, %v1064
    %1073 = vrot.lane.b32.xlu0 %v1065, 64
    %v1074 = vpop.permute.xlu0 %1073
    %1075 = vrot.lane.b32.xlu0 %v1066, 64
    %v1076 = vpop.permute.xlu0 %1075
    %1077 = vrot.lane.b32.xlu0 %v1067, 64
    %v1078 = vpop.permute.xlu0 %1077
    %1079 = vrot.lane.b32.xlu0 %v1068, 64
    %v1080 = vpop.permute.xlu0 %1079
    %v1085 = vsel %vm122, %v1074, 0.0
    %1086 = vadd.xlane.f32.xlu0 %v1085
    %v1087 = vpop.xlane.xlu0 %1086
    %v1088 = vsel %vm122, %v1076, 0.0
    %1089 = vadd.xlane.f32.xlu0 %v1088
    %v1090 = vpop.xlane.xlu0 %1089
    %v1091 = vsel %vm122, %v1078, 0.0
    %1092 = vadd.xlane.f32.xlu0 %v1091
    %v1093 = vpop.xlane.xlu0 %1092
    %v1094 = vsel %vm122, %v1080, 0.0
    %1095 = vadd.xlane.f32.xlu0 %v1094
    %v1096 = vpop.xlane.xlu0 %1095
    %v1097 = vmul.f32 %v1087, %v135
    %v1098 = vmul.f32 %v1090, %v135
    %v1099 = vmul.f32 %v1093, %v135
    %v1100 = vmul.f32 %v1096, %v135
    %v1101 = vadd.f32 %v1097, 1e-05
    %v1102 = vadd.f32 %v1098, 1e-05
    %v1103 = vadd.f32 %v1099, 1e-05
    %v1104 = vadd.f32 %v1100, 1e-05
    %v1105 = vrsqrt.pop %v1101
    %v1106 = vrsqrt.pop %v1102
    %v1107 = vrsqrt.pop %v1103
    %v1108 = vrsqrt.pop %v1104
    %v1109 = vmul.f32 %v1061, %v1105
    %v1110 = vmul.f32 %v1062, %v1106
    %v1111 = vmul.f32 %v1063, %v1107
    %v1112 = vmul.f32 %v1064, %v1108
    %1113 = vrot.lane.b32.xlu0 %v937, 64
    %v1114 = vpop.permute.xlu0 %1113
    %v1116 = vmul.f32 %v1109, %v1114
    %v1117 = vmul.f32 %v1110, %v1114
    %v1118 = vmul.f32 %v1111, %v1114
    %v1119 = vmul.f32 %v1112, %v1114
    %1120 = vrot.lane.b32.xlu0 %v947, 64
    %v1121 = vpop.permute.xlu0 %1120
    %v1123 = vadd.f32 %v1116, %v1121
    %v1124 = vadd.f32 %v1117, %v1121
    %v1125 = vadd.f32 %v1118, %v1121
    %v1126 = vadd.f32 %v1119, %v1121
    %v1127 = vmul.f32 %v1123, %v408
    %v1128 = vmul.f32 %v1124, %v410
    %v1129 = vmul.f32 %v1125, %v412
    %v1130 = vmul.f32 %v1126, %v414
    %v1131 = vmul.f32 %v1123, %v424
    %v1132 = vmul.f32 %v1124, %v426
    %v1133 = vmul.f32 %v1125, %v428
    %v1134 = vmul.f32 %v1126, %v430
    %1139 = vrot.lane.b32.xlu0 %v1131, 96
    %v1140 = vpop.permute.xlu0 %1139
    %1141 = vrot.lane.b32.xlu0 %v1132, 96
    %v1142 = vpop.permute.xlu0 %1141
    %1143 = vrot.lane.b32.xlu0 %v1133, 96
    %v1144 = vpop.permute.xlu0 %1143
    %1145 = vrot.lane.b32.xlu0 %v1134, 96
    %v1146 = vpop.permute.xlu0 %1145
    %v1151 = vsub.f32 %v1127, %v1140
    %v1152 = vsub.f32 %v1128, %v1142
    %v1153 = vsub.f32 %v1129, %v1144
    %v1154 = vsub.f32 %v1130, %v1146
    %v1155 = vmul.f32 %v1123, %v460
    %v1156 = vmul.f32 %v1124, %v462
    %v1157 = vmul.f32 %v1125, %v464
    %v1158 = vmul.f32 %v1126, %v466
    %v1159 = vmul.f32 %v1123, %v476
    %v1160 = vmul.f32 %v1124, %v478
    %v1161 = vmul.f32 %v1125, %v480
    %v1162 = vmul.f32 %v1126, %v482
    %1167 = vrot.lane.b32.xlu0 %v1159, 96
    %v1168 = vpop.permute.xlu0 %1167
    %1169 = vrot.lane.b32.xlu0 %v1160, 96
    %v1170 = vpop.permute.xlu0 %1169
    %1171 = vrot.lane.b32.xlu0 %v1161, 96
    %v1172 = vpop.permute.xlu0 %1171
    %1173 = vrot.lane.b32.xlu0 %v1162, 96
    %v1174 = vpop.permute.xlu0 %1173
    %v1179 = vadd.f32 %v1155, %v1168
    %v1180 = vadd.f32 %v1156, %v1170
    %v1181 = vadd.f32 %v1157, %v1172
    %v1182 = vadd.f32 %v1158, %v1174
    %1187 = vrot.lane.b32.xlu0 %v1151, 64
    %v1188 = vpop.permute.xlu0 %1187
    %1189 = vrot.lane.b32.xlu0 %v1152, 64
    %v1190 = vpop.permute.xlu0 %1189
    %1191 = vrot.lane.b32.xlu0 %v1153, 64
    %v1192 = vpop.permute.xlu0 %1191
    %1193 = vrot.lane.b32.xlu0 %v1154, 64
    %v1194 = vpop.permute.xlu0 %1193
    %1203 = vrot.lane.b32.xlu0 %v1179, 96
    %v1204 = vpop.permute.xlu0 %1203
    %1205 = vrot.lane.b32.xlu0 %v1180, 96
    %v1206 = vpop.permute.xlu0 %1205
    %1207 = vrot.lane.b32.xlu0 %v1181, 96
    %v1208 = vpop.permute.xlu0 %1207
    %1209 = vrot.lane.b32.xlu0 %v1182, 96
    %v1210 = vpop.permute.xlu0 %1209
    %v1215 = vsel %vm300, %v1188, %v1204
    %v1216 = vsel %vm300, %v1190, %v1206
    %v1217 = vsel %vm300, %v1192, %v1208
    %v1218 = vsel %vm300, %v1194, %v1210
    %v1219 = vsel %vm122, %v113, 0.0
    %1220 = vadd.xlane.f32.xlu0 %v1219
    %v1221 = vpop.xlane.xlu0 %1220
    %v1222 = vsel %vm122, %v115, 0.0
    %1223 = vadd.xlane.f32.xlu0 %v1222
    %v1224 = vpop.xlane.xlu0 %1223
    %v1225 = vsel %vm122, %v117, 0.0
    %1226 = vadd.xlane.f32.xlu0 %v1225
    %v1227 = vpop.xlane.xlu0 %1226
    %v1228 = vsel %vm122, %v119, 0.0
    %1229 = vadd.xlane.f32.xlu0 %v1228
    %v1230 = vpop.xlane.xlu0 %1229
    %v1231 = vmul.f32 %v1221, %v135
    %v1232 = vmul.f32 %v1224, %v135
    %v1233 = vmul.f32 %v1227, %v135
    %v1234 = vmul.f32 %v1230, %v135
    %v1235 = vsub.f32 %v113, %v1231
    %v1236 = vsub.f32 %v115, %v1232
    %v1237 = vsub.f32 %v117, %v1233
    %v1238 = vsub.f32 %v119, %v1234
    %v1239 = vmul.f32 %v1235, %v1235
    %v1240 = vmul.f32 %v1236, %v1236
    %v1241 = vmul.f32 %v1237, %v1237
    %v1242 = vmul.f32 %v1238, %v1238
    %v1243 = vsel %vm122, %v1239, 0.0
    %1244 = vadd.xlane.f32.xlu0 %v1243
    %v1245 = vpop.xlane.xlu0 %1244
    %v1246 = vsel %vm122, %v1240, 0.0
    %1247 = vadd.xlane.f32.xlu0 %v1246
    %v1248 = vpop.xlane.xlu0 %1247
    %v1249 = vsel %vm122, %v1241, 0.0
    %1250 = vadd.xlane.f32.xlu0 %v1249
    %v1251 = vpop.xlane.xlu0 %1250
    %v1252 = vsel %vm122, %v1242, 0.0
    %1253 = vadd.xlane.f32.xlu0 %v1252
    %v1254 = vpop.xlane.xlu0 %1253
    %v1255 = vmul.f32 %v1245, %v135
    %v1256 = vmul.f32 %v1248, %v135
    %v1257 = vmul.f32 %v1251, %v135
    %v1258 = vmul.f32 %v1254, %v135
    %v1259 = vadd.f32 %v1255, 1e-05
    %v1260 = vadd.f32 %v1256, 1e-05
    %v1261 = vadd.f32 %v1257, 1e-05
    %v1262 = vadd.f32 %v1258, 1e-05
    %v1263 = vrsqrt.pop %v1259
    %v1264 = vrsqrt.pop %v1260
    %v1265 = vrsqrt.pop %v1261
    %v1266 = vrsqrt.pop %v1262
    %v1267 = vmul.f32 %v1235, %v1263
    %v1268 = vmul.f32 %v1236, %v1264
    %v1269 = vmul.f32 %v1237, %v1265
    %v1270 = vmul.f32 %v1238, %v1266
    %v1271 = vmul.f32 %v1267, %v937
    %v1272 = vmul.f32 %v1268, %v937
    %v1273 = vmul.f32 %v1269, %v937
    %v1274 = vmul.f32 %v1270, %v937
    %v1275 = vadd.f32 %v1271, %v947
    %v1276 = vadd.f32 %v1272, %v947
    %v1277 = vadd.f32 %v1273, %v947
    %v1278 = vadd.f32 %v1274, %v947
    %v1279 = vmul.f32 %v1275, %v96
    %v1280 = vmul.f32 %v1276, %v97
    %v1281 = vmul.f32 %v1277, %v98
    %v1282 = vmul.f32 %v1278, %v99
    %v1283 = vmul.f32 %v1275, %v205
    %v1284 = vmul.f32 %v1276, %v207
    %v1285 = vmul.f32 %v1277, %v209
    %v1286 = vmul.f32 %v1278, %v211
    %1291 = vrot.lane.b32.xlu0 %v1283, 96
    %v1292 = vpop.permute.xlu0 %1291
    %1293 = vrot.lane.b32.xlu0 %v1284, 96
    %v1294 = vpop.permute.xlu0 %1293
    %1295 = vrot.lane.b32.xlu0 %v1285, 96
    %v1296 = vpop.permute.xlu0 %1295
    %1297 = vrot.lane.b32.xlu0 %v1286, 96
    %v1298 = vpop.permute.xlu0 %1297
    %v1303 = vsub.f32 %v1279, %v1292
    %v1304 = vsub.f32 %v1280, %v1294
    %v1305 = vsub.f32 %v1281, %v1296
    %v1306 = vsub.f32 %v1282, %v1298
    %v1307 = vmul.f32 %v1275, %v100
    %v1308 = vmul.f32 %v1276, %v101
    %v1309 = vmul.f32 %v1277, %v102
    %v1310 = vmul.f32 %v1278, %v103
    %v1311 = vmul.f32 %v1275, %v249
    %v1312 = vmul.f32 %v1276, %v251
    %v1313 = vmul.f32 %v1277, %v253
    %v1314 = vmul.f32 %v1278, %v255
    %1319 = vrot.lane.b32.xlu0 %v1311, 96
    %v1320 = vpop.permute.xlu0 %1319
    %1321 = vrot.lane.b32.xlu0 %v1312, 96
    %v1322 = vpop.permute.xlu0 %1321
    %1323 = vrot.lane.b32.xlu0 %v1313, 96
    %v1324 = vpop.permute.xlu0 %1323
    %1325 = vrot.lane.b32.xlu0 %v1314, 96
    %v1326 = vpop.permute.xlu0 %1325
    %v1331 = vadd.f32 %v1307, %v1320
    %v1332 = vadd.f32 %v1308, %v1322
    %v1333 = vadd.f32 %v1309, %v1324
    %v1334 = vadd.f32 %v1310, %v1326
    %1339 = vrot.lane.b32.xlu0 %v1331, 32
    %v1340 = vpop.permute.xlu0 %1339
    %1341 = vrot.lane.b32.xlu0 %v1332, 32
    %v1342 = vpop.permute.xlu0 %1341
    %1343 = vrot.lane.b32.xlu0 %v1333, 32
    %v1344 = vpop.permute.xlu0 %1343
    %1345 = vrot.lane.b32.xlu0 %v1334, 32
    %v1346 = vpop.permute.xlu0 %1345
    %v1351 = vsel %vm300, %v1303, %v1340
    %v1352 = vsel %vm300, %v1304, %v1342
    %v1353 = vsel %vm300, %v1305, %v1344
    %v1354 = vsel %vm300, %v1306, %v1346
    %1359 = vrot.lane.b32.xlu0 %v113, 64
    %v1360 = vpop.permute.xlu0 %1359
    %1361 = vrot.lane.b32.xlu0 %v115, 64
    %v1362 = vpop.permute.xlu0 %1361
    %1363 = vrot.lane.b32.xlu0 %v117, 64
    %v1364 = vpop.permute.xlu0 %1363
    %1365 = vrot.lane.b32.xlu0 %v119, 64
    %v1366 = vpop.permute.xlu0 %1365
    %v1371 = vsel %vm122, %v1360, 0.0
    %1372 = vadd.xlane.f32.xlu0 %v1371
    %v1373 = vpop.xlane.xlu0 %1372
    %v1374 = vsel %vm122, %v1362, 0.0
    %1375 = vadd.xlane.f32.xlu0 %v1374
    %v1376 = vpop.xlane.xlu0 %1375
    %v1377 = vsel %vm122, %v1364, 0.0
    %1378 = vadd.xlane.f32.xlu0 %v1377
    %v1379 = vpop.xlane.xlu0 %1378
    %v1380 = vsel %vm122, %v1366, 0.0
    %1381 = vadd.xlane.f32.xlu0 %v1380
    %v1382 = vpop.xlane.xlu0 %1381
    %v1383 = vmul.f32 %v1373, %v135
    %v1384 = vmul.f32 %v1376, %v135
    %v1385 = vmul.f32 %v1379, %v135
    %v1386 = vmul.f32 %v1382, %v135
    %v1387 = vsub.f32 %v113, %v1383
    %v1388 = vsub.f32 %v115, %v1384
    %v1389 = vsub.f32 %v117, %v1385
    %v1390 = vsub.f32 %v119, %v1386
    %v1391 = vmul.f32 %v1387, %v1387
    %v1392 = vmul.f32 %v1388, %v1388
    %v1393 = vmul.f32 %v1389, %v1389
    %v1394 = vmul.f32 %v1390, %v1390
    %1399 = vrot.lane.b32.xlu0 %v1391, 64
    %v1400 = vpop.permute.xlu0 %1399
    %1401 = vrot.lane.b32.xlu0 %v1392, 64
    %v1402 = vpop.permute.xlu0 %1401
    %1403 = vrot.lane.b32.xlu0 %v1393, 64
    %v1404 = vpop.permute.xlu0 %1403
    %1405 = vrot.lane.b32.xlu0 %v1394, 64
    %v1406 = vpop.permute.xlu0 %1405
    %v1411 = vsel %vm122, %v1400, 0.0
    %1412 = vadd.xlane.f32.xlu0 %v1411
    %v1413 = vpop.xlane.xlu0 %1412
    %v1414 = vsel %vm122, %v1402, 0.0
    %1415 = vadd.xlane.f32.xlu0 %v1414
    %v1416 = vpop.xlane.xlu0 %1415
    %v1417 = vsel %vm122, %v1404, 0.0
    %1418 = vadd.xlane.f32.xlu0 %v1417
    %v1419 = vpop.xlane.xlu0 %1418
    %v1420 = vsel %vm122, %v1406, 0.0
    %1421 = vadd.xlane.f32.xlu0 %v1420
    %v1422 = vpop.xlane.xlu0 %1421
    %v1423 = vmul.f32 %v1413, %v135
    %v1424 = vmul.f32 %v1416, %v135
    %v1425 = vmul.f32 %v1419, %v135
    %v1426 = vmul.f32 %v1422, %v135
    %v1427 = vadd.f32 %v1423, 1e-05
    %v1428 = vadd.f32 %v1424, 1e-05
    %v1429 = vadd.f32 %v1425, 1e-05
    %v1430 = vadd.f32 %v1426, 1e-05
    %v1431 = vrsqrt.pop %v1427
    %v1432 = vrsqrt.pop %v1428
    %v1433 = vrsqrt.pop %v1429
    %v1434 = vrsqrt.pop %v1430
    %v1435 = vmul.f32 %v1387, %v1431
    %v1436 = vmul.f32 %v1388, %v1432
    %v1437 = vmul.f32 %v1389, %v1433
    %v1438 = vmul.f32 %v1390, %v1434
    %v1439 = vmul.f32 %v1435, %v1114
    %v1440 = vmul.f32 %v1436, %v1114
    %v1441 = vmul.f32 %v1437, %v1114
    %v1442 = vmul.f32 %v1438, %v1114
    %v1443 = vadd.f32 %v1439, %v1121
    %v1444 = vadd.f32 %v1440, %v1121
    %v1445 = vadd.f32 %v1441, %v1121
    %v1446 = vadd.f32 %v1442, %v1121
    %v1447 = vmul.f32 %v1443, %v408
    %v1448 = vmul.f32 %v1444, %v410
    %v1449 = vmul.f32 %v1445, %v412
    %v1450 = vmul.f32 %v1446, %v414
    %v1451 = vmul.f32 %v1443, %v424
    %v1452 = vmul.f32 %v1444, %v426
    %v1453 = vmul.f32 %v1445, %v428
    %v1454 = vmul.f32 %v1446, %v430
    %1459 = vrot.lane.b32.xlu0 %v1451, 96
    %v1460 = vpop.permute.xlu0 %1459
    %1461 = vrot.lane.b32.xlu0 %v1452, 96
    %v1462 = vpop.permute.xlu0 %1461
    %1463 = vrot.lane.b32.xlu0 %v1453, 96
    %v1464 = vpop.permute.xlu0 %1463
    %1465 = vrot.lane.b32.xlu0 %v1454, 96
    %v1466 = vpop.permute.xlu0 %1465
    %v1471 = vsub.f32 %v1447, %v1460
    %v1472 = vsub.f32 %v1448, %v1462
    %v1473 = vsub.f32 %v1449, %v1464
    %v1474 = vsub.f32 %v1450, %v1466
    %v1475 = vmul.f32 %v1443, %v460
    %v1476 = vmul.f32 %v1444, %v462
    %v1477 = vmul.f32 %v1445, %v464
    %v1478 = vmul.f32 %v1446, %v466
    %v1479 = vmul.f32 %v1443, %v476
    %v1480 = vmul.f32 %v1444, %v478
    %v1481 = vmul.f32 %v1445, %v480
    %v1482 = vmul.f32 %v1446, %v482
    %1487 = vrot.lane.b32.xlu0 %v1479, 96
    %v1488 = vpop.permute.xlu0 %1487
    %1489 = vrot.lane.b32.xlu0 %v1480, 96
    %v1490 = vpop.permute.xlu0 %1489
    %1491 = vrot.lane.b32.xlu0 %v1481, 96
    %v1492 = vpop.permute.xlu0 %1491
    %1493 = vrot.lane.b32.xlu0 %v1482, 96
    %v1494 = vpop.permute.xlu0 %1493
    %v1499 = vadd.f32 %v1475, %v1488
    %v1500 = vadd.f32 %v1476, %v1490
    %v1501 = vadd.f32 %v1477, %v1492
    %v1502 = vadd.f32 %v1478, %v1494
    %1507 = vrot.lane.b32.xlu0 %v1471, 64
    %v1508 = vpop.permute.xlu0 %1507
    %1509 = vrot.lane.b32.xlu0 %v1472, 64
    %v1510 = vpop.permute.xlu0 %1509
    %1511 = vrot.lane.b32.xlu0 %v1473, 64
    %v1512 = vpop.permute.xlu0 %1511
    %1513 = vrot.lane.b32.xlu0 %v1474, 64
    %v1514 = vpop.permute.xlu0 %1513
    %1523 = vrot.lane.b32.xlu0 %v1499, 96
    %v1524 = vpop.permute.xlu0 %1523
    %1525 = vrot.lane.b32.xlu0 %v1500, 96
    %v1526 = vpop.permute.xlu0 %1525
    %1527 = vrot.lane.b32.xlu0 %v1501, 96
    %v1528 = vpop.permute.xlu0 %1527
    %1529 = vrot.lane.b32.xlu0 %v1502, 96
    %v1530 = vpop.permute.xlu0 %1529
    %v1535 = vsel %vm300, %v1508, %v1524
    %v1536 = vsel %vm300, %v1510, %v1526
    %v1537 = vsel %vm300, %v1512, %v1528
    %v1538 = vsel %vm300, %v1514, %v1530
    %1543 = vrot.lane.b32.xlu0 %v547, 64
    %v1544 = vpop.permute.xlu0 %1543
    %1545 = vrot.lane.b32.xlu0 %v548, 64
    %v1546 = vpop.permute.xlu0 %1545
    %1547 = vrot.lane.b32.xlu0 %v549, 64
    %v1548 = vpop.permute.xlu0 %1547
    %1549 = vrot.lane.b32.xlu0 %v550, 64
    %v1550 = vpop.permute.xlu0 %1549
    %1559 = vrot.lane.b32.xlu0 %v875, 64
    %v1560 = vpop.permute.xlu0 %1559
    %1561 = vrot.lane.b32.xlu0 %v876, 64
    %v1562 = vpop.permute.xlu0 %1561
    %1563 = vrot.lane.b32.xlu0 %v877, 64
    %v1564 = vpop.permute.xlu0 %1563
    %1565 = vrot.lane.b32.xlu0 %v878, 64
    %v1566 = vpop.permute.xlu0 %1565
    %1575 = vrot.lane.b32.xlu0 %v1215, 64
    %v1576 = vpop.permute.xlu0 %1575
    %1577 = vrot.lane.b32.xlu0 %v1216, 64
    %v1578 = vpop.permute.xlu0 %1577
    %1579 = vrot.lane.b32.xlu0 %v1217, 64
    %v1580 = vpop.permute.xlu0 %1579
    %1581 = vrot.lane.b32.xlu0 %v1218, 64
    %v1582 = vpop.permute.xlu0 %1581
    %1591 = vrot.lane.b32.xlu0 %v1535, 64
    %v1592 = vpop.permute.xlu0 %1591
    %1593 = vrot.lane.b32.xlu0 %v1536, 64
    %v1594 = vpop.permute.xlu0 %1593
    %1595 = vrot.lane.b32.xlu0 %v1537, 64
    %v1596 = vpop.permute.xlu0 %1595
    %1597 = vrot.lane.b32.xlu0 %v1538, 64
    %v1598 = vpop.permute.xlu0 %1597
    %v1603 = vsel %vm122, %v305, %v1544
    %v1604 = vsel %vm122, %v306, %v1546
    %v1605 = vsel %vm122, %v307, %v1548
    %v1606 = vsel %vm122, %v308, %v1550
    %v1607 = vsel %vm122, %v687, %v1560
    %v1608 = vsel %vm122, %v688, %v1562
    %v1609 = vsel %vm122, %v689, %v1564
    %v1610 = vsel %vm122, %v690, %v1566
    %v1611 = vsel %vm122, %v1025, %v1576
    %v1612 = vsel %vm122, %v1026, %v1578
    %v1613 = vsel %vm122, %v1027, %v1580
    %v1614 = vsel %vm122, %v1028, %v1582
    %v1615 = vsel %vm122, %v1351, %v1592
    %v1616 = vsel %vm122, %v1352, %v1594
    %v1617 = vsel %vm122, %v1353, %v1596
    %v1618 = vsel %vm122, %v1354, %v1598
    %v1619 = vpack.c.bf16 %v1604, %v1603
    %v1620 = vpack.c.bf16 %v1608, %v1607
    %v1621 = vpack.c.bf16 %v1612, %v1611
    %v1622 = vpack.c.bf16 %v1616, %v1615
    %v1623 = vpack.c.bf16 %v1606, %v1605
    %v1624 = vpack.c.bf16 %v1610, %v1609
    %v1625 = vpack.c.bf16 %v1614, %v1613
    %v1626 = vpack.c.bf16 %v1618, %v1617
    %v1635 = vunpack.c.l.b16 %v1619
    %v1636 = vunpack.c.l.b16 %v1620
    %v1637 = vunpack.c.l.b16 %v1621
    %v1638 = vunpack.c.l.b16 %v1622
    %v1639 = vunpack.c.h.b16 %v1619
    %v1640 = vunpack.c.h.b16 %v1620
    %v1641 = vunpack.c.h.b16 %v1621
    %v1642 = vunpack.c.h.b16 %v1622
    %v1643 = vunpack.c.l.b16 %v1623
    %v1644 = vunpack.c.l.b16 %v1624
    %v1645 = vunpack.c.l.b16 %v1625
    %v1646 = vunpack.c.l.b16 %v1626
    %v1647 = vunpack.c.h.b16 %v1623
    %v1648 = vunpack.c.h.b16 %v1624
    %v1649 = vunpack.c.h.b16 %v1625
    %v1650 = vunpack.c.h.b16 %v1626
    %v1651 = vpack.c.b16 %v1636, %v1635
    %v1652 = vpack.c.b16 %v1638, %v1637
    %v1653 = vpack.c.b16 %v1640, %v1639
    %v1654 = vpack.c.b16 %v1642, %v1641
    %v1655 = vpack.c.b16 %v1644, %v1643
    %v1656 = vpack.c.b16 %v1646, %v1645
    %v1657 = vpack.c.b16 %v1648, %v1647
    %v1658 = vpack.c.b16 %v1650, %v1649
    %1667 = vst [vmem:[%s8] sm:$0xff] %v1651
    %1668 = vst [vmem:[%s8 + $0x8] sm:$0xff] %v1652
    %1669 = vst [vmem:[%s8 + $0x10] sm:$0xff] %v1653
    %1670 = vst [vmem:[%s8 + $0x18] sm:$0xff] %v1654
    %1671 = vst [vmem:[%s8 + $0x20] sm:$0xff] %v1655
    %1672 = vst [vmem:[%s8 + $0x28] sm:$0xff] %v1656
    %1673 = vst [vmem:[%s8 + $0x30] sm:$0xff] %v1657
    %1674 = vst [vmem:[%s8 + $0x38] sm:$0xff] %v1658
    // Predicated region
    $region80: #{chameleon_forward.12} parent=1 // pred_check
      _
    $region81: #{chameleon_forward.12} parent=1 // pred_check_branch
      %1676 = sbr.rel (0) target = $region83
    $region82: #{chameleon_forward.12} parent=1 // pred_region
      _
    $region83: #{chameleon_forward.12} parent=1 // pred_fallthru
      _
    // Predicated region
    $region84: #{chameleon_forward.12} parent=1 // pred_check
      _
    $region85: #{chameleon_forward.12} parent=1 // pred_check_branch
      %1678 = sbr.rel (0) target = $region87
    $region86: #{chameleon_forward.12} parent=1 // pred_region
      _
    $region87: #{chameleon_forward.12} parent=1 // pred_fallthru
      _

// kernel: chameleon_forward.15
$region0: #{chameleon_forward.15}
  #allocation0 [shape = 'u32[]', space=smem, size = 0x4, offset = 0x4, fixed_abs, tag = 'smem constant byte address 0x4 - core index']
  #allocation1 [shape = 'u32[144,128]{1,0:T(1,128)}', space=vmem, size = 0x12000, scoped, tag = 'internal scratch']
  #allocation2 [shape = 'bf16[32,256]{1,0:T(16,128)(2,1)}', space=vmem, size = 0x4000, scoped, tag = 'scratch operand']
  %s0 = inlined_call_operand.vmem [shape: f32[32,256], index: 0, kind: input, shape index: {}]
  %s1 = inlined_call_operand.vmem [shape: f32[1,256], index: 1, kind: input, shape index: {}]
  %s2 = inlined_call_operand.vmem [shape: bf16[256,256], index: 2, kind: input, shape index: {}]
  %s3 = inlined_call_operand.vmem [shape: bf16[256,256], index: 3, kind: input, shape index: {}]
  %s4 = inlined_call_operand.vmem [shape: bf16[256,256], index: 4, kind: input, shape index: {}]
  %s5 = inlined_call_operand.vmem [shape: f32[32,256], index: 5, kind: output, shape index: {}]
  %s6 = sld [smem:[#allocation0]]
  $region34: #{chameleon_forward.15} parent=0
    _
  %s8 = ssub.s32 1, %s6
  %s9 = scalar_select 0, %s8, %s6
  // Predicated region
  $region2: #{chameleon_forward.15} parent=0 // pred_check
    _
  $region3: #{chameleon_forward.15} parent=0 // pred_check_branch
    %11 = sbr.rel (0) target = $region5
  $region4: #{chameleon_forward.15} parent=0 // pred_region
    _
  $region5: #{chameleon_forward.15} parent=0 // pred_fallthru
    _
  // Predicated region
  $region6: #{chameleon_forward.15} parent=0 // pred_check
    _
  $region7: #{chameleon_forward.15} parent=0 // pred_check_branch
    %13 = sbr.rel (0) target = $region9
  $region8: #{chameleon_forward.15} parent=0 // pred_region
    _
  $region9: #{chameleon_forward.15} parent=0 // pred_fallthru
    _
  // Predicated region
  $region10: #{chameleon_forward.15} parent=0 // pred_check
    _
  $region11: #{chameleon_forward.15} parent=0 // pred_check_branch
    %15 = sbr.rel (0) target = $region13
  $region12: #{chameleon_forward.15} parent=0 // pred_region
    _
  $region13: #{chameleon_forward.15} parent=0 // pred_fallthru
    _
  // Predicated region
  $region14: #{chameleon_forward.15} parent=0 // pred_check
    _
  $region15: #{chameleon_forward.15} parent=0 // pred_check_branch
    %17 = sbr.rel (0) target = $region17
  $region16: #{chameleon_forward.15} parent=0 // pred_region
    _
  $region17: #{chameleon_forward.15} parent=0 // pred_fallthru
    _
  // Predicated region
  $region18: #{chameleon_forward.15} parent=0 // pred_check
    _
  $region19: #{chameleon_forward.15} parent=0 // pred_check_branch
    %19 = sbr.rel (0) target = $region21
  $region20: #{chameleon_forward.15} parent=0 // pred_region
    _
  $region21: #{chameleon_forward.15} parent=0 // pred_fallthru
    _
  %p20 = scmp.eq.s32.totalorder 0, 0
  // Predicated region
  $region22: #{chameleon_forward.15} parent=0 // pred_check
    %p21 = pneg %p20
  $region23: #{chameleon_forward.15} parent=0 // pred_check_branch
    %23 = sbr.rel (%p21) target = $region25
  $region24: #{chameleon_forward.15} parent=0 // pred_region
    %v24 = vld [vmem:[%s0] sm:$0xff]
    %v25 = vld [vmem:[%s0 + $0x8] sm:$0xff]
    %v26 = vld [vmem:[%s0 + $0x10] sm:$0xff]
    %v27 = vld [vmem:[%s0 + $0x18] sm:$0xff]
    %v28 = vld [vmem:[%s0 + $0x20] sm:$0xff]
    %v29 = vld [vmem:[%s0 + $0x28] sm:$0xff]
    %v30 = vld [vmem:[%s0 + $0x30] sm:$0xff]
    %v31 = vld [vmem:[%s0 + $0x38] sm:$0xff]
    %v32 = vmul.f32 %v24, %v24
    %v33 = vmul.f32 %v25, %v25
    %v34 = vmul.f32 %v26, %v26
    %v35 = vmul.f32 %v27, %v27
    %v36 = vmul.f32 %v28, %v28
    %v37 = vmul.f32 %v29, %v29
    %v38 = vmul.f32 %v30, %v30
    %v39 = vmul.f32 %v31, %v31
    %v40 = vadd.f32 %v32, %v33
    %41 = vadd.xlane.f32.xlu0 %v40
    %v42 = vpop.xlane.xlu0 %41
    %v43 = vadd.f32 %v34, %v35
    %44 = vadd.xlane.f32.xlu0 %v43
    %v45 = vpop.xlane.xlu0 %44
    %v46 = vadd.f32 %v36, %v37
    %47 = vadd.xlane.f32.xlu0 %v46
    %v48 = vpop.xlane.xlu0 %47
    %v49 = vadd.f32 %v38, %v39
    %50 = vadd.xlane.f32.xlu0 %v49
    %v51 = vpop.xlane.xlu0 %50
    %v52 = vrcp.pop 256.0
    %v53 = vmul.f32 %v42, %v52
    %v54 = vmul.f32 %v45, %v52
    %v55 = vmul.f32 %v48, %v52
    %v56 = vmul.f32 %v51, %v52
    %v57 = vadd.f32 %v53, 1e-05
    %v58 = vadd.f32 %v54, 1e-05
    %v59 = vadd.f32 %v55, 1e-05
    %v60 = vadd.f32 %v56, 1e-05
    %v61 = vrsqrt.pop %v57
    %v62 = vrsqrt.pop %v58
    %v63 = vrsqrt.pop %v59
    %v64 = vrsqrt.pop %v60
    %v65 = vmul.f32 %v24, %v61
    %v66 = vmul.f32 %v25, %v61
    %v67 = vmul.f32 %v26, %v62
    %v68 = vmul.f32 %v27, %v62
    %v69 = vmul.f32 %v28, %v63
    %v70 = vmul.f32 %v29, %v63
    %v71 = vmul.f32 %v30, %v64
    %v72 = vmul.f32 %v31, %v64
    %v73 = vld [vmem:[%s1] sm:$0x3]
    %v75 = vlaneseq
    %v76 = vshrl.u32 %v75, 7
    %v77 = vsub.s32 0, %v76
    %v78 = vrot.slane %v73, %v77
    %v79 = vlaneseq
    %v80 = vshrl.u32 %v79, 7
    %v81 = vsub.s32 1, %v80
    %v82 = vrot.slane %v73, %v81
    %v85 = vmul.f32 %v65, %v78
    %v86 = vmul.f32 %v66, %v82
    %v87 = vmul.f32 %v67, %v78
    %v88 = vmul.f32 %v68, %v82
    %v89 = vmul.f32 %v69, %v78
    %v90 = vmul.f32 %v70, %v82
    %v91 = vmul.f32 %v71, %v78
    %v92 = vmul.f32 %v72, %v82
    %v93 = vpack.c.bf16 %v87, %v85
    %v94 = vpack.c.bf16 %v88, %v86
    %v95 = vpack.c.bf16 %v91, %v89
    %v96 = vpack.c.bf16 %v92, %v90
    %97 = vst [vmem:[#allocation2] sm:$0xff] %v93
    %98 = vst [vmem:[#allocation2 + $0x8] sm:$0xff] %v94
    %99 = vst [vmem:[#allocation2 + $0x10] sm:$0xff] %v95
    %100 = vst [vmem:[#allocation2 + $0x18] sm:$0xff] %v96
    %101 = vst [vmem:[%s5] sm:$0xff] %v24
    %102 = vst [vmem:[%s5 + $0x8] sm:$0xff] %v25
    %103 = vst [vmem:[%s5 + $0x10] sm:$0xff] %v26
    %104 = vst [vmem:[%s5 + $0x18] sm:$0xff] %v27
    %105 = vst [vmem:[%s5 + $0x20] sm:$0xff] %v28
    %106 = vst [vmem:[%s5 + $0x28] sm:$0xff] %v29
    %107 = vst [vmem:[%s5 + $0x30] sm:$0xff] %v30
    %108 = vst [vmem:[%s5 + $0x38] sm:$0xff] %v31
  $region25: #{chameleon_forward.15} parent=0 // pred_fallthru
    _
  %v109 = vld [vmem:[#allocation2] sm:$0xff]
  %v110 = vld [vmem:[#allocation2 + $0x8] sm:$0xff]
  %v111 = vld [vmem:[#allocation2 + $0x10] sm:$0xff]
  %v112 = vld [vmem:[#allocation2 + $0x18] sm:$0xff]
  %v113 = vld [vmem:[%s2] sm:$0xff]
  %v114 = vld [vmem:[%s2 + $0x8] sm:$0xff]
  %v115 = vld [vmem:[%s2 + $0x10] sm:$0xff]
  %v116 = vld [vmem:[%s2 + $0x18] sm:$0xff]
  %v117 = vld [vmem:[%s2 + $0x20] sm:$0xff]
  %v118 = vld [vmem:[%s2 + $0x28] sm:$0xff]
  %v119 = vld [vmem:[%s2 + $0x30] sm:$0xff]
  %v120 = vld [vmem:[%s2 + $0x38] sm:$0xff]
  %v121 = vld [vmem:[%s2 + $0x40] sm:$0xff]
  %v122 = vld [vmem:[%s2 + $0x48] sm:$0xff]
  %v123 = vld [vmem:[%s2 + $0x50] sm:$0xff]
  %v124 = vld [vmem:[%s2 + $0x58] sm:$0xff]
  %v125 = vld [vmem:[%s2 + $0x60] sm:$0xff]
  %v126 = vld [vmem:[%s2 + $0x68] sm:$0xff]
  %v127 = vld [vmem:[%s2 + $0x70] sm:$0xff]
  %v128 = vld [vmem:[%s2 + $0x78] sm:$0xff]
  %v129 = vld [vmem:[%s2 + $0x80] sm:$0xff]
  %v130 = vld [vmem:[%s2 + $0x88] sm:$0xff]
  %v131 = vld [vmem:[%s2 + $0x90] sm:$0xff]
  %v132 = vld [vmem:[%s2 + $0x98] sm:$0xff]
  %v133 = vld [vmem:[%s2 + $0xa0] sm:$0xff]
  %v134 = vld [vmem:[%s2 + $0xa8] sm:$0xff]
  %v135 = vld [vmem:[%s2 + $0xb0] sm:$0xff]
  %v136 = vld [vmem:[%s2 + $0xb8] sm:$0xff]
  %v137 = vld [vmem:[%s2 + $0xc0] sm:$0xff]
  %v138 = vld [vmem:[%s2 + $0xc8] sm:$0xff]
  %v139 = vld [vmem:[%s2 + $0xd0] sm:$0xff]
  %v140 = vld [vmem:[%s2 + $0xd8] sm:$0xff]
  %v141 = vld [vmem:[%s2 + $0xe0] sm:$0xff]
  %v142 = vld [vmem:[%s2 + $0xe8] sm:$0xff]
  %v143 = vld [vmem:[%s2 + $0xf0] sm:$0xff]
  %v144 = vld [vmem:[%s2 + $0xf8] sm:$0xff]
  %v177 = vunpack.c.l.b16 %v113
  %v178 = vunpack.c.h.b16 %v113
  %v179 = vunpack.c.l.b16 %v114
  %v180 = vunpack.c.h.b16 %v114
  %v181 = vunpack.c.l.b16 %v115
  %v182 = vunpack.c.h.b16 %v115
  %v183 = vunpack.c.l.b16 %v116
  %v184 = vunpack.c.h.b16 %v116
  %v185 = vunpack.c.l.b16 %v117
  %v186 = vunpack.c.h.b16 %v117
  %v187 = vunpack.c.l.b16 %v118
  %v188 = vunpack.c.h.b16 %v118
  %v189 = vunpack.c.l.b16 %v119
  %v190 = vunpack.c.h.b16 %v119
  %v191 = vunpack.c.l.b16 %v120
  %v192 = vunpack.c.h.b16 %v120
  %v193 = vunpack.c.l.b16 %v121
  %v194 = vunpack.c.h.b16 %v121
  %v195 = vunpack.c.l.b16 %v122
  %v196 = vunpack.c.h.b16 %v122
  %v197 = vunpack.c.l.b16 %v123
  %v198 = vunpack.c.h.b16 %v123
  %v199 = vunpack.c.l.b16 %v124
  %v200 = vunpack.c.h.b16 %v124
  %v201 = vunpack.c.l.b16 %v125
  %v202 = vunpack.c.h.b16 %v125
  %v203 = vunpack.c.l.b16 %v126
  %v204 = vunpack.c.h.b16 %v126
  %v205 = vunpack.c.l.b16 %v127
  %v206 = vunpack.c.h.b16 %v127
  %v207 = vunpack.c.l.b16 %v128
  %v208 = vunpack.c.h.b16 %v128
  %v209 = vunpack.c.l.b16 %v129
  %v210 = vunpack.c.h.b16 %v129
  %v211 = vunpack.c.l.b16 %v130
  %v212 = vunpack.c.h.b16 %v130
  %v213 = vunpack.c.l.b16 %v131
  %v214 = vunpack.c.h.b16 %v131
  %v215 = vunpack.c.l.b16 %v132
  %v216 = vunpack.c.h.b16 %v132
  %v217 = vunpack.c.l.b16 %v133
  %v218 = vunpack.c.h.b16 %v133
  %v219 = vunpack.c.l.b16 %v134
  %v220 = vunpack.c.h.b16 %v134
  %v221 = vunpack.c.l.b16 %v135
  %v222 = vunpack.c.h.b16 %v135
  %v223 = vunpack.c.l.b16 %v136
  %v224 = vunpack.c.h.b16 %v136
  %v225 = vunpack.c.l.b16 %v137
  %v226 = vunpack.c.h.b16 %v137
  %v227 = vunpack.c.l.b16 %v138
  %v228 = vunpack.c.h.b16 %v138
  %v229 = vunpack.c.l.b16 %v139
  %v230 = vunpack.c.h.b16 %v139
  %v231 = vunpack.c.l.b16 %v140
  %v232 = vunpack.c.h.b16 %v140
  %v233 = vunpack.c.l.b16 %v141
  %v234 = vunpack.c.h.b16 %v141
  %v235 = vunpack.c.l.b16 %v142
  %v236 = vunpack.c.h.b16 %v142
  %v237 = vunpack.c.l.b16 %v143
  %v238 = vunpack.c.h.b16 %v143
  %v239 = vunpack.c.l.b16 %v144
  %v240 = vunpack.c.h.b16 %v144
  %v241 = vpack.c.b16 %v179, %v177
  %v242 = vpack.c.b16 %v180, %v178
  %v243 = vpack.c.b16 %v183, %v181
  %v244 = vpack.c.b16 %v184, %v182
  %v245 = vpack.c.b16 %v187, %v185
  %v246 = vpack.c.b16 %v188, %v186
  %v247 = vpack.c.b16 %v191, %v189
  %v248 = vpack.c.b16 %v192, %v190
  %v249 = vpack.c.b16 %v195, %v193
  %v250 = vpack.c.b16 %v196, %v194
  %v251 = vpack.c.b16 %v199, %v197
  %v252 = vpack.c.b16 %v200, %v198
  %v253 = vpack.c.b16 %v203, %v201
  %v254 = vpack.c.b16 %v204, %v202
  %v255 = vpack.c.b16 %v207, %v205
  %v256 = vpack.c.b16 %v208, %v206
  %v257 = vpack.c.b16 %v211, %v209
  %v258 = vpack.c.b16 %v212, %v210
  %v259 = vpack.c.b16 %v215, %v213
  %v260 = vpack.c.b16 %v216, %v214
  %v261 = vpack.c.b16 %v219, %v217
  %v262 = vpack.c.b16 %v220, %v218
  %v263 = vpack.c.b16 %v223, %v221
  %v264 = vpack.c.b16 %v224, %v222
  %v265 = vpack.c.b16 %v227, %v225
  %v266 = vpack.c.b16 %v228, %v226
  %v267 = vpack.c.b16 %v231, %v229
  %v268 = vpack.c.b16 %v232, %v230
  %v269 = vpack.c.b16 %v235, %v233
  %v270 = vpack.c.b16 %v236, %v234
  %v271 = vpack.c.b16 %v239, %v237
  %v272 = vpack.c.b16 %v240, %v238
  %305 = vmatprep.subr.bf16.mxu0 %v242
  %306 = vmatpush1.bf16.msra.mxu0 %v241
  %307 = vmatprep.subr.bf16.mxu0 %v244
  %308 = vmatpush1.bf16.msra.mxu0 %v243
  %309 = vmatprep.subr.bf16.mxu0 %v246
  %310 = vmatpush1.bf16.msra.mxu0 %v245
  %311 = vmatprep.subr.bf16.mxu0 %v248
  %312 = vmatpush1.bf16.msra.mxu0 %v247
  %313 = vmatprep.subr.bf16.mxu0 %v250
  %314 = vmatpush1.bf16.msra.mxu0 %v249
  %315 = vmatprep.subr.bf16.mxu0 %v252
  %316 = vmatpush1.bf16.msra.mxu0 %v251
  %317 = vmatprep.subr.bf16.mxu0 %v254
  %318 = vmatpush1.bf16.msra.mxu0 %v253
  %319 = vmatprep.subr.bf16.mxu0 %v256
  %320 = vmatpush1.bf16.msra.mxu0 %v255
  %321 = vmatprep.subr.bf16.mxu0 %v258
  %322 = vmatpush1.bf16.msra.mxu0 %v257
  %323 = vmatprep.subr.bf16.mxu0 %v260
  %324 = vmatpush1.bf16.msra.mxu0 %v259
  %325 = vmatprep.subr.bf16.mxu0 %v262
  %326 = vmatpush1.bf16.msra.mxu0 %v261
  %327 = vmatprep.subr.bf16.mxu0 %v264
  %328 = vmatpush1.bf16.msra.mxu0 %v263
  %329 = vmatprep.subr.bf16.mxu0 %v266
  %330 = vmatpush1.bf16.msra.mxu0 %v265
  %331 = vmatprep.subr.bf16.mxu0 %v268
  %332 = vmatpush1.bf16.msra.mxu0 %v267
  %333 = vmatprep.subr.bf16.mxu0 %v270
  %334 = vmatpush1.bf16.msra.mxu0 %v269
  %335 = vmatprep.subr.bf16.mxu0 %v272
  %336 = vmatpush1.bf16.msra.mxu0 %v271
  %337 = vmatprep.mubr.bf16.mxu0 %v110
  %338 = vmatmul.mubr.bf16.gmra.mrb[0].mxu0 %v109
  %v339 = vpop.f32.mrb[0].mxu0
  %v340 = vadd.f32 0.0, %v339
  %v341 = vpop.f32.mrb[0].mxu0
  %v342 = vadd.f32 0.0, %v341
  %v343 = vpop.f32.mrb[0].mxu0
  %v344 = vadd.f32 0.0, %v343
  %v345 = vpop.f32.mrb[0].mxu0
  %v346 = vadd.f32 0.0, %v345
  %347 = vmatprep.mubr.bf16.mxu0 %v112
  %348 = vmatmul.mubr.bf16.gmra.mrb[0].mxu0 %v111
  %v349 = vpop.f32.mrb[0].mxu0
  %v350 = vadd.f32 0.0, %v349
  %v351 = vpop.f32.mrb[0].mxu0
  %v352 = vadd.f32 0.0, %v351
  %v353 = vpop.f32.mrb[0].mxu0
  %v354 = vadd.f32 0.0, %v353
  %v355 = vpop.f32.mrb[0].mxu0
  %v356 = vadd.f32 0.0, %v355
  %357 = vdwg.mxu0
  %v358 = vld [vmem:[%s3] sm:$0xff]
  %v359 = vld [vmem:[%s3 + $0x8] sm:$0xff]
  %v360 = vld [vmem:[%s3 + $0x10] sm:$0xff]
  %v361 = vld [vmem:[%s3 + $0x18] sm:$0xff]
  %v362 = vld [vmem:[%s3 + $0x20] sm:$0xff]
  %v363 = vld [vmem:[%s3 + $0x28] sm:$0xff]
  %v364 = vld [vmem:[%s3 + $0x30] sm:$0xff]
  %v365 = vld [vmem:[%s3 + $0x38] sm:$0xff]
  %v366 = vld [vmem:[%s3 + $0x40] sm:$0xff]
  %v367 = vld [vmem:[%s3 + $0x48] sm:$0xff]
  %v368 = vld [vmem:[%s3 + $0x50] sm:$0xff]
  %v369 = vld [vmem:[%s3 + $0x58] sm:$0xff]
  %v370 = vld [vmem:[%s3 + $0x60] sm:$0xff]
  %v371 = vld [vmem:[%s3 + $0x68] sm:$0xff]
  %v372 = vld [vmem:[%s3 + $0x70] sm:$0xff]
  %v373 = vld [vmem:[%s3 + $0x78] sm:$0xff]
  %v374 = vld [vmem:[%s3 + $0x80] sm:$0xff]
  %v375 = vld [vmem:[%s3 + $0x88] sm:$0xff]
  %v376 = vld [vmem:[%s3 + $0x90] sm:$0xff]
  %v377 = vld [vmem:[%s3 + $0x98] sm:$0xff]
  %v378 = vld [vmem:[%s3 + $0xa0] sm:$0xff]
  %v379 = vld [vmem:[%s3 + $0xa8] sm:$0xff]
  %v380 = vld [vmem:[%s3 + $0xb0] sm:$0xff]
  %v381 = vld [vmem:[%s3 + $0xb8] sm:$0xff]
  %v382 = vld [vmem:[%s3 + $0xc0] sm:$0xff]
  %v383 = vld [vmem:[%s3 + $0xc8] sm:$0xff]
  %v384 = vld [vmem:[%s3 + $0xd0] sm:$0xff]
  %v385 = vld [vmem:[%s3 + $0xd8] sm:$0xff]
  %v386 = vld [vmem:[%s3 + $0xe0] sm:$0xff]
  %v387 = vld [vmem:[%s3 + $0xe8] sm:$0xff]
  %v388 = vld [vmem:[%s3 + $0xf0] sm:$0xff]
  %v389 = vld [vmem:[%s3 + $0xf8] sm:$0xff]
  %v422 = vunpack.c.l.b16 %v358
  %v423 = vunpack.c.h.b16 %v358
  %v424 = vunpack.c.l.b16 %v359
  %v425 = vunpack.c.h.b16 %v359
  %v426 = vunpack.c.l.b16 %v360
  %v427 = vunpack.c.h.b16 %v360
  %v428 = vunpack.c.l.b16 %v361
  %v429 = vunpack.c.h.b16 %v361
  %v430 = vunpack.c.l.b16 %v362
  %v431 = vunpack.c.h.b16 %v362
  %v432 = vunpack.c.l.b16 %v363
  %v433 = vunpack.c.h.b16 %v363
  %v434 = vunpack.c.l.b16 %v364
  %v435 = vunpack.c.h.b16 %v364
  %v436 = vunpack.c.l.b16 %v365
  %v437 = vunpack.c.h.b16 %v365
  %v438 = vunpack.c.l.b16 %v366
  %v439 = vunpack.c.h.b16 %v366
  %v440 = vunpack.c.l.b16 %v367
  %v441 = vunpack.c.h.b16 %v367
  %v442 = vunpack.c.l.b16 %v368
  %v443 = vunpack.c.h.b16 %v368
  %v444 = vunpack.c.l.b16 %v369
  %v445 = vunpack.c.h.b16 %v369
  %v446 = vunpack.c.l.b16 %v370
  %v447 = vunpack.c.h.b16 %v370
  %v448 = vunpack.c.l.b16 %v371
  %v449 = vunpack.c.h.b16 %v371
  %v450 = vunpack.c.l.b16 %v372
  %v451 = vunpack.c.h.b16 %v372
  %v452 = vunpack.c.l.b16 %v373
  %v453 = vunpack.c.h.b16 %v373
  %v454 = vunpack.c.l.b16 %v374
  %v455 = vunpack.c.h.b16 %v374
  %v456 = vunpack.c.l.b16 %v375
  %v457 = vunpack.c.h.b16 %v375
  %v458 = vunpack.c.l.b16 %v376
  %v459 = vunpack.c.h.b16 %v376
  %v460 = vunpack.c.l.b16 %v377
  %v461 = vunpack.c.h.b16 %v377
  %v462 = vunpack.c.l.b16 %v378
  %v463 = vunpack.c.h.b16 %v378
  %v464 = vunpack.c.l.b16 %v379
  %v465 = vunpack.c.h.b16 %v379
  %v466 = vunpack.c.l.b16 %v380
  %v467 = vunpack.c.h.b16 %v380
  %v468 = vunpack.c.l.b16 %v381
  %v469 = vunpack.c.h.b16 %v381
  %v470 = vunpack.c.l.b16 %v382
  %v471 = vunpack.c.h.b16 %v382
  %v472 = vunpack.c.l.b16 %v383
  %v473 = vunpack.c.h.b16 %v383
  %v474 = vunpack.c.l.b16 %v384
  %v475 = vunpack.c.h.b16 %v384
  %v476 = vunpack.c.l.b16 %v385
  %v477 = vunpack.c.h.b16 %v385
  %v478 = vunpack.c.l.b16 %v386
  %v479 = vunpack.c.h.b16 %v386
  %v480 = vunpack.c.l.b16 %v387
  %v481 = vunpack.c.h.b16 %v387
  %v482 = vunpack.c.l.b16 %v388
  %v483 = vunpack.c.h.b16 %v388
  %v484 = vunpack.c.l.b16 %v389
  %v485 = vunpack.c.h.b16 %v389
  %v486 = vpack.c.b16 %v424, %v422
  %v487 = vpack.c.b16 %v425, %v423
  %v488 = vpack.c.b16 %v428, %v426
  %v489 = vpack.c.b16 %v429, %v427
  %v490 = vpack.c.b16 %v432, %v430
  %v491 = vpack.c.b16 %v433, %v431
  %v492 = vpack.c.b16 %v436, %v434
  %v493 = vpack.c.b16 %v437, %v435
  %v494 = vpack.c.b16 %v440, %v438
  %v495 = vpack.c.b16 %v441, %v439
  %v496 = vpack.c.b16 %v444, %v442
  %v497 = vpack.c.b16 %v445, %v443
  %v498 = vpack.c.b16 %v448, %v446
  %v499 = vpack.c.b16 %v449, %v447
  %v500 = vpack.c.b16 %v452, %v450
  %v501 = vpack.c.b16 %v453, %v451
  %v502 = vpack.c.b16 %v456, %v454
  %v503 = vpack.c.b16 %v457, %v455
  %v504 = vpack.c.b16 %v460, %v458
  %v505 = vpack.c.b16 %v461, %v459
  %v506 = vpack.c.b16 %v464, %v462
  %v507 = vpack.c.b16 %v465, %v463
  %v508 = vpack.c.b16 %v468, %v466
  %v509 = vpack.c.b16 %v469, %v467
  %v510 = vpack.c.b16 %v472, %v470
  %v511 = vpack.c.b16 %v473, %v471
  %v512 = vpack.c.b16 %v476, %v474
  %v513 = vpack.c.b16 %v477, %v475
  %v514 = vpack.c.b16 %v480, %v478
  %v515 = vpack.c.b16 %v481, %v479
  %v516 = vpack.c.b16 %v484, %v482
  %v517 = vpack.c.b16 %v485, %v483
  %550 = vmatprep.subr.bf16.mxu0 %v487
  %551 = vmatpush1.bf16.msra.mxu0 %v486
  %552 = vmatprep.subr.bf16.mxu0 %v489
  %553 = vmatpush1.bf16.msra.mxu0 %v488
  %554 = vmatprep.subr.bf16.mxu0 %v491
  %555 = vmatpush1.bf16.msra.mxu0 %v490
  %556 = vmatprep.subr.bf16.mxu0 %v493
  %557 = vmatpush1.bf16.msra.mxu0 %v492
  %558 = vmatprep.subr.bf16.mxu0 %v495
  %559 = vmatpush1.bf16.msra.mxu0 %v494
  %560 = vmatprep.subr.bf16.mxu0 %v497
  %561 = vmatpush1.bf16.msra.mxu0 %v496
  %562 = vmatprep.subr.bf16.mxu0 %v499
  %563 = vmatpush1.bf16.msra.mxu0 %v498
  %564 = vmatprep.subr.bf16.mxu0 %v501
  %565 = vmatpush1.bf16.msra.mxu0 %v500
  %566 = vmatprep.subr.bf16.mxu0 %v503
  %567 = vmatpush1.bf16.msra.mxu0 %v502
  %568 = vmatprep.subr.bf16.mxu0 %v505
  %569 = vmatpush1.bf16.msra.mxu0 %v504
  %570 = vmatprep.subr.bf16.mxu0 %v507
  %571 = vmatpush1.bf16.msra.mxu0 %v506
  %572 = vmatprep.subr.bf16.mxu0 %v509
  %573 = vmatpush1.bf16.msra.mxu0 %v508
  %574 = vmatprep.subr.bf16.mxu0 %v511
  %575 = vmatpush1.bf16.msra.mxu0 %v510
  %576 = vmatprep.subr.bf16.mxu0 %v513
  %577 = vmatpush1.bf16.msra.mxu0 %v512
  %578 = vmatprep.subr.bf16.mxu0 %v515
  %579 = vmatpush1.bf16.msra.mxu0 %v514
  %580 = vmatprep.subr.bf16.mxu0 %v517
  %581 = vmatpush1.bf16.msra.mxu0 %v516
  %582 = vmatprep.mubr.bf16.mxu0 %v110
  %583 = vmatmul.mubr.bf16.gmra.mrb[0].mxu0 %v109
  %v584 = vpop.f32.mrb[0].mxu0
  %v585 = vadd.f32 0.0, %v584
  %v586 = vpop.f32.mrb[0].mxu0
  %v587 = vadd.f32 0.0, %v586
  %v588 = vpop.f32.mrb[0].mxu0
  %v589 = vadd.f32 0.0, %v588
  %v590 = vpop.f32.mrb[0].mxu0
  %v591 = vadd.f32 0.0, %v590
  %592 = vmatprep.mubr.bf16.mxu0 %v112
  %593 = vmatmul.mubr.bf16.gmra.mrb[0].mxu0 %v111
  %v594 = vpop.f32.mrb[0].mxu0
  %v595 = vadd.f32 0.0, %v594
  %v596 = vpop.f32.mrb[0].mxu0
  %v597 = vadd.f32 0.0, %v596
  %v598 = vpop.f32.mrb[0].mxu0
  %v599 = vadd.f32 0.0, %v598
  %v600 = vpop.f32.mrb[0].mxu0
  %v601 = vadd.f32 0.0, %v600
  %602 = vdwg.mxu0
  %v603 = vxor.u32 %v340, 2147483648
  %v604 = vxor.u32 %v342, 2147483648
  %v605 = vxor.u32 %v344, 2147483648
  %v606 = vxor.u32 %v346, 2147483648
  %v607 = vxor.u32 %v350, 2147483648
  %v608 = vxor.u32 %v352, 2147483648
  %v609 = vxor.u32 %v354, 2147483648
  %v610 = vxor.u32 %v356, 2147483648
  %v611 = vmul.f32 %v603, 1.442695
  %v612 = vpow.pop %v611
  %v613 = vmul.f32 %v604, 1.442695
  %v614 = vpow.pop %v613
  %v615 = vmul.f32 %v605, 1.442695
  %v616 = vpow.pop %v615
  %v617 = vmul.f32 %v606, 1.442695
  %v618 = vpow.pop %v617
  %v619 = vmul.f32 %v607, 1.442695
  %v620 = vpow.pop %v619
  %v621 = vmul.f32 %v608, 1.442695
  %v622 = vpow.pop %v621
  %v623 = vmul.f32 %v609, 1.442695
  %v624 = vpow.pop %v623
  %v625 = vmul.f32 %v610, 1.442695
  %v626 = vpow.pop %v625
  %v627 = vadd.f32 %v612, 1.0
  %v628 = vadd.f32 %v614, 1.0
  %v629 = vadd.f32 %v616, 1.0
  %v630 = vadd.f32 %v618, 1.0
  %v631 = vadd.f32 %v620, 1.0
  %v632 = vadd.f32 %v622, 1.0
  %v633 = vadd.f32 %v624, 1.0
  %v634 = vadd.f32 %v626, 1.0
  %v635 = vrcp.pop %v627
  %v636 = vmul.f32 1.0, %v635
  %v637 = vrcp.pop %v628
  %v638 = vmul.f32 1.0, %v637
  %v639 = vrcp.pop %v629
  %v640 = vmul.f32 1.0, %v639
  %v641 = vrcp.pop %v630
  %v642 = vmul.f32 1.0, %v641
  %v643 = vrcp.pop %v631
  %v644 = vmul.f32 1.0, %v643
  %v645 = vrcp.pop %v632
  %v646 = vmul.f32 1.0, %v645
  %v647 = vrcp.pop %v633
  %v648 = vmul.f32 1.0, %v647
  %v649 = vrcp.pop %v634
  %v650 = vmul.f32 1.0, %v649
  %v651 = vmul.f32 %v340, %v636
  %v652 = vmul.f32 %v342, %v638
  %v653 = vmul.f32 %v344, %v640
  %v654 = vmul.f32 %v346, %v642
  %v655 = vmul.f32 %v350, %v644
  %v656 = vmul.f32 %v352, %v646
  %v657 = vmul.f32 %v354, %v648
  %v658 = vmul.f32 %v356, %v650
  %v659 = vmul.f32 %v651, %v585
  %v660 = vmul.f32 %v652, %v587
  %v661 = vmul.f32 %v653, %v589
  %v662 = vmul.f32 %v654, %v591
  %v663 = vmul.f32 %v655, %v595
  %v664 = vmul.f32 %v656, %v597
  %v665 = vmul.f32 %v657, %v599
  %v666 = vmul.f32 %v658, %v601
  %v667 = vpack.c.bf16 %v661, %v659
  %v668 = vpack.c.bf16 %v662, %v660
  %v669 = vpack.c.bf16 %v665, %v663
  %v670 = vpack.c.bf16 %v666, %v664
  %v671 = vld [vmem:[%s5] sm:$0xff]
  %v672 = vld [vmem:[%s5 + $0x8] sm:$0xff]
  %v673 = vld [vmem:[%s5 + $0x10] sm:$0xff]
  %v674 = vld [vmem:[%s5 + $0x18] sm:$0xff]
  %v675 = vld [vmem:[%s5 + $0x20] sm:$0xff]
  %v676 = vld [vmem:[%s5 + $0x28] sm:$0xff]
  %v677 = vld [vmem:[%s5 + $0x30] sm:$0xff]
  %v678 = vld [vmem:[%s5 + $0x38] sm:$0xff]
  %v679 = vld [vmem:[%s4] sm:$0xff]
  %v680 = vld [vmem:[%s4 + $0x8] sm:$0xff]
  %v681 = vld [vmem:[%s4 + $0x10] sm:$0xff]
  %v682 = vld [vmem:[%s4 + $0x18] sm:$0xff]
  %v683 = vld [vmem:[%s4 + $0x20] sm:$0xff]
  %v684 = vld [vmem:[%s4 + $0x28] sm:$0xff]
  %v685 = vld [vmem:[%s4 + $0x30] sm:$0xff]
  %v686 = vld [vmem:[%s4 + $0x38] sm:$0xff]
  %v687 = vld [vmem:[%s4 + $0x40] sm:$0xff]
  %v688 = vld [vmem:[%s4 + $0x48] sm:$0xff]
  %v689 = vld [vmem:[%s4 + $0x50] sm:$0xff]
  %v690 = vld [vmem:[%s4 + $0x58] sm:$0xff]
  %v691 = vld [vmem:[%s4 + $0x60] sm:$0xff]
  %v692 = vld [vmem:[%s4 + $0x68] sm:$0xff]
  %v693 = vld [vmem:[%s4 + $0x70] sm:$0xff]
  %v694 = vld [vmem:[%s4 + $0x78] sm:$0xff]
  %v695 = vld [vmem:[%s4 + $0x80] sm:$0xff]
  %v696 = vld [vmem:[%s4 + $0x88] sm:$0xff]
  %v697 = vld [vmem:[%s4 + $0x90] sm:$0xff]
  %v698 = vld [vmem:[%s4 + $0x98] sm:$0xff]
  %v699 = vld [vmem:[%s4 + $0xa0] sm:$0xff]
  %v700 = vld [vmem:[%s4 + $0xa8] sm:$0xff]
  %v701 = vld [vmem:[%s4 + $0xb0] sm:$0xff]
  %v702 = vld [vmem:[%s4 + $0xb8] sm:$0xff]
  %v703 = vld [vmem:[%s4 + $0xc0] sm:$0xff]
  %v704 = vld [vmem:[%s4 + $0xc8] sm:$0xff]
  %v705 = vld [vmem:[%s4 + $0xd0] sm:$0xff]
  %v706 = vld [vmem:[%s4 + $0xd8] sm:$0xff]
  %v707 = vld [vmem:[%s4 + $0xe0] sm:$0xff]
  %v708 = vld [vmem:[%s4 + $0xe8] sm:$0xff]
  %v709 = vld [vmem:[%s4 + $0xf0] sm:$0xff]
  %v710 = vld [vmem:[%s4 + $0xf8] sm:$0xff]
  %v743 = vunpack.c.l.b16 %v679
  %v744 = vunpack.c.h.b16 %v679
  %v745 = vunpack.c.l.b16 %v680
  %v746 = vunpack.c.h.b16 %v680
  %v747 = vunpack.c.l.b16 %v681
  %v748 = vunpack.c.h.b16 %v681
  %v749 = vunpack.c.l.b16 %v682
  %v750 = vunpack.c.h.b16 %v682
  %v751 = vunpack.c.l.b16 %v683
  %v752 = vunpack.c.h.b16 %v683
  %v753 = vunpack.c.l.b16 %v684
  %v754 = vunpack.c.h.b16 %v684
  %v755 = vunpack.c.l.b16 %v685
  %v756 = vunpack.c.h.b16 %v685
  %v757 = vunpack.c.l.b16 %v686
  %v758 = vunpack.c.h.b16 %v686
  %v759 = vunpack.c.l.b16 %v687
  %v760 = vunpack.c.h.b16 %v687
  %v761 = vunpack.c.l.b16 %v688
  %v762 = vunpack.c.h.b16 %v688
  %v763 = vunpack.c.l.b16 %v689
  %v764 = vunpack.c.h.b16 %v689
  %v765 = vunpack.c.l.b16 %v690
  %v766 = vunpack.c.h.b16 %v690
  %v767 = vunpack.c.l.b16 %v691
  %v768 = vunpack.c.h.b16 %v691
  %v769 = vunpack.c.l.b16 %v692
  %v770 = vunpack.c.h.b16 %v692
  %v771 = vunpack.c.l.b16 %v693
  %v772 = vunpack.c.h.b16 %v693
  %v773 = vunpack.c.l.b16 %v694
  %v774 = vunpack.c.h.b16 %v694
  %v775 = vunpack.c.l.b16 %v695
  %v776 = vunpack.c.h.b16 %v695
  %v777 = vunpack.c.l.b16 %v696
  %v778 = vunpack.c.h.b16 %v696
  %v779 = vunpack.c.l.b16 %v697
  %v780 = vunpack.c.h.b16 %v697
  %v781 = vunpack.c.l.b16 %v698
  %v782 = vunpack.c.h.b16 %v698
  %v783 = vunpack.c.l.b16 %v699
  %v784 = vunpack.c.h.b16 %v699
  %v785 = vunpack.c.l.b16 %v700
  %v786 = vunpack.c.h.b16 %v700
  %v787 = vunpack.c.l.b16 %v701
  %v788 = vunpack.c.h.b16 %v701
  %v789 = vunpack.c.l.b16 %v702
  %v790 = vunpack.c.h.b16 %v702
  %v791 = vunpack.c.l.b16 %v703
  %v792 = vunpack.c.h.b16 %v703
  %v793 = vunpack.c.l.b16 %v704
  %v794 = vunpack.c.h.b16 %v704
  %v795 = vunpack.c.l.b16 %v705
  %v796 = vunpack.c.h.b16 %v705
  %v797 = vunpack.c.l.b16 %v706
  %v798 = vunpack.c.h.b16 %v706
  %v799 = vunpack.c.l.b16 %v707
  %v800 = vunpack.c.h.b16 %v707
  %v801 = vunpack.c.l.b16 %v708
  %v802 = vunpack.c.h.b16 %v708
  %v803 = vunpack.c.l.b16 %v709
  %v804 = vunpack.c.h.b16 %v709
  %v805 = vunpack.c.l.b16 %v710
  %v806 = vunpack.c.h.b16 %v710
  %v807 = vpack.c.b16 %v745, %v743
  %v808 = vpack.c.b16 %v746, %v744
  %v809 = vpack.c.b16 %v749, %v747
  %v810 = vpack.c.b16 %v750, %v748
  %v811 = vpack.c.b16 %v753, %v751
  %v812 = vpack.c.b16 %v754, %v752
  %v813 = vpack.c.b16 %v757, %v755
  %v814 = vpack.c.b16 %v758, %v756
  %v815 = vpack.c.b16 %v761, %v759
  %v816 = vpack.c.b16 %v762, %v760
  %v817 = vpack.c.b16 %v765, %v763
  %v818 = vpack.c.b16 %v766, %v764
  %v819 = vpack.c.b16 %v769, %v767
  %v820 = vpack.c.b16 %v770, %v768
  %v821 = vpack.c.b16 %v773, %v771
  %v822 = vpack.c.b16 %v774, %v772
  %v823 = vpack.c.b16 %v777, %v775
  %v824 = vpack.c.b16 %v778, %v776
  %v825 = vpack.c.b16 %v781, %v779
  %v826 = vpack.c.b16 %v782, %v780
  %v827 = vpack.c.b16 %v785, %v783
  %v828 = vpack.c.b16 %v786, %v784
  %v829 = vpack.c.b16 %v789, %v787
  %v830 = vpack.c.b16 %v790, %v788
  %v831 = vpack.c.b16 %v793, %v791
  %v832 = vpack.c.b16 %v794, %v792
  %v833 = vpack.c.b16 %v797, %v795
  %v834 = vpack.c.b16 %v798, %v796
  %v835 = vpack.c.b16 %v801, %v799
  %v836 = vpack.c.b16 %v802, %v800
  %v837 = vpack.c.b16 %v805, %v803
  %v838 = vpack.c.b16 %v806, %v804
  %871 = vmatprep.subr.bf16.mxu0 %v808
  %872 = vmatpush1.bf16.msra.mxu0 %v807
  %873 = vmatprep.subr.bf16.mxu0 %v810
  %874 = vmatpush1.bf16.msra.mxu0 %v809
  %875 = vmatprep.subr.bf16.mxu0 %v812
  %876 = vmatpush1.bf16.msra.mxu0 %v811
  %877 = vmatprep.subr.bf16.mxu0 %v814
  %878 = vmatpush1.bf16.msra.mxu0 %v813
  %879 = vmatprep.subr.bf16.mxu0 %v816
  %880 = vmatpush1.bf16.msra.mxu0 %v815
  %881 = vmatprep.subr.bf16.mxu0 %v818
  %882 = vmatpush1.bf16.msra.mxu0 %v817
  %883 = vmatprep.subr.bf16.mxu0 %v820
  %884 = vmatpush1.bf16.msra.mxu0 %v819
  %885 = vmatprep.subr.bf16.mxu0 %v822
  %886 = vmatpush1.bf16.msra.mxu0 %v821
  %887 = vmatprep.subr.bf16.mxu0 %v824
  %888 = vmatpush1.bf16.msra.mxu0 %v823
  %889 = vmatprep.subr.bf16.mxu0 %v826
  %890 = vmatpush1.bf16.msra.mxu0 %v825
  %891 = vmatprep.subr.bf16.mxu0 %v828
  %892 = vmatpush1.bf16.msra.mxu0 %v827
  %893 = vmatprep.subr.bf16.mxu0 %v830
  %894 = vmatpush1.bf16.msra.mxu0 %v829
  %895 = vmatprep.subr.bf16.mxu0 %v832
  %896 = vmatpush1.bf16.msra.mxu0 %v831
  %897 = vmatprep.subr.bf16.mxu0 %v834
  %898 = vmatpush1.bf16.msra.mxu0 %v833
  %899 = vmatprep.subr.bf16.mxu0 %v836
  %900 = vmatpush1.bf16.msra.mxu0 %v835
  %901 = vmatprep.subr.bf16.mxu0 %v838
  %902 = vmatpush1.bf16.msra.mxu0 %v837
  %903 = vmatprep.mubr.bf16.mxu0 %v668
  %904 = vmatmul.mubr.bf16.gmra.mrb[0].mxu0 %v667
  %v905 = vpop.f32.mrb[0].mxu0
  %v906 = vadd.f32 0.0, %v905
  %v907 = vpop.f32.mrb[0].mxu0
  %v908 = vadd.f32 0.0, %v907
  %v909 = vpop.f32.mrb[0].mxu0
  %v910 = vadd.f32 0.0, %v909
  %v911 = vpop.f32.mrb[0].mxu0
  %v912 = vadd.f32 0.0, %v911
  %913 = vmatprep.mubr.bf16.mxu0 %v670
  %914 = vmatmul.mubr.bf16.gmra.mrb[0].mxu0 %v669
  %v915 = vpop.f32.mrb[0].mxu0
  %v916 = vadd.f32 0.0, %v915
  %v917 = vpop.f32.mrb[0].mxu0
  %v918 = vadd.f32 0.0, %v917
  %v919 = vpop.f32.mrb[0].mxu0
  %v920 = vadd.f32 0.0, %v919
  %v921 = vpop.f32.mrb[0].mxu0
  %v922 = vadd.f32 0.0, %v921
  %923 = vdwg.mxu0
  %v924 = vadd.f32 %v671, %v906
  %v925 = vadd.f32 %v672, %v908
  %v926 = vadd.f32 %v673, %v910
  %v927 = vadd.f32 %v674, %v912
  %v928 = vadd.f32 %v675, %v916
  %v929 = vadd.f32 %v676, %v918
  %v930 = vadd.f32 %v677, %v920
  %v931 = vadd.f32 %v678, %v922
  %932 = vst [vmem:[%s5] sm:$0xff] %v924
  %933 = vst [vmem:[%s5 + $0x8] sm:$0xff] %v925
  %934 = vst [vmem:[%s5 + $0x10] sm:$0xff] %v926
  %935 = vst [vmem:[%s5 + $0x18] sm:$0xff] %v927
  %936 = vst [vmem:[%s5 + $0x20] sm:$0xff] %v928
  %937 = vst [vmem:[%s5 + $0x28] sm:$0xff] %v929
  %938 = vst [vmem:[%s5 + $0x30] sm:$0xff] %v930
  %939 = vst [vmem:[%s5 + $0x38] sm:$0xff] %v931
  // Predicated region
  $region26: #{chameleon_forward.15} parent=0 // pred_check
    _
  $region27: #{chameleon_forward.15} parent=0 // pred_check_branch
    %941 = sbr.rel (0) target = $region29
  $region28: #{chameleon_forward.15} parent=0 // pred_region
    _
  $region29: #{chameleon_forward.15} parent=0 // pred_fallthru
    _
  // Predicated region
  $region30: #{chameleon_forward.15} parent=0 // pred_check
    _
  $region31: #{chameleon_forward.15} parent=0 // pred_check_branch
    %943 = sbr.rel (0) target = $region33
  $region32: #{chameleon_forward.15} parent=0 // pred_region
    _
  $region33: #{chameleon_forward.15} parent=0 // pred_fallthru
    _

// kernel: chameleon_forward.21
$region0: #{chameleon_forward.21}
  #allocation0 [shape = 'u32[]', space=smem, size = 0x4, offset = 0x4, fixed_abs, tag = 'smem constant byte address 0x4 - core index']
  #allocation1 [shape = 'u32[144,128]{1,0:T(1,128)}', space=vmem, size = 0x12000, scoped, tag = 'internal scratch']
  %s0 = inlined_call_operand.vmem [shape: f32[32,256], index: 0, kind: input, shape index: {}]
  %s1 = inlined_call_operand.vmem [shape: f32[1,256], index: 1, kind: input, shape index: {}]
  %s2 = inlined_call_operand.vmem [shape: bf16[256,512], index: 2, kind: input, shape index: {}]
  %s3 = inlined_call_operand.hbm [shape: f32[32,512], index: 3, kind: output, shape index: {}]
  %s4 = sld [smem:[#allocation0]]
  $region22: #{chameleon_forward.21} parent=0
    _
  %s6 = ssub.s32 1, %s4
  %s7 = scalar_select 0, %s6, %s4
  $region1: #{chameleon_forward.21} parent=0
    #allocation2 [shape = 'u8[65536]{0}', space=vmem, size = 0x10000, scoped, tag = 'output window, operand 0, single buffered']
    #allocation3 [shape = 's32[1]{0}', space=sflag, size = 0x4, scoped, tag = 'scoped memory for chameleon_forward.21']
    %8 = vsyncpa [#allocation3], 0
    // Predicated region
    $region2: #{chameleon_forward.21} parent=1 // pred_check
      _
    $region3: #{chameleon_forward.21} parent=1 // pred_check_branch
      %10 = sbr.rel (0) target = $region5
    $region4: #{chameleon_forward.21} parent=1 // pred_region
      _
    $region5: #{chameleon_forward.21} parent=1 // pred_fallthru
      _
    // Predicated region
    $region6: #{chameleon_forward.21} parent=1 // pred_check
      _
    $region7: #{chameleon_forward.21} parent=1 // pred_check_branch
      %12 = sbr.rel (0) target = $region9
    $region8: #{chameleon_forward.21} parent=1 // pred_region
      _
    $region9: #{chameleon_forward.21} parent=1 // pred_fallthru
      _
    // Predicated region
    $region10: #{chameleon_forward.21} parent=1 // pred_check
      _
    $region11: #{chameleon_forward.21} parent=1 // pred_check_branch
      %14 = sbr.rel (0) target = $region13
    $region12: #{chameleon_forward.21} parent=1 // pred_region
      _
    $region13: #{chameleon_forward.21} parent=1 // pred_fallthru
      _
    %v15 = vld [vmem:[%s0] sm:$0xff]
    %v16 = vld [vmem:[%s0 + $0x8] sm:$0xff]
    %v17 = vld [vmem:[%s0 + $0x10] sm:$0xff]
    %v18 = vld [vmem:[%s0 + $0x18] sm:$0xff]
    %v19 = vld [vmem:[%s0 + $0x20] sm:$0xff]
    %v20 = vld [vmem:[%s0 + $0x28] sm:$0xff]
    %v21 = vld [vmem:[%s0 + $0x30] sm:$0xff]
    %v22 = vld [vmem:[%s0 + $0x38] sm:$0xff]
    %v23 = vmul.f32 %v15, %v15
    %v24 = vmul.f32 %v16, %v16
    %v25 = vmul.f32 %v17, %v17
    %v26 = vmul.f32 %v18, %v18
    %v27 = vmul.f32 %v19, %v19
    %v28 = vmul.f32 %v20, %v20
    %v29 = vmul.f32 %v21, %v21
    %v30 = vmul.f32 %v22, %v22
    %v31 = vadd.f32 %v23, %v24
    %32 = vadd.xlane.f32.xlu0 %v31
    %v33 = vpop.xlane.xlu0 %32
    %v34 = vadd.f32 %v25, %v26
    %35 = vadd.xlane.f32.xlu0 %v34
    %v36 = vpop.xlane.xlu0 %35
    %v37 = vadd.f32 %v27, %v28
    %38 = vadd.xlane.f32.xlu0 %v37
    %v39 = vpop.xlane.xlu0 %38
    %v40 = vadd.f32 %v29, %v30
    %41 = vadd.xlane.f32.xlu0 %v40
    %v42 = vpop.xlane.xlu0 %41
    %v43 = vrcp.pop 256.0
    %v44 = vmul.f32 %v33, %v43
    %v45 = vmul.f32 %v36, %v43
    %v46 = vmul.f32 %v39, %v43
    %v47 = vmul.f32 %v42, %v43
    %v48 = vadd.f32 %v44, 1e-05
    %v49 = vadd.f32 %v45, 1e-05
    %v50 = vadd.f32 %v46, 1e-05
    %v51 = vadd.f32 %v47, 1e-05
    %v52 = vrsqrt.pop %v48
    %v53 = vrsqrt.pop %v49
    %v54 = vrsqrt.pop %v50
    %v55 = vrsqrt.pop %v51
    %v56 = vmul.f32 %v15, %v52
    %v57 = vmul.f32 %v16, %v52
    %v58 = vmul.f32 %v17, %v53
    %v59 = vmul.f32 %v18, %v53
    %v60 = vmul.f32 %v19, %v54
    %v61 = vmul.f32 %v20, %v54
    %v62 = vmul.f32 %v21, %v55
    %v63 = vmul.f32 %v22, %v55
    %v64 = vld [vmem:[%s1] sm:$0x3]
    %v66 = vlaneseq
    %v67 = vshrl.u32 %v66, 7
    %v68 = vsub.s32 0, %v67
    %v69 = vrot.slane %v64, %v68
    %v70 = vlaneseq
    %v71 = vshrl.u32 %v70, 7
    %v72 = vsub.s32 1, %v71
    %v73 = vrot.slane %v64, %v72
    %v76 = vmul.f32 %v56, %v69
    %v77 = vmul.f32 %v57, %v73
    %v78 = vmul.f32 %v58, %v69
    %v79 = vmul.f32 %v59, %v73
    %v80 = vmul.f32 %v60, %v69
    %v81 = vmul.f32 %v61, %v73
    %v82 = vmul.f32 %v62, %v69
    %v83 = vmul.f32 %v63, %v73
    %v84 = vpack.c.bf16 %v78, %v76
    %v85 = vpack.c.bf16 %v79, %v77
    %v86 = vpack.c.bf16 %v82, %v80
    %v87 = vpack.c.bf16 %v83, %v81
    %v88 = vld [vmem:[%s2] sm:$0xff]
    %v89 = vld [vmem:[%s2 + $0x8] sm:$0xff]
    %v90 = vld [vmem:[%s2 + $0x10] sm:$0xff]
    %v91 = vld [vmem:[%s2 + $0x18] sm:$0xff]
    %v92 = vld [vmem:[%s2 + $0x20] sm:$0xff]
    %v93 = vld [vmem:[%s2 + $0x28] sm:$0xff]
    %v94 = vld [vmem:[%s2 + $0x30] sm:$0xff]
    %v95 = vld [vmem:[%s2 + $0x38] sm:$0xff]
    %v96 = vld [vmem:[%s2 + $0x40] sm:$0xff]
    %v97 = vld [vmem:[%s2 + $0x48] sm:$0xff]
    %v98 = vld [vmem:[%s2 + $0x50] sm:$0xff]
    %v99 = vld [vmem:[%s2 + $0x58] sm:$0xff]
    %v100 = vld [vmem:[%s2 + $0x60] sm:$0xff]
    %v101 = vld [vmem:[%s2 + $0x68] sm:$0xff]
    %v102 = vld [vmem:[%s2 + $0x70] sm:$0xff]
    %v103 = vld [vmem:[%s2 + $0x78] sm:$0xff]
    %v104 = vld [vmem:[%s2 + $0x80] sm:$0xff]
    %v105 = vld [vmem:[%s2 + $0x88] sm:$0xff]
    %v106 = vld [vmem:[%s2 + $0x90] sm:$0xff]
    %v107 = vld [vmem:[%s2 + $0x98] sm:$0xff]
    %v108 = vld [vmem:[%s2 + $0xa0] sm:$0xff]
    %v109 = vld [vmem:[%s2 + $0xa8] sm:$0xff]
    %v110 = vld [vmem:[%s2 + $0xb0] sm:$0xff]
    %v111 = vld [vmem:[%s2 + $0xb8] sm:$0xff]
    %v112 = vld [vmem:[%s2 + $0xc0] sm:$0xff]
    %v113 = vld [vmem:[%s2 + $0xc8] sm:$0xff]
    %v114 = vld [vmem:[%s2 + $0xd0] sm:$0xff]
    %v115 = vld [vmem:[%s2 + $0xd8] sm:$0xff]
    %v116 = vld [vmem:[%s2 + $0xe0] sm:$0xff]
    %v117 = vld [vmem:[%s2 + $0xe8] sm:$0xff]
    %v118 = vld [vmem:[%s2 + $0xf0] sm:$0xff]
    %v119 = vld [vmem:[%s2 + $0xf8] sm:$0xff]
    %v120 = vld [vmem:[%s2 + $0x100] sm:$0xff]
    %v121 = vld [vmem:[%s2 + $0x108] sm:$0xff]
    %v122 = vld [vmem:[%s2 + $0x110] sm:$0xff]
    %v123 = vld [vmem:[%s2 + $0x118] sm:$0xff]
    %v124 = vld [vmem:[%s2 + $0x120] sm:$0xff]
    %v125 = vld [vmem:[%s2 + $0x128] sm:$0xff]
    %v126 = vld [vmem:[%s2 + $0x130] sm:$0xff]
    %v127 = vld [vmem:[%s2 + $0x138] sm:$0xff]
    %v128 = vld [vmem:[%s2 + $0x140] sm:$0xff]
    %v129 = vld [vmem:[%s2 + $0x148] sm:$0xff]
    %v130 = vld [vmem:[%s2 + $0x150] sm:$0xff]
    %v131 = vld [vmem:[%s2 + $0x158] sm:$0xff]
    %v132 = vld [vmem:[%s2 + $0x160] sm:$0xff]
    %v133 = vld [vmem:[%s2 + $0x168] sm:$0xff]
    %v134 = vld [vmem:[%s2 + $0x170] sm:$0xff]
    %v135 = vld [vmem:[%s2 + $0x178] sm:$0xff]
    %v136 = vld [vmem:[%s2 + $0x180] sm:$0xff]
    %v137 = vld [vmem:[%s2 + $0x188] sm:$0xff]
    %v138 = vld [vmem:[%s2 + $0x190] sm:$0xff]
    %v139 = vld [vmem:[%s2 + $0x198] sm:$0xff]
    %v140 = vld [vmem:[%s2 + $0x1a0] sm:$0xff]
    %v141 = vld [vmem:[%s2 + $0x1a8] sm:$0xff]
    %v142 = vld [vmem:[%s2 + $0x1b0] sm:$0xff]
    %v143 = vld [vmem:[%s2 + $0x1b8] sm:$0xff]
    %v144 = vld [vmem:[%s2 + $0x1c0] sm:$0xff]
    %v145 = vld [vmem:[%s2 + $0x1c8] sm:$0xff]
    %v146 = vld [vmem:[%s2 + $0x1d0] sm:$0xff]
    %v147 = vld [vmem:[%s2 + $0x1d8] sm:$0xff]
    %v148 = vld [vmem:[%s2 + $0x1e0] sm:$0xff]
    %v149 = vld [vmem:[%s2 + $0x1e8] sm:$0xff]
    %v150 = vld [vmem:[%s2 + $0x1f0] sm:$0xff]
    %v151 = vld [vmem:[%s2 + $0x1f8] sm:$0xff]
    %v216 = vunpack.c.l.b16 %v88
    %v217 = vunpack.c.h.b16 %v88
    %v218 = vunpack.c.l.b16 %v89
    %v219 = vunpack.c.h.b16 %v89
    %v220 = vunpack.c.l.b16 %v90
    %v221 = vunpack.c.h.b16 %v90
    %v222 = vunpack.c.l.b16 %v91
    %v223 = vunpack.c.h.b16 %v91
    %v224 = vunpack.c.l.b16 %v92
    %v225 = vunpack.c.h.b16 %v92
    %v226 = vunpack.c.l.b16 %v93
    %v227 = vunpack.c.h.b16 %v93
    %v228 = vunpack.c.l.b16 %v94
    %v229 = vunpack.c.h.b16 %v94
    %v230 = vunpack.c.l.b16 %v95
    %v231 = vunpack.c.h.b16 %v95
    %v232 = vunpack.c.l.b16 %v96
    %v233 = vunpack.c.h.b16 %v96
    %v234 = vunpack.c.l.b16 %v97
    %v235 = vunpack.c.h.b16 %v97
    %v236 = vunpack.c.l.b16 %v98
    %v237 = vunpack.c.h.b16 %v98
    %v238 = vunpack.c.l.b16 %v99
    %v239 = vunpack.c.h.b16 %v99
    %v240 = vunpack.c.l.b16 %v100
    %v241 = vunpack.c.h.b16 %v100
    %v242 = vunpack.c.l.b16 %v101
    %v243 = vunpack.c.h.b16 %v101
    %v244 = vunpack.c.l.b16 %v102
    %v245 = vunpack.c.h.b16 %v102
    %v246 = vunpack.c.l.b16 %v103
    %v247 = vunpack.c.h.b16 %v103
    %v248 = vunpack.c.l.b16 %v104
    %v249 = vunpack.c.h.b16 %v104
    %v250 = vunpack.c.l.b16 %v105
    %v251 = vunpack.c.h.b16 %v105
    %v252 = vunpack.c.l.b16 %v106
    %v253 = vunpack.c.h.b16 %v106
    %v254 = vunpack.c.l.b16 %v107
    %v255 = vunpack.c.h.b16 %v107
    %v256 = vunpack.c.l.b16 %v108
    %v257 = vunpack.c.h.b16 %v108
    %v258 = vunpack.c.l.b16 %v109
    %v259 = vunpack.c.h.b16 %v109
    %v260 = vunpack.c.l.b16 %v110
    %v261 = vunpack.c.h.b16 %v110
    %v262 = vunpack.c.l.b16 %v111
    %v263 = vunpack.c.h.b16 %v111
    %v264 = vunpack.c.l.b16 %v112
    %v265 = vunpack.c.h.b16 %v112
    %v266 = vunpack.c.l.b16 %v113
    %v267 = vunpack.c.h.b16 %v113
    %v268 = vunpack.c.l.b16 %v114
    %v269 = vunpack.c.h.b16 %v114
    %v270 = vunpack.c.l.b16 %v115
    %v271 = vunpack.c.h.b16 %v115
    %v272 = vunpack.c.l.b16 %v116
    %v273 = vunpack.c.h.b16 %v116
    %v274 = vunpack.c.l.b16 %v117
    %v275 = vunpack.c.h.b16 %v117
    %v276 = vunpack.c.l.b16 %v118
    %v277 = vunpack.c.h.b16 %v118
    %v278 = vunpack.c.l.b16 %v119
    %v279 = vunpack.c.h.b16 %v119
    %v280 = vunpack.c.l.b16 %v120
    %v281 = vunpack.c.h.b16 %v120
    %v282 = vunpack.c.l.b16 %v121
    %v283 = vunpack.c.h.b16 %v121
    %v284 = vunpack.c.l.b16 %v122
    %v285 = vunpack.c.h.b16 %v122
    %v286 = vunpack.c.l.b16 %v123
    %v287 = vunpack.c.h.b16 %v123
    %v288 = vunpack.c.l.b16 %v124
    %v289 = vunpack.c.h.b16 %v124
    %v290 = vunpack.c.l.b16 %v125
    %v291 = vunpack.c.h.b16 %v125
    %v292 = vunpack.c.l.b16 %v126
    %v293 = vunpack.c.h.b16 %v126
    %v294 = vunpack.c.l.b16 %v127
    %v295 = vunpack.c.h.b16 %v127
    %v296 = vunpack.c.l.b16 %v128
    %v297 = vunpack.c.h.b16 %v128
    %v298 = vunpack.c.l.b16 %v129
    %v299 = vunpack.c.h.b16 %v129
    %v300 = vunpack.c.l.b16 %v130
    %v301 = vunpack.c.h.b16 %v130
    %v302 = vunpack.c.l.b16 %v131
    %v303 = vunpack.c.h.b16 %v131
    %v304 = vunpack.c.l.b16 %v132
    %v305 = vunpack.c.h.b16 %v132
    %v306 = vunpack.c.l.b16 %v133
    %v307 = vunpack.c.h.b16 %v133
    %v308 = vunpack.c.l.b16 %v134
    %v309 = vunpack.c.h.b16 %v134
    %v310 = vunpack.c.l.b16 %v135
    %v311 = vunpack.c.h.b16 %v135
    %v312 = vunpack.c.l.b16 %v136
    %v313 = vunpack.c.h.b16 %v136
    %v314 = vunpack.c.l.b16 %v137
    %v315 = vunpack.c.h.b16 %v137
    %v316 = vunpack.c.l.b16 %v138
    %v317 = vunpack.c.h.b16 %v138
    %v318 = vunpack.c.l.b16 %v139
    %v319 = vunpack.c.h.b16 %v139
    %v320 = vunpack.c.l.b16 %v140
    %v321 = vunpack.c.h.b16 %v140
    %v322 = vunpack.c.l.b16 %v141
    %v323 = vunpack.c.h.b16 %v141
    %v324 = vunpack.c.l.b16 %v142
    %v325 = vunpack.c.h.b16 %v142
    %v326 = vunpack.c.l.b16 %v143
    %v327 = vunpack.c.h.b16 %v143
    %v328 = vunpack.c.l.b16 %v144
    %v329 = vunpack.c.h.b16 %v144
    %v330 = vunpack.c.l.b16 %v145
    %v331 = vunpack.c.h.b16 %v145
    %v332 = vunpack.c.l.b16 %v146
    %v333 = vunpack.c.h.b16 %v146
    %v334 = vunpack.c.l.b16 %v147
    %v335 = vunpack.c.h.b16 %v147
    %v336 = vunpack.c.l.b16 %v148
    %v337 = vunpack.c.h.b16 %v148
    %v338 = vunpack.c.l.b16 %v149
    %v339 = vunpack.c.h.b16 %v149
    %v340 = vunpack.c.l.b16 %v150
    %v341 = vunpack.c.h.b16 %v150
    %v342 = vunpack.c.l.b16 %v151
    %v343 = vunpack.c.h.b16 %v151
    %v344 = vpack.c.b16 %v220, %v216
    %v345 = vpack.c.b16 %v221, %v217
    %v346 = vpack.c.b16 %v222, %v218
    %v347 = vpack.c.b16 %v223, %v219
    %v348 = vpack.c.b16 %v228, %v224
    %v349 = vpack.c.b16 %v229, %v225
    %v350 = vpack.c.b16 %v230, %v226
    %v351 = vpack.c.b16 %v231, %v227
    %v352 = vpack.c.b16 %v236, %v232
    %v353 = vpack.c.b16 %v237, %v233
    %v354 = vpack.c.b16 %v238, %v234
    %v355 = vpack.c.b16 %v239, %v235
    %v356 = vpack.c.b16 %v244, %v240
    %v357 = vpack.c.b16 %v245, %v241
    %v358 = vpack.c.b16 %v246, %v242
    %v359 = vpack.c.b16 %v247, %v243
    %v360 = vpack.c.b16 %v252, %v248
    %v361 = vpack.c.b16 %v253, %v249
    %v362 = vpack.c.b16 %v254, %v250
    %v363 = vpack.c.b16 %v255, %v251
    %v364 = vpack.c.b16 %v260, %v256
    %v365 = vpack.c.b16 %v261, %v257
    %v366 = vpack.c.b16 %v262, %v258
    %v367 = vpack.c.b16 %v263, %v259
    %v368 = vpack.c.b16 %v268, %v264
    %v369 = vpack.c.b16 %v269, %v265
    %v370 = vpack.c.b16 %v270, %v266
    %v371 = vpack.c.b16 %v271, %v267
    %v372 = vpack.c.b16 %v276, %v272
    %v373 = vpack.c.b16 %v277, %v273
    %v374 = vpack.c.b16 %v278, %v274
    %v375 = vpack.c.b16 %v279, %v275
    %v376 = vpack.c.b16 %v284, %v280
    %v377 = vpack.c.b16 %v285, %v281
    %v378 = vpack.c.b16 %v286, %v282
    %v379 = vpack.c.b16 %v287, %v283
    %v380 = vpack.c.b16 %v292, %v288
    %v381 = vpack.c.b16 %v293, %v289
    %v382 = vpack.c.b16 %v294, %v290
    %v383 = vpack.c.b16 %v295, %v291
    %v384 = vpack.c.b16 %v300, %v296
    %v385 = vpack.c.b16 %v301, %v297
    %v386 = vpack.c.b16 %v302, %v298
    %v387 = vpack.c.b16 %v303, %v299
    %v388 = vpack.c.b16 %v308, %v304
    %v389 = vpack.c.b16 %v309, %v305
    %v390 = vpack.c.b16 %v310, %v306
    %v391 = vpack.c.b16 %v311, %v307
    %v392 = vpack.c.b16 %v316, %v312
    %v393 = vpack.c.b16 %v317, %v313
    %v394 = vpack.c.b16 %v318, %v314
    %v395 = vpack.c.b16 %v319, %v315
    %v396 = vpack.c.b16 %v324, %v320
    %v397 = vpack.c.b16 %v325, %v321
    %v398 = vpack.c.b16 %v326, %v322
    %v399 = vpack.c.b16 %v327, %v323
    %v400 = vpack.c.b16 %v332, %v328
    %v401 = vpack.c.b16 %v333, %v329
    %v402 = vpack.c.b16 %v334, %v330
    %v403 = vpack.c.b16 %v335, %v331
    %v404 = vpack.c.b16 %v340, %v336
    %v405 = vpack.c.b16 %v341, %v337
    %v406 = vpack.c.b16 %v342, %v338
    %v407 = vpack.c.b16 %v343, %v339
    %472 = vmatprep.subr.bf16.mxu0 %v345
    %473 = vmatpush1.bf16.msra.mxu0 %v344
    %474 = vmatprep.subr.bf16.mxu0 %v349
    %475 = vmatpush1.bf16.msra.mxu0 %v348
    %476 = vmatprep.subr.bf16.mxu0 %v353
    %477 = vmatpush1.bf16.msra.mxu0 %v352
    %478 = vmatprep.subr.bf16.mxu0 %v357
    %479 = vmatpush1.bf16.msra.mxu0 %v356
    %480 = vmatprep.subr.bf16.mxu0 %v361
    %481 = vmatpush1.bf16.msra.mxu0 %v360
    %482 = vmatprep.subr.bf16.mxu0 %v365
    %483 = vmatpush1.bf16.msra.mxu0 %v364
    %484 = vmatprep.subr.bf16.mxu0 %v369
    %485 = vmatpush1.bf16.msra.mxu0 %v368
    %486 = vmatprep.subr.bf16.mxu0 %v373
    %487 = vmatpush1.bf16.msra.mxu0 %v372
    %488 = vmatprep.subr.bf16.mxu0 %v377
    %489 = vmatpush1.bf16.msra.mxu0 %v376
    %490 = vmatprep.subr.bf16.mxu0 %v381
    %491 = vmatpush1.bf16.msra.mxu0 %v380
    %492 = vmatprep.subr.bf16.mxu0 %v385
    %493 = vmatpush1.bf16.msra.mxu0 %v384
    %494 = vmatprep.subr.bf16.mxu0 %v389
    %495 = vmatpush1.bf16.msra.mxu0 %v388
    %496 = vmatprep.subr.bf16.mxu0 %v393
    %497 = vmatpush1.bf16.msra.mxu0 %v392
    %498 = vmatprep.subr.bf16.mxu0 %v397
    %499 = vmatpush1.bf16.msra.mxu0 %v396
    %500 = vmatprep.subr.bf16.mxu0 %v401
    %501 = vmatpush1.bf16.msra.mxu0 %v400
    %502 = vmatprep.subr.bf16.mxu0 %v405
    %503 = vmatpush1.bf16.msra.mxu0 %v404
    %504 = vmatprep.mubr.bf16.mxu0 %v85
    %505 = vmatmul.mubr.bf16.gmra.mrb[0].mxu0 %v84
    %v506 = vpop.f32.mrb[0].mxu0
    %v507 = vadd.f32 0.0, %v506
    %v508 = vpop.f32.mrb[0].mxu0
    %v509 = vadd.f32 0.0, %v508
    %v510 = vpop.f32.mrb[0].mxu0
    %v511 = vadd.f32 0.0, %v510
    %v512 = vpop.f32.mrb[0].mxu0
    %v513 = vadd.f32 0.0, %v512
    %514 = vmatprep.mubr.bf16.mxu0 %v87
    %515 = vmatmul.mubr.bf16.gmra.mrb[0].mxu0 %v86
    %v516 = vpop.f32.mrb[0].mxu0
    %v517 = vadd.f32 0.0, %v516
    %v518 = vpop.f32.mrb[0].mxu0
    %v519 = vadd.f32 0.0, %v518
    %v520 = vpop.f32.mrb[0].mxu0
    %v521 = vadd.f32 0.0, %v520
    %v522 = vpop.f32.mrb[0].mxu0
    %v523 = vadd.f32 0.0, %v522
    %524 = vdwg.mxu0
    %525 = vmatprep.subr.bf16.mxu0 %v347
    %526 = vmatpush1.bf16.msra.mxu0 %v346
    %527 = vmatprep.subr.bf16.mxu0 %v351
    %528 = vmatpush1.bf16.msra.mxu0 %v350
    %529 = vmatprep.subr.bf16.mxu0 %v355
    %530 = vmatpush1.bf16.msra.mxu0 %v354
    %531 = vmatprep.subr.bf16.mxu0 %v359
    %532 = vmatpush1.bf16.msra.mxu0 %v358
    %533 = vmatprep.subr.bf16.mxu0 %v363
    %534 = vmatpush1.bf16.msra.mxu0 %v362
    %535 = vmatprep.subr.bf16.mxu0 %v367
    %536 = vmatpush1.bf16.msra.mxu0 %v366
    %537 = vmatprep.subr.bf16.mxu0 %v371
    %538 = vmatpush1.bf16.msra.mxu0 %v370
    %539 = vmatprep.subr.bf16.mxu0 %v375
    %540 = vmatpush1.bf16.msra.mxu0 %v374
    %541 = vmatprep.subr.bf16.mxu0 %v379
    %542 = vmatpush1.bf16.msra.mxu0 %v378
    %543 = vmatprep.subr.bf16.mxu0 %v383
    %544 = vmatpush1.bf16.msra.mxu0 %v382
    %545 = vmatprep.subr.bf16.mxu0 %v387
    %546 = vmatpush1.bf16.msra.mxu0 %v386
    %547 = vmatprep.subr.bf16.mxu0 %v391
    %548 = vmatpush1.bf16.msra.mxu0 %v390
    %549 = vmatprep.subr.bf16.mxu0 %v395
    %550 = vmatpush1.bf16.msra.mxu0 %v394
    %551 = vmatprep.subr.bf16.mxu0 %v399
    %552 = vmatpush1.bf16.msra.mxu0 %v398
    %553 = vmatprep.subr.bf16.mxu0 %v403
    %554 = vmatpush1.bf16.msra.mxu0 %v402
    %555 = vmatprep.subr.bf16.mxu0 %v407
    %556 = vmatpush1.bf16.msra.mxu0 %v406
    %557 = vmatprep.mubr.bf16.mxu0 %v85
    %558 = vmatmul.mubr.bf16.gmra.mrb[0].mxu0 %v84
    %v559 = vpop.f32.mrb[0].mxu0
    %v560 = vadd.f32 0.0, %v559
    %v561 = vpop.f32.mrb[0].mxu0
    %v562 = vadd.f32 0.0, %v561
    %v563 = vpop.f32.mrb[0].mxu0
    %v564 = vadd.f32 0.0, %v563
    %v565 = vpop.f32.mrb[0].mxu0
    %v566 = vadd.f32 0.0, %v565
    %567 = vmatprep.mubr.bf16.mxu0 %v87
    %568 = vmatmul.mubr.bf16.gmra.mrb[0].mxu0 %v86
    %v569 = vpop.f32.mrb[0].mxu0
    %v570 = vadd.f32 0.0, %v569
    %v571 = vpop.f32.mrb[0].mxu0
    %v572 = vadd.f32 0.0, %v571
    %v573 = vpop.f32.mrb[0].mxu0
    %v574 = vadd.f32 0.0, %v573
    %v575 = vpop.f32.mrb[0].mxu0
    %v576 = vadd.f32 0.0, %v575
    %577 = vdwg.mxu0
    %578 = vst [vmem:[#allocation2] sm:$0xff] %v507
    %579 = vst [vmem:[#allocation2 + $0x8] sm:$0xff] %v509
    %580 = vst [vmem:[#allocation2 + $0x10] sm:$0xff] %v560
    %581 = vst [vmem:[#allocation2 + $0x18] sm:$0xff] %v562
    %582 = vst [vmem:[#allocation2 + $0x20] sm:$0xff] %v511
    %583 = vst [vmem:[#allocation2 + $0x28] sm:$0xff] %v513
    %584 = vst [vmem:[#allocation2 + $0x30] sm:$0xff] %v564
    %585 = vst [vmem:[#allocation2 + $0x38] sm:$0xff] %v566
    %586 = vst [vmem:[#allocation2 + $0x40] sm:$0xff] %v517
    %587 = vst [vmem:[#allocation2 + $0x48] sm:$0xff] %v519
    %588 = vst [vmem:[#allocation2 + $0x50] sm:$0xff] %v570
    %589 = vst [vmem:[#allocation2 + $0x58] sm:$0xff] %v572
    %590 = vst [vmem:[#allocation2 + $0x60] sm:$0xff] %v521
    %591 = vst [vmem:[#allocation2 + $0x68] sm:$0xff] %v523
    %592 = vst [vmem:[#allocation2 + $0x70] sm:$0xff] %v574
    %593 = vst [vmem:[#allocation2 + $0x78] sm:$0xff] %v576
    // Predicated region
    $region14: #{chameleon_forward.21} parent=1 // pred_check
      _
    $region15: #{chameleon_forward.21} parent=1 // pred_check_branch
      %595 = sbr.rel (0) target = $region17
    $region16: #{chameleon_forward.21} parent=1 // pred_region
      %s597 = ssub.s32 2048, 2048
      %598 = vsyncadd [#allocation3], %s597
      %s599 = sshll.u32 [#allocation2], 4
      %s600 = int_to_ptr.vmem [resolvable:$true] %s599
      %605 = dma.vmem_to_hbm [thread:$0]  %s600, 2048, %s3, [#allocation3], 512, 512, 32
    $region17: #{chameleon_forward.21} parent=1 // pred_fallthru
      _
    // Predicated region
    $region18: #{chameleon_forward.21} parent=1 // pred_check
      _
    $region19: #{chameleon_forward.21} parent=1 // pred_check_branch
      %607 = sbr.rel (0) target = $region21
    $region20: #{chameleon_forward.21} parent=1 // pred_region
      %608 = dma.done [#allocation3], 2048
    $region21: #{chameleon_forward.21} parent=1 // pred_fallthru
      _
    %609 = vsyncpa [#allocation3], 1

</llo_original>
